<compile_context>
chip_gen: v7x
topology: tpu7x:2x2x1
jax: 0.10.0
libtpu: 0.0.40
codegen_flags: <defaults>
</compile_context>

<pallas_src>
import numpy as np
import jax
import jax.numpy as jnp
from jax.experimental import pallas as pl
from jax.experimental.pallas import tpu as pltpu

NUM_S_IN, NUM_V_IN = 8, 4
NUM_S_OUT, NUM_V_OUT = 8, 4
IN_DIM = NUM_S_IN + 3 * NUM_V_IN            # 20
OUT_DIM = NUM_S_OUT + 3 * NUM_V_OUT         # 20
SH_DIM = 4
N_EDGE_FEAT = 8
HIDDEN = 16
WEIGHT_NUMEL = 144
NSLOTS = 384                                 # 304 used slots, padded to 3*128 lanes
EDGE_WEIGHT = 1.0                            # scalar edge_weight path of the torch code
COUNT_EPS = 1.1920929e-07                    # torch.finfo(torch.float32).eps
BN_EPS = 1e-5                                # e3nn BatchNorm default

# e3nn path-normalization constants (irrep_normalization='component',
# path_normalization='element') fused with the Wigner-3j values for these paths.
C1 = (1.0 / 12.0) ** 0.5                     # 0e x 0e -> 0e
C2 = C1 / (3.0 ** 0.5)                       # 1o x 1o -> 0e   (w3j = delta / sqrt(3))
C3 = 0.5 / (3.0 ** 0.5)                      # 0e x 1o -> 1o
C4 = 0.5 / (3.0 ** 0.5)                      # 1o x 0e -> 1o


def _build_tp_constants():
    """Constant gather/summation matrices that turn the FC tensor product into
    (x @ Gx) * (sh @ Gsh) * (w @ Gw) @ S with per-path coefficients folded into S."""
    gx = np.zeros((IN_DIM, NSLOTS), np.float32)
    gsh = np.zeros((SH_DIM, NSLOTS), np.float32)
    gw = np.zeros((WEIGHT_NUMEL, NSLOTS), np.float32)
    smat = np.zeros((NSLOTS, OUT_DIM), np.float32)
    slot = 0
    for u in range(NUM_S_IN):                           # P1: 0e x 0e -> 0e
        for wo in range(NUM_S_OUT):
            gx[u, slot] = 1.0
            gsh[0, slot] = 1.0
            gw[u * NUM_S_OUT + wo, slot] = 1.0
            smat[slot, wo] = C1
            slot += 1
    for u in range(NUM_V_IN):                           # P2: 1o x 1o -> 0e
        for m in range(3):
            for wo in range(NUM_S_OUT):
                gx[NUM_S_IN + 3 * u + m, slot] = 1.0
                gsh[1 + m, slot] = 1.0
                gw[64 + u * NUM_S_OUT + wo, slot] = 1.0
                smat[slot, wo] = C2
                slot += 1
    for u in range(NUM_S_IN):                           # P3: 0e x 1o -> 1o
        for m in range(3):
            for wo in range(NUM_V_OUT):
                gx[u, slot] = 1.0
                gsh[1 + m, slot] = 1.0
                gw[96 + u * NUM_V_OUT + wo, slot] = 1.0
                smat[slot, NUM_S_OUT + 3 * wo + m] = C3
                slot += 1
    for u in range(NUM_V_IN):                           # P4: 1o x 0e -> 1o
        for m in range(3):
            for wo in range(NUM_V_OUT):
                gx[NUM_S_IN + 3 * u + m, slot] = 1.0
                gsh[0, slot] = 1.0
                gw[128 + u * NUM_V_OUT + wo, slot] = 1.0
                smat[slot, NUM_S_OUT + 3 * wo + m] = C4
                slot += 1
    assert slot == 304
    return gx, gsh, gw, smat


_GX, _GSH, _GW, _SMAT = _build_tp_constants()

# BatchNorm pooling constants: _PV averages the 3 m-components of each output vector,
# _EV expands a per-vector scale back to 12 lanes.
_PV = np.zeros((3 * NUM_V_OUT, NUM_V_OUT), np.float32)
_EV = np.zeros((NUM_V_OUT, 3 * NUM_V_OUT), np.float32)
for _u in range(NUM_V_OUT):
    for _m in range(3):
        _PV[3 * _u + _m, _u] = 1.0 / 3.0
        _EV[_u, 3 * _u + _m] = 1.0


def _scatter_kernel(src_ref, dst_ref, eattr_ref, esh_ref, node_ref,
                    w1_ref, b1_ref, w2g_ref, b2g_ref, gx_ref, gsh_ref, s_ref,
                    acc_ref):
    """One edge tile per grid step.  Gather -> edge MLP -> tensor product ->
    scatter-add (+ fused bincount) into the per-core (n_nodes, OUT_DIM+1) output
    block, which stays resident across the 'arbitrary' edge-tile axis."""
    i = pl.program_id(1)
    te = eattr_ref.shape[0]
    n_nodes = node_ref.shape[0]
    f32 = jnp.float32

    @pl.when(i == 0)
    def _init():
        acc_ref[...] = jnp.zeros_like(acc_ref)

    # ---- gather node_attr[edge_dst] via one-hot matmul (MXU) -----------------
    dst = dst_ref[...]                                                   # (TE,1) int32
    oh_dst = (jax.lax.broadcasted_iota(jnp.int32, (te, n_nodes), 1)
              == dst).astype(f32)                                        # (TE,N)
    x = jnp.dot(oh_dst, node_ref[...], preferred_element_type=f32)       # (TE,IN_DIM)

    # ---- edge MLP: Linear -> ReLU -> Dropout(p=0, identity) -> Linear --------
    # The second Linear has the slot-gather Gw and the scalar edge_weight folded
    # in (done in the wrapper), so it directly produces the 384-lane slot weights.
    h = jnp.dot(eattr_ref[...], w1_ref[...], preferred_element_type=f32) + b1_ref[...]
    h = jnp.maximum(h, 0.0)
    we = jnp.dot(h, w2g_ref[...], preferred_element_type=f32) + b2g_ref[...]  # (TE,NSLOTS)

    # ---- FullyConnectedTensorProduct, lane-dense slot form -------------------
    xe = jnp.dot(x, gx_ref[...], preferred_element_type=f32)             # (TE,NSLOTS)
    she = jnp.dot(esh_ref[...], gsh_ref[...], preferred_element_type=f32)  # (TE,NSLOTS)
    a = xe * she * we                                                    # 2 wide VPU muls
    tp_out = jnp.dot(a, s_ref[...], preferred_element_type=f32)          # (TE,OUT_DIM)

    # ---- scatter-add over edge_src (bincount fused as a 21st column) ---------
    tp21 = jnp.concatenate([tp_out, jnp.ones((te, 1), f32)], axis=1)     # (TE,21)
    src = src_ref[...]                                                   # (1,TE) int32
    oh_src_t = (jax.lax.broadcasted_iota(jnp.int32, (n_nodes, te), 0)
                == src).astype(f32)                                      # (N,TE)
    acc_ref[...] += jnp.dot(oh_src_t, tp21, preferred_element_type=f32)


def _finalize_kernel(part_ref, res_ref, bnw_ref, bnb_ref, pv_ref, ev_ref, out_ref):
    """Combine per-core partial sums, divide by edge counts (reduce='mean'),
    add the residual, and apply e3nn BatchNorm (training-mode batch stats) as a
    single full-width scale/shift."""
    f32 = jnp.float32
    acc = part_ref[0]
    for c in range(1, part_ref.shape[0]):
        acc = acc + part_ref[c]                                          # (N, 21)

    counts = jnp.maximum(acc[:, OUT_DIM:OUT_DIM + 1], COUNT_EPS)         # clamp(eps)
    out = acc[:, :OUT_DIM] / counts + res_ref[...]                       # mean + residual

    # scalars: standard per-channel batch norm (biased variance)
    s = out[:, :NUM_S_OUT]
    mean_s = jnp.mean(s, axis=0, keepdims=True)                          # (1,8)
    d = s - mean_s
    var_s = jnp.mean(d * d, axis=0, keepdims=True)                       # (1,8)
    scale_s = jax.lax.rsqrt(var_s + BN_EPS) * bnw_ref[:, :NUM_S_OUT]     # (1,8)
    shift_s = bnb_ref[...] - mean_s * scale_s                            # (1,8)

    # vectors: per-vector mean-square norm via constant pooling matmul
    v = out[:, NUM_S_OUT:]                                               # (N,12)
    msq = jnp.dot(v * v, pv_ref[...], preferred_element_type=f32)        # (N,4) mean over m
    n2 = jnp.mean(msq, axis=0, keepdims=True)                            # (1,4)
    scale_v = jax.lax.rsqrt(n2 + BN_EPS) * bnw_ref[:, NUM_S_OUT:]        # (1,4)
    scale_v12 = jnp.dot(scale_v, ev_ref[...], preferred_element_type=f32)  # (1,12)

    scale = jnp.concatenate([scale_s, scale_v12], axis=1)                # (1,20)
    shift = jnp.concatenate([shift_s, jnp.zeros((1, 3 * NUM_V_OUT), f32)], axis=1)
    out_ref[...] = (out * scale + shift).astype(out_ref.dtype)


def tensor_product_conv_layer(node_attr, edge_index, edge_attr, edge_sh, params,
                              edge_tile=512, core_splits=2):
    n_nodes = node_attr.shape[0]
    num_edges = edge_attr.shape[0]
    w1, b1, w2, b2, bn_w, bn_b = params

    gx = jnp.asarray(_GX)
    gsh = jnp.asarray(_GSH)
    gw = jnp.asarray(_GW)
    smat = jnp.asarray(_SMAT)
    pv = jnp.asarray(_PV)
    ev = jnp.asarray(_EV)

    # Fold the slot-gather Gw (exact column gather) and the scalar edge_weight into
    # the second MLP linear: (h @ W2 + b2) * ew == h @ (W2*ew) + b2*ew.
    w2g = jnp.dot(w2, gw) * EDGE_WEIGHT      # (HIDDEN, NSLOTS)
    b2g = jnp.dot(b2, gw) * EDGE_WEIGHT      # (1, NSLOTS)

    # Pad edges to a multiple of core_splits * edge_tile.  Padded edges get
    # src = n_nodes (matches no scatter row => contributes nothing to sums/counts).
    chunk = core_splits * edge_tile
    e_pad = ((num_edges + chunk - 1) // chunk) * chunk
    pad = e_pad - num_edges
    src = jnp.concatenate([edge_index[0].astype(jnp.int32),
                           jnp.full((pad,), n_nodes, jnp.int32)])
    dst = jnp.concatenate([edge_index[1].astype(jnp.int32),
                           jnp.zeros((pad,), jnp.int32)])
    ea = jnp.pad(edge_attr, ((0, pad), (0, 0)))
    esh = jnp.pad(edge_sh, ((0, pad), (0, 0)))
    src_row = src.reshape(1, e_pad)
    dst_col = dst.reshape(e_pad, 1)

    tps = e_pad // chunk                      # edge tiles per core split
    grid = (core_splits, tps)
    full2 = lambda c, i: (0, 0)

    partial = pl.pallas_call(
        _scatter_kernel,
        out_shape=jax.ShapeDtypeStruct((core_splits, n_nodes, OUT_DIM + 1), jnp.float32),
        grid_spec=pltpu.PrefetchScalarGridSpec(
            num_scalar_prefetch=0,
            grid=grid,
            in_specs=[
                pl.BlockSpec((1, edge_tile), lambda c, i: (0, c * tps + i)),           # edge_src
                pl.BlockSpec((edge_tile, 1), lambda c, i: (c * tps + i, 0)),           # edge_dst
                pl.BlockSpec((edge_tile, N_EDGE_FEAT), lambda c, i: (c * tps + i, 0)),  # edge_attr
                pl.BlockSpec((edge_tile, SH_DIM), lambda c, i: (c * tps + i, 0)),       # edge_sh
                pl.BlockSpec((n_nodes, IN_DIM), full2),                                # node_attr
                pl.BlockSpec((N_EDGE_FEAT, HIDDEN), full2),                            # fc W1
                pl.BlockSpec((1, HIDDEN), full2),                                      # fc b1
                pl.BlockSpec((HIDDEN, NSLOTS), full2),                                 # fc W2 @ Gw
                pl.BlockSpec((1, NSLOTS), full2),                                      # fc b2 @ Gw
                pl.BlockSpec((IN_DIM, NSLOTS), full2),                                 # Gx
                pl.BlockSpec((SH_DIM, NSLOTS), full2),                                 # Gsh
                pl.BlockSpec((NSLOTS, OUT_DIM), full2),                                # S
            ],
            out_specs=pl.BlockSpec((None, n_nodes, OUT_DIM + 1), lambda c, i: (c, 0, 0)),
        ),
        compiler_params=pltpu.CompilerParams(
            dimension_semantics=("parallel", "arbitrary"),
            vmem_limit_bytes=32 * 1024 * 1024),
    )(src_row, dst_col, ea, esh, node_attr, w1, b1, w2g, b2g, gx, gsh, smat)

    # residual: F.pad(node_attr, (0, out_dim - in_dim))
    res = jnp.pad(node_attr, ((0, 0), (0, OUT_DIM - IN_DIM)))

    full1 = lambda i: (0, 0)
    out = pl.pallas_call(
        _finalize_kernel,
        out_shape=jax.ShapeDtypeStruct((n_nodes, OUT_DIM), node_attr.dtype),
        grid_spec=pltpu.PrefetchScalarGridSpec(
            num_scalar_prefetch=0,
            grid=(1,),
            in_specs=[
                pl.BlockSpec((core_splits, n_nodes, OUT_DIM + 1), lambda i: (0, 0, 0)),
                pl.BlockSpec((n_nodes, OUT_DIM), full1),                               # residual
                pl.BlockSpec((1, NUM_S_OUT + NUM_V_OUT), full1),                       # BN weight
                pl.BlockSpec((1, NUM_S_OUT), full1),                                   # BN bias
                pl.BlockSpec((3 * NUM_V_OUT, NUM_V_OUT), full1),                       # pool
                pl.BlockSpec((NUM_V_OUT, 3 * NUM_V_OUT), full1),                       # expand
            ],
            out_specs=pl.BlockSpec((n_nodes, OUT_DIM), full1),
        ),
        compiler_params=pltpu.CompilerParams(dimension_semantics=("arbitrary",)),
    )(partial, res, bn_w, bn_b, pv, ev)
    return out


# ---------------------------- pure-JAX reference -----------------------------
def reference_forward(node_attr, edge_index, edge_attr, edge_sh, params):
    w1, b1, w2, b2, bn_w, bn_b = params
    n_nodes = node_attr.shape[0]
    e = edge_attr.shape[0]
    src, dst = edge_index[0], edge_index[1]
    h = jnp.maximum(edge_attr @ w1 + b1, 0.0)
    w = (h @ w2 + b2) * EDGE_WEIGHT
    x = node_attr[dst]
    x0 = x[:, :NUM_S_IN]
    x1 = x[:, NUM_S_IN:].reshape(e, NUM_V_IN, 3)
    sh0, sh1 = edge_sh[:, :1], edge_sh[:, 1:4]
    W1p = w[:, 0:64].reshape(e, 8, 8)
    W2p = w[:, 64:96].reshape(e, 4, 8)
    W3p = w[:, 96:128].reshape(e, 8, 4)
    W4p = w[:, 128:144].reshape(e, 4, 4)
    out_s = (C1 * jnp.einsum('eu,euw->ew', x0 * sh0, W1p)
             + C2 * jnp.einsum('eu,euw->ew', jnp.einsum('eum,em->eu', x1, sh1), W2p))
    out_v = (C3 * jnp.einsum('eu,euw,em->ewm', x0, W3p, sh1)
             + C4 * jnp.einsum('eum,euw->ewm', x1, W4p) * sh0[:, :, None])
    tp_out = jnp.concatenate([out_s, out_v.reshape(e, 3 * NUM_V_OUT)], axis=1)
    scattered = jnp.zeros((n_nodes, OUT_DIM), node_attr.dtype).at[src].add(tp_out)
    counts = jnp.zeros((n_nodes,), node_attr.dtype).at[src].add(1.0)
    out = scattered / jnp.maximum(counts, COUNT_EPS)[:, None]
    out = out + jnp.pad(node_attr, ((0, 0), (0, OUT_DIM - IN_DIM)))
    s = out[:, :NUM_S_OUT]
    mean = s.mean(axis=0, keepdims=True)
    s = s - mean
    var = (s * s).mean(axis=0, keepdims=True)
    s = s / jnp.sqrt(var + BN_EPS) * bn_w[:, :NUM_S_OUT] + bn_b
    v = out[:, NUM_S_OUT:].reshape(n_nodes, NUM_V_OUT, 3)
    n2 = (v * v).mean(axis=2).mean(axis=0)
    v = v / jnp.sqrt(n2 + BN_EPS)[None, :, None] * bn_w[0, NUM_S_OUT:][None, :, None]
    return jnp.concatenate([s, v.reshape(n_nodes, 3 * NUM_V_OUT)], axis=1)


if __name__ == "__main__":
    key = jax.random.PRNGKey(0)
    keys = jax.random.split(key, 8)
    n_nodes, num_edges = 24, 2000

    node_attr = jax.random.normal(keys[0], (n_nodes, IN_DIM), jnp.float32)
    edge_src = jax.random.randint(keys[1], (num_edges,), 0, n_nodes, jnp.int32)
    edge_dst = jax.random.randint(keys[2], (num_edges,), 0, n_nodes, jnp.int32)
    edge_index = jnp.stack([edge_src, edge_dst], axis=0)
    edge_attr = jax.random.normal(keys[3], (num_edges, N_EDGE_FEAT), jnp.float32)
    vec = jax.random.normal(keys[4], (num_edges, 3), jnp.float32)
    unit = vec / jnp.linalg.norm(vec, axis=1, keepdims=True)
    # spherical harmonics for lmax=1, 'component' normalization: [1, sqrt(3)*r_hat]
    edge_sh = jnp.concatenate([jnp.ones((num_edges, 1), jnp.float32),
                               jnp.sqrt(3.0) * unit], axis=1)

    def linear_init(k, fan_in, fan_out):
        bound = 1.0 / np.sqrt(fan_in)
        kw, kb = jax.random.split(k)
        wgt = jax.random.uniform(kw, (fan_in, fan_out), jnp.float32, -bound, bound)
        bias = jax.random.uniform(kb, (1, fan_out), jnp.float32, -bound, bound)
        return wgt, bias

    w1, b1 = linear_init(keys[5], N_EDGE_FEAT, HIDDEN)
    w2, b2 = linear_init(keys[6], HIDDEN, WEIGHT_NUMEL)
    bn_w = jnp.ones((1, NUM_S_OUT + NUM_V_OUT), jnp.float32)   # e3nn BatchNorm affine init
    bn_b = jnp.zeros((1, NUM_S_OUT), jnp.float32)
    # TODO(synk): e3nn BatchNorm running-stat buffer updates (in-place side effect) are
    # not represented; the kernel uses batch statistics (training-mode forward math).
    params = (w1, b1, w2, b2, bn_w, bn_b)

    out = tensor_product_conv_layer(node_attr, edge_index, edge_attr, edge_sh, params,
                                    edge_tile=512, core_splits=2)
    out = jax.block_until_ready(out)

    ref = reference_forward(node_attr, edge_index, edge_attr, edge_sh, params)
    np.testing.assert_allclose(np.asarray(out), np.asarray(ref), rtol=1e-4, atol=1e-4)
    print("KERNEL_OK")
</pallas_src>

<mosaic_0001>
module attributes {stable_mosaic.version = 11 : i64} {
  func.func @_scatter_kernel(%arg0: i32, %arg1: i32, %arg2: memref<1x512xi32, #tpu.memory_space<vmem>>, %arg3: memref<512x1xi32, #tpu.memory_space<vmem>>, %arg4: memref<512x8xf32, #tpu.memory_space<vmem>>, %arg5: memref<512x4xf32, #tpu.memory_space<vmem>>, %arg6: memref<24x20xf32, #tpu.memory_space<vmem>>, %arg7: memref<8x16xf32, #tpu.memory_space<vmem>>, %arg8: memref<1x16xf32, #tpu.memory_space<vmem>>, %arg9: memref<16x384xf32, #tpu.memory_space<vmem>>, %arg10: memref<1x384xf32, #tpu.memory_space<vmem>>, %arg11: memref<20x384xf32, #tpu.memory_space<vmem>>, %arg12: memref<4x384xf32, #tpu.memory_space<vmem>>, %arg13: memref<384x20xf32, #tpu.memory_space<vmem>>, %arg14: memref<1x24x21xf32, #tpu.memory_space<vmem>>) attributes {dimension_semantics = [#tpu.dimension_semantics<parallel>, #tpu.dimension_semantics<arbitrary>], iteration_bounds = array<i64: 2, 2>, scalar_prefetch = 0 : i64, scratch_operands = 0 : i64, tpu.core_type = #tpu.core_type<tc>, window_params = [{transform_indices = @transform_0, window_bounds = array<i64: 1, 512>}, {transform_indices = @transform_1, window_bounds = array<i64: 512, 1>}, {transform_indices = @transform_2, window_bounds = array<i64: 512, 8>}, {transform_indices = @transform_3, window_bounds = array<i64: 512, 4>}, {pipeline_mode = #tpu.pipeline_mode<synchronous>, transform_indices = @transform_4, window_bounds = array<i64: 24, 20>}, {pipeline_mode = #tpu.pipeline_mode<synchronous>, transform_indices = @transform_5, window_bounds = array<i64: 8, 16>}, {pipeline_mode = #tpu.pipeline_mode<synchronous>, transform_indices = @transform_6, window_bounds = array<i64: 1, 16>}, {pipeline_mode = #tpu.pipeline_mode<synchronous>, transform_indices = @transform_7, window_bounds = array<i64: 16, 384>}, {pipeline_mode = #tpu.pipeline_mode<synchronous>, transform_indices = @transform_8, window_bounds = array<i64: 1, 384>}, {pipeline_mode = #tpu.pipeline_mode<synchronous>, transform_indices = @transform_9, window_bounds = array<i64: 20, 384>}, {pipeline_mode = #tpu.pipeline_mode<synchronous>, transform_indices = @transform_10, window_bounds = array<i64: 4, 384>}, {pipeline_mode = #tpu.pipeline_mode<synchronous>, transform_indices = @transform_11, window_bounds = array<i64: 384, 20>}, {transform_indices = @transform_12, window_bounds = array<i64: 1, 24, 21>}]} {
    %c0_i32 = arith.constant 0 : i32
    %0 = arith.cmpi eq, %arg1, %c0_i32 : i32
    %1 = arith.extui %0 : i1 to i32
    %c0_i32_0 = arith.constant 0 : i32
    %2 = arith.cmpi ne, %1, %c0_i32_0 : i32
    scf.if %2 {
      %cst_38 = arith.constant 0.000000e+00 : f32
      %48 = vector.broadcast %cst_38 : f32 to vector<24x21xf32>
      %c0_39 = arith.constant 0 : index
      %c0_40 = arith.constant 0 : index
      %c0_41 = arith.constant 0 : index
      %49 = vector.load %arg14[%c0_39, %c0_40, %c0_41] : memref<1x24x21xf32, #tpu.memory_space<vmem>>, vector<1x24x21xf32>
      %50 = vector.shape_cast %49 : vector<1x24x21xf32> to vector<24x21xf32>
      %51 = vector.shape_cast %48 : vector<24x21xf32> to vector<1x24x21xf32>
      tpu.vector_store %arg14[%c0_39, %c0_40, %c0_41], %51 {strides = array<i32>} : memref<1x24x21xf32, #tpu.memory_space<vmem>>, vector<1x24x21xf32>,
    } else {
    }
    %c0 = arith.constant 0 : index
    %c0_1 = arith.constant 0 : index
    %3 = vector.load %arg3[%c0, %c0_1] : memref<512x1xi32, #tpu.memory_space<vmem>>, vector<512x1xi32>
    %4 = tpu.iota {dimensions = array<i32: 1>} : vector<512x24xi32>
    %5 = vector.broadcast %3 : vector<512x1xi32> to vector<512x24xi32>
    %6 = arith.cmpi eq, %4, %5 : vector<512x24xi32>
    %7 = arith.extui %6 : vector<512x24xi1> to vector<512x24xi32>
    %8 = arith.sitofp %7 : vector<512x24xi32> to vector<512x24xf32>
    %c0_2 = arith.constant 0 : index
    %c0_3 = arith.constant 0 : index
    %9 = vector.load %arg6[%c0_2, %c0_3] : memref<24x20xf32, #tpu.memory_space<vmem>>, vector<24x20xf32>
    %cst = arith.constant dense<0.000000e+00> : vector<512x20xf32>
    %10 = tpu.matmul %8, %9, %cst {dimension_numbers = #tpu.dot_dimension_numbers<[1], [0], [0], [1], [0, 0, 1, 1], [], []>} : vector<512x24xf32>, vector<24x20xf32>, vector<512x20xf32> -> vector<512x20xf32>
    %c0_4 = arith.constant 0 : index
    %c0_5 = arith.constant 0 : index
    %11 = vector.load %arg4[%c0_4, %c0_5] : memref<512x8xf32, #tpu.memory_space<vmem>>, vector<512x8xf32>
    %c0_6 = arith.constant 0 : index
    %c0_7 = arith.constant 0 : index
    %12 = vector.load %arg7[%c0_6, %c0_7] : memref<8x16xf32, #tpu.memory_space<vmem>>, vector<8x16xf32>
    %cst_8 = arith.constant dense<0.000000e+00> : vector<512x16xf32>
    %13 = tpu.matmul %11, %12, %cst_8 {dimension_numbers = #tpu.dot_dimension_numbers<[1], [0], [0], [1], [0, 0, 1, 1], [], []>} : vector<512x8xf32>, vector<8x16xf32>, vector<512x16xf32> -> vector<512x16xf32>
    %c0_9 = arith.constant 0 : index
    %c0_10 = arith.constant 0 : index
    %14 = vector.load %arg8[%c0_9, %c0_10] : memref<1x16xf32, #tpu.memory_space<vmem>>, vector<1x16xf32>
    %15 = vector.broadcast %14 : vector<1x16xf32> to vector<512x16xf32>
    %16 = arith.addf %13, %15 : vector<512x16xf32>
    %cst_11 = arith.constant 0.000000e+00 : f32
    %17 = vector.broadcast %cst_11 : f32 to vector<512x16xf32>
    %18 = arith.maximumf %16, %17 : vector<512x16xf32>
    %c0_12 = arith.constant 0 : index
    %c0_13 = arith.constant 0 : index
    %19 = vector.load %arg9[%c0_12, %c0_13] : memref<16x384xf32, #tpu.memory_space<vmem>>, vector<16x384xf32>
    %cst_14 = arith.constant dense<0.000000e+00> : vector<512x384xf32>
    %20 = tpu.matmul %18, %19, %cst_14 {dimension_numbers = #tpu.dot_dimension_numbers<[1], [0], [0], [1], [0, 0, 1, 1], [], []>} : vector<512x16xf32>, vector<16x384xf32>, vector<512x384xf32> -> vector<512x384xf32>
    %c0_15 = arith.constant 0 : index
    %c0_16 = arith.constant 0 : index
    %21 = vector.load %arg10[%c0_15, %c0_16] : memref<1x384xf32, #tpu.memory_space<vmem>>, vector<1x384xf32>
    %22 = vector.broadcast %21 : vector<1x384xf32> to vector<512x384xf32>
    %23 = arith.addf %20, %22 : vector<512x384xf32>
    %c0_17 = arith.constant 0 : index
    %c0_18 = arith.constant 0 : index
    %24 = vector.load %arg11[%c0_17, %c0_18] : memref<20x384xf32, #tpu.memory_space<vmem>>, vector<20x384xf32>
    %cst_19 = arith.constant dense<0.000000e+00> : vector<512x384xf32>
    %25 = tpu.matmul %10, %24, %cst_19 {dimension_numbers = #tpu.dot_dimension_numbers<[1], [0], [0], [1], [0, 0, 1, 1], [], []>} : vector<512x20xf32>, vector<20x384xf32>, vector<512x384xf32> -> vector<512x384xf32>
    %c0_20 = arith.constant 0 : index
    %c0_21 = arith.constant 0 : index
    %26 = vector.load %arg5[%c0_20, %c0_21] : memref<512x4xf32, #tpu.memory_space<vmem>>, vector<512x4xf32>
    %c0_22 = arith.constant 0 : index
    %c0_23 = arith.constant 0 : index
    %27 = vector.load %arg12[%c0_22, %c0_23] : memref<4x384xf32, #tpu.memory_space<vmem>>, vector<4x384xf32>
    %cst_24 = arith.constant dense<0.000000e+00> : vector<512x384xf32>
    %28 = tpu.matmul %26, %27, %cst_24 {dimension_numbers = #tpu.dot_dimension_numbers<[1], [0], [0], [1], [0, 0, 1, 1], [], []>} : vector<512x4xf32>, vector<4x384xf32>, vector<512x384xf32> -> vector<512x384xf32>
    %29 = arith.mulf %25, %28 : vector<512x384xf32>
    %30 = arith.mulf %29, %23 : vector<512x384xf32>
    %c0_25 = arith.constant 0 : index
    %c0_26 = arith.constant 0 : index
    %31 = vector.load %arg13[%c0_25, %c0_26] : memref<384x20xf32, #tpu.memory_space<vmem>>, vector<384x20xf32>
    %cst_27 = arith.constant dense<0.000000e+00> : vector<512x20xf32>
    %32 = tpu.matmul %30, %31, %cst_27 {dimension_numbers = #tpu.dot_dimension_numbers<[1], [0], [0], [1], [0, 0, 1, 1], [], []>} : vector<512x384xf32>, vector<384x20xf32>, vector<512x20xf32> -> vector<512x20xf32>
    %cst_28 = arith.constant 1.000000e+00 : f32
    %33 = vector.broadcast %cst_28 : f32 to vector<512x1xf32>
    %34 = tpu.concatenate %32, %33 in 1 : vector<512x20xf32>, vector<512x1xf32> -> vector<512x21xf32>
    %c0_29 = arith.constant 0 : index
    %c0_30 = arith.constant 0 : index
    %35 = vector.load %arg2[%c0_29, %c0_30] : memref<1x512xi32, #tpu.memory_space<vmem>>, vector<1x512xi32>
    %36 = tpu.iota {dimensions = array<i32: 0>} : vector<24x512xi32>
    %37 = vector.broadcast %35 : vector<1x512xi32> to vector<24x512xi32>
    %38 = arith.cmpi eq, %36, %37 : vector<24x512xi32>
    %39 = arith.extui %38 : vector<24x512xi1> to vector<24x512xi32>
    %40 = arith.sitofp %39 : vector<24x512xi32> to vector<24x512xf32>
    %c0_31 = arith.constant 0 : index
    %c0_32 = arith.constant 0 : index
    %c0_33 = arith.constant 0 : index
    %41 = vector.load %arg14[%c0_31, %c0_32, %c0_33] : memref<1x24x21xf32, #tpu.memory_space<vmem>>, vector<1x24x21xf32>
    %42 = vector.shape_cast %41 : vector<1x24x21xf32> to vector<24x21xf32>
    %cst_34 = arith.constant dense<0.000000e+00> : vector<24x21xf32>
    %43 = tpu.matmul %40, %34, %cst_34 {dimension_numbers = #tpu.dot_dimension_numbers<[1], [0], [0], [1], [0, 0, 1, 1], [], []>} : vector<24x512xf32>, vector<512x21xf32>, vector<24x21xf32> -> vector<24x21xf32>
    %44 = arith.addf %42, %43 : vector<24x21xf32>
    %c0_35 = arith.constant 0 : index
    %c0_36 = arith.constant 0 : index
    %c0_37 = arith.constant 0 : index
    %45 = vector.load %arg14[%c0_35, %c0_36, %c0_37] : memref<1x24x21xf32, #tpu.memory_space<vmem>>, vector<1x24x21xf32>
    %46 = vector.shape_cast %45 : vector<1x24x21xf32> to vector<24x21xf32>
    %47 = vector.shape_cast %44 : vector<24x21xf32> to vector<1x24x21xf32>
    tpu.vector_store %arg14[%c0_35, %c0_36, %c0_37], %47 {strides = array<i32>} : memref<1x24x21xf32, #tpu.memory_space<vmem>>, vector<1x24x21xf32>,
    return
  }
  func.func @transform_0(%arg0: i32, %arg1: i32) -> (i32, i32) {
    %c2_i32 = arith.constant 2 : i32
    %0 = arith.muli %arg0, %c2_i32 : i32
    %1 = arith.addi %0, %arg1 : i32
    %c0_i32 = arith.constant 0 : i32
    %c0_i32_0 = arith.constant 0 : i32
    return %c0_i32, %1 : i32, i32
  }
  func.func @transform_1(%arg0: i32, %arg1: i32) -> (i32, i32) {
    %c2_i32 = arith.constant 2 : i32
    %0 = arith.muli %arg0, %c2_i32 : i32
    %1 = arith.addi %0, %arg1 : i32
    %c0_i32 = arith.constant 0 : i32
    %c0_i32_0 = arith.constant 0 : i32
    return %1, %c0_i32 : i32, i32
  }
  func.func @transform_2(%arg0: i32, %arg1: i32) -> (i32, i32) {
    %c2_i32 = arith.constant 2 : i32
    %0 = arith.muli %arg0, %c2_i32 : i32
    %1 = arith.addi %0, %arg1 : i32
    %c0_i32 = arith.constant 0 : i32
    %c0_i32_0 = arith.constant 0 : i32
    return %1, %c0_i32 : i32, i32
  }
  func.func @transform_3(%arg0: i32, %arg1: i32) -> (i32, i32) {
    %c2_i32 = arith.constant 2 : i32
    %0 = arith.muli %arg0, %c2_i32 : i32
    %1 = arith.addi %0, %arg1 : i32
    %c0_i32 = arith.constant 0 : i32
    %c0_i32_0 = arith.constant 0 : i32
    return %1, %c0_i32 : i32, i32
  }
  func.func @transform_4(%arg0: i32, %arg1: i32) -> (i32, i32) {
    %c0_i32 = arith.constant 0 : i32
    %c0_i32_0 = arith.constant 0 : i32
    %c0_i32_1 = arith.constant 0 : i32
    return %c0_i32, %c0_i32_0 : i32, i32
  }
  func.func @transform_5(%arg0: i32, %arg1: i32) -> (i32, i32) {
    %c0_i32 = arith.constant 0 : i32
    %c0_i32_0 = arith.constant 0 : i32
    %c0_i32_1 = arith.constant 0 : i32
    return %c0_i32, %c0_i32_0 : i32, i32
  }
  func.func @transform_6(%arg0: i32, %arg1: i32) -> (i32, i32) {
    %c0_i32 = arith.constant 0 : i32
    %c0_i32_0 = arith.constant 0 : i32
    %c0_i32_1 = arith.constant 0 : i32
    return %c0_i32, %c0_i32_0 : i32, i32
  }
  func.func @transform_7(%arg0: i32, %arg1: i32) -> (i32, i32) {
    %c0_i32 = arith.constant 0 : i32
    %c0_i32_0 = arith.constant 0 : i32
    %c0_i32_1 = arith.constant 0 : i32
    return %c0_i32, %c0_i32_0 : i32, i32
  }
  func.func @transform_8(%arg0: i32, %arg1: i32) -> (i32, i32) {
    %c0_i32 = arith.constant 0 : i32
    %c0_i32_0 = arith.constant 0 : i32
    %c0_i32_1 = arith.constant 0 : i32
    return %c0_i32, %c0_i32_0 : i32, i32
  }
  func.func @transform_9(%arg0: i32, %arg1: i32) -> (i32, i32) {
    %c0_i32 = arith.constant 0 : i32
    %c0_i32_0 = arith.constant 0 : i32
    %c0_i32_1 = arith.constant 0 : i32
    return %c0_i32, %c0_i32_0 : i32, i32
  }
  func.func @transform_10(%arg0: i32, %arg1: i32) -> (i32, i32) {
    %c0_i32 = arith.constant 0 : i32
    %c0_i32_0 = arith.constant 0 : i32
    %c0_i32_1 = arith.constant 0 : i32
    return %c0_i32, %c0_i32_0 : i32, i32
  }
  func.func @transform_11(%arg0: i32, %arg1: i32) -> (i32, i32) {
    %c0_i32 = arith.constant 0 : i32
    %c0_i32_0 = arith.constant 0 : i32
    %c0_i32_1 = arith.constant 0 : i32
    return %c0_i32, %c0_i32_0 : i32, i32
  }
  func.func @transform_12(%arg0: i32, %arg1: i32) -> (i32, i32, i32) {
    %c0_i32 = arith.constant 0 : i32
    %c0_i32_0 = arith.constant 0 : i32
    %c0_i32_1 = arith.constant 0 : i32
    return %arg0, %c0_i32, %c0_i32_0 : i32, i32, i32
  }
}

</mosaic_0001>

<llo_original>
// kernel: tpu_custom_call.1
$region0: #{tpu_custom_call.1}
  #allocation0 [shape = 'u32[]', space=smem, size = 0x4, offset = 0x4, fixed_abs, tag = 'smem constant byte address 0x4 - core index']
  #allocation1 [shape = 'u32[144,128]{1,0:T(1,128)}', space=vmem, size = 0x12000, scoped, tag = 'internal scratch']
  %s0 = inlined_call_operand.vmem [shape: s32[1,2048], index: 0, kind: input, shape index: {}]
  %s1 = inlined_call_operand.vmem [shape: s32[2048,1], index: 1, kind: input, shape index: {}]
  %s2 = inlined_call_operand.vmem [shape: f32[2048,8], index: 2, kind: input, shape index: {}]
  %s3 = inlined_call_operand.vmem [shape: f32[2048,4], index: 3, kind: input, shape index: {}]
  %s4 = inlined_call_operand.vmem [shape: f32[24,20], index: 4, kind: input, shape index: {}]
  %s5 = inlined_call_operand.vmem [shape: f32[8,16], index: 5, kind: input, shape index: {}]
  %s6 = inlined_call_operand.vmem [shape: f32[1,16], index: 6, kind: input, shape index: {}]
  %s7 = inlined_call_operand.vmem [shape: f32[16,384], index: 7, kind: input, shape index: {}]
  %s8 = inlined_call_operand.vmem [shape: f32[1,384], index: 8, kind: input, shape index: {}]
  %s9 = inlined_call_operand.vmem [shape: f32[20,384], index: 9, kind: input, shape index: {}]
  %s10 = inlined_call_operand.vmem [shape: f32[4,384], index: 10, kind: input, shape index: {}]
  %s11 = inlined_call_operand.vmem [shape: f32[384,20], index: 11, kind: input, shape index: {}]
  %s12 = inlined_call_operand.vmem [shape: f32[2,24,21], index: 12, kind: output, shape index: {}]
  %s13 = sld [smem:[#allocation0]]
  $region85: #{tpu_custom_call.1} parent=0
    _
  %s15 = ssub.s32 1, %s13
  %s16 = scalar_select 0, %s15, %s13
  loop: start=0, step=1, limit=6
  $region2: #{tpu_custom_call.1} parent=0 // loop_pre_header
    _
  $region3: #{tpu_custom_call.1} parent=0 // loop_header
    %s18 = sphi 0, %s22
    %p19 = scmp.ge.s32.totalorder %s18, 6
    %s25 = sphi 0, %s37
    %s26 = sphi 0, %s33
    %s27 = sphi 0, %s25
    %s28 = sphi 0, %s26
    %s29 = sphi 0, %s27
    %s30 = sphi 0, %s28
    %s44 = sphi 0, %s46
    %s47 = sphi 0, %s44
    %s48 = sphi 0, %s47
    %s64 = sphi 0, %s48
    %s74 = sphi 0, %s76
    %s77 = sphi 0, %s74
    %s78 = sphi 0, %s77
    %s94 = sphi 0, %s78
    %s104 = sphi 0, %s106
    %s107 = sphi 0, %s104
    %s108 = sphi 0, %s107
    %s124 = sphi 0, %s108
    %s134 = sphi 0, %s136
    %s137 = sphi 0, %s134
    %s138 = sphi 0, %s137
    %s154 = sphi 0, %s138
    %s158 = sphi 0, %s158
    %s160 = sphi 0, %s158
    %s161 = sphi 0, %s160
    %s175 = sphi 0, %s161
    %s179 = sphi 0, %s179
    %s181 = sphi 0, %s179
    %s182 = sphi 0, %s181
    %s196 = sphi 0, %s182
    %s200 = sphi 0, %s200
    %s202 = sphi 0, %s200
    %s203 = sphi 0, %s202
    %s217 = sphi 0, %s203
    %s221 = sphi 0, %s221
    %s223 = sphi 0, %s221
    %s224 = sphi 0, %s223
    %s238 = sphi 0, %s224
    %s242 = sphi 0, %s242
    %s244 = sphi 0, %s242
    %s245 = sphi 0, %s244
    %s259 = sphi 0, %s245
    %s263 = sphi 0, %s263
    %s265 = sphi 0, %s263
    %s266 = sphi 0, %s265
    %s280 = sphi 0, %s266
    %s284 = sphi 0, %s284
    %s286 = sphi 0, %s284
    %s287 = sphi 0, %s286
    %s301 = sphi 0, %s287
    %s305 = sphi 0, %s305
    %s307 = sphi 0, %s305
    %s308 = sphi 0, %s307
    %s322 = sphi 0, %s308
    %s328 = sphi 0, %s330
    %s331 = sphi 0, %s328
    %s332 = sphi 0, %s331
    %s348 = sphi 0, %s332
  $region4: #{tpu_custom_call.1} parent=0 // loop_header_branch
    %21 = sbr.rel (%p19) target = $region8
  $region5: #{tpu_custom_call.1} parent=0 // loop_body
    %s23 = ssub.s32 %s18, 1
    %s24 = ssub.s32 %s18, 2
    %s31 = sadd.s32 1, %s26
    %p32 = scmp.ge.s32.totalorder %s31, 2
    %s33 = scalar_select %p32, 0, %s31
    %s34 = sadd.s32 1, %s25
    %s35 = scalar_select %p32, %s34, %s25
    %p36 = scmp.ge.s32.totalorder %s35, 2
    %s37 = scalar_select %p36, 0, %s35
    %s38 = smul.u32 %s25, 2
    %s39 = sadd.s32 %s38, %s26
    %s40 = smul.u32 %s37, 2
    %s41 = sadd.s32 %s40, %s33
    %s42 = ssub.s32 %s39, %s41
    %p43 = scmp.eq.s32.totalorder %s42, 0
    %s45 = sadd.s32 %s44, 1
    %s46 = scalar_select %p43, %s44, %s45
    %p49 = pneg %p43
    %p50 = scmp.eq.s32.totalorder %s18, 3
    %p51 = por %p49, %p50
    %p52 = scmp.ne.s32.totalorder %s44, %s47
    %p53 = scmp.eq.s32.totalorder %s18, 0
    %p54 = por %p52, %p53
    %p55 = scmp.ne.s32.totalorder %s44, %s47
    %p56 = scmp.eq.s32.totalorder %s23, 3
    %p57 = por %p55, %p56
    %p58 = scmp.ne.s32.totalorder %s47, %s48
    %p59 = scmp.eq.s32.totalorder %s23, 0
    %p60 = por %p58, %p59
    %p61 = scmp.ne.s32.totalorder %s47, %s48
    %p62 = scmp.eq.s32.totalorder %s24, 3
    %p63 = por %p61, %p62
    %p65 = scmp.ne.s32.totalorder %s48, %s64
    %p66 = scmp.eq.s32.totalorder %s24, 0
    %p67 = por %p65, %p66
    %s68 = smul.u32 %s25, 2
    %s69 = sadd.s32 %s68, %s26
    %s70 = smul.u32 %s37, 2
    %s71 = sadd.s32 %s70, %s33
    %s72 = ssub.s32 %s69, %s71
    %p73 = scmp.eq.s32.totalorder %s72, 0
    %s75 = sadd.s32 %s74, 1
    %s76 = scalar_select %p73, %s74, %s75
    %p79 = pneg %p73
    %p80 = scmp.eq.s32.totalorder %s18, 3
    %p81 = por %p79, %p80
    %p82 = scmp.ne.s32.totalorder %s74, %s77
    %p83 = scmp.eq.s32.totalorder %s18, 0
    %p84 = por %p82, %p83
    %p85 = scmp.ne.s32.totalorder %s74, %s77
    %p86 = scmp.eq.s32.totalorder %s23, 3
    %p87 = por %p85, %p86
    %p88 = scmp.ne.s32.totalorder %s77, %s78
    %p89 = scmp.eq.s32.totalorder %s23, 0
    %p90 = por %p88, %p89
    %p91 = scmp.ne.s32.totalorder %s77, %s78
    %p92 = scmp.eq.s32.totalorder %s24, 3
    %p93 = por %p91, %p92
    %p95 = scmp.ne.s32.totalorder %s78, %s94
    %p96 = scmp.eq.s32.totalorder %s24, 0
    %p97 = por %p95, %p96
    %s98 = smul.u32 %s25, 2
    %s99 = sadd.s32 %s98, %s26
    %s100 = smul.u32 %s37, 2
    %s101 = sadd.s32 %s100, %s33
    %s102 = ssub.s32 %s99, %s101
    %p103 = scmp.eq.s32.totalorder %s102, 0
    %s105 = sadd.s32 %s104, 1
    %s106 = scalar_select %p103, %s104, %s105
    %p109 = pneg %p103
    %p110 = scmp.eq.s32.totalorder %s18, 3
    %p111 = por %p109, %p110
    %p112 = scmp.ne.s32.totalorder %s104, %s107
    %p113 = scmp.eq.s32.totalorder %s18, 0
    %p114 = por %p112, %p113
    %p115 = scmp.ne.s32.totalorder %s104, %s107
    %p116 = scmp.eq.s32.totalorder %s23, 3
    %p117 = por %p115, %p116
    %p118 = scmp.ne.s32.totalorder %s107, %s108
    %p119 = scmp.eq.s32.totalorder %s23, 0
    %p120 = por %p118, %p119
    %p121 = scmp.ne.s32.totalorder %s107, %s108
    %p122 = scmp.eq.s32.totalorder %s24, 3
    %p123 = por %p121, %p122
    %p125 = scmp.ne.s32.totalorder %s108, %s124
    %p126 = scmp.eq.s32.totalorder %s24, 0
    %p127 = por %p125, %p126
    %s128 = smul.u32 %s25, 2
    %s129 = sadd.s32 %s128, %s26
    %s130 = smul.u32 %s37, 2
    %s131 = sadd.s32 %s130, %s33
    %s132 = ssub.s32 %s129, %s131
    %p133 = scmp.eq.s32.totalorder %s132, 0
    %s135 = sadd.s32 %s134, 1
    %s136 = scalar_select %p133, %s134, %s135
    %p139 = pneg %p133
    %p140 = scmp.eq.s32.totalorder %s18, 3
    %p141 = por %p139, %p140
    %p142 = scmp.ne.s32.totalorder %s134, %s137
    %p143 = scmp.eq.s32.totalorder %s18, 0
    %p144 = por %p142, %p143
    %p145 = scmp.ne.s32.totalorder %s134, %s137
    %p146 = scmp.eq.s32.totalorder %s23, 3
    %p147 = por %p145, %p146
    %p148 = scmp.ne.s32.totalorder %s137, %s138
    %p149 = scmp.eq.s32.totalorder %s23, 0
    %p150 = por %p148, %p149
    %p151 = scmp.ne.s32.totalorder %s137, %s138
    %p152 = scmp.eq.s32.totalorder %s24, 3
    %p153 = por %p151, %p152
    %p155 = scmp.ne.s32.totalorder %s138, %s154
    %p156 = scmp.eq.s32.totalorder %s24, 0
    %p157 = por %p155, %p156
    %s159 = sadd.s32 %s158, 1
    %p162 = scmp.eq.s32.totalorder %s18, 3
    %p163 = scmp.ne.s32.totalorder %s158, %s160
    %p164 = scmp.eq.s32.totalorder %s18, 0
    %p165 = por %p163, %p164
    %p166 = scmp.ne.s32.totalorder %s158, %s160
    %p167 = scmp.eq.s32.totalorder %s23, 3
    %p168 = por %p166, %p167
    %p169 = scmp.ne.s32.totalorder %s160, %s161
    %p170 = scmp.eq.s32.totalorder %s23, 0
    %p171 = por %p169, %p170
    %p172 = scmp.ne.s32.totalorder %s160, %s161
    %p173 = scmp.eq.s32.totalorder %s24, 3
    %p174 = por %p172, %p173
    %p176 = scmp.ne.s32.totalorder %s161, %s175
    %p177 = scmp.eq.s32.totalorder %s24, 0
    %p178 = por %p176, %p177
    %s180 = sadd.s32 %s179, 1
    %p183 = scmp.eq.s32.totalorder %s18, 3
    %p184 = scmp.ne.s32.totalorder %s179, %s181
    %p185 = scmp.eq.s32.totalorder %s18, 0
    %p186 = por %p184, %p185
    %p187 = scmp.ne.s32.totalorder %s179, %s181
    %p188 = scmp.eq.s32.totalorder %s23, 3
    %p189 = por %p187, %p188
    %p190 = scmp.ne.s32.totalorder %s181, %s182
    %p191 = scmp.eq.s32.totalorder %s23, 0
    %p192 = por %p190, %p191
    %p193 = scmp.ne.s32.totalorder %s181, %s182
    %p194 = scmp.eq.s32.totalorder %s24, 3
    %p195 = por %p193, %p194
    %p197 = scmp.ne.s32.totalorder %s182, %s196
    %p198 = scmp.eq.s32.totalorder %s24, 0
    %p199 = por %p197, %p198
    %s201 = sadd.s32 %s200, 1
    %p204 = scmp.eq.s32.totalorder %s18, 3
    %p205 = scmp.ne.s32.totalorder %s200, %s202
    %p206 = scmp.eq.s32.totalorder %s18, 0
    %p207 = por %p205, %p206
    %p208 = scmp.ne.s32.totalorder %s200, %s202
    %p209 = scmp.eq.s32.totalorder %s23, 3
    %p210 = por %p208, %p209
    %p211 = scmp.ne.s32.totalorder %s202, %s203
    %p212 = scmp.eq.s32.totalorder %s23, 0
    %p213 = por %p211, %p212
    %p214 = scmp.ne.s32.totalorder %s202, %s203
    %p215 = scmp.eq.s32.totalorder %s24, 3
    %p216 = por %p214, %p215
    %p218 = scmp.ne.s32.totalorder %s203, %s217
    %p219 = scmp.eq.s32.totalorder %s24, 0
    %p220 = por %p218, %p219
    %s222 = sadd.s32 %s221, 1
    %p225 = scmp.eq.s32.totalorder %s18, 3
    %p226 = scmp.ne.s32.totalorder %s221, %s223
    %p227 = scmp.eq.s32.totalorder %s18, 0
    %p228 = por %p226, %p227
    %p229 = scmp.ne.s32.totalorder %s221, %s223
    %p230 = scmp.eq.s32.totalorder %s23, 3
    %p231 = por %p229, %p230
    %p232 = scmp.ne.s32.totalorder %s223, %s224
    %p233 = scmp.eq.s32.totalorder %s23, 0
    %p234 = por %p232, %p233
    %p235 = scmp.ne.s32.totalorder %s223, %s224
    %p236 = scmp.eq.s32.totalorder %s24, 3
    %p237 = por %p235, %p236
    %p239 = scmp.ne.s32.totalorder %s224, %s238
    %p240 = scmp.eq.s32.totalorder %s24, 0
    %p241 = por %p239, %p240
    %s243 = sadd.s32 %s242, 1
    %p246 = scmp.eq.s32.totalorder %s18, 3
    %p247 = scmp.ne.s32.totalorder %s242, %s244
    %p248 = scmp.eq.s32.totalorder %s18, 0
    %p249 = por %p247, %p248
    %p250 = scmp.ne.s32.totalorder %s242, %s244
    %p251 = scmp.eq.s32.totalorder %s23, 3
    %p252 = por %p250, %p251
    %p253 = scmp.ne.s32.totalorder %s244, %s245
    %p254 = scmp.eq.s32.totalorder %s23, 0
    %p255 = por %p253, %p254
    %p256 = scmp.ne.s32.totalorder %s244, %s245
    %p257 = scmp.eq.s32.totalorder %s24, 3
    %p258 = por %p256, %p257
    %p260 = scmp.ne.s32.totalorder %s245, %s259
    %p261 = scmp.eq.s32.totalorder %s24, 0
    %p262 = por %p260, %p261
    %s264 = sadd.s32 %s263, 1
    %p267 = scmp.eq.s32.totalorder %s18, 3
    %p268 = scmp.ne.s32.totalorder %s263, %s265
    %p269 = scmp.eq.s32.totalorder %s18, 0
    %p270 = por %p268, %p269
    %p271 = scmp.ne.s32.totalorder %s263, %s265
    %p272 = scmp.eq.s32.totalorder %s23, 3
    %p273 = por %p271, %p272
    %p274 = scmp.ne.s32.totalorder %s265, %s266
    %p275 = scmp.eq.s32.totalorder %s23, 0
    %p276 = por %p274, %p275
    %p277 = scmp.ne.s32.totalorder %s265, %s266
    %p278 = scmp.eq.s32.totalorder %s24, 3
    %p279 = por %p277, %p278
    %p281 = scmp.ne.s32.totalorder %s266, %s280
    %p282 = scmp.eq.s32.totalorder %s24, 0
    %p283 = por %p281, %p282
    %s285 = sadd.s32 %s284, 1
    %p288 = scmp.eq.s32.totalorder %s18, 3
    %p289 = scmp.ne.s32.totalorder %s284, %s286
    %p290 = scmp.eq.s32.totalorder %s18, 0
    %p291 = por %p289, %p290
    %p292 = scmp.ne.s32.totalorder %s284, %s286
    %p293 = scmp.eq.s32.totalorder %s23, 3
    %p294 = por %p292, %p293
    %p295 = scmp.ne.s32.totalorder %s286, %s287
    %p296 = scmp.eq.s32.totalorder %s23, 0
    %p297 = por %p295, %p296
    %p298 = scmp.ne.s32.totalorder %s286, %s287
    %p299 = scmp.eq.s32.totalorder %s24, 3
    %p300 = por %p298, %p299
    %p302 = scmp.ne.s32.totalorder %s287, %s301
    %p303 = scmp.eq.s32.totalorder %s24, 0
    %p304 = por %p302, %p303
    %s306 = sadd.s32 %s305, 1
    %p309 = scmp.eq.s32.totalorder %s18, 3
    %p310 = scmp.ne.s32.totalorder %s305, %s307
    %p311 = scmp.eq.s32.totalorder %s18, 0
    %p312 = por %p310, %p311
    %p313 = scmp.ne.s32.totalorder %s305, %s307
    %p314 = scmp.eq.s32.totalorder %s23, 3
    %p315 = por %p313, %p314
    %p316 = scmp.ne.s32.totalorder %s307, %s308
    %p317 = scmp.eq.s32.totalorder %s23, 0
    %p318 = por %p316, %p317
    %p319 = scmp.ne.s32.totalorder %s307, %s308
    %p320 = scmp.eq.s32.totalorder %s24, 3
    %p321 = por %p319, %p320
    %p323 = scmp.ne.s32.totalorder %s308, %s322
    %p324 = scmp.eq.s32.totalorder %s24, 0
    %p325 = por %p323, %p324
    %s326 = ssub.s32 %s25, %s37
    %p327 = scmp.eq.s32.totalorder %s326, 0
    %s329 = sadd.s32 %s328, 1
    %s330 = scalar_select %p327, %s328, %s329
    %p333 = pneg %p327
    %p334 = scmp.eq.s32.totalorder %s18, 3
    %p335 = por %p333, %p334
    %p336 = scmp.ne.s32.totalorder %s328, %s331
    %p337 = scmp.eq.s32.totalorder %s18, 0
    %p338 = por %p336, %p337
    %p339 = scmp.ne.s32.totalorder %s328, %s331
    %p340 = scmp.eq.s32.totalorder %s23, 3
    %p341 = por %p339, %p340
    %p342 = scmp.ne.s32.totalorder %s331, %s332
    %p343 = scmp.eq.s32.totalorder %s23, 0
    %p344 = por %p342, %p343
    %p345 = scmp.ne.s32.totalorder %s331, %s332
    %p346 = scmp.eq.s32.totalorder %s24, 3
    %p347 = por %p345, %p346
    %p349 = scmp.ne.s32.totalorder %s332, %s348
    %p350 = scmp.eq.s32.totalorder %s24, 0
    %p351 = por %p349, %p350
    %p352 = scmp.le.s32.totalorder 1, %s18
    %p353 = scmp.lt.s32.totalorder %s18, 5
    %p354 = pnand %p352, %p353
    %p355 = pneg %p354
    // Predicated region
    $region9: #{tpu_custom_call.1} parent=5 // pred_check
      _
    $region10: #{tpu_custom_call.1} parent=5 // pred_check_branch
      %357 = sbr.rel (%p354) target = $region12
    $region11: #{tpu_custom_call.1} parent=5 // pred_region
      %s358 = ssub.s32 %s18, 1
      // Predicated region
      $region13: #{tpu_custom_call.1} parent=11 // pred_check
        %p359 = pneg %p171
      $region14: #{tpu_custom_call.1} parent=11 // pred_check_branch
        %361 = sbr.rel (%p359) target = $region16
      $region15: #{tpu_custom_call.1} parent=11 // pred_region
        _
      $region16: #{tpu_custom_call.1} parent=11 // pred_fallthru
        _
      // Predicated region
      $region17: #{tpu_custom_call.1} parent=11 // pred_check
        %p362 = pneg %p192
      $region18: #{tpu_custom_call.1} parent=11 // pred_check_branch
        %364 = sbr.rel (%p362) target = $region20
      $region19: #{tpu_custom_call.1} parent=11 // pred_region
        _
      $region20: #{tpu_custom_call.1} parent=11 // pred_fallthru
        _
      // Predicated region
      $region21: #{tpu_custom_call.1} parent=11 // pred_check
        %p365 = pneg %p213
      $region22: #{tpu_custom_call.1} parent=11 // pred_check_branch
        %367 = sbr.rel (%p365) target = $region24
      $region23: #{tpu_custom_call.1} parent=11 // pred_region
        _
      $region24: #{tpu_custom_call.1} parent=11 // pred_fallthru
        _
      // Predicated region
      $region25: #{tpu_custom_call.1} parent=11 // pred_check
        %p368 = pneg %p234
      $region26: #{tpu_custom_call.1} parent=11 // pred_check_branch
        %370 = sbr.rel (%p368) target = $region28
      $region27: #{tpu_custom_call.1} parent=11 // pred_region
        _
      $region28: #{tpu_custom_call.1} parent=11 // pred_fallthru
        _
      // Predicated region
      $region29: #{tpu_custom_call.1} parent=11 // pred_check
        %p371 = pneg %p255
      $region30: #{tpu_custom_call.1} parent=11 // pred_check_branch
        %373 = sbr.rel (%p371) target = $region32
      $region31: #{tpu_custom_call.1} parent=11 // pred_region
        _
      $region32: #{tpu_custom_call.1} parent=11 // pred_fallthru
        _
      // Predicated region
      $region33: #{tpu_custom_call.1} parent=11 // pred_check
        %p374 = pneg %p276
      $region34: #{tpu_custom_call.1} parent=11 // pred_check_branch
        %376 = sbr.rel (%p374) target = $region36
      $region35: #{tpu_custom_call.1} parent=11 // pred_region
        _
      $region36: #{tpu_custom_call.1} parent=11 // pred_fallthru
        _
      // Predicated region
      $region37: #{tpu_custom_call.1} parent=11 // pred_check
        %p377 = pneg %p297
      $region38: #{tpu_custom_call.1} parent=11 // pred_check_branch
        %379 = sbr.rel (%p377) target = $region40
      $region39: #{tpu_custom_call.1} parent=11 // pred_region
        _
      $region40: #{tpu_custom_call.1} parent=11 // pred_fallthru
        _
      // Predicated region
      $region41: #{tpu_custom_call.1} parent=11 // pred_check
        %p380 = pneg %p318
      $region42: #{tpu_custom_call.1} parent=11 // pred_check_branch
        %382 = sbr.rel (%p380) target = $region44
      $region43: #{tpu_custom_call.1} parent=11 // pred_region
        _
      $region44: #{tpu_custom_call.1} parent=11 // pred_fallthru
        _
    $region12: #{tpu_custom_call.1} parent=5 // pred_fallthru
      _
    %p383 = scmp.lt.s32.totalorder %s18, 4
    // Predicated region
    $region45: #{tpu_custom_call.1} parent=5 // pred_check
      %p384 = pneg %p383
    $region46: #{tpu_custom_call.1} parent=5 // pred_check_branch
      %386 = sbr.rel (%p384) target = $region48
    $region47: #{tpu_custom_call.1} parent=5 // pred_region
      // Predicated region
      $region49: #{tpu_custom_call.1} parent=47 // pred_check
        %p387 = pneg %p54
      $region50: #{tpu_custom_call.1} parent=47 // pred_check_branch
        %389 = sbr.rel (%p387) target = $region52
      $region51: #{tpu_custom_call.1} parent=47 // pred_region
        %s390 = smul.u32 %s25, 2
        %s391 = sadd.s32 %s390, %s26
        %s392 = smul.u32 4, %s391
        %p393 = scmp.lt.s32.totalorder %s392, 15
        %s394 = scalar_select %p393, %s392, 15
        %s395 = scalar_lea.vmem %s0, %s394
        %s396 = smul.u32 %s25, 2
        %s397 = sadd.s32 %s396, %s26
        %s398 = smul.u32 4, %s397
      $region52: #{tpu_custom_call.1} parent=47 // pred_fallthru
        _
      // Predicated region
      $region53: #{tpu_custom_call.1} parent=47 // pred_check
        %p399 = pneg %p84
      $region54: #{tpu_custom_call.1} parent=47 // pred_check_branch
        %401 = sbr.rel (%p399) target = $region56
      $region55: #{tpu_custom_call.1} parent=47 // pred_region
        %s402 = smul.u32 %s25, 2
        %s403 = sadd.s32 %s402, %s26
        %s404 = smul.u32 64, %s403
        %p405 = scmp.lt.s32.totalorder %s404, 255
        %s406 = scalar_select %p405, %s404, 255
        %s407 = smul.addr %s406, 8
        %s408 = scalar_lea.vmem %s1, %s407
        %s409 = smul.u32 %s25, 2
        %s410 = sadd.s32 %s409, %s26
        %s411 = smul.u32 64, %s410
      $region56: #{tpu_custom_call.1} parent=47 // pred_fallthru
        _
      // Predicated region
      $region57: #{tpu_custom_call.1} parent=47 // pred_check
        %p412 = pneg %p114
      $region58: #{tpu_custom_call.1} parent=47 // pred_check_branch
        %414 = sbr.rel (%p412) target = $region60
      $region59: #{tpu_custom_call.1} parent=47 // pred_region
        %s415 = smul.u32 %s25, 2
        %s416 = sadd.s32 %s415, %s26
        %s417 = smul.u32 64, %s416
        %p418 = scmp.lt.s32.totalorder %s417, 255
        %s419 = scalar_select %p418, %s417, 255
        %s420 = smul.addr %s419, 8
        %s421 = scalar_lea.vmem %s2, %s420
        %s422 = smul.u32 %s25, 2
        %s423 = sadd.s32 %s422, %s26
        %s424 = smul.u32 64, %s423
      $region60: #{tpu_custom_call.1} parent=47 // pred_fallthru
        _
      // Predicated region
      $region61: #{tpu_custom_call.1} parent=47 // pred_check
        %p425 = pneg %p144
      $region62: #{tpu_custom_call.1} parent=47 // pred_check_branch
        %427 = sbr.rel (%p425) target = $region64
      $region63: #{tpu_custom_call.1} parent=47 // pred_region
        %s428 = smul.u32 %s25, 2
        %s429 = sadd.s32 %s428, %s26
        %s430 = smul.u32 64, %s429
        %p431 = scmp.lt.s32.totalorder %s430, 255
        %s432 = scalar_select %p431, %s430, 255
        %s433 = smul.addr %s432, 8
        %s434 = scalar_lea.vmem %s3, %s433
        %s435 = smul.u32 %s25, 2
        %s436 = sadd.s32 %s435, %s26
        %s437 = smul.u32 64, %s436
      $region64: #{tpu_custom_call.1} parent=47 // pred_fallthru
        _
    $region48: #{tpu_custom_call.1} parent=5 // pred_fallthru
      _
    %p438 = scmp.le.s32.totalorder 1, %s18
    %p439 = scmp.lt.s32.totalorder %s18, 5
    %p440 = pnand %p438, %p439
    %p441 = pneg %p440
    // Predicated region
    $region65: #{tpu_custom_call.1} parent=5 // pred_check
      _
    $region66: #{tpu_custom_call.1} parent=5 // pred_check_branch
      %443 = sbr.rel (%p440) target = $region68
    $region67: #{tpu_custom_call.1} parent=5 // pred_region
      %s444 = ssub.s32 %s18, 1
      %s445 = smul.u32 %s27, 2
      %s446 = sadd.s32 %s445, %s28
      %s447 = smul.u32 4, %s446
      %p448 = scmp.lt.s32.totalorder %s447, 15
      %s449 = scalar_select %p448, %s447, 15
      %s450 = scalar_lea.vmem %s0, %s449
      %p451 = pneg %p60
      %p452 = pneg %p57
      %s453 = smul.u32 %s27, 2
      %s454 = sadd.s32 %s453, %s28
      %s455 = smul.u32 64, %s454
      %p456 = scmp.lt.s32.totalorder %s455, 255
      %s457 = scalar_select %p456, %s455, 255
      %s458 = smul.addr %s457, 8
      %s459 = scalar_lea.vmem %s1, %s458
      %p460 = pneg %p90
      %p461 = pneg %p87
      %s462 = smul.u32 %s27, 2
      %s463 = sadd.s32 %s462, %s28
      %s464 = smul.u32 64, %s463
      %p465 = scmp.lt.s32.totalorder %s464, 255
      %s466 = scalar_select %p465, %s464, 255
      %s467 = smul.addr %s466, 8
      %s468 = scalar_lea.vmem %s2, %s467
      %p469 = pneg %p120
      %p470 = pneg %p117
      %s471 = smul.u32 %s27, 2
      %s472 = sadd.s32 %s471, %s28
      %s473 = smul.u32 64, %s472
      %p474 = scmp.lt.s32.totalorder %s473, 255
      %s475 = scalar_select %p474, %s473, 255
      %s476 = smul.addr %s475, 8
      %s477 = scalar_lea.vmem %s3, %s476
      %p478 = pneg %p150
      %p479 = pneg %p147
      %p480 = pneg %p171
      %p481 = pneg %p168
      %p482 = pneg %p192
      %p483 = pneg %p189
      %p484 = pneg %p213
      %p485 = pneg %p210
      %p486 = pneg %p234
      %p487 = pneg %p231
      %p488 = pneg %p255
      %p489 = pneg %p252
      %p490 = pneg %p276
      %p491 = pneg %p273
      %p492 = pneg %p297
      %p493 = pneg %p294
      %p494 = pneg %p318
      %p495 = pneg %p315
      %p496 = pneg %p344
      %p497 = pneg %p341
      %p498 = scmp.lt.s32.totalorder %s27, 1
      %s499 = scalar_select %p498, %s27, 1
      %s500 = smul.addr %s499, 3
      %s501 = smul.addr %s500, 8
      %s502 = scalar_lea.vmem %s12, %s501
      %s503 = smul.u32 %s27, 2
      %s504 = sadd.s32 %s503, %s28
      %s505 = smul.u32 4, %s504
      %p506 = scmp.lt.s32.totalorder %s505, 15
      %s507 = scalar_select %p506, %s505, 15
      %s508 = scalar_lea.vmem %s0, %s507
      %s509 = smul.u32 %s27, 2
      %s510 = sadd.s32 %s509, %s28
      %s511 = smul.u32 4, %s510
      %s512 = smul.u32 %s27, 2
      %s513 = sadd.s32 %s512, %s28
      %s514 = smul.u32 64, %s513
      %p515 = scmp.lt.s32.totalorder %s514, 255
      %s516 = scalar_select %p515, %s514, 255
      %s517 = smul.addr %s516, 8
      %s518 = scalar_lea.vmem %s1, %s517
      %s519 = smul.u32 %s27, 2
      %s520 = sadd.s32 %s519, %s28
      %s521 = smul.u32 64, %s520
      %s522 = smul.u32 %s27, 2
      %s523 = sadd.s32 %s522, %s28
      %s524 = smul.u32 64, %s523
      %p525 = scmp.lt.s32.totalorder %s524, 255
      %s526 = scalar_select %p525, %s524, 255
      %s527 = smul.addr %s526, 8
      %s528 = scalar_lea.vmem %s2, %s527
      %s529 = smul.u32 %s27, 2
      %s530 = sadd.s32 %s529, %s28
      %s531 = smul.u32 64, %s530
      %s532 = smul.u32 %s27, 2
      %s533 = sadd.s32 %s532, %s28
      %s534 = smul.u32 64, %s533
      %p535 = scmp.lt.s32.totalorder %s534, 255
      %s536 = scalar_select %p535, %s534, 255
      %s537 = smul.addr %s536, 8
      %s538 = scalar_lea.vmem %s3, %s537
      %s539 = smul.u32 %s27, 2
      %s540 = sadd.s32 %s539, %s28
      %s541 = smul.u32 64, %s540
      %p542 = scmp.lt.s32.totalorder %s27, 1
      %s543 = scalar_select %p542, %s27, 1
      %s544 = smul.addr %s543, 3
      %s545 = smul.addr %s544, 8
      %s546 = scalar_lea.vmem %s12, %s545
      %p547 = scmp.eq.s32.totalorder %s28, 0
      // Predicated region
      $region69: #{tpu_custom_call.1} parent=67 // pred_check
        %p548 = pneg %p547
      $region70: #{tpu_custom_call.1} parent=67 // pred_check_branch
        %550 = sbr.rel (%p548) target = $region72
      $region71: #{tpu_custom_call.1} parent=67 // pred_region
        %vm551 = vcmask 171008
        %552 = vst.msk [vmem:[%s546] sm:$0xff] %vm551, 0.0
        %553 = vst.msk [vmem:[%s546 + $0x8] sm:$0xff] %vm551, 0.0
        %554 = vst.msk [vmem:[%s546 + $0x10] sm:$0xff] %vm551, 0.0
      $region72: #{tpu_custom_call.1} parent=67 // pred_fallthru
        _
      %v555 = vld [vmem:[%s518] sm:$0xff]
      %v556 = vld [vmem:[%s518 + $0x8] sm:$0xff]
      %v557 = vld [vmem:[%s518 + $0x10] sm:$0xff]
      %v558 = vld [vmem:[%s518 + $0x18] sm:$0xff]
      %v559 = vld [vmem:[%s518 + $0x20] sm:$0xff]
      %v560 = vld [vmem:[%s518 + $0x28] sm:$0xff]
      %v561 = vld [vmem:[%s518 + $0x30] sm:$0xff]
      %v562 = vld [vmem:[%s518 + $0x38] sm:$0xff]
      %v563 = vld [vmem:[%s518 + $0x40] sm:$0xff]
      %v564 = vld [vmem:[%s518 + $0x48] sm:$0xff]
      %v565 = vld [vmem:[%s518 + $0x50] sm:$0xff]
      %v566 = vld [vmem:[%s518 + $0x58] sm:$0xff]
      %v567 = vld [vmem:[%s518 + $0x60] sm:$0xff]
      %v568 = vld [vmem:[%s518 + $0x68] sm:$0xff]
      %v569 = vld [vmem:[%s518 + $0x70] sm:$0xff]
      %v570 = vld [vmem:[%s518 + $0x78] sm:$0xff]
      %v571 = vld [vmem:[%s518 + $0x80] sm:$0xff]
      %v572 = vld [vmem:[%s518 + $0x88] sm:$0xff]
      %v573 = vld [vmem:[%s518 + $0x90] sm:$0xff]
      %v574 = vld [vmem:[%s518 + $0x98] sm:$0xff]
      %v575 = vld [vmem:[%s518 + $0xa0] sm:$0xff]
      %v576 = vld [vmem:[%s518 + $0xa8] sm:$0xff]
      %v577 = vld [vmem:[%s518 + $0xb0] sm:$0xff]
      %v578 = vld [vmem:[%s518 + $0xb8] sm:$0xff]
      %v579 = vld [vmem:[%s518 + $0xc0] sm:$0xff]
      %v580 = vld [vmem:[%s518 + $0xc8] sm:$0xff]
      %v581 = vld [vmem:[%s518 + $0xd0] sm:$0xff]
      %v582 = vld [vmem:[%s518 + $0xd8] sm:$0xff]
      %v583 = vld [vmem:[%s518 + $0xe0] sm:$0xff]
      %v584 = vld [vmem:[%s518 + $0xe8] sm:$0xff]
      %v585 = vld [vmem:[%s518 + $0xf0] sm:$0xff]
      %v586 = vld [vmem:[%s518 + $0xf8] sm:$0xff]
      %v587 = vld [vmem:[%s518 + $0x100] sm:$0xff]
      %v588 = vld [vmem:[%s518 + $0x108] sm:$0xff]
      %v589 = vld [vmem:[%s518 + $0x110] sm:$0xff]
      %v590 = vld [vmem:[%s518 + $0x118] sm:$0xff]
      %v591 = vld [vmem:[%s518 + $0x120] sm:$0xff]
      %v592 = vld [vmem:[%s518 + $0x128] sm:$0xff]
      %v593 = vld [vmem:[%s518 + $0x130] sm:$0xff]
      %v594 = vld [vmem:[%s518 + $0x138] sm:$0xff]
      %v595 = vld [vmem:[%s518 + $0x140] sm:$0xff]
      %v596 = vld [vmem:[%s518 + $0x148] sm:$0xff]
      %v597 = vld [vmem:[%s518 + $0x150] sm:$0xff]
      %v598 = vld [vmem:[%s518 + $0x158] sm:$0xff]
      %v599 = vld [vmem:[%s518 + $0x160] sm:$0xff]
      %v600 = vld [vmem:[%s518 + $0x168] sm:$0xff]
      %v601 = vld [vmem:[%s518 + $0x170] sm:$0xff]
      %v602 = vld [vmem:[%s518 + $0x178] sm:$0xff]
      %v603 = vld [vmem:[%s518 + $0x180] sm:$0xff]
      %v604 = vld [vmem:[%s518 + $0x188] sm:$0xff]
      %v605 = vld [vmem:[%s518 + $0x190] sm:$0xff]
      %v606 = vld [vmem:[%s518 + $0x198] sm:$0xff]
      %v607 = vld [vmem:[%s518 + $0x1a0] sm:$0xff]
      %v608 = vld [vmem:[%s518 + $0x1a8] sm:$0xff]
      %v609 = vld [vmem:[%s518 + $0x1b0] sm:$0xff]
      %v610 = vld [vmem:[%s518 + $0x1b8] sm:$0xff]
      %v611 = vld [vmem:[%s518 + $0x1c0] sm:$0xff]
      %v612 = vld [vmem:[%s518 + $0x1c8] sm:$0xff]
      %v613 = vld [vmem:[%s518 + $0x1d0] sm:$0xff]
      %v614 = vld [vmem:[%s518 + $0x1d8] sm:$0xff]
      %v615 = vld [vmem:[%s518 + $0x1e0] sm:$0xff]
      %v616 = vld [vmem:[%s518 + $0x1e8] sm:$0xff]
      %v617 = vld [vmem:[%s518 + $0x1f0] sm:$0xff]
      %v618 = vld [vmem:[%s518 + $0x1f8] sm:$0xff]
      %v619 = vlaneseq
      %v620 = vand.u32 %v619, 127
      %621 = vset.pattern.permute.xlu0 0
      %622 = vperm.xlu0 %621, %v555
      %v623 = vpop.permute.xlu0 %622
      %624 = vset.pattern.permute.xlu0 0
      %625 = vperm.xlu0 %624, %v556
      %v626 = vpop.permute.xlu0 %625
      %627 = vset.pattern.permute.xlu0 0
      %628 = vperm.xlu0 %627, %v557
      %v629 = vpop.permute.xlu0 %628
      %630 = vset.pattern.permute.xlu0 0
      %631 = vperm.xlu0 %630, %v558
      %v632 = vpop.permute.xlu0 %631
      %633 = vset.pattern.permute.xlu0 0
      %634 = vperm.xlu0 %633, %v559
      %v635 = vpop.permute.xlu0 %634
      %636 = vset.pattern.permute.xlu0 0
      %637 = vperm.xlu0 %636, %v560
      %v638 = vpop.permute.xlu0 %637
      %639 = vset.pattern.permute.xlu0 0
      %640 = vperm.xlu0 %639, %v561
      %v641 = vpop.permute.xlu0 %640
      %642 = vset.pattern.permute.xlu0 0
      %643 = vperm.xlu0 %642, %v562
      %v644 = vpop.permute.xlu0 %643
      %645 = vset.pattern.permute.xlu0 0
      %646 = vperm.xlu0 %645, %v563
      %v647 = vpop.permute.xlu0 %646
      %648 = vset.pattern.permute.xlu0 0
      %649 = vperm.xlu0 %648, %v564
      %v650 = vpop.permute.xlu0 %649
      %651 = vset.pattern.permute.xlu0 0
      %652 = vperm.xlu0 %651, %v565
      %v653 = vpop.permute.xlu0 %652
      %654 = vset.pattern.permute.xlu0 0
      %655 = vperm.xlu0 %654, %v566
      %v656 = vpop.permute.xlu0 %655
      %657 = vset.pattern.permute.xlu0 0
      %658 = vperm.xlu0 %657, %v567
      %v659 = vpop.permute.xlu0 %658
      %660 = vset.pattern.permute.xlu0 0
      %661 = vperm.xlu0 %660, %v568
      %v662 = vpop.permute.xlu0 %661
      %663 = vset.pattern.permute.xlu0 0
      %664 = vperm.xlu0 %663, %v569
      %v665 = vpop.permute.xlu0 %664
      %666 = vset.pattern.permute.xlu0 0
      %667 = vperm.xlu0 %666, %v570
      %v668 = vpop.permute.xlu0 %667
      %669 = vset.pattern.permute.xlu0 0
      %670 = vperm.xlu0 %669, %v571
      %v671 = vpop.permute.xlu0 %670
      %672 = vset.pattern.permute.xlu0 0
      %673 = vperm.xlu0 %672, %v572
      %v674 = vpop.permute.xlu0 %673
      %675 = vset.pattern.permute.xlu0 0
      %676 = vperm.xlu0 %675, %v573
      %v677 = vpop.permute.xlu0 %676
      %678 = vset.pattern.permute.xlu0 0
      %679 = vperm.xlu0 %678, %v574
      %v680 = vpop.permute.xlu0 %679
      %681 = vset.pattern.permute.xlu0 0
      %682 = vperm.xlu0 %681, %v575
      %v683 = vpop.permute.xlu0 %682
      %684 = vset.pattern.permute.xlu0 0
      %685 = vperm.xlu0 %684, %v576
      %v686 = vpop.permute.xlu0 %685
      %687 = vset.pattern.permute.xlu0 0
      %688 = vperm.xlu0 %687, %v577
      %v689 = vpop.permute.xlu0 %688
      %690 = vset.pattern.permute.xlu0 0
      %691 = vperm.xlu0 %690, %v578
      %v692 = vpop.permute.xlu0 %691
      %693 = vset.pattern.permute.xlu0 0
      %694 = vperm.xlu0 %693, %v579
      %v695 = vpop.permute.xlu0 %694
      %696 = vset.pattern.permute.xlu0 0
      %697 = vperm.xlu0 %696, %v580
      %v698 = vpop.permute.xlu0 %697
      %699 = vset.pattern.permute.xlu0 0
      %700 = vperm.xlu0 %699, %v581
      %v701 = vpop.permute.xlu0 %700
      %702 = vset.pattern.permute.xlu0 0
      %703 = vperm.xlu0 %702, %v582
      %v704 = vpop.permute.xlu0 %703
      %705 = vset.pattern.permute.xlu0 0
      %706 = vperm.xlu0 %705, %v583
      %v707 = vpop.permute.xlu0 %706
      %708 = vset.pattern.permute.xlu0 0
      %709 = vperm.xlu0 %708, %v584
      %v710 = vpop.permute.xlu0 %709
      %711 = vset.pattern.permute.xlu0 0
      %712 = vperm.xlu0 %711, %v585
      %v713 = vpop.permute.xlu0 %712
      %714 = vset.pattern.permute.xlu0 0
      %715 = vperm.xlu0 %714, %v586
      %v716 = vpop.permute.xlu0 %715
      %717 = vset.pattern.permute.xlu0 0
      %718 = vperm.xlu0 %717, %v587
      %v719 = vpop.permute.xlu0 %718
      %720 = vset.pattern.permute.xlu0 0
      %721 = vperm.xlu0 %720, %v588
      %v722 = vpop.permute.xlu0 %721
      %723 = vset.pattern.permute.xlu0 0
      %724 = vperm.xlu0 %723, %v589
      %v725 = vpop.permute.xlu0 %724
      %726 = vset.pattern.permute.xlu0 0
      %727 = vperm.xlu0 %726, %v590
      %v728 = vpop.permute.xlu0 %727
      %729 = vset.pattern.permute.xlu0 0
      %730 = vperm.xlu0 %729, %v591
      %v731 = vpop.permute.xlu0 %730
      %732 = vset.pattern.permute.xlu0 0
      %733 = vperm.xlu0 %732, %v592
      %v734 = vpop.permute.xlu0 %733
      %735 = vset.pattern.permute.xlu0 0
      %736 = vperm.xlu0 %735, %v593
      %v737 = vpop.permute.xlu0 %736
      %738 = vset.pattern.permute.xlu0 0
      %739 = vperm.xlu0 %738, %v594
      %v740 = vpop.permute.xlu0 %739
      %741 = vset.pattern.permute.xlu0 0
      %742 = vperm.xlu0 %741, %v595
      %v743 = vpop.permute.xlu0 %742
      %744 = vset.pattern.permute.xlu0 0
      %745 = vperm.xlu0 %744, %v596
      %v746 = vpop.permute.xlu0 %745
      %747 = vset.pattern.permute.xlu0 0
      %748 = vperm.xlu0 %747, %v597
      %v749 = vpop.permute.xlu0 %748
      %750 = vset.pattern.permute.xlu0 0
      %751 = vperm.xlu0 %750, %v598
      %v752 = vpop.permute.xlu0 %751
      %753 = vset.pattern.permute.xlu0 0
      %754 = vperm.xlu0 %753, %v599
      %v755 = vpop.permute.xlu0 %754
      %756 = vset.pattern.permute.xlu0 0
      %757 = vperm.xlu0 %756, %v600
      %v758 = vpop.permute.xlu0 %757
      %759 = vset.pattern.permute.xlu0 0
      %760 = vperm.xlu0 %759, %v601
      %v761 = vpop.permute.xlu0 %760
      %762 = vset.pattern.permute.xlu0 0
      %763 = vperm.xlu0 %762, %v602
      %v764 = vpop.permute.xlu0 %763
      %765 = vset.pattern.permute.xlu0 0
      %766 = vperm.xlu0 %765, %v603
      %v767 = vpop.permute.xlu0 %766
      %768 = vset.pattern.permute.xlu0 0
      %769 = vperm.xlu0 %768, %v604
      %v770 = vpop.permute.xlu0 %769
      %771 = vset.pattern.permute.xlu0 0
      %772 = vperm.xlu0 %771, %v605
      %v773 = vpop.permute.xlu0 %772
      %774 = vset.pattern.permute.xlu0 0
      %775 = vperm.xlu0 %774, %v606
      %v776 = vpop.permute.xlu0 %775
      %777 = vset.pattern.permute.xlu0 0
      %778 = vperm.xlu0 %777, %v607
      %v779 = vpop.permute.xlu0 %778
      %780 = vset.pattern.permute.xlu0 0
      %781 = vperm.xlu0 %780, %v608
      %v782 = vpop.permute.xlu0 %781
      %783 = vset.pattern.permute.xlu0 0
      %784 = vperm.xlu0 %783, %v609
      %v785 = vpop.permute.xlu0 %784
      %786 = vset.pattern.permute.xlu0 0
      %787 = vperm.xlu0 %786, %v610
      %v788 = vpop.permute.xlu0 %787
      %789 = vset.pattern.permute.xlu0 0
      %790 = vperm.xlu0 %789, %v611
      %v791 = vpop.permute.xlu0 %790
      %792 = vset.pattern.permute.xlu0 0
      %793 = vperm.xlu0 %792, %v612
      %v794 = vpop.permute.xlu0 %793
      %795 = vset.pattern.permute.xlu0 0
      %796 = vperm.xlu0 %795, %v613
      %v797 = vpop.permute.xlu0 %796
      %798 = vset.pattern.permute.xlu0 0
      %799 = vperm.xlu0 %798, %v614
      %v800 = vpop.permute.xlu0 %799
      %801 = vset.pattern.permute.xlu0 0
      %802 = vperm.xlu0 %801, %v615
      %v803 = vpop.permute.xlu0 %802
      %804 = vset.pattern.permute.xlu0 0
      %805 = vperm.xlu0 %804, %v616
      %v806 = vpop.permute.xlu0 %805
      %807 = vset.pattern.permute.xlu0 0
      %808 = vperm.xlu0 %807, %v617
      %v809 = vpop.permute.xlu0 %808
      %810 = vset.pattern.permute.xlu0 0
      %811 = vperm.xlu0 %810, %v618
      %v812 = vpop.permute.xlu0 %811
      %vm813 = vcmp.eq.s32.totalorder %v620, %v623
      %vm814 = vcmp.eq.s32.totalorder %v620, %v626
      %vm815 = vcmp.eq.s32.totalorder %v620, %v629
      %vm816 = vcmp.eq.s32.totalorder %v620, %v632
      %vm817 = vcmp.eq.s32.totalorder %v620, %v635
      %vm818 = vcmp.eq.s32.totalorder %v620, %v638
      %vm819 = vcmp.eq.s32.totalorder %v620, %v641
      %vm820 = vcmp.eq.s32.totalorder %v620, %v644
      %vm821 = vcmp.eq.s32.totalorder %v620, %v647
      %vm822 = vcmp.eq.s32.totalorder %v620, %v650
      %vm823 = vcmp.eq.s32.totalorder %v620, %v653
      %vm824 = vcmp.eq.s32.totalorder %v620, %v656
      %vm825 = vcmp.eq.s32.totalorder %v620, %v659
      %vm826 = vcmp.eq.s32.totalorder %v620, %v662
      %vm827 = vcmp.eq.s32.totalorder %v620, %v665
      %vm828 = vcmp.eq.s32.totalorder %v620, %v668
      %vm829 = vcmp.eq.s32.totalorder %v620, %v671
      %vm830 = vcmp.eq.s32.totalorder %v620, %v674
      %vm831 = vcmp.eq.s32.totalorder %v620, %v677
      %vm832 = vcmp.eq.s32.totalorder %v620, %v680
      %vm833 = vcmp.eq.s32.totalorder %v620, %v683
      %vm834 = vcmp.eq.s32.totalorder %v620, %v686
      %vm835 = vcmp.eq.s32.totalorder %v620, %v689
      %vm836 = vcmp.eq.s32.totalorder %v620, %v692
      %vm837 = vcmp.eq.s32.totalorder %v620, %v695
      %vm838 = vcmp.eq.s32.totalorder %v620, %v698
      %vm839 = vcmp.eq.s32.totalorder %v620, %v701
      %vm840 = vcmp.eq.s32.totalorder %v620, %v704
      %vm841 = vcmp.eq.s32.totalorder %v620, %v707
      %vm842 = vcmp.eq.s32.totalorder %v620, %v710
      %vm843 = vcmp.eq.s32.totalorder %v620, %v713
      %vm844 = vcmp.eq.s32.totalorder %v620, %v716
      %vm845 = vcmp.eq.s32.totalorder %v620, %v719
      %vm846 = vcmp.eq.s32.totalorder %v620, %v722
      %vm847 = vcmp.eq.s32.totalorder %v620, %v725
      %vm848 = vcmp.eq.s32.totalorder %v620, %v728
      %vm849 = vcmp.eq.s32.totalorder %v620, %v731
      %vm850 = vcmp.eq.s32.totalorder %v620, %v734
      %vm851 = vcmp.eq.s32.totalorder %v620, %v737
      %vm852 = vcmp.eq.s32.totalorder %v620, %v740
      %vm853 = vcmp.eq.s32.totalorder %v620, %v743
      %vm854 = vcmp.eq.s32.totalorder %v620, %v746
      %vm855 = vcmp.eq.s32.totalorder %v620, %v749
      %vm856 = vcmp.eq.s32.totalorder %v620, %v752
      %vm857 = vcmp.eq.s32.totalorder %v620, %v755
      %vm858 = vcmp.eq.s32.totalorder %v620, %v758
      %vm859 = vcmp.eq.s32.totalorder %v620, %v761
      %vm860 = vcmp.eq.s32.totalorder %v620, %v764
      %vm861 = vcmp.eq.s32.totalorder %v620, %v767
      %vm862 = vcmp.eq.s32.totalorder %v620, %v770
      %vm863 = vcmp.eq.s32.totalorder %v620, %v773
      %vm864 = vcmp.eq.s32.totalorder %v620, %v776
      %vm865 = vcmp.eq.s32.totalorder %v620, %v779
      %vm866 = vcmp.eq.s32.totalorder %v620, %v782
      %vm867 = vcmp.eq.s32.totalorder %v620, %v785
      %vm868 = vcmp.eq.s32.totalorder %v620, %v788
      %vm869 = vcmp.eq.s32.totalorder %v620, %v791
      %vm870 = vcmp.eq.s32.totalorder %v620, %v794
      %vm871 = vcmp.eq.s32.totalorder %v620, %v797
      %vm872 = vcmp.eq.s32.totalorder %v620, %v800
      %vm873 = vcmp.eq.s32.totalorder %v620, %v803
      %vm874 = vcmp.eq.s32.totalorder %v620, %v806
      %vm875 = vcmp.eq.s32.totalorder %v620, %v809
      %vm876 = vcmp.eq.s32.totalorder %v620, %v812
      %v877 = vsel %vm813, 1, 0
      %v878 = vsel %vm814, 1, 0
      %v879 = vsel %vm815, 1, 0
      %v880 = vsel %vm816, 1, 0
      %v881 = vsel %vm817, 1, 0
      %v882 = vsel %vm818, 1, 0
      %v883 = vsel %vm819, 1, 0
      %v884 = vsel %vm820, 1, 0
      %v885 = vsel %vm821, 1, 0
      %v886 = vsel %vm822, 1, 0
      %v887 = vsel %vm823, 1, 0
      %v888 = vsel %vm824, 1, 0
      %v889 = vsel %vm825, 1, 0
      %v890 = vsel %vm826, 1, 0
      %v891 = vsel %vm827, 1, 0
      %v892 = vsel %vm828, 1, 0
      %v893 = vsel %vm829, 1, 0
      %v894 = vsel %vm830, 1, 0
      %v895 = vsel %vm831, 1, 0
      %v896 = vsel %vm832, 1, 0
      %v897 = vsel %vm833, 1, 0
      %v898 = vsel %vm834, 1, 0
      %v899 = vsel %vm835, 1, 0
      %v900 = vsel %vm836, 1, 0
      %v901 = vsel %vm837, 1, 0
      %v902 = vsel %vm838, 1, 0
      %v903 = vsel %vm839, 1, 0
      %v904 = vsel %vm840, 1, 0
      %v905 = vsel %vm841, 1, 0
      %v906 = vsel %vm842, 1, 0
      %v907 = vsel %vm843, 1, 0
      %v908 = vsel %vm844, 1, 0
      %v909 = vsel %vm845, 1, 0
      %v910 = vsel %vm846, 1, 0
      %v911 = vsel %vm847, 1, 0
      %v912 = vsel %vm848, 1, 0
      %v913 = vsel %vm849, 1, 0
      %v914 = vsel %vm850, 1, 0
      %v915 = vsel %vm851, 1, 0
      %v916 = vsel %vm852, 1, 0
      %v917 = vsel %vm853, 1, 0
      %v918 = vsel %vm854, 1, 0
      %v919 = vsel %vm855, 1, 0
      %v920 = vsel %vm856, 1, 0
      %v921 = vsel %vm857, 1, 0
      %v922 = vsel %vm858, 1, 0
      %v923 = vsel %vm859, 1, 0
      %v924 = vsel %vm860, 1, 0
      %v925 = vsel %vm861, 1, 0
      %v926 = vsel %vm862, 1, 0
      %v927 = vsel %vm863, 1, 0
      %v928 = vsel %vm864, 1, 0
      %v929 = vsel %vm865, 1, 0
      %v930 = vsel %vm866, 1, 0
      %v931 = vsel %vm867, 1, 0
      %v932 = vsel %vm868, 1, 0
      %v933 = vsel %vm869, 1, 0
      %v934 = vsel %vm870, 1, 0
      %v935 = vsel %vm871, 1, 0
      %v936 = vsel %vm872, 1, 0
      %v937 = vsel %vm873, 1, 0
      %v938 = vsel %vm874, 1, 0
      %v939 = vsel %vm875, 1, 0
      %v940 = vsel %vm876, 1, 0
      %v941 = vcvt.s32.f32 %v877
      %v942 = vcvt.s32.f32 %v878
      %v943 = vcvt.s32.f32 %v879
      %v944 = vcvt.s32.f32 %v880
      %v945 = vcvt.s32.f32 %v881
      %v946 = vcvt.s32.f32 %v882
      %v947 = vcvt.s32.f32 %v883
      %v948 = vcvt.s32.f32 %v884
      %v949 = vcvt.s32.f32 %v885
      %v950 = vcvt.s32.f32 %v886
      %v951 = vcvt.s32.f32 %v887
      %v952 = vcvt.s32.f32 %v888
      %v953 = vcvt.s32.f32 %v889
      %v954 = vcvt.s32.f32 %v890
      %v955 = vcvt.s32.f32 %v891
      %v956 = vcvt.s32.f32 %v892
      %v957 = vcvt.s32.f32 %v893
      %v958 = vcvt.s32.f32 %v894
      %v959 = vcvt.s32.f32 %v895
      %v960 = vcvt.s32.f32 %v896
      %v961 = vcvt.s32.f32 %v897
      %v962 = vcvt.s32.f32 %v898
      %v963 = vcvt.s32.f32 %v899
      %v964 = vcvt.s32.f32 %v900
      %v965 = vcvt.s32.f32 %v901
      %v966 = vcvt.s32.f32 %v902
      %v967 = vcvt.s32.f32 %v903
      %v968 = vcvt.s32.f32 %v904
      %v969 = vcvt.s32.f32 %v905
      %v970 = vcvt.s32.f32 %v906
      %v971 = vcvt.s32.f32 %v907
      %v972 = vcvt.s32.f32 %v908
      %v973 = vcvt.s32.f32 %v909
      %v974 = vcvt.s32.f32 %v910
      %v975 = vcvt.s32.f32 %v911
      %v976 = vcvt.s32.f32 %v912
      %v977 = vcvt.s32.f32 %v913
      %v978 = vcvt.s32.f32 %v914
      %v979 = vcvt.s32.f32 %v915
      %v980 = vcvt.s32.f32 %v916
      %v981 = vcvt.s32.f32 %v917
      %v982 = vcvt.s32.f32 %v918
      %v983 = vcvt.s32.f32 %v919
      %v984 = vcvt.s32.f32 %v920
      %v985 = vcvt.s32.f32 %v921
      %v986 = vcvt.s32.f32 %v922
      %v987 = vcvt.s32.f32 %v923
      %v988 = vcvt.s32.f32 %v924
      %v989 = vcvt.s32.f32 %v925
      %v990 = vcvt.s32.f32 %v926
      %v991 = vcvt.s32.f32 %v927
      %v992 = vcvt.s32.f32 %v928
      %v993 = vcvt.s32.f32 %v929
      %v994 = vcvt.s32.f32 %v930
      %v995 = vcvt.s32.f32 %v931
      %v996 = vcvt.s32.f32 %v932
      %v997 = vcvt.s32.f32 %v933
      %v998 = vcvt.s32.f32 %v934
      %v999 = vcvt.s32.f32 %v935
      %v1000 = vcvt.s32.f32 %v936
      %v1001 = vcvt.s32.f32 %v937
      %v1002 = vcvt.s32.f32 %v938
      %v1003 = vcvt.s32.f32 %v939
      %v1004 = vcvt.s32.f32 %v940
      %v1005 = vld [vmem:[%s4] sm:$0xff]
      %v1006 = vld [vmem:[%s4 + $0x8] sm:$0xff]
      %v1007 = vld [vmem:[%s4 + $0x10] sm:$0xff]
      %vm1008 = vcmask 195584
      %v1010 = vsel %vm1008, %v941, 0
      %v1013 = vsel %vm1008, %v942, 0
      %v1016 = vsel %vm1008, %v943, 0
      %v1019 = vsel %vm1008, %v944, 0
      %v1022 = vsel %vm1008, %v945, 0
      %v1025 = vsel %vm1008, %v946, 0
      %v1028 = vsel %vm1008, %v947, 0
      %v1031 = vsel %vm1008, %v948, 0
      %v1034 = vsel %vm1008, %v949, 0
      %v1037 = vsel %vm1008, %v950, 0
      %v1040 = vsel %vm1008, %v951, 0
      %v1043 = vsel %vm1008, %v952, 0
      %v1046 = vsel %vm1008, %v953, 0
      %v1049 = vsel %vm1008, %v954, 0
      %v1052 = vsel %vm1008, %v955, 0
      %v1055 = vsel %vm1008, %v956, 0
      %v1058 = vsel %vm1008, %v957, 0
      %v1061 = vsel %vm1008, %v958, 0
      %v1064 = vsel %vm1008, %v959, 0
      %v1067 = vsel %vm1008, %v960, 0
      %v1070 = vsel %vm1008, %v961, 0
      %v1073 = vsel %vm1008, %v962, 0
      %v1076 = vsel %vm1008, %v963, 0
      %v1079 = vsel %vm1008, %v964, 0
      %v1082 = vsel %vm1008, %v965, 0
      %v1085 = vsel %vm1008, %v966, 0
      %v1088 = vsel %vm1008, %v967, 0
      %v1091 = vsel %vm1008, %v968, 0
      %v1094 = vsel %vm1008, %v969, 0
      %v1097 = vsel %vm1008, %v970, 0
      %v1100 = vsel %vm1008, %v971, 0
      %v1103 = vsel %vm1008, %v972, 0
      %v1106 = vsel %vm1008, %v973, 0
      %v1109 = vsel %vm1008, %v974, 0
      %v1112 = vsel %vm1008, %v975, 0
      %v1115 = vsel %vm1008, %v976, 0
      %v1118 = vsel %vm1008, %v977, 0
      %v1121 = vsel %vm1008, %v978, 0
      %v1124 = vsel %vm1008, %v979, 0
      %v1127 = vsel %vm1008, %v980, 0
      %v1130 = vsel %vm1008, %v981, 0
      %v1133 = vsel %vm1008, %v982, 0
      %v1136 = vsel %vm1008, %v983, 0
      %v1139 = vsel %vm1008, %v984, 0
      %v1142 = vsel %vm1008, %v985, 0
      %v1145 = vsel %vm1008, %v986, 0
      %v1148 = vsel %vm1008, %v987, 0
      %v1151 = vsel %vm1008, %v988, 0
      %v1154 = vsel %vm1008, %v989, 0
      %v1157 = vsel %vm1008, %v990, 0
      %v1160 = vsel %vm1008, %v991, 0
      %v1163 = vsel %vm1008, %v992, 0
      %v1166 = vsel %vm1008, %v993, 0
      %v1169 = vsel %vm1008, %v994, 0
      %v1172 = vsel %vm1008, %v995, 0
      %v1175 = vsel %vm1008, %v996, 0
      %v1178 = vsel %vm1008, %v997, 0
      %v1181 = vsel %vm1008, %v998, 0
      %v1184 = vsel %vm1008, %v999, 0
      %v1187 = vsel %vm1008, %v1000, 0
      %v1190 = vsel %vm1008, %v1001, 0
      %v1193 = vsel %vm1008, %v1002, 0
      %v1196 = vsel %vm1008, %v1003, 0
      %v1199 = vsel %vm1008, %v1004, 0
      %1201 = vmatprep.subr.mxu0 0.0
      %1202 = vmatpush1.msra.mxu0 %v1005
      %1203 = vmatprep.subr.mxu0 0.0
      %1204 = vmatpush1.msra.mxu0 %v1006
      %1205 = vmatprep.subr.mxu0 0.0
      %1206 = vmatpush1.msra.mxu0 %v1007
      %1207 = vmatprep.subr.mxu0 0.0
      %1208 = vmatpush1.msra.mxu0 0.0
      %1209 = vmatprep.subr.mxu0 0.0
      %1210 = vmatpush1.msra.mxu0 0.0
      %1211 = vmatprep.subr.mxu0 0.0
      %1212 = vmatpush1.msra.mxu0 0.0
      %1213 = vmatprep.subr.mxu0 0.0
      %1214 = vmatpush1.msra.mxu0 0.0
      %1215 = vmatprep.subr.mxu0 0.0
      %1216 = vmatpush1.msra.mxu0 0.0
      %1217 = vmatprep.subr.mxu0 0.0
      %1218 = vmatpush1.msra.mxu0 0.0
      %1219 = vmatprep.subr.mxu0 0.0
      %1220 = vmatpush1.msra.mxu0 0.0
      %1221 = vmatprep.subr.mxu0 0.0
      %1222 = vmatpush1.msra.mxu0 0.0
      %1223 = vmatprep.subr.mxu0 0.0
      %1224 = vmatpush1.msra.mxu0 0.0
      %1225 = vmatprep.subr.mxu0 0.0
      %1226 = vmatpush1.msra.mxu0 0.0
      %1227 = vmatprep.subr.mxu0 0.0
      %1228 = vmatpush1.msra.mxu0 0.0
      %1229 = vmatprep.subr.mxu0 0.0
      %1230 = vmatpush1.msra.mxu0 0.0
      %1231 = vmatprep.subr.mxu0 0.0
      %1232 = vmatpush1.msra.mxu0 0.0
      %1233 = vmatprep.subr.mxu0 0.0
      %1234 = vmatpush1.msra.mxu0 0.0
      %1235 = vmatprep.subr.mxu0 0.0
      %1236 = vmatpush1.msra.mxu0 0.0
      %1237 = vmatprep.subr.mxu0 0.0
      %1238 = vmatpush1.msra.mxu0 0.0
      %1239 = vmatprep.subr.mxu0 0.0
      %1240 = vmatpush1.msra.mxu0 0.0
      %1241 = vmatprep.subr.mxu0 0.0
      %1242 = vmatpush1.msra.mxu0 0.0
      %1243 = vmatprep.subr.mxu0 0.0
      %1244 = vmatpush1.msra.mxu0 0.0
      %1245 = vmatprep.subr.mxu0 0.0
      %1246 = vmatpush1.msra.mxu0 0.0
      %1247 = vmatprep.subr.mxu0 0.0
      %1248 = vmatpush1.msra.mxu0 0.0
      %1249 = vmatprep.subr.mxu0 0.0
      %1250 = vmatpush1.msra.mxu0 0.0
      %1251 = vmatprep.subr.mxu0 0.0
      %1252 = vmatpush1.msra.mxu0 0.0
      %1253 = vmatprep.subr.mxu0 0.0
      %1254 = vmatpush1.msra.mxu0 0.0
      %1255 = vmatprep.subr.mxu0 0.0
      %1256 = vmatpush1.msra.mxu0 0.0
      %1257 = vmatprep.subr.mxu0 0.0
      %1258 = vmatpush1.msra.mxu0 0.0
      %1259 = vmatprep.subr.mxu0 0.0
      %1260 = vmatpush1.msra.mxu0 0.0
      %1261 = vmatprep.subr.mxu0 0.0
      %1262 = vmatpush1.msra.mxu0 0.0
      %1263 = vmatprep.subr.mxu0 0.0
      %1264 = vmatpush1.msra.mxu0 0.0
      %1265 = vmatprep.mubr.f32.mxu0 0.0
      %1266 = vmatmul.mubr.f32.gmra.mrb[0].mxu0 %v1010
      %v1267 = vpop.f32.mrb[0].mxu0
      %v1268 = vadd.f32 0.0, %v1267
      %v1269 = vpop.f32.mrb[0].mxu0
      %1270 = vmatprep.mubr.f32.mxu0 0.0
      %1271 = vmatmul.mubr.f32.gmra.mrb[0].mxu0 %v1013
      %v1272 = vpop.f32.mrb[0].mxu0
      %v1273 = vadd.f32 0.0, %v1272
      %v1274 = vpop.f32.mrb[0].mxu0
      %1275 = vmatprep.mubr.f32.mxu0 0.0
      %1276 = vmatmul.mubr.f32.gmra.mrb[0].mxu0 %v1016
      %v1277 = vpop.f32.mrb[0].mxu0
      %v1278 = vadd.f32 0.0, %v1277
      %v1279 = vpop.f32.mrb[0].mxu0
      %1280 = vmatprep.mubr.f32.mxu0 0.0
      %1281 = vmatmul.mubr.f32.gmra.mrb[0].mxu0 %v1019
      %v1282 = vpop.f32.mrb[0].mxu0
      %v1283 = vadd.f32 0.0, %v1282
      %v1284 = vpop.f32.mrb[0].mxu0
      %1285 = vmatprep.mubr.f32.mxu0 0.0
      %1286 = vmatmul.mubr.f32.gmra.mrb[0].mxu0 %v1022
      %v1287 = vpop.f32.mrb[0].mxu0
      %v1288 = vadd.f32 0.0, %v1287
      %v1289 = vpop.f32.mrb[0].mxu0
      %1290 = vmatprep.mubr.f32.mxu0 0.0
      %1291 = vmatmul.mubr.f32.gmra.mrb[0].mxu0 %v1025
      %v1292 = vpop.f32.mrb[0].mxu0
      %v1293 = vadd.f32 0.0, %v1292
      %v1294 = vpop.f32.mrb[0].mxu0
      %1295 = vmatprep.mubr.f32.mxu0 0.0
      %1296 = vmatmul.mubr.f32.gmra.mrb[0].mxu0 %v1028
      %v1297 = vpop.f32.mrb[0].mxu0
      %v1298 = vadd.f32 0.0, %v1297
      %v1299 = vpop.f32.mrb[0].mxu0
      %1300 = vmatprep.mubr.f32.mxu0 0.0
      %1301 = vmatmul.mubr.f32.gmra.mrb[0].mxu0 %v1031
      %v1302 = vpop.f32.mrb[0].mxu0
      %v1303 = vadd.f32 0.0, %v1302
      %v1304 = vpop.f32.mrb[0].mxu0
      %1305 = vmatprep.mubr.f32.mxu0 0.0
      %1306 = vmatmul.mubr.f32.gmra.mrb[0].mxu0 %v1034
      %v1307 = vpop.f32.mrb[0].mxu0
      %v1308 = vadd.f32 0.0, %v1307
      %v1309 = vpop.f32.mrb[0].mxu0
      %1310 = vmatprep.mubr.f32.mxu0 0.0
      %1311 = vmatmul.mubr.f32.gmra.mrb[0].mxu0 %v1037
      %v1312 = vpop.f32.mrb[0].mxu0
      %v1313 = vadd.f32 0.0, %v1312
      %v1314 = vpop.f32.mrb[0].mxu0
      %1315 = vmatprep.mubr.f32.mxu0 0.0
      %1316 = vmatmul.mubr.f32.gmra.mrb[0].mxu0 %v1040
      %v1317 = vpop.f32.mrb[0].mxu0
      %v1318 = vadd.f32 0.0, %v1317
      %v1319 = vpop.f32.mrb[0].mxu0
      %1320 = vmatprep.mubr.f32.mxu0 0.0
      %1321 = vmatmul.mubr.f32.gmra.mrb[0].mxu0 %v1043
      %v1322 = vpop.f32.mrb[0].mxu0
      %v1323 = vadd.f32 0.0, %v1322
      %v1324 = vpop.f32.mrb[0].mxu0
      %1325 = vmatprep.mubr.f32.mxu0 0.0
      %1326 = vmatmul.mubr.f32.gmra.mrb[0].mxu0 %v1046
      %v1327 = vpop.f32.mrb[0].mxu0
      %v1328 = vadd.f32 0.0, %v1327
      %v1329 = vpop.f32.mrb[0].mxu0
      %1330 = vmatprep.mubr.f32.mxu0 0.0
      %1331 = vmatmul.mubr.f32.gmra.mrb[0].mxu0 %v1049
      %v1332 = vpop.f32.mrb[0].mxu0
      %v1333 = vadd.f32 0.0, %v1332
      %v1334 = vpop.f32.mrb[0].mxu0
      %1335 = vmatprep.mubr.f32.mxu0 0.0
      %1336 = vmatmul.mubr.f32.gmra.mrb[0].mxu0 %v1052
      %v1337 = vpop.f32.mrb[0].mxu0
      %v1338 = vadd.f32 0.0, %v1337
      %v1339 = vpop.f32.mrb[0].mxu0
      %1340 = vmatprep.mubr.f32.mxu0 0.0
      %1341 = vmatmul.mubr.f32.gmra.mrb[0].mxu0 %v1055
      %v1342 = vpop.f32.mrb[0].mxu0
      %v1343 = vadd.f32 0.0, %v1342
      %v1344 = vpop.f32.mrb[0].mxu0
      %1345 = vmatprep.mubr.f32.mxu0 0.0
      %1346 = vmatmul.mubr.f32.gmra.mrb[0].mxu0 %v1058
      %v1347 = vpop.f32.mrb[0].mxu0
      %v1348 = vadd.f32 0.0, %v1347
      %v1349 = vpop.f32.mrb[0].mxu0
      %1350 = vmatprep.mubr.f32.mxu0 0.0
      %1351 = vmatmul.mubr.f32.gmra.mrb[0].mxu0 %v1061
      %v1352 = vpop.f32.mrb[0].mxu0
      %v1353 = vadd.f32 0.0, %v1352
      %v1354 = vpop.f32.mrb[0].mxu0
      %1355 = vmatprep.mubr.f32.mxu0 0.0
      %1356 = vmatmul.mubr.f32.gmra.mrb[0].mxu0 %v1064
      %v1357 = vpop.f32.mrb[0].mxu0
      %v1358 = vadd.f32 0.0, %v1357
      %v1359 = vpop.f32.mrb[0].mxu0
      %1360 = vmatprep.mubr.f32.mxu0 0.0
      %1361 = vmatmul.mubr.f32.gmra.mrb[0].mxu0 %v1067
      %v1362 = vpop.f32.mrb[0].mxu0
      %v1363 = vadd.f32 0.0, %v1362
      %v1364 = vpop.f32.mrb[0].mxu0
      %1365 = vmatprep.mubr.f32.mxu0 0.0
      %1366 = vmatmul.mubr.f32.gmra.mrb[0].mxu0 %v1070
      %v1367 = vpop.f32.mrb[0].mxu0
      %v1368 = vadd.f32 0.0, %v1367
      %v1369 = vpop.f32.mrb[0].mxu0
      %1370 = vmatprep.mubr.f32.mxu0 0.0
      %1371 = vmatmul.mubr.f32.gmra.mrb[0].mxu0 %v1073
      %v1372 = vpop.f32.mrb[0].mxu0
      %v1373 = vadd.f32 0.0, %v1372
      %v1374 = vpop.f32.mrb[0].mxu0
      %1375 = vmatprep.mubr.f32.mxu0 0.0
      %1376 = vmatmul.mubr.f32.gmra.mrb[0].mxu0 %v1076
      %v1377 = vpop.f32.mrb[0].mxu0
      %v1378 = vadd.f32 0.0, %v1377
      %v1379 = vpop.f32.mrb[0].mxu0
      %1380 = vmatprep.mubr.f32.mxu0 0.0
      %1381 = vmatmul.mubr.f32.gmra.mrb[0].mxu0 %v1079
      %v1382 = vpop.f32.mrb[0].mxu0
      %v1383 = vadd.f32 0.0, %v1382
      %v1384 = vpop.f32.mrb[0].mxu0
      %1385 = vmatprep.mubr.f32.mxu0 0.0
      %1386 = vmatmul.mubr.f32.gmra.mrb[0].mxu0 %v1082
      %v1387 = vpop.f32.mrb[0].mxu0
      %v1388 = vadd.f32 0.0, %v1387
      %v1389 = vpop.f32.mrb[0].mxu0
      %1390 = vmatprep.mubr.f32.mxu0 0.0
      %1391 = vmatmul.mubr.f32.gmra.mrb[0].mxu0 %v1085
      %v1392 = vpop.f32.mrb[0].mxu0
      %v1393 = vadd.f32 0.0, %v1392
      %v1394 = vpop.f32.mrb[0].mxu0
      %1395 = vmatprep.mubr.f32.mxu0 0.0
      %1396 = vmatmul.mubr.f32.gmra.mrb[0].mxu0 %v1088
      %v1397 = vpop.f32.mrb[0].mxu0
      %v1398 = vadd.f32 0.0, %v1397
      %v1399 = vpop.f32.mrb[0].mxu0
      %1400 = vmatprep.mubr.f32.mxu0 0.0
      %1401 = vmatmul.mubr.f32.gmra.mrb[0].mxu0 %v1091
      %v1402 = vpop.f32.mrb[0].mxu0
      %v1403 = vadd.f32 0.0, %v1402
      %v1404 = vpop.f32.mrb[0].mxu0
      %1405 = vmatprep.mubr.f32.mxu0 0.0
      %1406 = vmatmul.mubr.f32.gmra.mrb[0].mxu0 %v1094
      %v1407 = vpop.f32.mrb[0].mxu0
      %v1408 = vadd.f32 0.0, %v1407
      %v1409 = vpop.f32.mrb[0].mxu0
      %1410 = vmatprep.mubr.f32.mxu0 0.0
      %1411 = vmatmul.mubr.f32.gmra.mrb[0].mxu0 %v1097
      %v1412 = vpop.f32.mrb[0].mxu0
      %v1413 = vadd.f32 0.0, %v1412
      %v1414 = vpop.f32.mrb[0].mxu0
      %1415 = vmatprep.mubr.f32.mxu0 0.0
      %1416 = vmatmul.mubr.f32.gmra.mrb[0].mxu0 %v1100
      %v1417 = vpop.f32.mrb[0].mxu0
      %v1418 = vadd.f32 0.0, %v1417
      %v1419 = vpop.f32.mrb[0].mxu0
      %1420 = vmatprep.mubr.f32.mxu0 0.0
      %1421 = vmatmul.mubr.f32.gmra.mrb[0].mxu0 %v1103
      %v1422 = vpop.f32.mrb[0].mxu0
      %v1423 = vadd.f32 0.0, %v1422
      %v1424 = vpop.f32.mrb[0].mxu0
      %1425 = vmatprep.mubr.f32.mxu0 0.0
      %1426 = vmatmul.mubr.f32.gmra.mrb[0].mxu0 %v1106
      %v1427 = vpop.f32.mrb[0].mxu0
      %v1428 = vadd.f32 0.0, %v1427
      %v1429 = vpop.f32.mrb[0].mxu0
      %1430 = vmatprep.mubr.f32.mxu0 0.0
      %1431 = vmatmul.mubr.f32.gmra.mrb[0].mxu0 %v1109
      %v1432 = vpop.f32.mrb[0].mxu0
      %v1433 = vadd.f32 0.0, %v1432
      %v1434 = vpop.f32.mrb[0].mxu0
      %1435 = vmatprep.mubr.f32.mxu0 0.0
      %1436 = vmatmul.mubr.f32.gmra.mrb[0].mxu0 %v1112
      %v1437 = vpop.f32.mrb[0].mxu0
      %v1438 = vadd.f32 0.0, %v1437
      %v1439 = vpop.f32.mrb[0].mxu0
      %1440 = vmatprep.mubr.f32.mxu0 0.0
      %1441 = vmatmul.mubr.f32.gmra.mrb[0].mxu0 %v1115
      %v1442 = vpop.f32.mrb[0].mxu0
      %v1443 = vadd.f32 0.0, %v1442
      %v1444 = vpop.f32.mrb[0].mxu0
      %1445 = vmatprep.mubr.f32.mxu0 0.0
      %1446 = vmatmul.mubr.f32.gmra.mrb[0].mxu0 %v1118
      %v1447 = vpop.f32.mrb[0].mxu0
      %v1448 = vadd.f32 0.0, %v1447
      %v1449 = vpop.f32.mrb[0].mxu0
      %1450 = vmatprep.mubr.f32.mxu0 0.0
      %1451 = vmatmul.mubr.f32.gmra.mrb[0].mxu0 %v1121
      %v1452 = vpop.f32.mrb[0].mxu0
      %v1453 = vadd.f32 0.0, %v1452
      %v1454 = vpop.f32.mrb[0].mxu0
      %1455 = vmatprep.mubr.f32.mxu0 0.0
      %1456 = vmatmul.mubr.f32.gmra.mrb[0].mxu0 %v1124
      %v1457 = vpop.f32.mrb[0].mxu0
      %v1458 = vadd.f32 0.0, %v1457
      %v1459 = vpop.f32.mrb[0].mxu0
      %1460 = vmatprep.mubr.f32.mxu0 0.0
      %1461 = vmatmul.mubr.f32.gmra.mrb[0].mxu0 %v1127
      %v1462 = vpop.f32.mrb[0].mxu0
      %v1463 = vadd.f32 0.0, %v1462
      %v1464 = vpop.f32.mrb[0].mxu0
      %1465 = vmatprep.mubr.f32.mxu0 0.0
      %1466 = vmatmul.mubr.f32.gmra.mrb[0].mxu0 %v1130
      %v1467 = vpop.f32.mrb[0].mxu0
      %v1468 = vadd.f32 0.0, %v1467
      %v1469 = vpop.f32.mrb[0].mxu0
      %1470 = vmatprep.mubr.f32.mxu0 0.0
      %1471 = vmatmul.mubr.f32.gmra.mrb[0].mxu0 %v1133
      %v1472 = vpop.f32.mrb[0].mxu0
      %v1473 = vadd.f32 0.0, %v1472
      %v1474 = vpop.f32.mrb[0].mxu0
      %1475 = vmatprep.mubr.f32.mxu0 0.0
      %1476 = vmatmul.mubr.f32.gmra.mrb[0].mxu0 %v1136
      %v1477 = vpop.f32.mrb[0].mxu0
      %v1478 = vadd.f32 0.0, %v1477
      %v1479 = vpop.f32.mrb[0].mxu0
      %1480 = vmatprep.mubr.f32.mxu0 0.0
      %1481 = vmatmul.mubr.f32.gmra.mrb[0].mxu0 %v1139
      %v1482 = vpop.f32.mrb[0].mxu0
      %v1483 = vadd.f32 0.0, %v1482
      %v1484 = vpop.f32.mrb[0].mxu0
      %1485 = vmatprep.mubr.f32.mxu0 0.0
      %1486 = vmatmul.mubr.f32.gmra.mrb[0].mxu0 %v1142
      %v1487 = vpop.f32.mrb[0].mxu0
      %v1488 = vadd.f32 0.0, %v1487
      %v1489 = vpop.f32.mrb[0].mxu0
      %1490 = vmatprep.mubr.f32.mxu0 0.0
      %1491 = vmatmul.mubr.f32.gmra.mrb[0].mxu0 %v1145
      %v1492 = vpop.f32.mrb[0].mxu0
      %v1493 = vadd.f32 0.0, %v1492
      %v1494 = vpop.f32.mrb[0].mxu0
      %1495 = vmatprep.mubr.f32.mxu0 0.0
      %1496 = vmatmul.mubr.f32.gmra.mrb[0].mxu0 %v1148
      %v1497 = vpop.f32.mrb[0].mxu0
      %v1498 = vadd.f32 0.0, %v1497
      %v1499 = vpop.f32.mrb[0].mxu0
      %1500 = vmatprep.mubr.f32.mxu0 0.0
      %1501 = vmatmul.mubr.f32.gmra.mrb[0].mxu0 %v1151
      %v1502 = vpop.f32.mrb[0].mxu0
      %v1503 = vadd.f32 0.0, %v1502
      %v1504 = vpop.f32.mrb[0].mxu0
      %1505 = vmatprep.mubr.f32.mxu0 0.0
      %1506 = vmatmul.mubr.f32.gmra.mrb[0].mxu0 %v1154
      %v1507 = vpop.f32.mrb[0].mxu0
      %v1508 = vadd.f32 0.0, %v1507
      %v1509 = vpop.f32.mrb[0].mxu0
      %1510 = vmatprep.mubr.f32.mxu0 0.0
      %1511 = vmatmul.mubr.f32.gmra.mrb[0].mxu0 %v1157
      %v1512 = vpop.f32.mrb[0].mxu0
      %v1513 = vadd.f32 0.0, %v1512
      %v1514 = vpop.f32.mrb[0].mxu0
      %1515 = vmatprep.mubr.f32.mxu0 0.0
      %1516 = vmatmul.mubr.f32.gmra.mrb[0].mxu0 %v1160
      %v1517 = vpop.f32.mrb[0].mxu0
      %v1518 = vadd.f32 0.0, %v1517
      %v1519 = vpop.f32.mrb[0].mxu0
      %1520 = vmatprep.mubr.f32.mxu0 0.0
      %1521 = vmatmul.mubr.f32.gmra.mrb[0].mxu0 %v1163
      %v1522 = vpop.f32.mrb[0].mxu0
      %v1523 = vadd.f32 0.0, %v1522
      %v1524 = vpop.f32.mrb[0].mxu0
      %1525 = vmatprep.mubr.f32.mxu0 0.0
      %1526 = vmatmul.mubr.f32.gmra.mrb[0].mxu0 %v1166
      %v1527 = vpop.f32.mrb[0].mxu0
      %v1528 = vadd.f32 0.0, %v1527
      %v1529 = vpop.f32.mrb[0].mxu0
      %1530 = vmatprep.mubr.f32.mxu0 0.0
      %1531 = vmatmul.mubr.f32.gmra.mrb[0].mxu0 %v1169
      %v1532 = vpop.f32.mrb[0].mxu0
      %v1533 = vadd.f32 0.0, %v1532
      %v1534 = vpop.f32.mrb[0].mxu0
      %1535 = vmatprep.mubr.f32.mxu0 0.0
      %1536 = vmatmul.mubr.f32.gmra.mrb[0].mxu0 %v1172
      %v1537 = vpop.f32.mrb[0].mxu0
      %v1538 = vadd.f32 0.0, %v1537
      %v1539 = vpop.f32.mrb[0].mxu0
      %1540 = vmatprep.mubr.f32.mxu0 0.0
      %1541 = vmatmul.mubr.f32.gmra.mrb[0].mxu0 %v1175
      %v1542 = vpop.f32.mrb[0].mxu0
      %v1543 = vadd.f32 0.0, %v1542
      %v1544 = vpop.f32.mrb[0].mxu0
      %1545 = vmatprep.mubr.f32.mxu0 0.0
      %1546 = vmatmul.mubr.f32.gmra.mrb[0].mxu0 %v1178
      %v1547 = vpop.f32.mrb[0].mxu0
      %v1548 = vadd.f32 0.0, %v1547
      %v1549 = vpop.f32.mrb[0].mxu0
      %1550 = vmatprep.mubr.f32.mxu0 0.0
      %1551 = vmatmul.mubr.f32.gmra.mrb[0].mxu0 %v1181
      %v1552 = vpop.f32.mrb[0].mxu0
      %v1553 = vadd.f32 0.0, %v1552
      %v1554 = vpop.f32.mrb[0].mxu0
      %1555 = vmatprep.mubr.f32.mxu0 0.0
      %1556 = vmatmul.mubr.f32.gmra.mrb[0].mxu0 %v1184
      %v1557 = vpop.f32.mrb[0].mxu0
      %v1558 = vadd.f32 0.0, %v1557
      %v1559 = vpop.f32.mrb[0].mxu0
      %1560 = vmatprep.mubr.f32.mxu0 0.0
      %1561 = vmatmul.mubr.f32.gmra.mrb[0].mxu0 %v1187
      %v1562 = vpop.f32.mrb[0].mxu0
      %v1563 = vadd.f32 0.0, %v1562
      %v1564 = vpop.f32.mrb[0].mxu0
      %1565 = vmatprep.mubr.f32.mxu0 0.0
      %1566 = vmatmul.mubr.f32.gmra.mrb[0].mxu0 %v1190
      %v1567 = vpop.f32.mrb[0].mxu0
      %v1568 = vadd.f32 0.0, %v1567
      %v1569 = vpop.f32.mrb[0].mxu0
      %1570 = vmatprep.mubr.f32.mxu0 0.0
      %1571 = vmatmul.mubr.f32.gmra.mrb[0].mxu0 %v1193
      %v1572 = vpop.f32.mrb[0].mxu0
      %v1573 = vadd.f32 0.0, %v1572
      %v1574 = vpop.f32.mrb[0].mxu0
      %1575 = vmatprep.mubr.f32.mxu0 0.0
      %1576 = vmatmul.mubr.f32.gmra.mrb[0].mxu0 %v1196
      %v1577 = vpop.f32.mrb[0].mxu0
      %v1578 = vadd.f32 0.0, %v1577
      %v1579 = vpop.f32.mrb[0].mxu0
      %1580 = vmatprep.mubr.f32.mxu0 0.0
      %1581 = vmatmul.mubr.f32.gmra.mrb[0].mxu0 %v1199
      %v1582 = vpop.f32.mrb[0].mxu0
      %v1583 = vadd.f32 0.0, %v1582
      %v1584 = vpop.f32.mrb[0].mxu0
      %1585 = vdwg.mxu0
      %v1586 = vld [vmem:[%s528] sm:$0xff]
      %v1587 = vld [vmem:[%s528 + $0x8] sm:$0xff]
      %v1588 = vld [vmem:[%s528 + $0x10] sm:$0xff]
      %v1589 = vld [vmem:[%s528 + $0x18] sm:$0xff]
      %v1590 = vld [vmem:[%s528 + $0x20] sm:$0xff]
      %v1591 = vld [vmem:[%s528 + $0x28] sm:$0xff]
      %v1592 = vld [vmem:[%s528 + $0x30] sm:$0xff]
      %v1593 = vld [vmem:[%s528 + $0x38] sm:$0xff]
      %v1594 = vld [vmem:[%s528 + $0x40] sm:$0xff]
      %v1595 = vld [vmem:[%s528 + $0x48] sm:$0xff]
      %v1596 = vld [vmem:[%s528 + $0x50] sm:$0xff]
      %v1597 = vld [vmem:[%s528 + $0x58] sm:$0xff]
      %v1598 = vld [vmem:[%s528 + $0x60] sm:$0xff]
      %v1599 = vld [vmem:[%s528 + $0x68] sm:$0xff]
      %v1600 = vld [vmem:[%s528 + $0x70] sm:$0xff]
      %v1601 = vld [vmem:[%s528 + $0x78] sm:$0xff]
      %v1602 = vld [vmem:[%s528 + $0x80] sm:$0xff]
      %v1603 = vld [vmem:[%s528 + $0x88] sm:$0xff]
      %v1604 = vld [vmem:[%s528 + $0x90] sm:$0xff]
      %v1605 = vld [vmem:[%s528 + $0x98] sm:$0xff]
      %v1606 = vld [vmem:[%s528 + $0xa0] sm:$0xff]
      %v1607 = vld [vmem:[%s528 + $0xa8] sm:$0xff]
      %v1608 = vld [vmem:[%s528 + $0xb0] sm:$0xff]
      %v1609 = vld [vmem:[%s528 + $0xb8] sm:$0xff]
      %v1610 = vld [vmem:[%s528 + $0xc0] sm:$0xff]
      %v1611 = vld [vmem:[%s528 + $0xc8] sm:$0xff]
      %v1612 = vld [vmem:[%s528 + $0xd0] sm:$0xff]
      %v1613 = vld [vmem:[%s528 + $0xd8] sm:$0xff]
      %v1614 = vld [vmem:[%s528 + $0xe0] sm:$0xff]
      %v1615 = vld [vmem:[%s528 + $0xe8] sm:$0xff]
      %v1616 = vld [vmem:[%s528 + $0xf0] sm:$0xff]
      %v1617 = vld [vmem:[%s528 + $0xf8] sm:$0xff]
      %v1618 = vld [vmem:[%s528 + $0x100] sm:$0xff]
      %v1619 = vld [vmem:[%s528 + $0x108] sm:$0xff]
      %v1620 = vld [vmem:[%s528 + $0x110] sm:$0xff]
      %v1621 = vld [vmem:[%s528 + $0x118] sm:$0xff]
      %v1622 = vld [vmem:[%s528 + $0x120] sm:$0xff]
      %v1623 = vld [vmem:[%s528 + $0x128] sm:$0xff]
      %v1624 = vld [vmem:[%s528 + $0x130] sm:$0xff]
      %v1625 = vld [vmem:[%s528 + $0x138] sm:$0xff]
      %v1626 = vld [vmem:[%s528 + $0x140] sm:$0xff]
      %v1627 = vld [vmem:[%s528 + $0x148] sm:$0xff]
      %v1628 = vld [vmem:[%s528 + $0x150] sm:$0xff]
      %v1629 = vld [vmem:[%s528 + $0x158] sm:$0xff]
      %v1630 = vld [vmem:[%s528 + $0x160] sm:$0xff]
      %v1631 = vld [vmem:[%s528 + $0x168] sm:$0xff]
      %v1632 = vld [vmem:[%s528 + $0x170] sm:$0xff]
      %v1633 = vld [vmem:[%s528 + $0x178] sm:$0xff]
      %v1634 = vld [vmem:[%s528 + $0x180] sm:$0xff]
      %v1635 = vld [vmem:[%s528 + $0x188] sm:$0xff]
      %v1636 = vld [vmem:[%s528 + $0x190] sm:$0xff]
      %v1637 = vld [vmem:[%s528 + $0x198] sm:$0xff]
      %v1638 = vld [vmem:[%s528 + $0x1a0] sm:$0xff]
      %v1639 = vld [vmem:[%s528 + $0x1a8] sm:$0xff]
      %v1640 = vld [vmem:[%s528 + $0x1b0] sm:$0xff]
      %v1641 = vld [vmem:[%s528 + $0x1b8] sm:$0xff]
      %v1642 = vld [vmem:[%s528 + $0x1c0] sm:$0xff]
      %v1643 = vld [vmem:[%s528 + $0x1c8] sm:$0xff]
      %v1644 = vld [vmem:[%s528 + $0x1d0] sm:$0xff]
      %v1645 = vld [vmem:[%s528 + $0x1d8] sm:$0xff]
      %v1646 = vld [vmem:[%s528 + $0x1e0] sm:$0xff]
      %v1647 = vld [vmem:[%s528 + $0x1e8] sm:$0xff]
      %v1648 = vld [vmem:[%s528 + $0x1f0] sm:$0xff]
      %v1649 = vld [vmem:[%s528 + $0x1f8] sm:$0xff]
      %v1650 = vld [vmem:[%s5] sm:$0xff]
      %v1651 = vld [vmem:[%s6] sm:$0x1]
      %v1653 = vlaneseq
      %v1654 = vshrl.u32 %v1653, 7
      %v1655 = vsub.s32 0, %v1654
      %v1656 = vrot.slane %v1651, %v1655
      %vm1658 = vcmask 64512
      %v1660 = vsel %vm1658, %v1586, 0
      %v1663 = vsel %vm1658, %v1587, 0
      %v1666 = vsel %vm1658, %v1588, 0
      %v1669 = vsel %vm1658, %v1589, 0
      %v1672 = vsel %vm1658, %v1590, 0
      %v1675 = vsel %vm1658, %v1591, 0
      %v1678 = vsel %vm1658, %v1592, 0
      %v1681 = vsel %vm1658, %v1593, 0
      %v1684 = vsel %vm1658, %v1594, 0
      %v1687 = vsel %vm1658, %v1595, 0
      %v1690 = vsel %vm1658, %v1596, 0
      %v1693 = vsel %vm1658, %v1597, 0
      %v1696 = vsel %vm1658, %v1598, 0
      %v1699 = vsel %vm1658, %v1599, 0
      %v1702 = vsel %vm1658, %v1600, 0
      %v1705 = vsel %vm1658, %v1601, 0
      %v1708 = vsel %vm1658, %v1602, 0
      %v1711 = vsel %vm1658, %v1603, 0
      %v1714 = vsel %vm1658, %v1604, 0
      %v1717 = vsel %vm1658, %v1605, 0
      %v1720 = vsel %vm1658, %v1606, 0
      %v1723 = vsel %vm1658, %v1607, 0
      %v1726 = vsel %vm1658, %v1608, 0
      %v1729 = vsel %vm1658, %v1609, 0
      %v1732 = vsel %vm1658, %v1610, 0
      %v1735 = vsel %vm1658, %v1611, 0
      %v1738 = vsel %vm1658, %v1612, 0
      %v1741 = vsel %vm1658, %v1613, 0
      %v1744 = vsel %vm1658, %v1614, 0
      %v1747 = vsel %vm1658, %v1615, 0
      %v1750 = vsel %vm1658, %v1616, 0
      %v1753 = vsel %vm1658, %v1617, 0
      %v1756 = vsel %vm1658, %v1618, 0
      %v1759 = vsel %vm1658, %v1619, 0
      %v1762 = vsel %vm1658, %v1620, 0
      %v1765 = vsel %vm1658, %v1621, 0
      %v1768 = vsel %vm1658, %v1622, 0
      %v1771 = vsel %vm1658, %v1623, 0
      %v1774 = vsel %vm1658, %v1624, 0
      %v1777 = vsel %vm1658, %v1625, 0
      %v1780 = vsel %vm1658, %v1626, 0
      %v1783 = vsel %vm1658, %v1627, 0
      %v1786 = vsel %vm1658, %v1628, 0
      %v1789 = vsel %vm1658, %v1629, 0
      %v1792 = vsel %vm1658, %v1630, 0
      %v1795 = vsel %vm1658, %v1631, 0
      %v1798 = vsel %vm1658, %v1632, 0
      %v1801 = vsel %vm1658, %v1633, 0
      %v1804 = vsel %vm1658, %v1634, 0
      %v1807 = vsel %vm1658, %v1635, 0
      %v1810 = vsel %vm1658, %v1636, 0
      %v1813 = vsel %vm1658, %v1637, 0
      %v1816 = vsel %vm1658, %v1638, 0
      %v1819 = vsel %vm1658, %v1639, 0
      %v1822 = vsel %vm1658, %v1640, 0
      %v1825 = vsel %vm1658, %v1641, 0
      %v1828 = vsel %vm1658, %v1642, 0
      %v1831 = vsel %vm1658, %v1643, 0
      %v1834 = vsel %vm1658, %v1644, 0
      %v1837 = vsel %vm1658, %v1645, 0
      %v1840 = vsel %vm1658, %v1646, 0
      %v1843 = vsel %vm1658, %v1647, 0
      %v1846 = vsel %vm1658, %v1648, 0
      %v1849 = vsel %vm1658, %v1649, 0
      %1851 = vmatprep.subr.mxu0 0.0
      %1852 = vmatpush1.msra.mxu0 %v1650
      %1853 = vmatprep.subr.mxu0 0.0
      %1854 = vmatpush1.msra.mxu0 0.0
      %1855 = vmatprep.subr.mxu0 0.0
      %1856 = vmatpush1.msra.mxu0 0.0
      %1857 = vmatprep.subr.mxu0 0.0
      %1858 = vmatpush1.msra.mxu0 0.0
      %1859 = vmatprep.subr.mxu0 0.0
      %1860 = vmatpush1.msra.mxu0 0.0
      %1861 = vmatprep.subr.mxu0 0.0
      %1862 = vmatpush1.msra.mxu0 0.0
      %1863 = vmatprep.subr.mxu0 0.0
      %1864 = vmatpush1.msra.mxu0 0.0
      %1865 = vmatprep.subr.mxu0 0.0
      %1866 = vmatpush1.msra.mxu0 0.0
      %1867 = vmatprep.subr.mxu0 0.0
      %1868 = vmatpush1.msra.mxu0 0.0
      %1869 = vmatprep.subr.mxu0 0.0
      %1870 = vmatpush1.msra.mxu0 0.0
      %1871 = vmatprep.subr.mxu0 0.0
      %1872 = vmatpush1.msra.mxu0 0.0
      %1873 = vmatprep.subr.mxu0 0.0
      %1874 = vmatpush1.msra.mxu0 0.0
      %1875 = vmatprep.subr.mxu0 0.0
      %1876 = vmatpush1.msra.mxu0 0.0
      %1877 = vmatprep.subr.mxu0 0.0
      %1878 = vmatpush1.msra.mxu0 0.0
      %1879 = vmatprep.subr.mxu0 0.0
      %1880 = vmatpush1.msra.mxu0 0.0
      %1881 = vmatprep.subr.mxu0 0.0
      %1882 = vmatpush1.msra.mxu0 0.0
      %1883 = vmatprep.subr.mxu0 0.0
      %1884 = vmatpush1.msra.mxu0 0.0
      %1885 = vmatprep.subr.mxu0 0.0
      %1886 = vmatpush1.msra.mxu0 0.0
      %1887 = vmatprep.subr.mxu0 0.0
      %1888 = vmatpush1.msra.mxu0 0.0
      %1889 = vmatprep.subr.mxu0 0.0
      %1890 = vmatpush1.msra.mxu0 0.0
      %1891 = vmatprep.subr.mxu0 0.0
      %1892 = vmatpush1.msra.mxu0 0.0
      %1893 = vmatprep.subr.mxu0 0.0
      %1894 = vmatpush1.msra.mxu0 0.0
      %1895 = vmatprep.subr.mxu0 0.0
      %1896 = vmatpush1.msra.mxu0 0.0
      %1897 = vmatprep.subr.mxu0 0.0
      %1898 = vmatpush1.msra.mxu0 0.0
      %1899 = vmatprep.subr.mxu0 0.0
      %1900 = vmatpush1.msra.mxu0 0.0
      %1901 = vmatprep.subr.mxu0 0.0
      %1902 = vmatpush1.msra.mxu0 0.0
      %1903 = vmatprep.subr.mxu0 0.0
      %1904 = vmatpush1.msra.mxu0 0.0
      %1905 = vmatprep.subr.mxu0 0.0
      %1906 = vmatpush1.msra.mxu0 0.0
      %1907 = vmatprep.subr.mxu0 0.0
      %1908 = vmatpush1.msra.mxu0 0.0
      %1909 = vmatprep.subr.mxu0 0.0
      %1910 = vmatpush1.msra.mxu0 0.0
      %1911 = vmatprep.subr.mxu0 0.0
      %1912 = vmatpush1.msra.mxu0 0.0
      %1913 = vmatprep.subr.mxu0 0.0
      %1914 = vmatpush1.msra.mxu0 0.0
      %1915 = vmatprep.mubr.f32.mxu0 0.0
      %1916 = vmatmul.mubr.f32.gmra.mrb[0].mxu0 %v1660
      %v1917 = vpop.f32.mrb[0].mxu0
      %v1918 = vadd.f32 %v1656, %v1917
      %v1919 = vpop.f32.mrb[0].mxu0
      %1920 = vmatprep.mubr.f32.mxu0 0.0
      %1921 = vmatmul.mubr.f32.gmra.mrb[0].mxu0 %v1663
      %v1922 = vpop.f32.mrb[0].mxu0
      %v1923 = vadd.f32 %v1656, %v1922
      %v1924 = vpop.f32.mrb[0].mxu0
      %1925 = vmatprep.mubr.f32.mxu0 0.0
      %1926 = vmatmul.mubr.f32.gmra.mrb[0].mxu0 %v1666
      %v1927 = vpop.f32.mrb[0].mxu0
      %v1928 = vadd.f32 %v1656, %v1927
      %v1929 = vpop.f32.mrb[0].mxu0
      %1930 = vmatprep.mubr.f32.mxu0 0.0
      %1931 = vmatmul.mubr.f32.gmra.mrb[0].mxu0 %v1669
      %v1932 = vpop.f32.mrb[0].mxu0
      %v1933 = vadd.f32 %v1656, %v1932
      %v1934 = vpop.f32.mrb[0].mxu0
      %1935 = vmatprep.mubr.f32.mxu0 0.0
      %1936 = vmatmul.mubr.f32.gmra.mrb[0].mxu0 %v1672
      %v1937 = vpop.f32.mrb[0].mxu0
      %v1938 = vadd.f32 %v1656, %v1937
      %v1939 = vpop.f32.mrb[0].mxu0
      %1940 = vmatprep.mubr.f32.mxu0 0.0
      %1941 = vmatmul.mubr.f32.gmra.mrb[0].mxu0 %v1675
      %v1942 = vpop.f32.mrb[0].mxu0
      %v1943 = vadd.f32 %v1656, %v1942
      %v1944 = vpop.f32.mrb[0].mxu0
      %1945 = vmatprep.mubr.f32.mxu0 0.0
      %1946 = vmatmul.mubr.f32.gmra.mrb[0].mxu0 %v1678
      %v1947 = vpop.f32.mrb[0].mxu0
      %v1948 = vadd.f32 %v1656, %v1947
      %v1949 = vpop.f32.mrb[0].mxu0
      %1950 = vmatprep.mubr.f32.mxu0 0.0
      %1951 = vmatmul.mubr.f32.gmra.mrb[0].mxu0 %v1681
      %v1952 = vpop.f32.mrb[0].mxu0
      %v1953 = vadd.f32 %v1656, %v1952
      %v1954 = vpop.f32.mrb[0].mxu0
      %1955 = vmatprep.mubr.f32.mxu0 0.0
      %1956 = vmatmul.mubr.f32.gmra.mrb[0].mxu0 %v1684
      %v1957 = vpop.f32.mrb[0].mxu0
      %v1958 = vadd.f32 %v1656, %v1957
      %v1959 = vpop.f32.mrb[0].mxu0
      %1960 = vmatprep.mubr.f32.mxu0 0.0
      %1961 = vmatmul.mubr.f32.gmra.mrb[0].mxu0 %v1687
      %v1962 = vpop.f32.mrb[0].mxu0
      %v1963 = vadd.f32 %v1656, %v1962
      %v1964 = vpop.f32.mrb[0].mxu0
      %1965 = vmatprep.mubr.f32.mxu0 0.0
      %1966 = vmatmul.mubr.f32.gmra.mrb[0].mxu0 %v1690
      %v1967 = vpop.f32.mrb[0].mxu0
      %v1968 = vadd.f32 %v1656, %v1967
      %v1969 = vpop.f32.mrb[0].mxu0
      %1970 = vmatprep.mubr.f32.mxu0 0.0
      %1971 = vmatmul.mubr.f32.gmra.mrb[0].mxu0 %v1693
      %v1972 = vpop.f32.mrb[0].mxu0
      %v1973 = vadd.f32 %v1656, %v1972
      %v1974 = vpop.f32.mrb[0].mxu0
      %1975 = vmatprep.mubr.f32.mxu0 0.0
      %1976 = vmatmul.mubr.f32.gmra.mrb[0].mxu0 %v1696
      %v1977 = vpop.f32.mrb[0].mxu0
      %v1978 = vadd.f32 %v1656, %v1977
      %v1979 = vpop.f32.mrb[0].mxu0
      %1980 = vmatprep.mubr.f32.mxu0 0.0
      %1981 = vmatmul.mubr.f32.gmra.mrb[0].mxu0 %v1699
      %v1982 = vpop.f32.mrb[0].mxu0
      %v1983 = vadd.f32 %v1656, %v1982
      %v1984 = vpop.f32.mrb[0].mxu0
      %1985 = vmatprep.mubr.f32.mxu0 0.0
      %1986 = vmatmul.mubr.f32.gmra.mrb[0].mxu0 %v1702
      %v1987 = vpop.f32.mrb[0].mxu0
      %v1988 = vadd.f32 %v1656, %v1987
      %v1989 = vpop.f32.mrb[0].mxu0
      %1990 = vmatprep.mubr.f32.mxu0 0.0
      %1991 = vmatmul.mubr.f32.gmra.mrb[0].mxu0 %v1705
      %v1992 = vpop.f32.mrb[0].mxu0
      %v1993 = vadd.f32 %v1656, %v1992
      %v1994 = vpop.f32.mrb[0].mxu0
      %1995 = vmatprep.mubr.f32.mxu0 0.0
      %1996 = vmatmul.mubr.f32.gmra.mrb[0].mxu0 %v1708
      %v1997 = vpop.f32.mrb[0].mxu0
      %v1998 = vadd.f32 %v1656, %v1997
      %v1999 = vpop.f32.mrb[0].mxu0
      %2000 = vmatprep.mubr.f32.mxu0 0.0
      %2001 = vmatmul.mubr.f32.gmra.mrb[0].mxu0 %v1711
      %v2002 = vpop.f32.mrb[0].mxu0
      %v2003 = vadd.f32 %v1656, %v2002
      %v2004 = vpop.f32.mrb[0].mxu0
      %2005 = vmatprep.mubr.f32.mxu0 0.0
      %2006 = vmatmul.mubr.f32.gmra.mrb[0].mxu0 %v1714
      %v2007 = vpop.f32.mrb[0].mxu0
      %v2008 = vadd.f32 %v1656, %v2007
      %v2009 = vpop.f32.mrb[0].mxu0
      %2010 = vmatprep.mubr.f32.mxu0 0.0
      %2011 = vmatmul.mubr.f32.gmra.mrb[0].mxu0 %v1717
      %v2012 = vpop.f32.mrb[0].mxu0
      %v2013 = vadd.f32 %v1656, %v2012
      %v2014 = vpop.f32.mrb[0].mxu0
      %2015 = vmatprep.mubr.f32.mxu0 0.0
      %2016 = vmatmul.mubr.f32.gmra.mrb[0].mxu0 %v1720
      %v2017 = vpop.f32.mrb[0].mxu0
      %v2018 = vadd.f32 %v1656, %v2017
      %v2019 = vpop.f32.mrb[0].mxu0
      %2020 = vmatprep.mubr.f32.mxu0 0.0
      %2021 = vmatmul.mubr.f32.gmra.mrb[0].mxu0 %v1723
      %v2022 = vpop.f32.mrb[0].mxu0
      %v2023 = vadd.f32 %v1656, %v2022
      %v2024 = vpop.f32.mrb[0].mxu0
      %2025 = vmatprep.mubr.f32.mxu0 0.0
      %2026 = vmatmul.mubr.f32.gmra.mrb[0].mxu0 %v1726
      %v2027 = vpop.f32.mrb[0].mxu0
      %v2028 = vadd.f32 %v1656, %v2027
      %v2029 = vpop.f32.mrb[0].mxu0
      %2030 = vmatprep.mubr.f32.mxu0 0.0
      %2031 = vmatmul.mubr.f32.gmra.mrb[0].mxu0 %v1729
      %v2032 = vpop.f32.mrb[0].mxu0
      %v2033 = vadd.f32 %v1656, %v2032
      %v2034 = vpop.f32.mrb[0].mxu0
      %2035 = vmatprep.mubr.f32.mxu0 0.0
      %2036 = vmatmul.mubr.f32.gmra.mrb[0].mxu0 %v1732
      %v2037 = vpop.f32.mrb[0].mxu0
      %v2038 = vadd.f32 %v1656, %v2037
      %v2039 = vpop.f32.mrb[0].mxu0
      %2040 = vmatprep.mubr.f32.mxu0 0.0
      %2041 = vmatmul.mubr.f32.gmra.mrb[0].mxu0 %v1735
      %v2042 = vpop.f32.mrb[0].mxu0
      %v2043 = vadd.f32 %v1656, %v2042
      %v2044 = vpop.f32.mrb[0].mxu0
      %2045 = vmatprep.mubr.f32.mxu0 0.0
      %2046 = vmatmul.mubr.f32.gmra.mrb[0].mxu0 %v1738
      %v2047 = vpop.f32.mrb[0].mxu0
      %v2048 = vadd.f32 %v1656, %v2047
      %v2049 = vpop.f32.mrb[0].mxu0
      %2050 = vmatprep.mubr.f32.mxu0 0.0
      %2051 = vmatmul.mubr.f32.gmra.mrb[0].mxu0 %v1741
      %v2052 = vpop.f32.mrb[0].mxu0
      %v2053 = vadd.f32 %v1656, %v2052
      %v2054 = vpop.f32.mrb[0].mxu0
      %2055 = vmatprep.mubr.f32.mxu0 0.0
      %2056 = vmatmul.mubr.f32.gmra.mrb[0].mxu0 %v1744
      %v2057 = vpop.f32.mrb[0].mxu0
      %v2058 = vadd.f32 %v1656, %v2057
      %v2059 = vpop.f32.mrb[0].mxu0
      %2060 = vmatprep.mubr.f32.mxu0 0.0
      %2061 = vmatmul.mubr.f32.gmra.mrb[0].mxu0 %v1747
      %v2062 = vpop.f32.mrb[0].mxu0
      %v2063 = vadd.f32 %v1656, %v2062
      %v2064 = vpop.f32.mrb[0].mxu0
      %2065 = vmatprep.mubr.f32.mxu0 0.0
      %2066 = vmatmul.mubr.f32.gmra.mrb[0].mxu0 %v1750
      %v2067 = vpop.f32.mrb[0].mxu0
      %v2068 = vadd.f32 %v1656, %v2067
      %v2069 = vpop.f32.mrb[0].mxu0
      %2070 = vmatprep.mubr.f32.mxu0 0.0
      %2071 = vmatmul.mubr.f32.gmra.mrb[0].mxu0 %v1753
      %v2072 = vpop.f32.mrb[0].mxu0
      %v2073 = vadd.f32 %v1656, %v2072
      %v2074 = vpop.f32.mrb[0].mxu0
      %2075 = vmatprep.mubr.f32.mxu0 0.0
      %2076 = vmatmul.mubr.f32.gmra.mrb[0].mxu0 %v1756
      %v2077 = vpop.f32.mrb[0].mxu0
      %v2078 = vadd.f32 %v1656, %v2077
      %v2079 = vpop.f32.mrb[0].mxu0
      %2080 = vmatprep.mubr.f32.mxu0 0.0
      %2081 = vmatmul.mubr.f32.gmra.mrb[0].mxu0 %v1759
      %v2082 = vpop.f32.mrb[0].mxu0
      %v2083 = vadd.f32 %v1656, %v2082
      %v2084 = vpop.f32.mrb[0].mxu0
      %2085 = vmatprep.mubr.f32.mxu0 0.0
      %2086 = vmatmul.mubr.f32.gmra.mrb[0].mxu0 %v1762
      %v2087 = vpop.f32.mrb[0].mxu0
      %v2088 = vadd.f32 %v1656, %v2087
      %v2089 = vpop.f32.mrb[0].mxu0
      %2090 = vmatprep.mubr.f32.mxu0 0.0
      %2091 = vmatmul.mubr.f32.gmra.mrb[0].mxu0 %v1765
      %v2092 = vpop.f32.mrb[0].mxu0
      %v2093 = vadd.f32 %v1656, %v2092
      %v2094 = vpop.f32.mrb[0].mxu0
      %2095 = vmatprep.mubr.f32.mxu0 0.0
      %2096 = vmatmul.mubr.f32.gmra.mrb[0].mxu0 %v1768
      %v2097 = vpop.f32.mrb[0].mxu0
      %v2098 = vadd.f32 %v1656, %v2097
      %v2099 = vpop.f32.mrb[0].mxu0
      %2100 = vmatprep.mubr.f32.mxu0 0.0
      %2101 = vmatmul.mubr.f32.gmra.mrb[0].mxu0 %v1771
      %v2102 = vpop.f32.mrb[0].mxu0
      %v2103 = vadd.f32 %v1656, %v2102
      %v2104 = vpop.f32.mrb[0].mxu0
      %2105 = vmatprep.mubr.f32.mxu0 0.0
      %2106 = vmatmul.mubr.f32.gmra.mrb[0].mxu0 %v1774
      %v2107 = vpop.f32.mrb[0].mxu0
      %v2108 = vadd.f32 %v1656, %v2107
      %v2109 = vpop.f32.mrb[0].mxu0
      %2110 = vmatprep.mubr.f32.mxu0 0.0
      %2111 = vmatmul.mubr.f32.gmra.mrb[0].mxu0 %v1777
      %v2112 = vpop.f32.mrb[0].mxu0
      %v2113 = vadd.f32 %v1656, %v2112
      %v2114 = vpop.f32.mrb[0].mxu0
      %2115 = vmatprep.mubr.f32.mxu0 0.0
      %2116 = vmatmul.mubr.f32.gmra.mrb[0].mxu0 %v1780
      %v2117 = vpop.f32.mrb[0].mxu0
      %v2118 = vadd.f32 %v1656, %v2117
      %v2119 = vpop.f32.mrb[0].mxu0
      %2120 = vmatprep.mubr.f32.mxu0 0.0
      %2121 = vmatmul.mubr.f32.gmra.mrb[0].mxu0 %v1783
      %v2122 = vpop.f32.mrb[0].mxu0
      %v2123 = vadd.f32 %v1656, %v2122
      %v2124 = vpop.f32.mrb[0].mxu0
      %2125 = vmatprep.mubr.f32.mxu0 0.0
      %2126 = vmatmul.mubr.f32.gmra.mrb[0].mxu0 %v1786
      %v2127 = vpop.f32.mrb[0].mxu0
      %v2128 = vadd.f32 %v1656, %v2127
      %v2129 = vpop.f32.mrb[0].mxu0
      %2130 = vmatprep.mubr.f32.mxu0 0.0
      %2131 = vmatmul.mubr.f32.gmra.mrb[0].mxu0 %v1789
      %v2132 = vpop.f32.mrb[0].mxu0
      %v2133 = vadd.f32 %v1656, %v2132
      %v2134 = vpop.f32.mrb[0].mxu0
      %2135 = vmatprep.mubr.f32.mxu0 0.0
      %2136 = vmatmul.mubr.f32.gmra.mrb[0].mxu0 %v1792
      %v2137 = vpop.f32.mrb[0].mxu0
      %v2138 = vadd.f32 %v1656, %v2137
      %v2139 = vpop.f32.mrb[0].mxu0
      %2140 = vmatprep.mubr.f32.mxu0 0.0
      %2141 = vmatmul.mubr.f32.gmra.mrb[0].mxu0 %v1795
      %v2142 = vpop.f32.mrb[0].mxu0
      %v2143 = vadd.f32 %v1656, %v2142
      %v2144 = vpop.f32.mrb[0].mxu0
      %2145 = vmatprep.mubr.f32.mxu0 0.0
      %2146 = vmatmul.mubr.f32.gmra.mrb[0].mxu0 %v1798
      %v2147 = vpop.f32.mrb[0].mxu0
      %v2148 = vadd.f32 %v1656, %v2147
      %v2149 = vpop.f32.mrb[0].mxu0
      %2150 = vmatprep.mubr.f32.mxu0 0.0
      %2151 = vmatmul.mubr.f32.gmra.mrb[0].mxu0 %v1801
      %v2152 = vpop.f32.mrb[0].mxu0
      %v2153 = vadd.f32 %v1656, %v2152
      %v2154 = vpop.f32.mrb[0].mxu0
      %2155 = vmatprep.mubr.f32.mxu0 0.0
      %2156 = vmatmul.mubr.f32.gmra.mrb[0].mxu0 %v1804
      %v2157 = vpop.f32.mrb[0].mxu0
      %v2158 = vadd.f32 %v1656, %v2157
      %v2159 = vpop.f32.mrb[0].mxu0
      %2160 = vmatprep.mubr.f32.mxu0 0.0
      %2161 = vmatmul.mubr.f32.gmra.mrb[0].mxu0 %v1807
      %v2162 = vpop.f32.mrb[0].mxu0
      %v2163 = vadd.f32 %v1656, %v2162
      %v2164 = vpop.f32.mrb[0].mxu0
      %2165 = vmatprep.mubr.f32.mxu0 0.0
      %2166 = vmatmul.mubr.f32.gmra.mrb[0].mxu0 %v1810
      %v2167 = vpop.f32.mrb[0].mxu0
      %v2168 = vadd.f32 %v1656, %v2167
      %v2169 = vpop.f32.mrb[0].mxu0
      %2170 = vmatprep.mubr.f32.mxu0 0.0
      %2171 = vmatmul.mubr.f32.gmra.mrb[0].mxu0 %v1813
      %v2172 = vpop.f32.mrb[0].mxu0
      %v2173 = vadd.f32 %v1656, %v2172
      %v2174 = vpop.f32.mrb[0].mxu0
      %2175 = vmatprep.mubr.f32.mxu0 0.0
      %2176 = vmatmul.mubr.f32.gmra.mrb[0].mxu0 %v1816
      %v2177 = vpop.f32.mrb[0].mxu0
      %v2178 = vadd.f32 %v1656, %v2177
      %v2179 = vpop.f32.mrb[0].mxu0
      %2180 = vmatprep.mubr.f32.mxu0 0.0
      %2181 = vmatmul.mubr.f32.gmra.mrb[0].mxu0 %v1819
      %v2182 = vpop.f32.mrb[0].mxu0
      %v2183 = vadd.f32 %v1656, %v2182
      %v2184 = vpop.f32.mrb[0].mxu0
      %2185 = vmatprep.mubr.f32.mxu0 0.0
      %2186 = vmatmul.mubr.f32.gmra.mrb[0].mxu0 %v1822
      %v2187 = vpop.f32.mrb[0].mxu0
      %v2188 = vadd.f32 %v1656, %v2187
      %v2189 = vpop.f32.mrb[0].mxu0
      %2190 = vmatprep.mubr.f32.mxu0 0.0
      %2191 = vmatmul.mubr.f32.gmra.mrb[0].mxu0 %v1825
      %v2192 = vpop.f32.mrb[0].mxu0
      %v2193 = vadd.f32 %v1656, %v2192
      %v2194 = vpop.f32.mrb[0].mxu0
      %2195 = vmatprep.mubr.f32.mxu0 0.0
      %2196 = vmatmul.mubr.f32.gmra.mrb[0].mxu0 %v1828
      %v2197 = vpop.f32.mrb[0].mxu0
      %v2198 = vadd.f32 %v1656, %v2197
      %v2199 = vpop.f32.mrb[0].mxu0
      %2200 = vmatprep.mubr.f32.mxu0 0.0
      %2201 = vmatmul.mubr.f32.gmra.mrb[0].mxu0 %v1831
      %v2202 = vpop.f32.mrb[0].mxu0
      %v2203 = vadd.f32 %v1656, %v2202
      %v2204 = vpop.f32.mrb[0].mxu0
      %2205 = vmatprep.mubr.f32.mxu0 0.0
      %2206 = vmatmul.mubr.f32.gmra.mrb[0].mxu0 %v1834
      %v2207 = vpop.f32.mrb[0].mxu0
      %v2208 = vadd.f32 %v1656, %v2207
      %v2209 = vpop.f32.mrb[0].mxu0
      %2210 = vmatprep.mubr.f32.mxu0 0.0
      %2211 = vmatmul.mubr.f32.gmra.mrb[0].mxu0 %v1837
      %v2212 = vpop.f32.mrb[0].mxu0
      %v2213 = vadd.f32 %v1656, %v2212
      %v2214 = vpop.f32.mrb[0].mxu0
      %2215 = vmatprep.mubr.f32.mxu0 0.0
      %2216 = vmatmul.mubr.f32.gmra.mrb[0].mxu0 %v1840
      %v2217 = vpop.f32.mrb[0].mxu0
      %v2218 = vadd.f32 %v1656, %v2217
      %v2219 = vpop.f32.mrb[0].mxu0
      %2220 = vmatprep.mubr.f32.mxu0 0.0
      %2221 = vmatmul.mubr.f32.gmra.mrb[0].mxu0 %v1843
      %v2222 = vpop.f32.mrb[0].mxu0
      %v2223 = vadd.f32 %v1656, %v2222
      %v2224 = vpop.f32.mrb[0].mxu0
      %2225 = vmatprep.mubr.f32.mxu0 0.0
      %2226 = vmatmul.mubr.f32.gmra.mrb[0].mxu0 %v1846
      %v2227 = vpop.f32.mrb[0].mxu0
      %v2228 = vadd.f32 %v1656, %v2227
      %v2229 = vpop.f32.mrb[0].mxu0
      %2230 = vmatprep.mubr.f32.mxu0 0.0
      %2231 = vmatmul.mubr.f32.gmra.mrb[0].mxu0 %v1849
      %v2232 = vpop.f32.mrb[0].mxu0
      %v2233 = vadd.f32 %v1656, %v2232
      %v2234 = vpop.f32.mrb[0].mxu0
      %2235 = vdwg.mxu0
      %v2236 = vmax.f32 %v1918, 0.0
      %v2237 = vmax.f32 %v1923, 0.0
      %v2238 = vmax.f32 %v1928, 0.0
      %v2239 = vmax.f32 %v1933, 0.0
      %v2240 = vmax.f32 %v1938, 0.0
      %v2241 = vmax.f32 %v1943, 0.0
      %v2242 = vmax.f32 %v1948, 0.0
      %v2243 = vmax.f32 %v1953, 0.0
      %v2244 = vmax.f32 %v1958, 0.0
      %v2245 = vmax.f32 %v1963, 0.0
      %v2246 = vmax.f32 %v1968, 0.0
      %v2247 = vmax.f32 %v1973, 0.0
      %v2248 = vmax.f32 %v1978, 0.0
      %v2249 = vmax.f32 %v1983, 0.0
      %v2250 = vmax.f32 %v1988, 0.0
      %v2251 = vmax.f32 %v1993, 0.0
      %v2252 = vmax.f32 %v1998, 0.0
      %v2253 = vmax.f32 %v2003, 0.0
      %v2254 = vmax.f32 %v2008, 0.0
      %v2255 = vmax.f32 %v2013, 0.0
      %v2256 = vmax.f32 %v2018, 0.0
      %v2257 = vmax.f32 %v2023, 0.0
      %v2258 = vmax.f32 %v2028, 0.0
      %v2259 = vmax.f32 %v2033, 0.0
      %v2260 = vmax.f32 %v2038, 0.0
      %v2261 = vmax.f32 %v2043, 0.0
      %v2262 = vmax.f32 %v2048, 0.0
      %v2263 = vmax.f32 %v2053, 0.0
      %v2264 = vmax.f32 %v2058, 0.0
      %v2265 = vmax.f32 %v2063, 0.0
      %v2266 = vmax.f32 %v2068, 0.0
      %v2267 = vmax.f32 %v2073, 0.0
      %v2268 = vmax.f32 %v2078, 0.0
      %v2269 = vmax.f32 %v2083, 0.0
      %v2270 = vmax.f32 %v2088, 0.0
      %v2271 = vmax.f32 %v2093, 0.0
      %v2272 = vmax.f32 %v2098, 0.0
      %v2273 = vmax.f32 %v2103, 0.0
      %v2274 = vmax.f32 %v2108, 0.0
      %v2275 = vmax.f32 %v2113, 0.0
      %v2276 = vmax.f32 %v2118, 0.0
      %v2277 = vmax.f32 %v2123, 0.0
      %v2278 = vmax.f32 %v2128, 0.0
      %v2279 = vmax.f32 %v2133, 0.0
      %v2280 = vmax.f32 %v2138, 0.0
      %v2281 = vmax.f32 %v2143, 0.0
      %v2282 = vmax.f32 %v2148, 0.0
      %v2283 = vmax.f32 %v2153, 0.0
      %v2284 = vmax.f32 %v2158, 0.0
      %v2285 = vmax.f32 %v2163, 0.0
      %v2286 = vmax.f32 %v2168, 0.0
      %v2287 = vmax.f32 %v2173, 0.0
      %v2288 = vmax.f32 %v2178, 0.0
      %v2289 = vmax.f32 %v2183, 0.0
      %v2290 = vmax.f32 %v2188, 0.0
      %v2291 = vmax.f32 %v2193, 0.0
      %v2292 = vmax.f32 %v2198, 0.0
      %v2293 = vmax.f32 %v2203, 0.0
      %v2294 = vmax.f32 %v2208, 0.0
      %v2295 = vmax.f32 %v2213, 0.0
      %v2296 = vmax.f32 %v2218, 0.0
      %v2297 = vmax.f32 %v2223, 0.0
      %v2298 = vmax.f32 %v2228, 0.0
      %v2299 = vmax.f32 %v2233, 0.0
      %v2300 = vld [vmem:[%s7] sm:$0xff]
      %v2301 = vld [vmem:[%s7 + $0x8] sm:$0xff]
      %v2302 = vld [vmem:[%s7 + $0x10] sm:$0xff]
      %v2303 = vld [vmem:[%s7 + $0x18] sm:$0xff]
      %v2304 = vld [vmem:[%s7 + $0x20] sm:$0xff]
      %v2305 = vld [vmem:[%s7 + $0x28] sm:$0xff]
      %v2306 = vld [vmem:[%s8] sm:$0x7]
      %v2308 = vlaneseq
      %v2309 = vshrl.u32 %v2308, 7
      %v2310 = vsub.s32 0, %v2309
      %v2311 = vrot.slane %v2306, %v2310
      %v2312 = vlaneseq
      %v2313 = vshrl.u32 %v2312, 7
      %v2314 = vsub.s32 1, %v2313
      %v2315 = vrot.slane %v2306, %v2314
      %v2316 = vlaneseq
      %v2317 = vshrl.u32 %v2316, 7
      %v2318 = vsub.s32 2, %v2317
      %v2319 = vrot.slane %v2306, %v2318
      %vm2323 = vcmask 130048
      %v2325 = vsel %vm2323, %v2236, 0
      %v2328 = vsel %vm2323, %v2237, 0
      %v2331 = vsel %vm2323, %v2238, 0
      %v2334 = vsel %vm2323, %v2239, 0
      %v2337 = vsel %vm2323, %v2240, 0
      %v2340 = vsel %vm2323, %v2241, 0
      %v2343 = vsel %vm2323, %v2242, 0
      %v2346 = vsel %vm2323, %v2243, 0
      %v2349 = vsel %vm2323, %v2244, 0
      %v2352 = vsel %vm2323, %v2245, 0
      %v2355 = vsel %vm2323, %v2246, 0
      %v2358 = vsel %vm2323, %v2247, 0
      %v2361 = vsel %vm2323, %v2248, 0
      %v2364 = vsel %vm2323, %v2249, 0
      %v2367 = vsel %vm2323, %v2250, 0
      %v2370 = vsel %vm2323, %v2251, 0
      %v2373 = vsel %vm2323, %v2252, 0
      %v2376 = vsel %vm2323, %v2253, 0
      %v2379 = vsel %vm2323, %v2254, 0
      %v2382 = vsel %vm2323, %v2255, 0
      %v2385 = vsel %vm2323, %v2256, 0
      %v2388 = vsel %vm2323, %v2257, 0
      %v2391 = vsel %vm2323, %v2258, 0
      %v2394 = vsel %vm2323, %v2259, 0
      %v2397 = vsel %vm2323, %v2260, 0
      %v2400 = vsel %vm2323, %v2261, 0
      %v2403 = vsel %vm2323, %v2262, 0
      %v2406 = vsel %vm2323, %v2263, 0
      %v2409 = vsel %vm2323, %v2264, 0
      %v2412 = vsel %vm2323, %v2265, 0
      %v2415 = vsel %vm2323, %v2266, 0
      %v2418 = vsel %vm2323, %v2267, 0
      %v2421 = vsel %vm2323, %v2268, 0
      %v2424 = vsel %vm2323, %v2269, 0
      %v2427 = vsel %vm2323, %v2270, 0
      %v2430 = vsel %vm2323, %v2271, 0
      %v2433 = vsel %vm2323, %v2272, 0
      %v2436 = vsel %vm2323, %v2273, 0
      %v2439 = vsel %vm2323, %v2274, 0
      %v2442 = vsel %vm2323, %v2275, 0
      %v2445 = vsel %vm2323, %v2276, 0
      %v2448 = vsel %vm2323, %v2277, 0
      %v2451 = vsel %vm2323, %v2278, 0
      %v2454 = vsel %vm2323, %v2279, 0
      %v2457 = vsel %vm2323, %v2280, 0
      %v2460 = vsel %vm2323, %v2281, 0
      %v2463 = vsel %vm2323, %v2282, 0
      %v2466 = vsel %vm2323, %v2283, 0
      %v2469 = vsel %vm2323, %v2284, 0
      %v2472 = vsel %vm2323, %v2285, 0
      %v2475 = vsel %vm2323, %v2286, 0
      %v2478 = vsel %vm2323, %v2287, 0
      %v2481 = vsel %vm2323, %v2288, 0
      %v2484 = vsel %vm2323, %v2289, 0
      %v2487 = vsel %vm2323, %v2290, 0
      %v2490 = vsel %vm2323, %v2291, 0
      %v2493 = vsel %vm2323, %v2292, 0
      %v2496 = vsel %vm2323, %v2293, 0
      %v2499 = vsel %vm2323, %v2294, 0
      %v2502 = vsel %vm2323, %v2295, 0
      %v2505 = vsel %vm2323, %v2296, 0
      %v2508 = vsel %vm2323, %v2297, 0
      %v2511 = vsel %vm2323, %v2298, 0
      %v2514 = vsel %vm2323, %v2299, 0
      %2516 = vmatprep.subr.mxu0 %v2301
      %2517 = vmatpush1.msra.mxu0 %v2300
      %2518 = vmatprep.subr.mxu0 %v2304
      %2519 = vmatpush1.msra.mxu0 %v2303
      %2520 = vmatprep.subr.mxu0 0.0
      %2521 = vmatpush1.msra.mxu0 0.0
      %2522 = vmatprep.subr.mxu0 0.0
      %2523 = vmatpush1.msra.mxu0 0.0
      %2524 = vmatprep.subr.mxu0 0.0
      %2525 = vmatpush1.msra.mxu0 0.0
      %2526 = vmatprep.subr.mxu0 0.0
      %2527 = vmatpush1.msra.mxu0 0.0
      %2528 = vmatprep.subr.mxu0 0.0
      %2529 = vmatpush1.msra.mxu0 0.0
      %2530 = vmatprep.subr.mxu0 0.0
      %2531 = vmatpush1.msra.mxu0 0.0
      %2532 = vmatprep.subr.mxu0 0.0
      %2533 = vmatpush1.msra.mxu0 0.0
      %2534 = vmatprep.subr.mxu0 0.0
      %2535 = vmatpush1.msra.mxu0 0.0
      %2536 = vmatprep.subr.mxu0 0.0
      %2537 = vmatpush1.msra.mxu0 0.0
      %2538 = vmatprep.subr.mxu0 0.0
      %2539 = vmatpush1.msra.mxu0 0.0
      %2540 = vmatprep.subr.mxu0 0.0
      %2541 = vmatpush1.msra.mxu0 0.0
      %2542 = vmatprep.subr.mxu0 0.0
      %2543 = vmatpush1.msra.mxu0 0.0
      %2544 = vmatprep.subr.mxu0 0.0
      %2545 = vmatpush1.msra.mxu0 0.0
      %2546 = vmatprep.subr.mxu0 0.0
      %2547 = vmatpush1.msra.mxu0 0.0
      %2548 = vmatprep.subr.mxu0 0.0
      %2549 = vmatpush1.msra.mxu0 0.0
      %2550 = vmatprep.subr.mxu0 0.0
      %2551 = vmatpush1.msra.mxu0 0.0
      %2552 = vmatprep.subr.mxu0 0.0
      %2553 = vmatpush1.msra.mxu0 0.0
      %2554 = vmatprep.subr.mxu0 0.0
      %2555 = vmatpush1.msra.mxu0 0.0
      %2556 = vmatprep.subr.mxu0 0.0
      %2557 = vmatpush1.msra.mxu0 0.0
      %2558 = vmatprep.subr.mxu0 0.0
      %2559 = vmatpush1.msra.mxu0 0.0
      %2560 = vmatprep.subr.mxu0 0.0
      %2561 = vmatpush1.msra.mxu0 0.0
      %2562 = vmatprep.subr.mxu0 0.0
      %2563 = vmatpush1.msra.mxu0 0.0
      %2564 = vmatprep.subr.mxu0 0.0
      %2565 = vmatpush1.msra.mxu0 0.0
      %2566 = vmatprep.subr.mxu0 0.0
      %2567 = vmatpush1.msra.mxu0 0.0
      %2568 = vmatprep.subr.mxu0 0.0
      %2569 = vmatpush1.msra.mxu0 0.0
      %2570 = vmatprep.subr.mxu0 0.0
      %2571 = vmatpush1.msra.mxu0 0.0
      %2572 = vmatprep.subr.mxu0 0.0
      %2573 = vmatpush1.msra.mxu0 0.0
      %2574 = vmatprep.subr.mxu0 0.0
      %2575 = vmatpush1.msra.mxu0 0.0
      %2576 = vmatprep.subr.mxu0 0.0
      %2577 = vmatpush1.msra.mxu0 0.0
      %2578 = vmatprep.subr.mxu0 0.0
      %2579 = vmatpush1.msra.mxu0 0.0
      %2580 = vmatprep.mubr.f32.mxu0 0.0
      %2581 = vmatmul.mubr.f32.gmra.mrb[0].mxu0 %v2325
      %v2582 = vpop.f32.mrb[0].mxu0
      %v2583 = vadd.f32 %v2311, %v2582
      %v2584 = vpop.f32.mrb[0].mxu0
      %v2585 = vadd.f32 %v2315, %v2584
      %2586 = vmatprep.mubr.f32.mxu0 0.0
      %2587 = vmatmul.mubr.f32.gmra.mrb[0].mxu0 %v2328
      %v2588 = vpop.f32.mrb[0].mxu0
      %v2589 = vadd.f32 %v2311, %v2588
      %v2590 = vpop.f32.mrb[0].mxu0
      %v2591 = vadd.f32 %v2315, %v2590
      %2592 = vmatprep.mubr.f32.mxu0 0.0
      %2593 = vmatmul.mubr.f32.gmra.mrb[0].mxu0 %v2331
      %v2594 = vpop.f32.mrb[0].mxu0
      %v2595 = vadd.f32 %v2311, %v2594
      %v2596 = vpop.f32.mrb[0].mxu0
      %v2597 = vadd.f32 %v2315, %v2596
      %2598 = vmatprep.mubr.f32.mxu0 0.0
      %2599 = vmatmul.mubr.f32.gmra.mrb[0].mxu0 %v2334
      %v2600 = vpop.f32.mrb[0].mxu0
      %v2601 = vadd.f32 %v2311, %v2600
      %v2602 = vpop.f32.mrb[0].mxu0
      %v2603 = vadd.f32 %v2315, %v2602
      %2604 = vmatprep.mubr.f32.mxu0 0.0
      %2605 = vmatmul.mubr.f32.gmra.mrb[0].mxu0 %v2337
      %v2606 = vpop.f32.mrb[0].mxu0
      %v2607 = vadd.f32 %v2311, %v2606
      %v2608 = vpop.f32.mrb[0].mxu0
      %v2609 = vadd.f32 %v2315, %v2608
      %2610 = vmatprep.mubr.f32.mxu0 0.0
      %2611 = vmatmul.mubr.f32.gmra.mrb[0].mxu0 %v2340
      %v2612 = vpop.f32.mrb[0].mxu0
      %v2613 = vadd.f32 %v2311, %v2612
      %v2614 = vpop.f32.mrb[0].mxu0
      %v2615 = vadd.f32 %v2315, %v2614
      %2616 = vmatprep.mubr.f32.mxu0 0.0
      %2617 = vmatmul.mubr.f32.gmra.mrb[0].mxu0 %v2343
      %v2618 = vpop.f32.mrb[0].mxu0
      %v2619 = vadd.f32 %v2311, %v2618
      %v2620 = vpop.f32.mrb[0].mxu0
      %v2621 = vadd.f32 %v2315, %v2620
      %2622 = vmatprep.mubr.f32.mxu0 0.0
      %2623 = vmatmul.mubr.f32.gmra.mrb[0].mxu0 %v2346
      %v2624 = vpop.f32.mrb[0].mxu0
      %v2625 = vadd.f32 %v2311, %v2624
      %v2626 = vpop.f32.mrb[0].mxu0
      %v2627 = vadd.f32 %v2315, %v2626
      %2628 = vmatprep.mubr.f32.mxu0 0.0
      %2629 = vmatmul.mubr.f32.gmra.mrb[0].mxu0 %v2349
      %v2630 = vpop.f32.mrb[0].mxu0
      %v2631 = vadd.f32 %v2311, %v2630
      %v2632 = vpop.f32.mrb[0].mxu0
      %v2633 = vadd.f32 %v2315, %v2632
      %2634 = vmatprep.mubr.f32.mxu0 0.0
      %2635 = vmatmul.mubr.f32.gmra.mrb[0].mxu0 %v2352
      %v2636 = vpop.f32.mrb[0].mxu0
      %v2637 = vadd.f32 %v2311, %v2636
      %v2638 = vpop.f32.mrb[0].mxu0
      %v2639 = vadd.f32 %v2315, %v2638
      %2640 = vmatprep.mubr.f32.mxu0 0.0
      %2641 = vmatmul.mubr.f32.gmra.mrb[0].mxu0 %v2355
      %v2642 = vpop.f32.mrb[0].mxu0
      %v2643 = vadd.f32 %v2311, %v2642
      %v2644 = vpop.f32.mrb[0].mxu0
      %v2645 = vadd.f32 %v2315, %v2644
      %2646 = vmatprep.mubr.f32.mxu0 0.0
      %2647 = vmatmul.mubr.f32.gmra.mrb[0].mxu0 %v2358
      %v2648 = vpop.f32.mrb[0].mxu0
      %v2649 = vadd.f32 %v2311, %v2648
      %v2650 = vpop.f32.mrb[0].mxu0
      %v2651 = vadd.f32 %v2315, %v2650
      %2652 = vmatprep.mubr.f32.mxu0 0.0
      %2653 = vmatmul.mubr.f32.gmra.mrb[0].mxu0 %v2361
      %v2654 = vpop.f32.mrb[0].mxu0
      %v2655 = vadd.f32 %v2311, %v2654
      %v2656 = vpop.f32.mrb[0].mxu0
      %v2657 = vadd.f32 %v2315, %v2656
      %2658 = vmatprep.mubr.f32.mxu0 0.0
      %2659 = vmatmul.mubr.f32.gmra.mrb[0].mxu0 %v2364
      %v2660 = vpop.f32.mrb[0].mxu0
      %v2661 = vadd.f32 %v2311, %v2660
      %v2662 = vpop.f32.mrb[0].mxu0
      %v2663 = vadd.f32 %v2315, %v2662
      %2664 = vmatprep.mubr.f32.mxu0 0.0
      %2665 = vmatmul.mubr.f32.gmra.mrb[0].mxu0 %v2367
      %v2666 = vpop.f32.mrb[0].mxu0
      %v2667 = vadd.f32 %v2311, %v2666
      %v2668 = vpop.f32.mrb[0].mxu0
      %v2669 = vadd.f32 %v2315, %v2668
      %2670 = vmatprep.mubr.f32.mxu0 0.0
      %2671 = vmatmul.mubr.f32.gmra.mrb[0].mxu0 %v2370
      %v2672 = vpop.f32.mrb[0].mxu0
      %v2673 = vadd.f32 %v2311, %v2672
      %v2674 = vpop.f32.mrb[0].mxu0
      %v2675 = vadd.f32 %v2315, %v2674
      %2676 = vmatprep.mubr.f32.mxu0 0.0
      %2677 = vmatmul.mubr.f32.gmra.mrb[0].mxu0 %v2373
      %v2678 = vpop.f32.mrb[0].mxu0
      %v2679 = vadd.f32 %v2311, %v2678
      %v2680 = vpop.f32.mrb[0].mxu0
      %v2681 = vadd.f32 %v2315, %v2680
      %2682 = vmatprep.mubr.f32.mxu0 0.0
      %2683 = vmatmul.mubr.f32.gmra.mrb[0].mxu0 %v2376
      %v2684 = vpop.f32.mrb[0].mxu0
      %v2685 = vadd.f32 %v2311, %v2684
      %v2686 = vpop.f32.mrb[0].mxu0
      %v2687 = vadd.f32 %v2315, %v2686
      %2688 = vmatprep.mubr.f32.mxu0 0.0
      %2689 = vmatmul.mubr.f32.gmra.mrb[0].mxu0 %v2379
      %v2690 = vpop.f32.mrb[0].mxu0
      %v2691 = vadd.f32 %v2311, %v2690
      %v2692 = vpop.f32.mrb[0].mxu0
      %v2693 = vadd.f32 %v2315, %v2692
      %2694 = vmatprep.mubr.f32.mxu0 0.0
      %2695 = vmatmul.mubr.f32.gmra.mrb[0].mxu0 %v2382
      %v2696 = vpop.f32.mrb[0].mxu0
      %v2697 = vadd.f32 %v2311, %v2696
      %v2698 = vpop.f32.mrb[0].mxu0
      %v2699 = vadd.f32 %v2315, %v2698
      %2700 = vmatprep.mubr.f32.mxu0 0.0
      %2701 = vmatmul.mubr.f32.gmra.mrb[0].mxu0 %v2385
      %v2702 = vpop.f32.mrb[0].mxu0
      %v2703 = vadd.f32 %v2311, %v2702
      %v2704 = vpop.f32.mrb[0].mxu0
      %v2705 = vadd.f32 %v2315, %v2704
      %2706 = vmatprep.mubr.f32.mxu0 0.0
      %2707 = vmatmul.mubr.f32.gmra.mrb[0].mxu0 %v2388
      %v2708 = vpop.f32.mrb[0].mxu0
      %v2709 = vadd.f32 %v2311, %v2708
      %v2710 = vpop.f32.mrb[0].mxu0
      %v2711 = vadd.f32 %v2315, %v2710
      %2712 = vmatprep.mubr.f32.mxu0 0.0
      %2713 = vmatmul.mubr.f32.gmra.mrb[0].mxu0 %v2391
      %v2714 = vpop.f32.mrb[0].mxu0
      %v2715 = vadd.f32 %v2311, %v2714
      %v2716 = vpop.f32.mrb[0].mxu0
      %v2717 = vadd.f32 %v2315, %v2716
      %2718 = vmatprep.mubr.f32.mxu0 0.0
      %2719 = vmatmul.mubr.f32.gmra.mrb[0].mxu0 %v2394
      %v2720 = vpop.f32.mrb[0].mxu0
      %v2721 = vadd.f32 %v2311, %v2720
      %v2722 = vpop.f32.mrb[0].mxu0
      %v2723 = vadd.f32 %v2315, %v2722
      %2724 = vmatprep.mubr.f32.mxu0 0.0
      %2725 = vmatmul.mubr.f32.gmra.mrb[0].mxu0 %v2397
      %v2726 = vpop.f32.mrb[0].mxu0
      %v2727 = vadd.f32 %v2311, %v2726
      %v2728 = vpop.f32.mrb[0].mxu0
      %v2729 = vadd.f32 %v2315, %v2728
      %2730 = vmatprep.mubr.f32.mxu0 0.0
      %2731 = vmatmul.mubr.f32.gmra.mrb[0].mxu0 %v2400
      %v2732 = vpop.f32.mrb[0].mxu0
      %v2733 = vadd.f32 %v2311, %v2732
      %v2734 = vpop.f32.mrb[0].mxu0
      %v2735 = vadd.f32 %v2315, %v2734
      %2736 = vmatprep.mubr.f32.mxu0 0.0
      %2737 = vmatmul.mubr.f32.gmra.mrb[0].mxu0 %v2403
      %v2738 = vpop.f32.mrb[0].mxu0
      %v2739 = vadd.f32 %v2311, %v2738
      %v2740 = vpop.f32.mrb[0].mxu0
      %v2741 = vadd.f32 %v2315, %v2740
      %2742 = vmatprep.mubr.f32.mxu0 0.0
      %2743 = vmatmul.mubr.f32.gmra.mrb[0].mxu0 %v2406
      %v2744 = vpop.f32.mrb[0].mxu0
      %v2745 = vadd.f32 %v2311, %v2744
      %v2746 = vpop.f32.mrb[0].mxu0
      %v2747 = vadd.f32 %v2315, %v2746
      %2748 = vmatprep.mubr.f32.mxu0 0.0
      %2749 = vmatmul.mubr.f32.gmra.mrb[0].mxu0 %v2409
      %v2750 = vpop.f32.mrb[0].mxu0
      %v2751 = vadd.f32 %v2311, %v2750
      %v2752 = vpop.f32.mrb[0].mxu0
      %v2753 = vadd.f32 %v2315, %v2752
      %2754 = vmatprep.mubr.f32.mxu0 0.0
      %2755 = vmatmul.mubr.f32.gmra.mrb[0].mxu0 %v2412
      %v2756 = vpop.f32.mrb[0].mxu0
      %v2757 = vadd.f32 %v2311, %v2756
      %v2758 = vpop.f32.mrb[0].mxu0
      %v2759 = vadd.f32 %v2315, %v2758
      %2760 = vmatprep.mubr.f32.mxu0 0.0
      %2761 = vmatmul.mubr.f32.gmra.mrb[0].mxu0 %v2415
      %v2762 = vpop.f32.mrb[0].mxu0
      %v2763 = vadd.f32 %v2311, %v2762
      %v2764 = vpop.f32.mrb[0].mxu0
      %v2765 = vadd.f32 %v2315, %v2764
      %2766 = vmatprep.mubr.f32.mxu0 0.0
      %2767 = vmatmul.mubr.f32.gmra.mrb[0].mxu0 %v2418
      %v2768 = vpop.f32.mrb[0].mxu0
      %v2769 = vadd.f32 %v2311, %v2768
      %v2770 = vpop.f32.mrb[0].mxu0
      %v2771 = vadd.f32 %v2315, %v2770
      %2772 = vmatprep.mubr.f32.mxu0 0.0
      %2773 = vmatmul.mubr.f32.gmra.mrb[0].mxu0 %v2421
      %v2774 = vpop.f32.mrb[0].mxu0
      %v2775 = vadd.f32 %v2311, %v2774
      %v2776 = vpop.f32.mrb[0].mxu0
      %v2777 = vadd.f32 %v2315, %v2776
      %2778 = vmatprep.mubr.f32.mxu0 0.0
      %2779 = vmatmul.mubr.f32.gmra.mrb[0].mxu0 %v2424
      %v2780 = vpop.f32.mrb[0].mxu0
      %v2781 = vadd.f32 %v2311, %v2780
      %v2782 = vpop.f32.mrb[0].mxu0
      %v2783 = vadd.f32 %v2315, %v2782
      %2784 = vmatprep.mubr.f32.mxu0 0.0
      %2785 = vmatmul.mubr.f32.gmra.mrb[0].mxu0 %v2427
      %v2786 = vpop.f32.mrb[0].mxu0
      %v2787 = vadd.f32 %v2311, %v2786
      %v2788 = vpop.f32.mrb[0].mxu0
      %v2789 = vadd.f32 %v2315, %v2788
      %2790 = vmatprep.mubr.f32.mxu0 0.0
      %2791 = vmatmul.mubr.f32.gmra.mrb[0].mxu0 %v2430
      %v2792 = vpop.f32.mrb[0].mxu0
      %v2793 = vadd.f32 %v2311, %v2792
      %v2794 = vpop.f32.mrb[0].mxu0
      %v2795 = vadd.f32 %v2315, %v2794
      %2796 = vmatprep.mubr.f32.mxu0 0.0
      %2797 = vmatmul.mubr.f32.gmra.mrb[0].mxu0 %v2433
      %v2798 = vpop.f32.mrb[0].mxu0
      %v2799 = vadd.f32 %v2311, %v2798
      %v2800 = vpop.f32.mrb[0].mxu0
      %v2801 = vadd.f32 %v2315, %v2800
      %2802 = vmatprep.mubr.f32.mxu0 0.0
      %2803 = vmatmul.mubr.f32.gmra.mrb[0].mxu0 %v2436
      %v2804 = vpop.f32.mrb[0].mxu0
      %v2805 = vadd.f32 %v2311, %v2804
      %v2806 = vpop.f32.mrb[0].mxu0
      %v2807 = vadd.f32 %v2315, %v2806
      %2808 = vmatprep.mubr.f32.mxu0 0.0
      %2809 = vmatmul.mubr.f32.gmra.mrb[0].mxu0 %v2439
      %v2810 = vpop.f32.mrb[0].mxu0
      %v2811 = vadd.f32 %v2311, %v2810
      %v2812 = vpop.f32.mrb[0].mxu0
      %v2813 = vadd.f32 %v2315, %v2812
      %2814 = vmatprep.mubr.f32.mxu0 0.0
      %2815 = vmatmul.mubr.f32.gmra.mrb[0].mxu0 %v2442
      %v2816 = vpop.f32.mrb[0].mxu0
      %v2817 = vadd.f32 %v2311, %v2816
      %v2818 = vpop.f32.mrb[0].mxu0
      %v2819 = vadd.f32 %v2315, %v2818
      %2820 = vmatprep.mubr.f32.mxu0 0.0
      %2821 = vmatmul.mubr.f32.gmra.mrb[0].mxu0 %v2445
      %v2822 = vpop.f32.mrb[0].mxu0
      %v2823 = vadd.f32 %v2311, %v2822
      %v2824 = vpop.f32.mrb[0].mxu0
      %v2825 = vadd.f32 %v2315, %v2824
      %2826 = vmatprep.mubr.f32.mxu0 0.0
      %2827 = vmatmul.mubr.f32.gmra.mrb[0].mxu0 %v2448
      %v2828 = vpop.f32.mrb[0].mxu0
      %v2829 = vadd.f32 %v2311, %v2828
      %v2830 = vpop.f32.mrb[0].mxu0
      %v2831 = vadd.f32 %v2315, %v2830
      %2832 = vmatprep.mubr.f32.mxu0 0.0
      %2833 = vmatmul.mubr.f32.gmra.mrb[0].mxu0 %v2451
      %v2834 = vpop.f32.mrb[0].mxu0
      %v2835 = vadd.f32 %v2311, %v2834
      %v2836 = vpop.f32.mrb[0].mxu0
      %v2837 = vadd.f32 %v2315, %v2836
      %2838 = vmatprep.mubr.f32.mxu0 0.0
      %2839 = vmatmul.mubr.f32.gmra.mrb[0].mxu0 %v2454
      %v2840 = vpop.f32.mrb[0].mxu0
      %v2841 = vadd.f32 %v2311, %v2840
      %v2842 = vpop.f32.mrb[0].mxu0
      %v2843 = vadd.f32 %v2315, %v2842
      %2844 = vmatprep.mubr.f32.mxu0 0.0
      %2845 = vmatmul.mubr.f32.gmra.mrb[0].mxu0 %v2457
      %v2846 = vpop.f32.mrb[0].mxu0
      %v2847 = vadd.f32 %v2311, %v2846
      %v2848 = vpop.f32.mrb[0].mxu0
      %v2849 = vadd.f32 %v2315, %v2848
      %2850 = vmatprep.mubr.f32.mxu0 0.0
      %2851 = vmatmul.mubr.f32.gmra.mrb[0].mxu0 %v2460
      %v2852 = vpop.f32.mrb[0].mxu0
      %v2853 = vadd.f32 %v2311, %v2852
      %v2854 = vpop.f32.mrb[0].mxu0
      %v2855 = vadd.f32 %v2315, %v2854
      %2856 = vmatprep.mubr.f32.mxu0 0.0
      %2857 = vmatmul.mubr.f32.gmra.mrb[0].mxu0 %v2463
      %v2858 = vpop.f32.mrb[0].mxu0
      %v2859 = vadd.f32 %v2311, %v2858
      %v2860 = vpop.f32.mrb[0].mxu0
      %v2861 = vadd.f32 %v2315, %v2860
      %2862 = vmatprep.mubr.f32.mxu0 0.0
      %2863 = vmatmul.mubr.f32.gmra.mrb[0].mxu0 %v2466
      %v2864 = vpop.f32.mrb[0].mxu0
      %v2865 = vadd.f32 %v2311, %v2864
      %v2866 = vpop.f32.mrb[0].mxu0
      %v2867 = vadd.f32 %v2315, %v2866
      %2868 = vmatprep.mubr.f32.mxu0 0.0
      %2869 = vmatmul.mubr.f32.gmra.mrb[0].mxu0 %v2469
      %v2870 = vpop.f32.mrb[0].mxu0
      %v2871 = vadd.f32 %v2311, %v2870
      %v2872 = vpop.f32.mrb[0].mxu0
      %v2873 = vadd.f32 %v2315, %v2872
      %2874 = vmatprep.mubr.f32.mxu0 0.0
      %2875 = vmatmul.mubr.f32.gmra.mrb[0].mxu0 %v2472
      %v2876 = vpop.f32.mrb[0].mxu0
      %v2877 = vadd.f32 %v2311, %v2876
      %v2878 = vpop.f32.mrb[0].mxu0
      %v2879 = vadd.f32 %v2315, %v2878
      %2880 = vmatprep.mubr.f32.mxu0 0.0
      %2881 = vmatmul.mubr.f32.gmra.mrb[0].mxu0 %v2475
      %v2882 = vpop.f32.mrb[0].mxu0
      %v2883 = vadd.f32 %v2311, %v2882
      %v2884 = vpop.f32.mrb[0].mxu0
      %v2885 = vadd.f32 %v2315, %v2884
      %2886 = vmatprep.mubr.f32.mxu0 0.0
      %2887 = vmatmul.mubr.f32.gmra.mrb[0].mxu0 %v2478
      %v2888 = vpop.f32.mrb[0].mxu0
      %v2889 = vadd.f32 %v2311, %v2888
      %v2890 = vpop.f32.mrb[0].mxu0
      %v2891 = vadd.f32 %v2315, %v2890
      %2892 = vmatprep.mubr.f32.mxu0 0.0
      %2893 = vmatmul.mubr.f32.gmra.mrb[0].mxu0 %v2481
      %v2894 = vpop.f32.mrb[0].mxu0
      %v2895 = vadd.f32 %v2311, %v2894
      %v2896 = vpop.f32.mrb[0].mxu0
      %v2897 = vadd.f32 %v2315, %v2896
      %2898 = vmatprep.mubr.f32.mxu0 0.0
      %2899 = vmatmul.mubr.f32.gmra.mrb[0].mxu0 %v2484
      %v2900 = vpop.f32.mrb[0].mxu0
      %v2901 = vadd.f32 %v2311, %v2900
      %v2902 = vpop.f32.mrb[0].mxu0
      %v2903 = vadd.f32 %v2315, %v2902
      %2904 = vmatprep.mubr.f32.mxu0 0.0
      %2905 = vmatmul.mubr.f32.gmra.mrb[0].mxu0 %v2487
      %v2906 = vpop.f32.mrb[0].mxu0
      %v2907 = vadd.f32 %v2311, %v2906
      %v2908 = vpop.f32.mrb[0].mxu0
      %v2909 = vadd.f32 %v2315, %v2908
      %2910 = vmatprep.mubr.f32.mxu0 0.0
      %2911 = vmatmul.mubr.f32.gmra.mrb[0].mxu0 %v2490
      %v2912 = vpop.f32.mrb[0].mxu0
      %v2913 = vadd.f32 %v2311, %v2912
      %v2914 = vpop.f32.mrb[0].mxu0
      %v2915 = vadd.f32 %v2315, %v2914
      %2916 = vmatprep.mubr.f32.mxu0 0.0
      %2917 = vmatmul.mubr.f32.gmra.mrb[0].mxu0 %v2493
      %v2918 = vpop.f32.mrb[0].mxu0
      %v2919 = vadd.f32 %v2311, %v2918
      %v2920 = vpop.f32.mrb[0].mxu0
      %v2921 = vadd.f32 %v2315, %v2920
      %2922 = vmatprep.mubr.f32.mxu0 0.0
      %2923 = vmatmul.mubr.f32.gmra.mrb[0].mxu0 %v2496
      %v2924 = vpop.f32.mrb[0].mxu0
      %v2925 = vadd.f32 %v2311, %v2924
      %v2926 = vpop.f32.mrb[0].mxu0
      %v2927 = vadd.f32 %v2315, %v2926
      %2928 = vmatprep.mubr.f32.mxu0 0.0
      %2929 = vmatmul.mubr.f32.gmra.mrb[0].mxu0 %v2499
      %v2930 = vpop.f32.mrb[0].mxu0
      %v2931 = vadd.f32 %v2311, %v2930
      %v2932 = vpop.f32.mrb[0].mxu0
      %v2933 = vadd.f32 %v2315, %v2932
      %2934 = vmatprep.mubr.f32.mxu0 0.0
      %2935 = vmatmul.mubr.f32.gmra.mrb[0].mxu0 %v2502
      %v2936 = vpop.f32.mrb[0].mxu0
      %v2937 = vadd.f32 %v2311, %v2936
      %v2938 = vpop.f32.mrb[0].mxu0
      %v2939 = vadd.f32 %v2315, %v2938
      %2940 = vmatprep.mubr.f32.mxu0 0.0
      %2941 = vmatmul.mubr.f32.gmra.mrb[0].mxu0 %v2505
      %v2942 = vpop.f32.mrb[0].mxu0
      %v2943 = vadd.f32 %v2311, %v2942
      %v2944 = vpop.f32.mrb[0].mxu0
      %v2945 = vadd.f32 %v2315, %v2944
      %2946 = vmatprep.mubr.f32.mxu0 0.0
      %2947 = vmatmul.mubr.f32.gmra.mrb[0].mxu0 %v2508
      %v2948 = vpop.f32.mrb[0].mxu0
      %v2949 = vadd.f32 %v2311, %v2948
      %v2950 = vpop.f32.mrb[0].mxu0
      %v2951 = vadd.f32 %v2315, %v2950
      %2952 = vmatprep.mubr.f32.mxu0 0.0
      %2953 = vmatmul.mubr.f32.gmra.mrb[0].mxu0 %v2511
      %v2954 = vpop.f32.mrb[0].mxu0
      %v2955 = vadd.f32 %v2311, %v2954
      %v2956 = vpop.f32.mrb[0].mxu0
      %v2957 = vadd.f32 %v2315, %v2956
      %2958 = vmatprep.mubr.f32.mxu0 0.0
      %2959 = vmatmul.mubr.f32.gmra.mrb[0].mxu0 %v2514
      %v2960 = vpop.f32.mrb[0].mxu0
      %v2961 = vadd.f32 %v2311, %v2960
      %v2962 = vpop.f32.mrb[0].mxu0
      %v2963 = vadd.f32 %v2315, %v2962
      %2964 = vdwg.mxu0
      %2965 = vmatprep.subr.mxu0 0.0
      %2966 = vmatpush1.msra.mxu0 %v2302
      %2967 = vmatprep.subr.mxu0 0.0
      %2968 = vmatpush1.msra.mxu0 %v2305
      %2969 = vmatprep.subr.mxu0 0.0
      %2970 = vmatpush1.msra.mxu0 0.0
      %2971 = vmatprep.subr.mxu0 0.0
      %2972 = vmatpush1.msra.mxu0 0.0
      %2973 = vmatprep.subr.mxu0 0.0
      %2974 = vmatpush1.msra.mxu0 0.0
      %2975 = vmatprep.subr.mxu0 0.0
      %2976 = vmatpush1.msra.mxu0 0.0
      %2977 = vmatprep.subr.mxu0 0.0
      %2978 = vmatpush1.msra.mxu0 0.0
      %2979 = vmatprep.subr.mxu0 0.0
      %2980 = vmatpush1.msra.mxu0 0.0
      %2981 = vmatprep.subr.mxu0 0.0
      %2982 = vmatpush1.msra.mxu0 0.0
      %2983 = vmatprep.subr.mxu0 0.0
      %2984 = vmatpush1.msra.mxu0 0.0
      %2985 = vmatprep.subr.mxu0 0.0
      %2986 = vmatpush1.msra.mxu0 0.0
      %2987 = vmatprep.subr.mxu0 0.0
      %2988 = vmatpush1.msra.mxu0 0.0
      %2989 = vmatprep.subr.mxu0 0.0
      %2990 = vmatpush1.msra.mxu0 0.0
      %2991 = vmatprep.subr.mxu0 0.0
      %2992 = vmatpush1.msra.mxu0 0.0
      %2993 = vmatprep.subr.mxu0 0.0
      %2994 = vmatpush1.msra.mxu0 0.0
      %2995 = vmatprep.subr.mxu0 0.0
      %2996 = vmatpush1.msra.mxu0 0.0
      %2997 = vmatprep.subr.mxu0 0.0
      %2998 = vmatpush1.msra.mxu0 0.0
      %2999 = vmatprep.subr.mxu0 0.0
      %3000 = vmatpush1.msra.mxu0 0.0
      %3001 = vmatprep.subr.mxu0 0.0
      %3002 = vmatpush1.msra.mxu0 0.0
      %3003 = vmatprep.subr.mxu0 0.0
      %3004 = vmatpush1.msra.mxu0 0.0
      %3005 = vmatprep.subr.mxu0 0.0
      %3006 = vmatpush1.msra.mxu0 0.0
      %3007 = vmatprep.subr.mxu0 0.0
      %3008 = vmatpush1.msra.mxu0 0.0
      %3009 = vmatprep.subr.mxu0 0.0
      %3010 = vmatpush1.msra.mxu0 0.0
      %3011 = vmatprep.subr.mxu0 0.0
      %3012 = vmatpush1.msra.mxu0 0.0
      %3013 = vmatprep.subr.mxu0 0.0
      %3014 = vmatpush1.msra.mxu0 0.0
      %3015 = vmatprep.subr.mxu0 0.0
      %3016 = vmatpush1.msra.mxu0 0.0
      %3017 = vmatprep.subr.mxu0 0.0
      %3018 = vmatpush1.msra.mxu0 0.0
      %3019 = vmatprep.subr.mxu0 0.0
      %3020 = vmatpush1.msra.mxu0 0.0
      %3021 = vmatprep.subr.mxu0 0.0
      %3022 = vmatpush1.msra.mxu0 0.0
      %3023 = vmatprep.subr.mxu0 0.0
      %3024 = vmatpush1.msra.mxu0 0.0
      %3025 = vmatprep.subr.mxu0 0.0
      %3026 = vmatpush1.msra.mxu0 0.0
      %3027 = vmatprep.subr.mxu0 0.0
      %3028 = vmatpush1.msra.mxu0 0.0
      %3029 = vmatprep.mubr.f32.mxu0 0.0
      %3030 = vmatmul.mubr.f32.gmra.mrb[0].mxu0 %v2325
      %v3031 = vpop.f32.mrb[0].mxu0
      %v3032 = vadd.f32 %v2319, %v3031
      %v3033 = vpop.f32.mrb[0].mxu0
      %3034 = vmatprep.mubr.f32.mxu0 0.0
      %3035 = vmatmul.mubr.f32.gmra.mrb[0].mxu0 %v2328
      %v3036 = vpop.f32.mrb[0].mxu0
      %v3037 = vadd.f32 %v2319, %v3036
      %v3038 = vpop.f32.mrb[0].mxu0
      %3039 = vmatprep.mubr.f32.mxu0 0.0
      %3040 = vmatmul.mubr.f32.gmra.mrb[0].mxu0 %v2331
      %v3041 = vpop.f32.mrb[0].mxu0
      %v3042 = vadd.f32 %v2319, %v3041
      %v3043 = vpop.f32.mrb[0].mxu0
      %3044 = vmatprep.mubr.f32.mxu0 0.0
      %3045 = vmatmul.mubr.f32.gmra.mrb[0].mxu0 %v2334
      %v3046 = vpop.f32.mrb[0].mxu0
      %v3047 = vadd.f32 %v2319, %v3046
      %v3048 = vpop.f32.mrb[0].mxu0
      %3049 = vmatprep.mubr.f32.mxu0 0.0
      %3050 = vmatmul.mubr.f32.gmra.mrb[0].mxu0 %v2337
      %v3051 = vpop.f32.mrb[0].mxu0
      %v3052 = vadd.f32 %v2319, %v3051
      %v3053 = vpop.f32.mrb[0].mxu0
      %3054 = vmatprep.mubr.f32.mxu0 0.0
      %3055 = vmatmul.mubr.f32.gmra.mrb[0].mxu0 %v2340
      %v3056 = vpop.f32.mrb[0].mxu0
      %v3057 = vadd.f32 %v2319, %v3056
      %v3058 = vpop.f32.mrb[0].mxu0
      %3059 = vmatprep.mubr.f32.mxu0 0.0
      %3060 = vmatmul.mubr.f32.gmra.mrb[0].mxu0 %v2343
      %v3061 = vpop.f32.mrb[0].mxu0
      %v3062 = vadd.f32 %v2319, %v3061
      %v3063 = vpop.f32.mrb[0].mxu0
      %3064 = vmatprep.mubr.f32.mxu0 0.0
      %3065 = vmatmul.mubr.f32.gmra.mrb[0].mxu0 %v2346
      %v3066 = vpop.f32.mrb[0].mxu0
      %v3067 = vadd.f32 %v2319, %v3066
      %v3068 = vpop.f32.mrb[0].mxu0
      %3069 = vmatprep.mubr.f32.mxu0 0.0
      %3070 = vmatmul.mubr.f32.gmra.mrb[0].mxu0 %v2349
      %v3071 = vpop.f32.mrb[0].mxu0
      %v3072 = vadd.f32 %v2319, %v3071
      %v3073 = vpop.f32.mrb[0].mxu0
      %3074 = vmatprep.mubr.f32.mxu0 0.0
      %3075 = vmatmul.mubr.f32.gmra.mrb[0].mxu0 %v2352
      %v3076 = vpop.f32.mrb[0].mxu0
      %v3077 = vadd.f32 %v2319, %v3076
      %v3078 = vpop.f32.mrb[0].mxu0
      %3079 = vmatprep.mubr.f32.mxu0 0.0
      %3080 = vmatmul.mubr.f32.gmra.mrb[0].mxu0 %v2355
      %v3081 = vpop.f32.mrb[0].mxu0
      %v3082 = vadd.f32 %v2319, %v3081
      %v3083 = vpop.f32.mrb[0].mxu0
      %3084 = vmatprep.mubr.f32.mxu0 0.0
      %3085 = vmatmul.mubr.f32.gmra.mrb[0].mxu0 %v2358
      %v3086 = vpop.f32.mrb[0].mxu0
      %v3087 = vadd.f32 %v2319, %v3086
      %v3088 = vpop.f32.mrb[0].mxu0
      %3089 = vmatprep.mubr.f32.mxu0 0.0
      %3090 = vmatmul.mubr.f32.gmra.mrb[0].mxu0 %v2361
      %v3091 = vpop.f32.mrb[0].mxu0
      %v3092 = vadd.f32 %v2319, %v3091
      %v3093 = vpop.f32.mrb[0].mxu0
      %3094 = vmatprep.mubr.f32.mxu0 0.0
      %3095 = vmatmul.mubr.f32.gmra.mrb[0].mxu0 %v2364
      %v3096 = vpop.f32.mrb[0].mxu0
      %v3097 = vadd.f32 %v2319, %v3096
      %v3098 = vpop.f32.mrb[0].mxu0
      %3099 = vmatprep.mubr.f32.mxu0 0.0
      %3100 = vmatmul.mubr.f32.gmra.mrb[0].mxu0 %v2367
      %v3101 = vpop.f32.mrb[0].mxu0
      %v3102 = vadd.f32 %v2319, %v3101
      %v3103 = vpop.f32.mrb[0].mxu0
      %3104 = vmatprep.mubr.f32.mxu0 0.0
      %3105 = vmatmul.mubr.f32.gmra.mrb[0].mxu0 %v2370
      %v3106 = vpop.f32.mrb[0].mxu0
      %v3107 = vadd.f32 %v2319, %v3106
      %v3108 = vpop.f32.mrb[0].mxu0
      %3109 = vmatprep.mubr.f32.mxu0 0.0
      %3110 = vmatmul.mubr.f32.gmra.mrb[0].mxu0 %v2373
      %v3111 = vpop.f32.mrb[0].mxu0
      %v3112 = vadd.f32 %v2319, %v3111
      %v3113 = vpop.f32.mrb[0].mxu0
      %3114 = vmatprep.mubr.f32.mxu0 0.0
      %3115 = vmatmul.mubr.f32.gmra.mrb[0].mxu0 %v2376
      %v3116 = vpop.f32.mrb[0].mxu0
      %v3117 = vadd.f32 %v2319, %v3116
      %v3118 = vpop.f32.mrb[0].mxu0
      %3119 = vmatprep.mubr.f32.mxu0 0.0
      %3120 = vmatmul.mubr.f32.gmra.mrb[0].mxu0 %v2379
      %v3121 = vpop.f32.mrb[0].mxu0
      %v3122 = vadd.f32 %v2319, %v3121
      %v3123 = vpop.f32.mrb[0].mxu0
      %3124 = vmatprep.mubr.f32.mxu0 0.0
      %3125 = vmatmul.mubr.f32.gmra.mrb[0].mxu0 %v2382
      %v3126 = vpop.f32.mrb[0].mxu0
      %v3127 = vadd.f32 %v2319, %v3126
      %v3128 = vpop.f32.mrb[0].mxu0
      %3129 = vmatprep.mubr.f32.mxu0 0.0
      %3130 = vmatmul.mubr.f32.gmra.mrb[0].mxu0 %v2385
      %v3131 = vpop.f32.mrb[0].mxu0
      %v3132 = vadd.f32 %v2319, %v3131
      %v3133 = vpop.f32.mrb[0].mxu0
      %3134 = vmatprep.mubr.f32.mxu0 0.0
      %3135 = vmatmul.mubr.f32.gmra.mrb[0].mxu0 %v2388
      %v3136 = vpop.f32.mrb[0].mxu0
      %v3137 = vadd.f32 %v2319, %v3136
      %v3138 = vpop.f32.mrb[0].mxu0
      %3139 = vmatprep.mubr.f32.mxu0 0.0
      %3140 = vmatmul.mubr.f32.gmra.mrb[0].mxu0 %v2391
      %v3141 = vpop.f32.mrb[0].mxu0
      %v3142 = vadd.f32 %v2319, %v3141
      %v3143 = vpop.f32.mrb[0].mxu0
      %3144 = vmatprep.mubr.f32.mxu0 0.0
      %3145 = vmatmul.mubr.f32.gmra.mrb[0].mxu0 %v2394
      %v3146 = vpop.f32.mrb[0].mxu0
      %v3147 = vadd.f32 %v2319, %v3146
      %v3148 = vpop.f32.mrb[0].mxu0
      %3149 = vmatprep.mubr.f32.mxu0 0.0
      %3150 = vmatmul.mubr.f32.gmra.mrb[0].mxu0 %v2397
      %v3151 = vpop.f32.mrb[0].mxu0
      %v3152 = vadd.f32 %v2319, %v3151
      %v3153 = vpop.f32.mrb[0].mxu0
      %3154 = vmatprep.mubr.f32.mxu0 0.0
      %3155 = vmatmul.mubr.f32.gmra.mrb[0].mxu0 %v2400
      %v3156 = vpop.f32.mrb[0].mxu0
      %v3157 = vadd.f32 %v2319, %v3156
      %v3158 = vpop.f32.mrb[0].mxu0
      %3159 = vmatprep.mubr.f32.mxu0 0.0
      %3160 = vmatmul.mubr.f32.gmra.mrb[0].mxu0 %v2403
      %v3161 = vpop.f32.mrb[0].mxu0
      %v3162 = vadd.f32 %v2319, %v3161
      %v3163 = vpop.f32.mrb[0].mxu0
      %3164 = vmatprep.mubr.f32.mxu0 0.0
      %3165 = vmatmul.mubr.f32.gmra.mrb[0].mxu0 %v2406
      %v3166 = vpop.f32.mrb[0].mxu0
      %v3167 = vadd.f32 %v2319, %v3166
      %v3168 = vpop.f32.mrb[0].mxu0
      %3169 = vmatprep.mubr.f32.mxu0 0.0
      %3170 = vmatmul.mubr.f32.gmra.mrb[0].mxu0 %v2409
      %v3171 = vpop.f32.mrb[0].mxu0
      %v3172 = vadd.f32 %v2319, %v3171
      %v3173 = vpop.f32.mrb[0].mxu0
      %3174 = vmatprep.mubr.f32.mxu0 0.0
      %3175 = vmatmul.mubr.f32.gmra.mrb[0].mxu0 %v2412
      %v3176 = vpop.f32.mrb[0].mxu0
      %v3177 = vadd.f32 %v2319, %v3176
      %v3178 = vpop.f32.mrb[0].mxu0
      %3179 = vmatprep.mubr.f32.mxu0 0.0
      %3180 = vmatmul.mubr.f32.gmra.mrb[0].mxu0 %v2415
      %v3181 = vpop.f32.mrb[0].mxu0
      %v3182 = vadd.f32 %v2319, %v3181
      %v3183 = vpop.f32.mrb[0].mxu0
      %3184 = vmatprep.mubr.f32.mxu0 0.0
      %3185 = vmatmul.mubr.f32.gmra.mrb[0].mxu0 %v2418
      %v3186 = vpop.f32.mrb[0].mxu0
      %v3187 = vadd.f32 %v2319, %v3186
      %v3188 = vpop.f32.mrb[0].mxu0
      %3189 = vmatprep.mubr.f32.mxu0 0.0
      %3190 = vmatmul.mubr.f32.gmra.mrb[0].mxu0 %v2421
      %v3191 = vpop.f32.mrb[0].mxu0
      %v3192 = vadd.f32 %v2319, %v3191
      %v3193 = vpop.f32.mrb[0].mxu0
      %3194 = vmatprep.mubr.f32.mxu0 0.0
      %3195 = vmatmul.mubr.f32.gmra.mrb[0].mxu0 %v2424
      %v3196 = vpop.f32.mrb[0].mxu0
      %v3197 = vadd.f32 %v2319, %v3196
      %v3198 = vpop.f32.mrb[0].mxu0
      %3199 = vmatprep.mubr.f32.mxu0 0.0
      %3200 = vmatmul.mubr.f32.gmra.mrb[0].mxu0 %v2427
      %v3201 = vpop.f32.mrb[0].mxu0
      %v3202 = vadd.f32 %v2319, %v3201
      %v3203 = vpop.f32.mrb[0].mxu0
      %3204 = vmatprep.mubr.f32.mxu0 0.0
      %3205 = vmatmul.mubr.f32.gmra.mrb[0].mxu0 %v2430
      %v3206 = vpop.f32.mrb[0].mxu0
      %v3207 = vadd.f32 %v2319, %v3206
      %v3208 = vpop.f32.mrb[0].mxu0
      %3209 = vmatprep.mubr.f32.mxu0 0.0
      %3210 = vmatmul.mubr.f32.gmra.mrb[0].mxu0 %v2433
      %v3211 = vpop.f32.mrb[0].mxu0
      %v3212 = vadd.f32 %v2319, %v3211
      %v3213 = vpop.f32.mrb[0].mxu0
      %3214 = vmatprep.mubr.f32.mxu0 0.0
      %3215 = vmatmul.mubr.f32.gmra.mrb[0].mxu0 %v2436
      %v3216 = vpop.f32.mrb[0].mxu0
      %v3217 = vadd.f32 %v2319, %v3216
      %v3218 = vpop.f32.mrb[0].mxu0
      %3219 = vmatprep.mubr.f32.mxu0 0.0
      %3220 = vmatmul.mubr.f32.gmra.mrb[0].mxu0 %v2439
      %v3221 = vpop.f32.mrb[0].mxu0
      %v3222 = vadd.f32 %v2319, %v3221
      %v3223 = vpop.f32.mrb[0].mxu0
      %3224 = vmatprep.mubr.f32.mxu0 0.0
      %3225 = vmatmul.mubr.f32.gmra.mrb[0].mxu0 %v2442
      %v3226 = vpop.f32.mrb[0].mxu0
      %v3227 = vadd.f32 %v2319, %v3226
      %v3228 = vpop.f32.mrb[0].mxu0
      %3229 = vmatprep.mubr.f32.mxu0 0.0
      %3230 = vmatmul.mubr.f32.gmra.mrb[0].mxu0 %v2445
      %v3231 = vpop.f32.mrb[0].mxu0
      %v3232 = vadd.f32 %v2319, %v3231
      %v3233 = vpop.f32.mrb[0].mxu0
      %3234 = vmatprep.mubr.f32.mxu0 0.0
      %3235 = vmatmul.mubr.f32.gmra.mrb[0].mxu0 %v2448
      %v3236 = vpop.f32.mrb[0].mxu0
      %v3237 = vadd.f32 %v2319, %v3236
      %v3238 = vpop.f32.mrb[0].mxu0
      %3239 = vmatprep.mubr.f32.mxu0 0.0
      %3240 = vmatmul.mubr.f32.gmra.mrb[0].mxu0 %v2451
      %v3241 = vpop.f32.mrb[0].mxu0
      %v3242 = vadd.f32 %v2319, %v3241
      %v3243 = vpop.f32.mrb[0].mxu0
      %3244 = vmatprep.mubr.f32.mxu0 0.0
      %3245 = vmatmul.mubr.f32.gmra.mrb[0].mxu0 %v2454
      %v3246 = vpop.f32.mrb[0].mxu0
      %v3247 = vadd.f32 %v2319, %v3246
      %v3248 = vpop.f32.mrb[0].mxu0
      %3249 = vmatprep.mubr.f32.mxu0 0.0
      %3250 = vmatmul.mubr.f32.gmra.mrb[0].mxu0 %v2457
      %v3251 = vpop.f32.mrb[0].mxu0
      %v3252 = vadd.f32 %v2319, %v3251
      %v3253 = vpop.f32.mrb[0].mxu0
      %3254 = vmatprep.mubr.f32.mxu0 0.0
      %3255 = vmatmul.mubr.f32.gmra.mrb[0].mxu0 %v2460
      %v3256 = vpop.f32.mrb[0].mxu0
      %v3257 = vadd.f32 %v2319, %v3256
      %v3258 = vpop.f32.mrb[0].mxu0
      %3259 = vmatprep.mubr.f32.mxu0 0.0
      %3260 = vmatmul.mubr.f32.gmra.mrb[0].mxu0 %v2463
      %v3261 = vpop.f32.mrb[0].mxu0
      %v3262 = vadd.f32 %v2319, %v3261
      %v3263 = vpop.f32.mrb[0].mxu0
      %3264 = vmatprep.mubr.f32.mxu0 0.0
      %3265 = vmatmul.mubr.f32.gmra.mrb[0].mxu0 %v2466
      %v3266 = vpop.f32.mrb[0].mxu0
      %v3267 = vadd.f32 %v2319, %v3266
      %v3268 = vpop.f32.mrb[0].mxu0
      %3269 = vmatprep.mubr.f32.mxu0 0.0
      %3270 = vmatmul.mubr.f32.gmra.mrb[0].mxu0 %v2469
      %v3271 = vpop.f32.mrb[0].mxu0
      %v3272 = vadd.f32 %v2319, %v3271
      %v3273 = vpop.f32.mrb[0].mxu0
      %3274 = vmatprep.mubr.f32.mxu0 0.0
      %3275 = vmatmul.mubr.f32.gmra.mrb[0].mxu0 %v2472
      %v3276 = vpop.f32.mrb[0].mxu0
      %v3277 = vadd.f32 %v2319, %v3276
      %v3278 = vpop.f32.mrb[0].mxu0
      %3279 = vmatprep.mubr.f32.mxu0 0.0
      %3280 = vmatmul.mubr.f32.gmra.mrb[0].mxu0 %v2475
      %v3281 = vpop.f32.mrb[0].mxu0
      %v3282 = vadd.f32 %v2319, %v3281
      %v3283 = vpop.f32.mrb[0].mxu0
      %3284 = vmatprep.mubr.f32.mxu0 0.0
      %3285 = vmatmul.mubr.f32.gmra.mrb[0].mxu0 %v2478
      %v3286 = vpop.f32.mrb[0].mxu0
      %v3287 = vadd.f32 %v2319, %v3286
      %v3288 = vpop.f32.mrb[0].mxu0
      %3289 = vmatprep.mubr.f32.mxu0 0.0
      %3290 = vmatmul.mubr.f32.gmra.mrb[0].mxu0 %v2481
      %v3291 = vpop.f32.mrb[0].mxu0
      %v3292 = vadd.f32 %v2319, %v3291
      %v3293 = vpop.f32.mrb[0].mxu0
      %3294 = vmatprep.mubr.f32.mxu0 0.0
      %3295 = vmatmul.mubr.f32.gmra.mrb[0].mxu0 %v2484
      %v3296 = vpop.f32.mrb[0].mxu0
      %v3297 = vadd.f32 %v2319, %v3296
      %v3298 = vpop.f32.mrb[0].mxu0
      %3299 = vmatprep.mubr.f32.mxu0 0.0
      %3300 = vmatmul.mubr.f32.gmra.mrb[0].mxu0 %v2487
      %v3301 = vpop.f32.mrb[0].mxu0
      %v3302 = vadd.f32 %v2319, %v3301
      %v3303 = vpop.f32.mrb[0].mxu0
      %3304 = vmatprep.mubr.f32.mxu0 0.0
      %3305 = vmatmul.mubr.f32.gmra.mrb[0].mxu0 %v2490
      %v3306 = vpop.f32.mrb[0].mxu0
      %v3307 = vadd.f32 %v2319, %v3306
      %v3308 = vpop.f32.mrb[0].mxu0
      %3309 = vmatprep.mubr.f32.mxu0 0.0
      %3310 = vmatmul.mubr.f32.gmra.mrb[0].mxu0 %v2493
      %v3311 = vpop.f32.mrb[0].mxu0
      %v3312 = vadd.f32 %v2319, %v3311
      %v3313 = vpop.f32.mrb[0].mxu0
      %3314 = vmatprep.mubr.f32.mxu0 0.0
      %3315 = vmatmul.mubr.f32.gmra.mrb[0].mxu0 %v2496
      %v3316 = vpop.f32.mrb[0].mxu0
      %v3317 = vadd.f32 %v2319, %v3316
      %v3318 = vpop.f32.mrb[0].mxu0
      %3319 = vmatprep.mubr.f32.mxu0 0.0
      %3320 = vmatmul.mubr.f32.gmra.mrb[0].mxu0 %v2499
      %v3321 = vpop.f32.mrb[0].mxu0
      %v3322 = vadd.f32 %v2319, %v3321
      %v3323 = vpop.f32.mrb[0].mxu0
      %3324 = vmatprep.mubr.f32.mxu0 0.0
      %3325 = vmatmul.mubr.f32.gmra.mrb[0].mxu0 %v2502
      %v3326 = vpop.f32.mrb[0].mxu0
      %v3327 = vadd.f32 %v2319, %v3326
      %v3328 = vpop.f32.mrb[0].mxu0
      %3329 = vmatprep.mubr.f32.mxu0 0.0
      %3330 = vmatmul.mubr.f32.gmra.mrb[0].mxu0 %v2505
      %v3331 = vpop.f32.mrb[0].mxu0
      %v3332 = vadd.f32 %v2319, %v3331
      %v3333 = vpop.f32.mrb[0].mxu0
      %3334 = vmatprep.mubr.f32.mxu0 0.0
      %3335 = vmatmul.mubr.f32.gmra.mrb[0].mxu0 %v2508
      %v3336 = vpop.f32.mrb[0].mxu0
      %v3337 = vadd.f32 %v2319, %v3336
      %v3338 = vpop.f32.mrb[0].mxu0
      %3339 = vmatprep.mubr.f32.mxu0 0.0
      %3340 = vmatmul.mubr.f32.gmra.mrb[0].mxu0 %v2511
      %v3341 = vpop.f32.mrb[0].mxu0
      %v3342 = vadd.f32 %v2319, %v3341
      %v3343 = vpop.f32.mrb[0].mxu0
      %3344 = vmatprep.mubr.f32.mxu0 0.0
      %3345 = vmatmul.mubr.f32.gmra.mrb[0].mxu0 %v2514
      %v3346 = vpop.f32.mrb[0].mxu0
      %v3347 = vadd.f32 %v2319, %v3346
      %v3348 = vpop.f32.mrb[0].mxu0
      %3349 = vdwg.mxu0
      %v3350 = vld [vmem:[%s9] sm:$0xff]
      %v3351 = vld [vmem:[%s9 + $0x8] sm:$0xff]
      %v3352 = vld [vmem:[%s9 + $0x10] sm:$0xff]
      %v3353 = vld [vmem:[%s9 + $0x18] sm:$0xff]
      %v3354 = vld [vmem:[%s9 + $0x20] sm:$0xff]
      %v3355 = vld [vmem:[%s9 + $0x28] sm:$0xff]
      %v3356 = vld [vmem:[%s9 + $0x30] sm:$0xf]
      %v3357 = vld [vmem:[%s9 + $0x38] sm:$0xf]
      %v3358 = vld [vmem:[%s9 + $0x40] sm:$0xf]
      %vm3359 = vcmask 162816
      %v3361 = vsel %vm3359, %v1268, 0
      %v3364 = vsel %vm3359, %v1273, 0
      %v3367 = vsel %vm3359, %v1278, 0
      %v3370 = vsel %vm3359, %v1283, 0
      %v3373 = vsel %vm3359, %v1288, 0
      %v3376 = vsel %vm3359, %v1293, 0
      %v3379 = vsel %vm3359, %v1298, 0
      %v3382 = vsel %vm3359, %v1303, 0
      %v3385 = vsel %vm3359, %v1308, 0
      %v3388 = vsel %vm3359, %v1313, 0
      %v3391 = vsel %vm3359, %v1318, 0
      %v3394 = vsel %vm3359, %v1323, 0
      %v3397 = vsel %vm3359, %v1328, 0
      %v3400 = vsel %vm3359, %v1333, 0
      %v3403 = vsel %vm3359, %v1338, 0
      %v3406 = vsel %vm3359, %v1343, 0
      %v3409 = vsel %vm3359, %v1348, 0
      %v3412 = vsel %vm3359, %v1353, 0
      %v3415 = vsel %vm3359, %v1358, 0
      %v3418 = vsel %vm3359, %v1363, 0
      %v3421 = vsel %vm3359, %v1368, 0
      %v3424 = vsel %vm3359, %v1373, 0
      %v3427 = vsel %vm3359, %v1378, 0
      %v3430 = vsel %vm3359, %v1383, 0
      %v3433 = vsel %vm3359, %v1388, 0
      %v3436 = vsel %vm3359, %v1393, 0
      %v3439 = vsel %vm3359, %v1398, 0
      %v3442 = vsel %vm3359, %v1403, 0
      %v3445 = vsel %vm3359, %v1408, 0
      %v3448 = vsel %vm3359, %v1413, 0
      %v3451 = vsel %vm3359, %v1418, 0
      %v3454 = vsel %vm3359, %v1423, 0
      %v3457 = vsel %vm3359, %v1428, 0
      %v3460 = vsel %vm3359, %v1433, 0
      %v3463 = vsel %vm3359, %v1438, 0
      %v3466 = vsel %vm3359, %v1443, 0
      %v3469 = vsel %vm3359, %v1448, 0
      %v3472 = vsel %vm3359, %v1453, 0
      %v3475 = vsel %vm3359, %v1458, 0
      %v3478 = vsel %vm3359, %v1463, 0
      %v3481 = vsel %vm3359, %v1468, 0
      %v3484 = vsel %vm3359, %v1473, 0
      %v3487 = vsel %vm3359, %v1478, 0
      %v3490 = vsel %vm3359, %v1483, 0
      %v3493 = vsel %vm3359, %v1488, 0
      %v3496 = vsel %vm3359, %v1493, 0
      %v3499 = vsel %vm3359, %v1498, 0
      %v3502 = vsel %vm3359, %v1503, 0
      %v3505 = vsel %vm3359, %v1508, 0
      %v3508 = vsel %vm3359, %v1513, 0
      %v3511 = vsel %vm3359, %v1518, 0
      %v3514 = vsel %vm3359, %v1523, 0
      %v3517 = vsel %vm3359, %v1528, 0
      %v3520 = vsel %vm3359, %v1533, 0
      %v3523 = vsel %vm3359, %v1538, 0
      %v3526 = vsel %vm3359, %v1543, 0
      %v3529 = vsel %vm3359, %v1548, 0
      %v3532 = vsel %vm3359, %v1553, 0
      %v3535 = vsel %vm3359, %v1558, 0
      %v3538 = vsel %vm3359, %v1563, 0
      %v3541 = vsel %vm3359, %v1568, 0
      %v3544 = vsel %vm3359, %v1573, 0
      %v3547 = vsel %vm3359, %v1578, 0
      %v3550 = vsel %vm3359, %v1583, 0
      %vm3552 = vcmask 1043456
      %v3554 = vsel %vm3552, %v3356, 0
      %v3557 = vsel %vm3552, %v3357, 0
      %v3560 = vsel %vm3552, %v3358, 0
      %3562 = vmatprep.subr.mxu0 %v3351
      %3563 = vmatpush1.msra.mxu0 %v3350
      %3564 = vmatprep.subr.mxu0 %v3354
      %3565 = vmatpush1.msra.mxu0 %v3353
      %3566 = vmatprep.subr.mxu0 %v3557
      %3567 = vmatpush1.msra.mxu0 %v3554
      %3568 = vmatprep.subr.mxu0 0.0
      %3569 = vmatpush1.msra.mxu0 0.0
      %3570 = vmatprep.subr.mxu0 0.0
      %3571 = vmatpush1.msra.mxu0 0.0
      %3572 = vmatprep.subr.mxu0 0.0
      %3573 = vmatpush1.msra.mxu0 0.0
      %3574 = vmatprep.subr.mxu0 0.0
      %3575 = vmatpush1.msra.mxu0 0.0
      %3576 = vmatprep.subr.mxu0 0.0
      %3577 = vmatpush1.msra.mxu0 0.0
      %3578 = vmatprep.subr.mxu0 0.0
      %3579 = vmatpush1.msra.mxu0 0.0
      %3580 = vmatprep.subr.mxu0 0.0
      %3581 = vmatpush1.msra.mxu0 0.0
      %3582 = vmatprep.subr.mxu0 0.0
      %3583 = vmatpush1.msra.mxu0 0.0
      %3584 = vmatprep.subr.mxu0 0.0
      %3585 = vmatpush1.msra.mxu0 0.0
      %3586 = vmatprep.subr.mxu0 0.0
      %3587 = vmatpush1.msra.mxu0 0.0
      %3588 = vmatprep.subr.mxu0 0.0
      %3589 = vmatpush1.msra.mxu0 0.0
      %3590 = vmatprep.subr.mxu0 0.0
      %3591 = vmatpush1.msra.mxu0 0.0
      %3592 = vmatprep.subr.mxu0 0.0
      %3593 = vmatpush1.msra.mxu0 0.0
      %3594 = vmatprep.subr.mxu0 0.0
      %3595 = vmatpush1.msra.mxu0 0.0
      %3596 = vmatprep.subr.mxu0 0.0
      %3597 = vmatpush1.msra.mxu0 0.0
      %3598 = vmatprep.subr.mxu0 0.0
      %3599 = vmatpush1.msra.mxu0 0.0
      %3600 = vmatprep.subr.mxu0 0.0
      %3601 = vmatpush1.msra.mxu0 0.0
      %3602 = vmatprep.subr.mxu0 0.0
      %3603 = vmatpush1.msra.mxu0 0.0
      %3604 = vmatprep.subr.mxu0 0.0
      %3605 = vmatpush1.msra.mxu0 0.0
      %3606 = vmatprep.subr.mxu0 0.0
      %3607 = vmatpush1.msra.mxu0 0.0
      %3608 = vmatprep.subr.mxu0 0.0
      %3609 = vmatpush1.msra.mxu0 0.0
      %3610 = vmatprep.subr.mxu0 0.0
      %3611 = vmatpush1.msra.mxu0 0.0
      %3612 = vmatprep.subr.mxu0 0.0
      %3613 = vmatpush1.msra.mxu0 0.0
      %3614 = vmatprep.subr.mxu0 0.0
      %3615 = vmatpush1.msra.mxu0 0.0
      %3616 = vmatprep.subr.mxu0 0.0
      %3617 = vmatpush1.msra.mxu0 0.0
      %3618 = vmatprep.subr.mxu0 0.0
      %3619 = vmatpush1.msra.mxu0 0.0
      %3620 = vmatprep.subr.mxu0 0.0
      %3621 = vmatpush1.msra.mxu0 0.0
      %3622 = vmatprep.subr.mxu0 0.0
      %3623 = vmatpush1.msra.mxu0 0.0
      %3624 = vmatprep.subr.mxu0 0.0
      %3625 = vmatpush1.msra.mxu0 0.0
      %3626 = vmatprep.mubr.f32.mxu0 0.0
      %3627 = vmatmul.mubr.f32.gmra.mrb[0].mxu0 %v3361
      %v3628 = vpop.f32.mrb[0].mxu0
      %v3629 = vadd.f32 0.0, %v3628
      %v3630 = vpop.f32.mrb[0].mxu0
      %v3631 = vadd.f32 0.0, %v3630
      %3632 = vmatprep.mubr.f32.mxu0 0.0
      %3633 = vmatmul.mubr.f32.gmra.mrb[0].mxu0 %v3364
      %v3634 = vpop.f32.mrb[0].mxu0
      %v3635 = vadd.f32 0.0, %v3634
      %v3636 = vpop.f32.mrb[0].mxu0
      %v3637 = vadd.f32 0.0, %v3636
      %3638 = vmatprep.mubr.f32.mxu0 0.0
      %3639 = vmatmul.mubr.f32.gmra.mrb[0].mxu0 %v3367
      %v3640 = vpop.f32.mrb[0].mxu0
      %v3641 = vadd.f32 0.0, %v3640
      %v3642 = vpop.f32.mrb[0].mxu0
      %v3643 = vadd.f32 0.0, %v3642
      %3644 = vmatprep.mubr.f32.mxu0 0.0
      %3645 = vmatmul.mubr.f32.gmra.mrb[0].mxu0 %v3370
      %v3646 = vpop.f32.mrb[0].mxu0
      %v3647 = vadd.f32 0.0, %v3646
      %v3648 = vpop.f32.mrb[0].mxu0
      %v3649 = vadd.f32 0.0, %v3648
      %3650 = vmatprep.mubr.f32.mxu0 0.0
      %3651 = vmatmul.mubr.f32.gmra.mrb[0].mxu0 %v3373
      %v3652 = vpop.f32.mrb[0].mxu0
      %v3653 = vadd.f32 0.0, %v3652
      %v3654 = vpop.f32.mrb[0].mxu0
      %v3655 = vadd.f32 0.0, %v3654
      %3656 = vmatprep.mubr.f32.mxu0 0.0
      %3657 = vmatmul.mubr.f32.gmra.mrb[0].mxu0 %v3376
      %v3658 = vpop.f32.mrb[0].mxu0
      %v3659 = vadd.f32 0.0, %v3658
      %v3660 = vpop.f32.mrb[0].mxu0
      %v3661 = vadd.f32 0.0, %v3660
      %3662 = vmatprep.mubr.f32.mxu0 0.0
      %3663 = vmatmul.mubr.f32.gmra.mrb[0].mxu0 %v3379
      %v3664 = vpop.f32.mrb[0].mxu0
      %v3665 = vadd.f32 0.0, %v3664
      %v3666 = vpop.f32.mrb[0].mxu0
      %v3667 = vadd.f32 0.0, %v3666
      %3668 = vmatprep.mubr.f32.mxu0 0.0
      %3669 = vmatmul.mubr.f32.gmra.mrb[0].mxu0 %v3382
      %v3670 = vpop.f32.mrb[0].mxu0
      %v3671 = vadd.f32 0.0, %v3670
      %v3672 = vpop.f32.mrb[0].mxu0
      %v3673 = vadd.f32 0.0, %v3672
      %3674 = vmatprep.mubr.f32.mxu0 0.0
      %3675 = vmatmul.mubr.f32.gmra.mrb[0].mxu0 %v3385
      %v3676 = vpop.f32.mrb[0].mxu0
      %v3677 = vadd.f32 0.0, %v3676
      %v3678 = vpop.f32.mrb[0].mxu0
      %v3679 = vadd.f32 0.0, %v3678
      %3680 = vmatprep.mubr.f32.mxu0 0.0
      %3681 = vmatmul.mubr.f32.gmra.mrb[0].mxu0 %v3388
      %v3682 = vpop.f32.mrb[0].mxu0
      %v3683 = vadd.f32 0.0, %v3682
      %v3684 = vpop.f32.mrb[0].mxu0
      %v3685 = vadd.f32 0.0, %v3684
      %3686 = vmatprep.mubr.f32.mxu0 0.0
      %3687 = vmatmul.mubr.f32.gmra.mrb[0].mxu0 %v3391
      %v3688 = vpop.f32.mrb[0].mxu0
      %v3689 = vadd.f32 0.0, %v3688
      %v3690 = vpop.f32.mrb[0].mxu0
      %v3691 = vadd.f32 0.0, %v3690
      %3692 = vmatprep.mubr.f32.mxu0 0.0
      %3693 = vmatmul.mubr.f32.gmra.mrb[0].mxu0 %v3394
      %v3694 = vpop.f32.mrb[0].mxu0
      %v3695 = vadd.f32 0.0, %v3694
      %v3696 = vpop.f32.mrb[0].mxu0
      %v3697 = vadd.f32 0.0, %v3696
      %3698 = vmatprep.mubr.f32.mxu0 0.0
      %3699 = vmatmul.mubr.f32.gmra.mrb[0].mxu0 %v3397
      %v3700 = vpop.f32.mrb[0].mxu0
      %v3701 = vadd.f32 0.0, %v3700
      %v3702 = vpop.f32.mrb[0].mxu0
      %v3703 = vadd.f32 0.0, %v3702
      %3704 = vmatprep.mubr.f32.mxu0 0.0
      %3705 = vmatmul.mubr.f32.gmra.mrb[0].mxu0 %v3400
      %v3706 = vpop.f32.mrb[0].mxu0
      %v3707 = vadd.f32 0.0, %v3706
      %v3708 = vpop.f32.mrb[0].mxu0
      %v3709 = vadd.f32 0.0, %v3708
      %3710 = vmatprep.mubr.f32.mxu0 0.0
      %3711 = vmatmul.mubr.f32.gmra.mrb[0].mxu0 %v3403
      %v3712 = vpop.f32.mrb[0].mxu0
      %v3713 = vadd.f32 0.0, %v3712
      %v3714 = vpop.f32.mrb[0].mxu0
      %v3715 = vadd.f32 0.0, %v3714
      %3716 = vmatprep.mubr.f32.mxu0 0.0
      %3717 = vmatmul.mubr.f32.gmra.mrb[0].mxu0 %v3406
      %v3718 = vpop.f32.mrb[0].mxu0
      %v3719 = vadd.f32 0.0, %v3718
      %v3720 = vpop.f32.mrb[0].mxu0
      %v3721 = vadd.f32 0.0, %v3720
      %3722 = vmatprep.mubr.f32.mxu0 0.0
      %3723 = vmatmul.mubr.f32.gmra.mrb[0].mxu0 %v3409
      %v3724 = vpop.f32.mrb[0].mxu0
      %v3725 = vadd.f32 0.0, %v3724
      %v3726 = vpop.f32.mrb[0].mxu0
      %v3727 = vadd.f32 0.0, %v3726
      %3728 = vmatprep.mubr.f32.mxu0 0.0
      %3729 = vmatmul.mubr.f32.gmra.mrb[0].mxu0 %v3412
      %v3730 = vpop.f32.mrb[0].mxu0
      %v3731 = vadd.f32 0.0, %v3730
      %v3732 = vpop.f32.mrb[0].mxu0
      %v3733 = vadd.f32 0.0, %v3732
      %3734 = vmatprep.mubr.f32.mxu0 0.0
      %3735 = vmatmul.mubr.f32.gmra.mrb[0].mxu0 %v3415
      %v3736 = vpop.f32.mrb[0].mxu0
      %v3737 = vadd.f32 0.0, %v3736
      %v3738 = vpop.f32.mrb[0].mxu0
      %v3739 = vadd.f32 0.0, %v3738
      %3740 = vmatprep.mubr.f32.mxu0 0.0
      %3741 = vmatmul.mubr.f32.gmra.mrb[0].mxu0 %v3418
      %v3742 = vpop.f32.mrb[0].mxu0
      %v3743 = vadd.f32 0.0, %v3742
      %v3744 = vpop.f32.mrb[0].mxu0
      %v3745 = vadd.f32 0.0, %v3744
      %3746 = vmatprep.mubr.f32.mxu0 0.0
      %3747 = vmatmul.mubr.f32.gmra.mrb[0].mxu0 %v3421
      %v3748 = vpop.f32.mrb[0].mxu0
      %v3749 = vadd.f32 0.0, %v3748
      %v3750 = vpop.f32.mrb[0].mxu0
      %v3751 = vadd.f32 0.0, %v3750
      %3752 = vmatprep.mubr.f32.mxu0 0.0
      %3753 = vmatmul.mubr.f32.gmra.mrb[0].mxu0 %v3424
      %v3754 = vpop.f32.mrb[0].mxu0
      %v3755 = vadd.f32 0.0, %v3754
      %v3756 = vpop.f32.mrb[0].mxu0
      %v3757 = vadd.f32 0.0, %v3756
      %3758 = vmatprep.mubr.f32.mxu0 0.0
      %3759 = vmatmul.mubr.f32.gmra.mrb[0].mxu0 %v3427
      %v3760 = vpop.f32.mrb[0].mxu0
      %v3761 = vadd.f32 0.0, %v3760
      %v3762 = vpop.f32.mrb[0].mxu0
      %v3763 = vadd.f32 0.0, %v3762
      %3764 = vmatprep.mubr.f32.mxu0 0.0
      %3765 = vmatmul.mubr.f32.gmra.mrb[0].mxu0 %v3430
      %v3766 = vpop.f32.mrb[0].mxu0
      %v3767 = vadd.f32 0.0, %v3766
      %v3768 = vpop.f32.mrb[0].mxu0
      %v3769 = vadd.f32 0.0, %v3768
      %3770 = vmatprep.mubr.f32.mxu0 0.0
      %3771 = vmatmul.mubr.f32.gmra.mrb[0].mxu0 %v3433
      %v3772 = vpop.f32.mrb[0].mxu0
      %v3773 = vadd.f32 0.0, %v3772
      %v3774 = vpop.f32.mrb[0].mxu0
      %v3775 = vadd.f32 0.0, %v3774
      %3776 = vmatprep.mubr.f32.mxu0 0.0
      %3777 = vmatmul.mubr.f32.gmra.mrb[0].mxu0 %v3436
      %v3778 = vpop.f32.mrb[0].mxu0
      %v3779 = vadd.f32 0.0, %v3778
      %v3780 = vpop.f32.mrb[0].mxu0
      %v3781 = vadd.f32 0.0, %v3780
      %3782 = vmatprep.mubr.f32.mxu0 0.0
      %3783 = vmatmul.mubr.f32.gmra.mrb[0].mxu0 %v3439
      %v3784 = vpop.f32.mrb[0].mxu0
      %v3785 = vadd.f32 0.0, %v3784
      %v3786 = vpop.f32.mrb[0].mxu0
      %v3787 = vadd.f32 0.0, %v3786
      %3788 = vmatprep.mubr.f32.mxu0 0.0
      %3789 = vmatmul.mubr.f32.gmra.mrb[0].mxu0 %v3442
      %v3790 = vpop.f32.mrb[0].mxu0
      %v3791 = vadd.f32 0.0, %v3790
      %v3792 = vpop.f32.mrb[0].mxu0
      %v3793 = vadd.f32 0.0, %v3792
      %3794 = vmatprep.mubr.f32.mxu0 0.0
      %3795 = vmatmul.mubr.f32.gmra.mrb[0].mxu0 %v3445
      %v3796 = vpop.f32.mrb[0].mxu0
      %v3797 = vadd.f32 0.0, %v3796
      %v3798 = vpop.f32.mrb[0].mxu0
      %v3799 = vadd.f32 0.0, %v3798
      %3800 = vmatprep.mubr.f32.mxu0 0.0
      %3801 = vmatmul.mubr.f32.gmra.mrb[0].mxu0 %v3448
      %v3802 = vpop.f32.mrb[0].mxu0
      %v3803 = vadd.f32 0.0, %v3802
      %v3804 = vpop.f32.mrb[0].mxu0
      %v3805 = vadd.f32 0.0, %v3804
      %3806 = vmatprep.mubr.f32.mxu0 0.0
      %3807 = vmatmul.mubr.f32.gmra.mrb[0].mxu0 %v3451
      %v3808 = vpop.f32.mrb[0].mxu0
      %v3809 = vadd.f32 0.0, %v3808
      %v3810 = vpop.f32.mrb[0].mxu0
      %v3811 = vadd.f32 0.0, %v3810
      %3812 = vmatprep.mubr.f32.mxu0 0.0
      %3813 = vmatmul.mubr.f32.gmra.mrb[0].mxu0 %v3454
      %v3814 = vpop.f32.mrb[0].mxu0
      %v3815 = vadd.f32 0.0, %v3814
      %v3816 = vpop.f32.mrb[0].mxu0
      %v3817 = vadd.f32 0.0, %v3816
      %3818 = vmatprep.mubr.f32.mxu0 0.0
      %3819 = vmatmul.mubr.f32.gmra.mrb[0].mxu0 %v3457
      %v3820 = vpop.f32.mrb[0].mxu0
      %v3821 = vadd.f32 0.0, %v3820
      %v3822 = vpop.f32.mrb[0].mxu0
      %v3823 = vadd.f32 0.0, %v3822
      %3824 = vmatprep.mubr.f32.mxu0 0.0
      %3825 = vmatmul.mubr.f32.gmra.mrb[0].mxu0 %v3460
      %v3826 = vpop.f32.mrb[0].mxu0
      %v3827 = vadd.f32 0.0, %v3826
      %v3828 = vpop.f32.mrb[0].mxu0
      %v3829 = vadd.f32 0.0, %v3828
      %3830 = vmatprep.mubr.f32.mxu0 0.0
      %3831 = vmatmul.mubr.f32.gmra.mrb[0].mxu0 %v3463
      %v3832 = vpop.f32.mrb[0].mxu0
      %v3833 = vadd.f32 0.0, %v3832
      %v3834 = vpop.f32.mrb[0].mxu0
      %v3835 = vadd.f32 0.0, %v3834
      %3836 = vmatprep.mubr.f32.mxu0 0.0
      %3837 = vmatmul.mubr.f32.gmra.mrb[0].mxu0 %v3466
      %v3838 = vpop.f32.mrb[0].mxu0
      %v3839 = vadd.f32 0.0, %v3838
      %v3840 = vpop.f32.mrb[0].mxu0
      %v3841 = vadd.f32 0.0, %v3840
      %3842 = vmatprep.mubr.f32.mxu0 0.0
      %3843 = vmatmul.mubr.f32.gmra.mrb[0].mxu0 %v3469
      %v3844 = vpop.f32.mrb[0].mxu0
      %v3845 = vadd.f32 0.0, %v3844
      %v3846 = vpop.f32.mrb[0].mxu0
      %v3847 = vadd.f32 0.0, %v3846
      %3848 = vmatprep.mubr.f32.mxu0 0.0
      %3849 = vmatmul.mubr.f32.gmra.mrb[0].mxu0 %v3472
      %v3850 = vpop.f32.mrb[0].mxu0
      %v3851 = vadd.f32 0.0, %v3850
      %v3852 = vpop.f32.mrb[0].mxu0
      %v3853 = vadd.f32 0.0, %v3852
      %3854 = vmatprep.mubr.f32.mxu0 0.0
      %3855 = vmatmul.mubr.f32.gmra.mrb[0].mxu0 %v3475
      %v3856 = vpop.f32.mrb[0].mxu0
      %v3857 = vadd.f32 0.0, %v3856
      %v3858 = vpop.f32.mrb[0].mxu0
      %v3859 = vadd.f32 0.0, %v3858
      %3860 = vmatprep.mubr.f32.mxu0 0.0
      %3861 = vmatmul.mubr.f32.gmra.mrb[0].mxu0 %v3478
      %v3862 = vpop.f32.mrb[0].mxu0
      %v3863 = vadd.f32 0.0, %v3862
      %v3864 = vpop.f32.mrb[0].mxu0
      %v3865 = vadd.f32 0.0, %v3864
      %3866 = vmatprep.mubr.f32.mxu0 0.0
      %3867 = vmatmul.mubr.f32.gmra.mrb[0].mxu0 %v3481
      %v3868 = vpop.f32.mrb[0].mxu0
      %v3869 = vadd.f32 0.0, %v3868
      %v3870 = vpop.f32.mrb[0].mxu0
      %v3871 = vadd.f32 0.0, %v3870
      %3872 = vmatprep.mubr.f32.mxu0 0.0
      %3873 = vmatmul.mubr.f32.gmra.mrb[0].mxu0 %v3484
      %v3874 = vpop.f32.mrb[0].mxu0
      %v3875 = vadd.f32 0.0, %v3874
      %v3876 = vpop.f32.mrb[0].mxu0
      %v3877 = vadd.f32 0.0, %v3876
      %3878 = vmatprep.mubr.f32.mxu0 0.0
      %3879 = vmatmul.mubr.f32.gmra.mrb[0].mxu0 %v3487
      %v3880 = vpop.f32.mrb[0].mxu0
      %v3881 = vadd.f32 0.0, %v3880
      %v3882 = vpop.f32.mrb[0].mxu0
      %v3883 = vadd.f32 0.0, %v3882
      %3884 = vmatprep.mubr.f32.mxu0 0.0
      %3885 = vmatmul.mubr.f32.gmra.mrb[0].mxu0 %v3490
      %v3886 = vpop.f32.mrb[0].mxu0
      %v3887 = vadd.f32 0.0, %v3886
      %v3888 = vpop.f32.mrb[0].mxu0
      %v3889 = vadd.f32 0.0, %v3888
      %3890 = vmatprep.mubr.f32.mxu0 0.0
      %3891 = vmatmul.mubr.f32.gmra.mrb[0].mxu0 %v3493
      %v3892 = vpop.f32.mrb[0].mxu0
      %v3893 = vadd.f32 0.0, %v3892
      %v3894 = vpop.f32.mrb[0].mxu0
      %v3895 = vadd.f32 0.0, %v3894
      %3896 = vmatprep.mubr.f32.mxu0 0.0
      %3897 = vmatmul.mubr.f32.gmra.mrb[0].mxu0 %v3496
      %v3898 = vpop.f32.mrb[0].mxu0
      %v3899 = vadd.f32 0.0, %v3898
      %v3900 = vpop.f32.mrb[0].mxu0
      %v3901 = vadd.f32 0.0, %v3900
      %3902 = vmatprep.mubr.f32.mxu0 0.0
      %3903 = vmatmul.mubr.f32.gmra.mrb[0].mxu0 %v3499
      %v3904 = vpop.f32.mrb[0].mxu0
      %v3905 = vadd.f32 0.0, %v3904
      %v3906 = vpop.f32.mrb[0].mxu0
      %v3907 = vadd.f32 0.0, %v3906
      %3908 = vmatprep.mubr.f32.mxu0 0.0
      %3909 = vmatmul.mubr.f32.gmra.mrb[0].mxu0 %v3502
      %v3910 = vpop.f32.mrb[0].mxu0
      %v3911 = vadd.f32 0.0, %v3910
      %v3912 = vpop.f32.mrb[0].mxu0
      %v3913 = vadd.f32 0.0, %v3912
      %3914 = vmatprep.mubr.f32.mxu0 0.0
      %3915 = vmatmul.mubr.f32.gmra.mrb[0].mxu0 %v3505
      %v3916 = vpop.f32.mrb[0].mxu0
      %v3917 = vadd.f32 0.0, %v3916
      %v3918 = vpop.f32.mrb[0].mxu0
      %v3919 = vadd.f32 0.0, %v3918
      %3920 = vmatprep.mubr.f32.mxu0 0.0
      %3921 = vmatmul.mubr.f32.gmra.mrb[0].mxu0 %v3508
      %v3922 = vpop.f32.mrb[0].mxu0
      %v3923 = vadd.f32 0.0, %v3922
      %v3924 = vpop.f32.mrb[0].mxu0
      %v3925 = vadd.f32 0.0, %v3924
      %3926 = vmatprep.mubr.f32.mxu0 0.0
      %3927 = vmatmul.mubr.f32.gmra.mrb[0].mxu0 %v3511
      %v3928 = vpop.f32.mrb[0].mxu0
      %v3929 = vadd.f32 0.0, %v3928
      %v3930 = vpop.f32.mrb[0].mxu0
      %v3931 = vadd.f32 0.0, %v3930
      %3932 = vmatprep.mubr.f32.mxu0 0.0
      %3933 = vmatmul.mubr.f32.gmra.mrb[0].mxu0 %v3514
      %v3934 = vpop.f32.mrb[0].mxu0
      %v3935 = vadd.f32 0.0, %v3934
      %v3936 = vpop.f32.mrb[0].mxu0
      %v3937 = vadd.f32 0.0, %v3936
      %3938 = vmatprep.mubr.f32.mxu0 0.0
      %3939 = vmatmul.mubr.f32.gmra.mrb[0].mxu0 %v3517
      %v3940 = vpop.f32.mrb[0].mxu0
      %v3941 = vadd.f32 0.0, %v3940
      %v3942 = vpop.f32.mrb[0].mxu0
      %v3943 = vadd.f32 0.0, %v3942
      %3944 = vmatprep.mubr.f32.mxu0 0.0
      %3945 = vmatmul.mubr.f32.gmra.mrb[0].mxu0 %v3520
      %v3946 = vpop.f32.mrb[0].mxu0
      %v3947 = vadd.f32 0.0, %v3946
      %v3948 = vpop.f32.mrb[0].mxu0
      %v3949 = vadd.f32 0.0, %v3948
      %3950 = vmatprep.mubr.f32.mxu0 0.0
      %3951 = vmatmul.mubr.f32.gmra.mrb[0].mxu0 %v3523
      %v3952 = vpop.f32.mrb[0].mxu0
      %v3953 = vadd.f32 0.0, %v3952
      %v3954 = vpop.f32.mrb[0].mxu0
      %v3955 = vadd.f32 0.0, %v3954
      %3956 = vmatprep.mubr.f32.mxu0 0.0
      %3957 = vmatmul.mubr.f32.gmra.mrb[0].mxu0 %v3526
      %v3958 = vpop.f32.mrb[0].mxu0
      %v3959 = vadd.f32 0.0, %v3958
      %v3960 = vpop.f32.mrb[0].mxu0
      %v3961 = vadd.f32 0.0, %v3960
      %3962 = vmatprep.mubr.f32.mxu0 0.0
      %3963 = vmatmul.mubr.f32.gmra.mrb[0].mxu0 %v3529
      %v3964 = vpop.f32.mrb[0].mxu0
      %v3965 = vadd.f32 0.0, %v3964
      %v3966 = vpop.f32.mrb[0].mxu0
      %v3967 = vadd.f32 0.0, %v3966
      %3968 = vmatprep.mubr.f32.mxu0 0.0
      %3969 = vmatmul.mubr.f32.gmra.mrb[0].mxu0 %v3532
      %v3970 = vpop.f32.mrb[0].mxu0
      %v3971 = vadd.f32 0.0, %v3970
      %v3972 = vpop.f32.mrb[0].mxu0
      %v3973 = vadd.f32 0.0, %v3972
      %3974 = vmatprep.mubr.f32.mxu0 0.0
      %3975 = vmatmul.mubr.f32.gmra.mrb[0].mxu0 %v3535
      %v3976 = vpop.f32.mrb[0].mxu0
      %v3977 = vadd.f32 0.0, %v3976
      %v3978 = vpop.f32.mrb[0].mxu0
      %v3979 = vadd.f32 0.0, %v3978
      %3980 = vmatprep.mubr.f32.mxu0 0.0
      %3981 = vmatmul.mubr.f32.gmra.mrb[0].mxu0 %v3538
      %v3982 = vpop.f32.mrb[0].mxu0
      %v3983 = vadd.f32 0.0, %v3982
      %v3984 = vpop.f32.mrb[0].mxu0
      %v3985 = vadd.f32 0.0, %v3984
      %3986 = vmatprep.mubr.f32.mxu0 0.0
      %3987 = vmatmul.mubr.f32.gmra.mrb[0].mxu0 %v3541
      %v3988 = vpop.f32.mrb[0].mxu0
      %v3989 = vadd.f32 0.0, %v3988
      %v3990 = vpop.f32.mrb[0].mxu0
      %v3991 = vadd.f32 0.0, %v3990
      %3992 = vmatprep.mubr.f32.mxu0 0.0
      %3993 = vmatmul.mubr.f32.gmra.mrb[0].mxu0 %v3544
      %v3994 = vpop.f32.mrb[0].mxu0
      %v3995 = vadd.f32 0.0, %v3994
      %v3996 = vpop.f32.mrb[0].mxu0
      %v3997 = vadd.f32 0.0, %v3996
      %3998 = vmatprep.mubr.f32.mxu0 0.0
      %3999 = vmatmul.mubr.f32.gmra.mrb[0].mxu0 %v3547
      %v4000 = vpop.f32.mrb[0].mxu0
      %v4001 = vadd.f32 0.0, %v4000
      %v4002 = vpop.f32.mrb[0].mxu0
      %v4003 = vadd.f32 0.0, %v4002
      %4004 = vmatprep.mubr.f32.mxu0 0.0
      %4005 = vmatmul.mubr.f32.gmra.mrb[0].mxu0 %v3550
      %v4006 = vpop.f32.mrb[0].mxu0
      %v4007 = vadd.f32 0.0, %v4006
      %v4008 = vpop.f32.mrb[0].mxu0
      %v4009 = vadd.f32 0.0, %v4008
      %4010 = vdwg.mxu0
      %4011 = vmatprep.subr.mxu0 0.0
      %4012 = vmatpush1.msra.mxu0 %v3352
      %4013 = vmatprep.subr.mxu0 0.0
      %4014 = vmatpush1.msra.mxu0 %v3355
      %4015 = vmatprep.subr.mxu0 0.0
      %4016 = vmatpush1.msra.mxu0 %v3560
      %4017 = vmatprep.subr.mxu0 0.0
      %4018 = vmatpush1.msra.mxu0 0.0
      %4019 = vmatprep.subr.mxu0 0.0
      %4020 = vmatpush1.msra.mxu0 0.0
      %4021 = vmatprep.subr.mxu0 0.0
      %4022 = vmatpush1.msra.mxu0 0.0
      %4023 = vmatprep.subr.mxu0 0.0
      %4024 = vmatpush1.msra.mxu0 0.0
      %4025 = vmatprep.subr.mxu0 0.0
      %4026 = vmatpush1.msra.mxu0 0.0
      %4027 = vmatprep.subr.mxu0 0.0
      %4028 = vmatpush1.msra.mxu0 0.0
      %4029 = vmatprep.subr.mxu0 0.0
      %4030 = vmatpush1.msra.mxu0 0.0
      %4031 = vmatprep.subr.mxu0 0.0
      %4032 = vmatpush1.msra.mxu0 0.0
      %4033 = vmatprep.subr.mxu0 0.0
      %4034 = vmatpush1.msra.mxu0 0.0
      %4035 = vmatprep.subr.mxu0 0.0
      %4036 = vmatpush1.msra.mxu0 0.0
      %4037 = vmatprep.subr.mxu0 0.0
      %4038 = vmatpush1.msra.mxu0 0.0
      %4039 = vmatprep.subr.mxu0 0.0
      %4040 = vmatpush1.msra.mxu0 0.0
      %4041 = vmatprep.subr.mxu0 0.0
      %4042 = vmatpush1.msra.mxu0 0.0
      %4043 = vmatprep.subr.mxu0 0.0
      %4044 = vmatpush1.msra.mxu0 0.0
      %4045 = vmatprep.subr.mxu0 0.0
      %4046 = vmatpush1.msra.mxu0 0.0
      %4047 = vmatprep.subr.mxu0 0.0
      %4048 = vmatpush1.msra.mxu0 0.0
      %4049 = vmatprep.subr.mxu0 0.0
      %4050 = vmatpush1.msra.mxu0 0.0
      %4051 = vmatprep.subr.mxu0 0.0
      %4052 = vmatpush1.msra.mxu0 0.0
      %4053 = vmatprep.subr.mxu0 0.0
      %4054 = vmatpush1.msra.mxu0 0.0
      %4055 = vmatprep.subr.mxu0 0.0
      %4056 = vmatpush1.msra.mxu0 0.0
      %4057 = vmatprep.subr.mxu0 0.0
      %4058 = vmatpush1.msra.mxu0 0.0
      %4059 = vmatprep.subr.mxu0 0.0
      %4060 = vmatpush1.msra.mxu0 0.0
      %4061 = vmatprep.subr.mxu0 0.0
      %4062 = vmatpush1.msra.mxu0 0.0
      %4063 = vmatprep.subr.mxu0 0.0
      %4064 = vmatpush1.msra.mxu0 0.0
      %4065 = vmatprep.subr.mxu0 0.0
      %4066 = vmatpush1.msra.mxu0 0.0
      %4067 = vmatprep.subr.mxu0 0.0
      %4068 = vmatpush1.msra.mxu0 0.0
      %4069 = vmatprep.subr.mxu0 0.0
      %4070 = vmatpush1.msra.mxu0 0.0
      %4071 = vmatprep.subr.mxu0 0.0
      %4072 = vmatpush1.msra.mxu0 0.0
      %4073 = vmatprep.subr.mxu0 0.0
      %4074 = vmatpush1.msra.mxu0 0.0
      %4075 = vmatprep.mubr.f32.mxu0 0.0
      %4076 = vmatmul.mubr.f32.gmra.mrb[0].mxu0 %v3361
      %v4077 = vpop.f32.mrb[0].mxu0
      %v4078 = vadd.f32 0.0, %v4077
      %v4079 = vpop.f32.mrb[0].mxu0
      %4080 = vmatprep.mubr.f32.mxu0 0.0
      %4081 = vmatmul.mubr.f32.gmra.mrb[0].mxu0 %v3364
      %v4082 = vpop.f32.mrb[0].mxu0
      %v4083 = vadd.f32 0.0, %v4082
      %v4084 = vpop.f32.mrb[0].mxu0
      %4085 = vmatprep.mubr.f32.mxu0 0.0
      %4086 = vmatmul.mubr.f32.gmra.mrb[0].mxu0 %v3367
      %v4087 = vpop.f32.mrb[0].mxu0
      %v4088 = vadd.f32 0.0, %v4087
      %v4089 = vpop.f32.mrb[0].mxu0
      %4090 = vmatprep.mubr.f32.mxu0 0.0
      %4091 = vmatmul.mubr.f32.gmra.mrb[0].mxu0 %v3370
      %v4092 = vpop.f32.mrb[0].mxu0
      %v4093 = vadd.f32 0.0, %v4092
      %v4094 = vpop.f32.mrb[0].mxu0
      %4095 = vmatprep.mubr.f32.mxu0 0.0
      %4096 = vmatmul.mubr.f32.gmra.mrb[0].mxu0 %v3373
      %v4097 = vpop.f32.mrb[0].mxu0
      %v4098 = vadd.f32 0.0, %v4097
      %v4099 = vpop.f32.mrb[0].mxu0
      %4100 = vmatprep.mubr.f32.mxu0 0.0
      %4101 = vmatmul.mubr.f32.gmra.mrb[0].mxu0 %v3376
      %v4102 = vpop.f32.mrb[0].mxu0
      %v4103 = vadd.f32 0.0, %v4102
      %v4104 = vpop.f32.mrb[0].mxu0
      %4105 = vmatprep.mubr.f32.mxu0 0.0
      %4106 = vmatmul.mubr.f32.gmra.mrb[0].mxu0 %v3379
      %v4107 = vpop.f32.mrb[0].mxu0
      %v4108 = vadd.f32 0.0, %v4107
      %v4109 = vpop.f32.mrb[0].mxu0
      %4110 = vmatprep.mubr.f32.mxu0 0.0
      %4111 = vmatmul.mubr.f32.gmra.mrb[0].mxu0 %v3382
      %v4112 = vpop.f32.mrb[0].mxu0
      %v4113 = vadd.f32 0.0, %v4112
      %v4114 = vpop.f32.mrb[0].mxu0
      %4115 = vmatprep.mubr.f32.mxu0 0.0
      %4116 = vmatmul.mubr.f32.gmra.mrb[0].mxu0 %v3385
      %v4117 = vpop.f32.mrb[0].mxu0
      %v4118 = vadd.f32 0.0, %v4117
      %v4119 = vpop.f32.mrb[0].mxu0
      %4120 = vmatprep.mubr.f32.mxu0 0.0
      %4121 = vmatmul.mubr.f32.gmra.mrb[0].mxu0 %v3388
      %v4122 = vpop.f32.mrb[0].mxu0
      %v4123 = vadd.f32 0.0, %v4122
      %v4124 = vpop.f32.mrb[0].mxu0
      %4125 = vmatprep.mubr.f32.mxu0 0.0
      %4126 = vmatmul.mubr.f32.gmra.mrb[0].mxu0 %v3391
      %v4127 = vpop.f32.mrb[0].mxu0
      %v4128 = vadd.f32 0.0, %v4127
      %v4129 = vpop.f32.mrb[0].mxu0
      %4130 = vmatprep.mubr.f32.mxu0 0.0
      %4131 = vmatmul.mubr.f32.gmra.mrb[0].mxu0 %v3394
      %v4132 = vpop.f32.mrb[0].mxu0
      %v4133 = vadd.f32 0.0, %v4132
      %v4134 = vpop.f32.mrb[0].mxu0
      %4135 = vmatprep.mubr.f32.mxu0 0.0
      %4136 = vmatmul.mubr.f32.gmra.mrb[0].mxu0 %v3397
      %v4137 = vpop.f32.mrb[0].mxu0
      %v4138 = vadd.f32 0.0, %v4137
      %v4139 = vpop.f32.mrb[0].mxu0
      %4140 = vmatprep.mubr.f32.mxu0 0.0
      %4141 = vmatmul.mubr.f32.gmra.mrb[0].mxu0 %v3400
      %v4142 = vpop.f32.mrb[0].mxu0
      %v4143 = vadd.f32 0.0, %v4142
      %v4144 = vpop.f32.mrb[0].mxu0
      %4145 = vmatprep.mubr.f32.mxu0 0.0
      %4146 = vmatmul.mubr.f32.gmra.mrb[0].mxu0 %v3403
      %v4147 = vpop.f32.mrb[0].mxu0
      %v4148 = vadd.f32 0.0, %v4147
      %v4149 = vpop.f32.mrb[0].mxu0
      %4150 = vmatprep.mubr.f32.mxu0 0.0
      %4151 = vmatmul.mubr.f32.gmra.mrb[0].mxu0 %v3406
      %v4152 = vpop.f32.mrb[0].mxu0
      %v4153 = vadd.f32 0.0, %v4152
      %v4154 = vpop.f32.mrb[0].mxu0
      %4155 = vmatprep.mubr.f32.mxu0 0.0
      %4156 = vmatmul.mubr.f32.gmra.mrb[0].mxu0 %v3409
      %v4157 = vpop.f32.mrb[0].mxu0
      %v4158 = vadd.f32 0.0, %v4157
      %v4159 = vpop.f32.mrb[0].mxu0
      %4160 = vmatprep.mubr.f32.mxu0 0.0
      %4161 = vmatmul.mubr.f32.gmra.mrb[0].mxu0 %v3412
      %v4162 = vpop.f32.mrb[0].mxu0
      %v4163 = vadd.f32 0.0, %v4162
      %v4164 = vpop.f32.mrb[0].mxu0
      %4165 = vmatprep.mubr.f32.mxu0 0.0
      %4166 = vmatmul.mubr.f32.gmra.mrb[0].mxu0 %v3415
      %v4167 = vpop.f32.mrb[0].mxu0
      %v4168 = vadd.f32 0.0, %v4167
      %v4169 = vpop.f32.mrb[0].mxu0
      %4170 = vmatprep.mubr.f32.mxu0 0.0
      %4171 = vmatmul.mubr.f32.gmra.mrb[0].mxu0 %v3418
      %v4172 = vpop.f32.mrb[0].mxu0
      %v4173 = vadd.f32 0.0, %v4172
      %v4174 = vpop.f32.mrb[0].mxu0
      %4175 = vmatprep.mubr.f32.mxu0 0.0
      %4176 = vmatmul.mubr.f32.gmra.mrb[0].mxu0 %v3421
      %v4177 = vpop.f32.mrb[0].mxu0
      %v4178 = vadd.f32 0.0, %v4177
      %v4179 = vpop.f32.mrb[0].mxu0
      %4180 = vmatprep.mubr.f32.mxu0 0.0
      %4181 = vmatmul.mubr.f32.gmra.mrb[0].mxu0 %v3424
      %v4182 = vpop.f32.mrb[0].mxu0
      %v4183 = vadd.f32 0.0, %v4182
      %v4184 = vpop.f32.mrb[0].mxu0
      %4185 = vmatprep.mubr.f32.mxu0 0.0
      %4186 = vmatmul.mubr.f32.gmra.mrb[0].mxu0 %v3427
      %v4187 = vpop.f32.mrb[0].mxu0
      %v4188 = vadd.f32 0.0, %v4187
      %v4189 = vpop.f32.mrb[0].mxu0
      %4190 = vmatprep.mubr.f32.mxu0 0.0
      %4191 = vmatmul.mubr.f32.gmra.mrb[0].mxu0 %v3430
      %v4192 = vpop.f32.mrb[0].mxu0
      %v4193 = vadd.f32 0.0, %v4192
      %v4194 = vpop.f32.mrb[0].mxu0
      %4195 = vmatprep.mubr.f32.mxu0 0.0
      %4196 = vmatmul.mubr.f32.gmra.mrb[0].mxu0 %v3433
      %v4197 = vpop.f32.mrb[0].mxu0
      %v4198 = vadd.f32 0.0, %v4197
      %v4199 = vpop.f32.mrb[0].mxu0
      %4200 = vmatprep.mubr.f32.mxu0 0.0
      %4201 = vmatmul.mubr.f32.gmra.mrb[0].mxu0 %v3436
      %v4202 = vpop.f32.mrb[0].mxu0
      %v4203 = vadd.f32 0.0, %v4202
      %v4204 = vpop.f32.mrb[0].mxu0
      %4205 = vmatprep.mubr.f32.mxu0 0.0
      %4206 = vmatmul.mubr.f32.gmra.mrb[0].mxu0 %v3439
      %v4207 = vpop.f32.mrb[0].mxu0
      %v4208 = vadd.f32 0.0, %v4207
      %v4209 = vpop.f32.mrb[0].mxu0
      %4210 = vmatprep.mubr.f32.mxu0 0.0
      %4211 = vmatmul.mubr.f32.gmra.mrb[0].mxu0 %v3442
      %v4212 = vpop.f32.mrb[0].mxu0
      %v4213 = vadd.f32 0.0, %v4212
      %v4214 = vpop.f32.mrb[0].mxu0
      %4215 = vmatprep.mubr.f32.mxu0 0.0
      %4216 = vmatmul.mubr.f32.gmra.mrb[0].mxu0 %v3445
      %v4217 = vpop.f32.mrb[0].mxu0
      %v4218 = vadd.f32 0.0, %v4217
      %v4219 = vpop.f32.mrb[0].mxu0
      %4220 = vmatprep.mubr.f32.mxu0 0.0
      %4221 = vmatmul.mubr.f32.gmra.mrb[0].mxu0 %v3448
      %v4222 = vpop.f32.mrb[0].mxu0
      %v4223 = vadd.f32 0.0, %v4222
      %v4224 = vpop.f32.mrb[0].mxu0
      %4225 = vmatprep.mubr.f32.mxu0 0.0
      %4226 = vmatmul.mubr.f32.gmra.mrb[0].mxu0 %v3451
      %v4227 = vpop.f32.mrb[0].mxu0
      %v4228 = vadd.f32 0.0, %v4227
      %v4229 = vpop.f32.mrb[0].mxu0
      %4230 = vmatprep.mubr.f32.mxu0 0.0
      %4231 = vmatmul.mubr.f32.gmra.mrb[0].mxu0 %v3454
      %v4232 = vpop.f32.mrb[0].mxu0
      %v4233 = vadd.f32 0.0, %v4232
      %v4234 = vpop.f32.mrb[0].mxu0
      %4235 = vmatprep.mubr.f32.mxu0 0.0
      %4236 = vmatmul.mubr.f32.gmra.mrb[0].mxu0 %v3457
      %v4237 = vpop.f32.mrb[0].mxu0
      %v4238 = vadd.f32 0.0, %v4237
      %v4239 = vpop.f32.mrb[0].mxu0
      %4240 = vmatprep.mubr.f32.mxu0 0.0
      %4241 = vmatmul.mubr.f32.gmra.mrb[0].mxu0 %v3460
      %v4242 = vpop.f32.mrb[0].mxu0
      %v4243 = vadd.f32 0.0, %v4242
      %v4244 = vpop.f32.mrb[0].mxu0
      %4245 = vmatprep.mubr.f32.mxu0 0.0
      %4246 = vmatmul.mubr.f32.gmra.mrb[0].mxu0 %v3463
      %v4247 = vpop.f32.mrb[0].mxu0
      %v4248 = vadd.f32 0.0, %v4247
      %v4249 = vpop.f32.mrb[0].mxu0
      %4250 = vmatprep.mubr.f32.mxu0 0.0
      %4251 = vmatmul.mubr.f32.gmra.mrb[0].mxu0 %v3466
      %v4252 = vpop.f32.mrb[0].mxu0
      %v4253 = vadd.f32 0.0, %v4252
      %v4254 = vpop.f32.mrb[0].mxu0
      %4255 = vmatprep.mubr.f32.mxu0 0.0
      %4256 = vmatmul.mubr.f32.gmra.mrb[0].mxu0 %v3469
      %v4257 = vpop.f32.mrb[0].mxu0
      %v4258 = vadd.f32 0.0, %v4257
      %v4259 = vpop.f32.mrb[0].mxu0
      %4260 = vmatprep.mubr.f32.mxu0 0.0
      %4261 = vmatmul.mubr.f32.gmra.mrb[0].mxu0 %v3472
      %v4262 = vpop.f32.mrb[0].mxu0
      %v4263 = vadd.f32 0.0, %v4262
      %v4264 = vpop.f32.mrb[0].mxu0
      %4265 = vmatprep.mubr.f32.mxu0 0.0
      %4266 = vmatmul.mubr.f32.gmra.mrb[0].mxu0 %v3475
      %v4267 = vpop.f32.mrb[0].mxu0
      %v4268 = vadd.f32 0.0, %v4267
      %v4269 = vpop.f32.mrb[0].mxu0
      %4270 = vmatprep.mubr.f32.mxu0 0.0
      %4271 = vmatmul.mubr.f32.gmra.mrb[0].mxu0 %v3478
      %v4272 = vpop.f32.mrb[0].mxu0
      %v4273 = vadd.f32 0.0, %v4272
      %v4274 = vpop.f32.mrb[0].mxu0
      %4275 = vmatprep.mubr.f32.mxu0 0.0
      %4276 = vmatmul.mubr.f32.gmra.mrb[0].mxu0 %v3481
      %v4277 = vpop.f32.mrb[0].mxu0
      %v4278 = vadd.f32 0.0, %v4277
      %v4279 = vpop.f32.mrb[0].mxu0
      %4280 = vmatprep.mubr.f32.mxu0 0.0
      %4281 = vmatmul.mubr.f32.gmra.mrb[0].mxu0 %v3484
      %v4282 = vpop.f32.mrb[0].mxu0
      %v4283 = vadd.f32 0.0, %v4282
      %v4284 = vpop.f32.mrb[0].mxu0
      %4285 = vmatprep.mubr.f32.mxu0 0.0
      %4286 = vmatmul.mubr.f32.gmra.mrb[0].mxu0 %v3487
      %v4287 = vpop.f32.mrb[0].mxu0
      %v4288 = vadd.f32 0.0, %v4287
      %v4289 = vpop.f32.mrb[0].mxu0
      %4290 = vmatprep.mubr.f32.mxu0 0.0
      %4291 = vmatmul.mubr.f32.gmra.mrb[0].mxu0 %v3490
      %v4292 = vpop.f32.mrb[0].mxu0
      %v4293 = vadd.f32 0.0, %v4292
      %v4294 = vpop.f32.mrb[0].mxu0
      %4295 = vmatprep.mubr.f32.mxu0 0.0
      %4296 = vmatmul.mubr.f32.gmra.mrb[0].mxu0 %v3493
      %v4297 = vpop.f32.mrb[0].mxu0
      %v4298 = vadd.f32 0.0, %v4297
      %v4299 = vpop.f32.mrb[0].mxu0
      %4300 = vmatprep.mubr.f32.mxu0 0.0
      %4301 = vmatmul.mubr.f32.gmra.mrb[0].mxu0 %v3496
      %v4302 = vpop.f32.mrb[0].mxu0
      %v4303 = vadd.f32 0.0, %v4302
      %v4304 = vpop.f32.mrb[0].mxu0
      %4305 = vmatprep.mubr.f32.mxu0 0.0
      %4306 = vmatmul.mubr.f32.gmra.mrb[0].mxu0 %v3499
      %v4307 = vpop.f32.mrb[0].mxu0
      %v4308 = vadd.f32 0.0, %v4307
      %v4309 = vpop.f32.mrb[0].mxu0
      %4310 = vmatprep.mubr.f32.mxu0 0.0
      %4311 = vmatmul.mubr.f32.gmra.mrb[0].mxu0 %v3502
      %v4312 = vpop.f32.mrb[0].mxu0
      %v4313 = vadd.f32 0.0, %v4312
      %v4314 = vpop.f32.mrb[0].mxu0
      %4315 = vmatprep.mubr.f32.mxu0 0.0
      %4316 = vmatmul.mubr.f32.gmra.mrb[0].mxu0 %v3505
      %v4317 = vpop.f32.mrb[0].mxu0
      %v4318 = vadd.f32 0.0, %v4317
      %v4319 = vpop.f32.mrb[0].mxu0
      %4320 = vmatprep.mubr.f32.mxu0 0.0
      %4321 = vmatmul.mubr.f32.gmra.mrb[0].mxu0 %v3508
      %v4322 = vpop.f32.mrb[0].mxu0
      %v4323 = vadd.f32 0.0, %v4322
      %v4324 = vpop.f32.mrb[0].mxu0
      %4325 = vmatprep.mubr.f32.mxu0 0.0
      %4326 = vmatmul.mubr.f32.gmra.mrb[0].mxu0 %v3511
      %v4327 = vpop.f32.mrb[0].mxu0
      %v4328 = vadd.f32 0.0, %v4327
      %v4329 = vpop.f32.mrb[0].mxu0
      %4330 = vmatprep.mubr.f32.mxu0 0.0
      %4331 = vmatmul.mubr.f32.gmra.mrb[0].mxu0 %v3514
      %v4332 = vpop.f32.mrb[0].mxu0
      %v4333 = vadd.f32 0.0, %v4332
      %v4334 = vpop.f32.mrb[0].mxu0
      %4335 = vmatprep.mubr.f32.mxu0 0.0
      %4336 = vmatmul.mubr.f32.gmra.mrb[0].mxu0 %v3517
      %v4337 = vpop.f32.mrb[0].mxu0
      %v4338 = vadd.f32 0.0, %v4337
      %v4339 = vpop.f32.mrb[0].mxu0
      %4340 = vmatprep.mubr.f32.mxu0 0.0
      %4341 = vmatmul.mubr.f32.gmra.mrb[0].mxu0 %v3520
      %v4342 = vpop.f32.mrb[0].mxu0
      %v4343 = vadd.f32 0.0, %v4342
      %v4344 = vpop.f32.mrb[0].mxu0
      %4345 = vmatprep.mubr.f32.mxu0 0.0
      %4346 = vmatmul.mubr.f32.gmra.mrb[0].mxu0 %v3523
      %v4347 = vpop.f32.mrb[0].mxu0
      %v4348 = vadd.f32 0.0, %v4347
      %v4349 = vpop.f32.mrb[0].mxu0
      %4350 = vmatprep.mubr.f32.mxu0 0.0
      %4351 = vmatmul.mubr.f32.gmra.mrb[0].mxu0 %v3526
      %v4352 = vpop.f32.mrb[0].mxu0
      %v4353 = vadd.f32 0.0, %v4352
      %v4354 = vpop.f32.mrb[0].mxu0
      %4355 = vmatprep.mubr.f32.mxu0 0.0
      %4356 = vmatmul.mubr.f32.gmra.mrb[0].mxu0 %v3529
      %v4357 = vpop.f32.mrb[0].mxu0
      %v4358 = vadd.f32 0.0, %v4357
      %v4359 = vpop.f32.mrb[0].mxu0
      %4360 = vmatprep.mubr.f32.mxu0 0.0
      %4361 = vmatmul.mubr.f32.gmra.mrb[0].mxu0 %v3532
      %v4362 = vpop.f32.mrb[0].mxu0
      %v4363 = vadd.f32 0.0, %v4362
      %v4364 = vpop.f32.mrb[0].mxu0
      %4365 = vmatprep.mubr.f32.mxu0 0.0
      %4366 = vmatmul.mubr.f32.gmra.mrb[0].mxu0 %v3535
      %v4367 = vpop.f32.mrb[0].mxu0
      %v4368 = vadd.f32 0.0, %v4367
      %v4369 = vpop.f32.mrb[0].mxu0
      %4370 = vmatprep.mubr.f32.mxu0 0.0
      %4371 = vmatmul.mubr.f32.gmra.mrb[0].mxu0 %v3538
      %v4372 = vpop.f32.mrb[0].mxu0
      %v4373 = vadd.f32 0.0, %v4372
      %v4374 = vpop.f32.mrb[0].mxu0
      %4375 = vmatprep.mubr.f32.mxu0 0.0
      %4376 = vmatmul.mubr.f32.gmra.mrb[0].mxu0 %v3541
      %v4377 = vpop.f32.mrb[0].mxu0
      %v4378 = vadd.f32 0.0, %v4377
      %v4379 = vpop.f32.mrb[0].mxu0
      %4380 = vmatprep.mubr.f32.mxu0 0.0
      %4381 = vmatmul.mubr.f32.gmra.mrb[0].mxu0 %v3544
      %v4382 = vpop.f32.mrb[0].mxu0
      %v4383 = vadd.f32 0.0, %v4382
      %v4384 = vpop.f32.mrb[0].mxu0
      %4385 = vmatprep.mubr.f32.mxu0 0.0
      %4386 = vmatmul.mubr.f32.gmra.mrb[0].mxu0 %v3547
      %v4387 = vpop.f32.mrb[0].mxu0
      %v4388 = vadd.f32 0.0, %v4387
      %v4389 = vpop.f32.mrb[0].mxu0
      %4390 = vmatprep.mubr.f32.mxu0 0.0
      %4391 = vmatmul.mubr.f32.gmra.mrb[0].mxu0 %v3550
      %v4392 = vpop.f32.mrb[0].mxu0
      %v4393 = vadd.f32 0.0, %v4392
      %v4394 = vpop.f32.mrb[0].mxu0
      %4395 = vdwg.mxu0
      %v4396 = vld [vmem:[%s538] sm:$0xff]
      %v4397 = vld [vmem:[%s538 + $0x8] sm:$0xff]
      %v4398 = vld [vmem:[%s538 + $0x10] sm:$0xff]
      %v4399 = vld [vmem:[%s538 + $0x18] sm:$0xff]
      %v4400 = vld [vmem:[%s538 + $0x20] sm:$0xff]
      %v4401 = vld [vmem:[%s538 + $0x28] sm:$0xff]
      %v4402 = vld [vmem:[%s538 + $0x30] sm:$0xff]
      %v4403 = vld [vmem:[%s538 + $0x38] sm:$0xff]
      %v4404 = vld [vmem:[%s538 + $0x40] sm:$0xff]
      %v4405 = vld [vmem:[%s538 + $0x48] sm:$0xff]
      %v4406 = vld [vmem:[%s538 + $0x50] sm:$0xff]
      %v4407 = vld [vmem:[%s538 + $0x58] sm:$0xff]
      %v4408 = vld [vmem:[%s538 + $0x60] sm:$0xff]
      %v4409 = vld [vmem:[%s538 + $0x68] sm:$0xff]
      %v4410 = vld [vmem:[%s538 + $0x70] sm:$0xff]
      %v4411 = vld [vmem:[%s538 + $0x78] sm:$0xff]
      %v4412 = vld [vmem:[%s538 + $0x80] sm:$0xff]
      %v4413 = vld [vmem:[%s538 + $0x88] sm:$0xff]
      %v4414 = vld [vmem:[%s538 + $0x90] sm:$0xff]
      %v4415 = vld [vmem:[%s538 + $0x98] sm:$0xff]
      %v4416 = vld [vmem:[%s538 + $0xa0] sm:$0xff]
      %v4417 = vld [vmem:[%s538 + $0xa8] sm:$0xff]
      %v4418 = vld [vmem:[%s538 + $0xb0] sm:$0xff]
      %v4419 = vld [vmem:[%s538 + $0xb8] sm:$0xff]
      %v4420 = vld [vmem:[%s538 + $0xc0] sm:$0xff]
      %v4421 = vld [vmem:[%s538 + $0xc8] sm:$0xff]
      %v4422 = vld [vmem:[%s538 + $0xd0] sm:$0xff]
      %v4423 = vld [vmem:[%s538 + $0xd8] sm:$0xff]
      %v4424 = vld [vmem:[%s538 + $0xe0] sm:$0xff]
      %v4425 = vld [vmem:[%s538 + $0xe8] sm:$0xff]
      %v4426 = vld [vmem:[%s538 + $0xf0] sm:$0xff]
      %v4427 = vld [vmem:[%s538 + $0xf8] sm:$0xff]
      %v4428 = vld [vmem:[%s538 + $0x100] sm:$0xff]
      %v4429 = vld [vmem:[%s538 + $0x108] sm:$0xff]
      %v4430 = vld [vmem:[%s538 + $0x110] sm:$0xff]
      %v4431 = vld [vmem:[%s538 + $0x118] sm:$0xff]
      %v4432 = vld [vmem:[%s538 + $0x120] sm:$0xff]
      %v4433 = vld [vmem:[%s538 + $0x128] sm:$0xff]
      %v4434 = vld [vmem:[%s538 + $0x130] sm:$0xff]
      %v4435 = vld [vmem:[%s538 + $0x138] sm:$0xff]
      %v4436 = vld [vmem:[%s538 + $0x140] sm:$0xff]
      %v4437 = vld [vmem:[%s538 + $0x148] sm:$0xff]
      %v4438 = vld [vmem:[%s538 + $0x150] sm:$0xff]
      %v4439 = vld [vmem:[%s538 + $0x158] sm:$0xff]
      %v4440 = vld [vmem:[%s538 + $0x160] sm:$0xff]
      %v4441 = vld [vmem:[%s538 + $0x168] sm:$0xff]
      %v4442 = vld [vmem:[%s538 + $0x170] sm:$0xff]
      %v4443 = vld [vmem:[%s538 + $0x178] sm:$0xff]
      %v4444 = vld [vmem:[%s538 + $0x180] sm:$0xff]
      %v4445 = vld [vmem:[%s538 + $0x188] sm:$0xff]
      %v4446 = vld [vmem:[%s538 + $0x190] sm:$0xff]
      %v4447 = vld [vmem:[%s538 + $0x198] sm:$0xff]
      %v4448 = vld [vmem:[%s538 + $0x1a0] sm:$0xff]
      %v4449 = vld [vmem:[%s538 + $0x1a8] sm:$0xff]
      %v4450 = vld [vmem:[%s538 + $0x1b0] sm:$0xff]
      %v4451 = vld [vmem:[%s538 + $0x1b8] sm:$0xff]
      %v4452 = vld [vmem:[%s538 + $0x1c0] sm:$0xff]
      %v4453 = vld [vmem:[%s538 + $0x1c8] sm:$0xff]
      %v4454 = vld [vmem:[%s538 + $0x1d0] sm:$0xff]
      %v4455 = vld [vmem:[%s538 + $0x1d8] sm:$0xff]
      %v4456 = vld [vmem:[%s538 + $0x1e0] sm:$0xff]
      %v4457 = vld [vmem:[%s538 + $0x1e8] sm:$0xff]
      %v4458 = vld [vmem:[%s538 + $0x1f0] sm:$0xff]
      %v4459 = vld [vmem:[%s538 + $0x1f8] sm:$0xff]
      %v4460 = vld [vmem:[%s10] sm:$0xff]
      %v4461 = vld [vmem:[%s10 + $0x8] sm:$0xf]
      %v4464 = vcombine.high %v4460, %v4460
      %vm4465 = vcmask 31744
      %v4467 = vsel %vm4465, %v4396, 0
      %v4470 = vsel %vm4465, %v4397, 0
      %v4473 = vsel %vm4465, %v4398, 0
      %v4476 = vsel %vm4465, %v4399, 0
      %v4479 = vsel %vm4465, %v4400, 0
      %v4482 = vsel %vm4465, %v4401, 0
      %v4485 = vsel %vm4465, %v4402, 0
      %v4488 = vsel %vm4465, %v4403, 0
      %v4491 = vsel %vm4465, %v4404, 0
      %v4494 = vsel %vm4465, %v4405, 0
      %v4497 = vsel %vm4465, %v4406, 0
      %v4500 = vsel %vm4465, %v4407, 0
      %v4503 = vsel %vm4465, %v4408, 0
      %v4506 = vsel %vm4465, %v4409, 0
      %v4509 = vsel %vm4465, %v4410, 0
      %v4512 = vsel %vm4465, %v4411, 0
      %v4515 = vsel %vm4465, %v4412, 0
      %v4518 = vsel %vm4465, %v4413, 0
      %v4521 = vsel %vm4465, %v4414, 0
      %v4524 = vsel %vm4465, %v4415, 0
      %v4527 = vsel %vm4465, %v4416, 0
      %v4530 = vsel %vm4465, %v4417, 0
      %v4533 = vsel %vm4465, %v4418, 0
      %v4536 = vsel %vm4465, %v4419, 0
      %v4539 = vsel %vm4465, %v4420, 0
      %v4542 = vsel %vm4465, %v4421, 0
      %v4545 = vsel %vm4465, %v4422, 0
      %v4548 = vsel %vm4465, %v4423, 0
      %v4551 = vsel %vm4465, %v4424, 0
      %v4554 = vsel %vm4465, %v4425, 0
      %v4557 = vsel %vm4465, %v4426, 0
      %v4560 = vsel %vm4465, %v4427, 0
      %v4563 = vsel %vm4465, %v4428, 0
      %v4566 = vsel %vm4465, %v4429, 0
      %v4569 = vsel %vm4465, %v4430, 0
      %v4572 = vsel %vm4465, %v4431, 0
      %v4575 = vsel %vm4465, %v4432, 0
      %v4578 = vsel %vm4465, %v4433, 0
      %v4581 = vsel %vm4465, %v4434, 0
      %v4584 = vsel %vm4465, %v4435, 0
      %v4587 = vsel %vm4465, %v4436, 0
      %v4590 = vsel %vm4465, %v4437, 0
      %v4593 = vsel %vm4465, %v4438, 0
      %v4596 = vsel %vm4465, %v4439, 0
      %v4599 = vsel %vm4465, %v4440, 0
      %v4602 = vsel %vm4465, %v4441, 0
      %v4605 = vsel %vm4465, %v4442, 0
      %v4608 = vsel %vm4465, %v4443, 0
      %v4611 = vsel %vm4465, %v4444, 0
      %v4614 = vsel %vm4465, %v4445, 0
      %v4617 = vsel %vm4465, %v4446, 0
      %v4620 = vsel %vm4465, %v4447, 0
      %v4623 = vsel %vm4465, %v4448, 0
      %v4626 = vsel %vm4465, %v4449, 0
      %v4629 = vsel %vm4465, %v4450, 0
      %v4632 = vsel %vm4465, %v4451, 0
      %v4635 = vsel %vm4465, %v4452, 0
      %v4638 = vsel %vm4465, %v4453, 0
      %v4641 = vsel %vm4465, %v4454, 0
      %v4644 = vsel %vm4465, %v4455, 0
      %v4647 = vsel %vm4465, %v4456, 0
      %v4650 = vsel %vm4465, %v4457, 0
      %v4653 = vsel %vm4465, %v4458, 0
      %v4656 = vsel %vm4465, %v4459, 0
      %v4658 = vsel %vm3552, %v4460, 0
      %v4660 = vsel %vm3552, %v4464, 0
      %v4662 = vsel %vm3552, %v4461, 0
      %4664 = vmatprep.subr.mxu0 %v4660
      %4665 = vmatpush1.msra.mxu0 %v4658
      %4666 = vmatprep.subr.mxu0 0.0
      %4667 = vmatpush1.msra.mxu0 0.0
      %4668 = vmatprep.subr.mxu0 0.0
      %4669 = vmatpush1.msra.mxu0 0.0
      %4670 = vmatprep.subr.mxu0 0.0
      %4671 = vmatpush1.msra.mxu0 0.0
      %4672 = vmatprep.subr.mxu0 0.0
      %4673 = vmatpush1.msra.mxu0 0.0
      %4674 = vmatprep.subr.mxu0 0.0
      %4675 = vmatpush1.msra.mxu0 0.0
      %4676 = vmatprep.subr.mxu0 0.0
      %4677 = vmatpush1.msra.mxu0 0.0
      %4678 = vmatprep.subr.mxu0 0.0
      %4679 = vmatpush1.msra.mxu0 0.0
      %4680 = vmatprep.subr.mxu0 0.0
      %4681 = vmatpush1.msra.mxu0 0.0
      %4682 = vmatprep.subr.mxu0 0.0
      %4683 = vmatpush1.msra.mxu0 0.0
      %4684 = vmatprep.subr.mxu0 0.0
      %4685 = vmatpush1.msra.mxu0 0.0
      %4686 = vmatprep.subr.mxu0 0.0
      %4687 = vmatpush1.msra.mxu0 0.0
      %4688 = vmatprep.subr.mxu0 0.0
      %4689 = vmatpush1.msra.mxu0 0.0
      %4690 = vmatprep.subr.mxu0 0.0
      %4691 = vmatpush1.msra.mxu0 0.0
      %4692 = vmatprep.subr.mxu0 0.0
      %4693 = vmatpush1.msra.mxu0 0.0
      %4694 = vmatprep.subr.mxu0 0.0
      %4695 = vmatpush1.msra.mxu0 0.0
      %4696 = vmatprep.subr.mxu0 0.0
      %4697 = vmatpush1.msra.mxu0 0.0
      %4698 = vmatprep.subr.mxu0 0.0
      %4699 = vmatpush1.msra.mxu0 0.0
      %4700 = vmatprep.subr.mxu0 0.0
      %4701 = vmatpush1.msra.mxu0 0.0
      %4702 = vmatprep.subr.mxu0 0.0
      %4703 = vmatpush1.msra.mxu0 0.0
      %4704 = vmatprep.subr.mxu0 0.0
      %4705 = vmatpush1.msra.mxu0 0.0
      %4706 = vmatprep.subr.mxu0 0.0
      %4707 = vmatpush1.msra.mxu0 0.0
      %4708 = vmatprep.subr.mxu0 0.0
      %4709 = vmatpush1.msra.mxu0 0.0
      %4710 = vmatprep.subr.mxu0 0.0
      %4711 = vmatpush1.msra.mxu0 0.0
      %4712 = vmatprep.subr.mxu0 0.0
      %4713 = vmatpush1.msra.mxu0 0.0
      %4714 = vmatprep.subr.mxu0 0.0
      %4715 = vmatpush1.msra.mxu0 0.0
      %4716 = vmatprep.subr.mxu0 0.0
      %4717 = vmatpush1.msra.mxu0 0.0
      %4718 = vmatprep.subr.mxu0 0.0
      %4719 = vmatpush1.msra.mxu0 0.0
      %4720 = vmatprep.subr.mxu0 0.0
      %4721 = vmatpush1.msra.mxu0 0.0
      %4722 = vmatprep.subr.mxu0 0.0
      %4723 = vmatpush1.msra.mxu0 0.0
      %4724 = vmatprep.subr.mxu0 0.0
      %4725 = vmatpush1.msra.mxu0 0.0
      %4726 = vmatprep.subr.mxu0 0.0
      %4727 = vmatpush1.msra.mxu0 0.0
      %4728 = vmatprep.mubr.f32.mxu0 0.0
      %4729 = vmatmul.mubr.f32.gmra.mrb[0].mxu0 %v4467
      %v4730 = vpop.f32.mrb[0].mxu0
      %v4731 = vadd.f32 0.0, %v4730
      %v4732 = vpop.f32.mrb[0].mxu0
      %v4733 = vadd.f32 0.0, %v4732
      %4734 = vmatprep.mubr.f32.mxu0 0.0
      %4735 = vmatmul.mubr.f32.gmra.mrb[0].mxu0 %v4470
      %v4736 = vpop.f32.mrb[0].mxu0
      %v4737 = vadd.f32 0.0, %v4736
      %v4738 = vpop.f32.mrb[0].mxu0
      %v4739 = vadd.f32 0.0, %v4738
      %4740 = vmatprep.mubr.f32.mxu0 0.0
      %4741 = vmatmul.mubr.f32.gmra.mrb[0].mxu0 %v4473
      %v4742 = vpop.f32.mrb[0].mxu0
      %v4743 = vadd.f32 0.0, %v4742
      %v4744 = vpop.f32.mrb[0].mxu0
      %v4745 = vadd.f32 0.0, %v4744
      %4746 = vmatprep.mubr.f32.mxu0 0.0
      %4747 = vmatmul.mubr.f32.gmra.mrb[0].mxu0 %v4476
      %v4748 = vpop.f32.mrb[0].mxu0
      %v4749 = vadd.f32 0.0, %v4748
      %v4750 = vpop.f32.mrb[0].mxu0
      %v4751 = vadd.f32 0.0, %v4750
      %4752 = vmatprep.mubr.f32.mxu0 0.0
      %4753 = vmatmul.mubr.f32.gmra.mrb[0].mxu0 %v4479
      %v4754 = vpop.f32.mrb[0].mxu0
      %v4755 = vadd.f32 0.0, %v4754
      %v4756 = vpop.f32.mrb[0].mxu0
      %v4757 = vadd.f32 0.0, %v4756
      %4758 = vmatprep.mubr.f32.mxu0 0.0
      %4759 = vmatmul.mubr.f32.gmra.mrb[0].mxu0 %v4482
      %v4760 = vpop.f32.mrb[0].mxu0
      %v4761 = vadd.f32 0.0, %v4760
      %v4762 = vpop.f32.mrb[0].mxu0
      %v4763 = vadd.f32 0.0, %v4762
      %4764 = vmatprep.mubr.f32.mxu0 0.0
      %4765 = vmatmul.mubr.f32.gmra.mrb[0].mxu0 %v4485
      %v4766 = vpop.f32.mrb[0].mxu0
      %v4767 = vadd.f32 0.0, %v4766
      %v4768 = vpop.f32.mrb[0].mxu0
      %v4769 = vadd.f32 0.0, %v4768
      %4770 = vmatprep.mubr.f32.mxu0 0.0
      %4771 = vmatmul.mubr.f32.gmra.mrb[0].mxu0 %v4488
      %v4772 = vpop.f32.mrb[0].mxu0
      %v4773 = vadd.f32 0.0, %v4772
      %v4774 = vpop.f32.mrb[0].mxu0
      %v4775 = vadd.f32 0.0, %v4774
      %4776 = vmatprep.mubr.f32.mxu0 0.0
      %4777 = vmatmul.mubr.f32.gmra.mrb[0].mxu0 %v4491
      %v4778 = vpop.f32.mrb[0].mxu0
      %v4779 = vadd.f32 0.0, %v4778
      %v4780 = vpop.f32.mrb[0].mxu0
      %v4781 = vadd.f32 0.0, %v4780
      %4782 = vmatprep.mubr.f32.mxu0 0.0
      %4783 = vmatmul.mubr.f32.gmra.mrb[0].mxu0 %v4494
      %v4784 = vpop.f32.mrb[0].mxu0
      %v4785 = vadd.f32 0.0, %v4784
      %v4786 = vpop.f32.mrb[0].mxu0
      %v4787 = vadd.f32 0.0, %v4786
      %4788 = vmatprep.mubr.f32.mxu0 0.0
      %4789 = vmatmul.mubr.f32.gmra.mrb[0].mxu0 %v4497
      %v4790 = vpop.f32.mrb[0].mxu0
      %v4791 = vadd.f32 0.0, %v4790
      %v4792 = vpop.f32.mrb[0].mxu0
      %v4793 = vadd.f32 0.0, %v4792
      %4794 = vmatprep.mubr.f32.mxu0 0.0
      %4795 = vmatmul.mubr.f32.gmra.mrb[0].mxu0 %v4500
      %v4796 = vpop.f32.mrb[0].mxu0
      %v4797 = vadd.f32 0.0, %v4796
      %v4798 = vpop.f32.mrb[0].mxu0
      %v4799 = vadd.f32 0.0, %v4798
      %4800 = vmatprep.mubr.f32.mxu0 0.0
      %4801 = vmatmul.mubr.f32.gmra.mrb[0].mxu0 %v4503
      %v4802 = vpop.f32.mrb[0].mxu0
      %v4803 = vadd.f32 0.0, %v4802
      %v4804 = vpop.f32.mrb[0].mxu0
      %v4805 = vadd.f32 0.0, %v4804
      %4806 = vmatprep.mubr.f32.mxu0 0.0
      %4807 = vmatmul.mubr.f32.gmra.mrb[0].mxu0 %v4506
      %v4808 = vpop.f32.mrb[0].mxu0
      %v4809 = vadd.f32 0.0, %v4808
      %v4810 = vpop.f32.mrb[0].mxu0
      %v4811 = vadd.f32 0.0, %v4810
      %4812 = vmatprep.mubr.f32.mxu0 0.0
      %4813 = vmatmul.mubr.f32.gmra.mrb[0].mxu0 %v4509
      %v4814 = vpop.f32.mrb[0].mxu0
      %v4815 = vadd.f32 0.0, %v4814
      %v4816 = vpop.f32.mrb[0].mxu0
      %v4817 = vadd.f32 0.0, %v4816
      %4818 = vmatprep.mubr.f32.mxu0 0.0
      %4819 = vmatmul.mubr.f32.gmra.mrb[0].mxu0 %v4512
      %v4820 = vpop.f32.mrb[0].mxu0
      %v4821 = vadd.f32 0.0, %v4820
      %v4822 = vpop.f32.mrb[0].mxu0
      %v4823 = vadd.f32 0.0, %v4822
      %4824 = vmatprep.mubr.f32.mxu0 0.0
      %4825 = vmatmul.mubr.f32.gmra.mrb[0].mxu0 %v4515
      %v4826 = vpop.f32.mrb[0].mxu0
      %v4827 = vadd.f32 0.0, %v4826
      %v4828 = vpop.f32.mrb[0].mxu0
      %v4829 = vadd.f32 0.0, %v4828
      %4830 = vmatprep.mubr.f32.mxu0 0.0
      %4831 = vmatmul.mubr.f32.gmra.mrb[0].mxu0 %v4518
      %v4832 = vpop.f32.mrb[0].mxu0
      %v4833 = vadd.f32 0.0, %v4832
      %v4834 = vpop.f32.mrb[0].mxu0
      %v4835 = vadd.f32 0.0, %v4834
      %4836 = vmatprep.mubr.f32.mxu0 0.0
      %4837 = vmatmul.mubr.f32.gmra.mrb[0].mxu0 %v4521
      %v4838 = vpop.f32.mrb[0].mxu0
      %v4839 = vadd.f32 0.0, %v4838
      %v4840 = vpop.f32.mrb[0].mxu0
      %v4841 = vadd.f32 0.0, %v4840
      %4842 = vmatprep.mubr.f32.mxu0 0.0
      %4843 = vmatmul.mubr.f32.gmra.mrb[0].mxu0 %v4524
      %v4844 = vpop.f32.mrb[0].mxu0
      %v4845 = vadd.f32 0.0, %v4844
      %v4846 = vpop.f32.mrb[0].mxu0
      %v4847 = vadd.f32 0.0, %v4846
      %4848 = vmatprep.mubr.f32.mxu0 0.0
      %4849 = vmatmul.mubr.f32.gmra.mrb[0].mxu0 %v4527
      %v4850 = vpop.f32.mrb[0].mxu0
      %v4851 = vadd.f32 0.0, %v4850
      %v4852 = vpop.f32.mrb[0].mxu0
      %v4853 = vadd.f32 0.0, %v4852
      %4854 = vmatprep.mubr.f32.mxu0 0.0
      %4855 = vmatmul.mubr.f32.gmra.mrb[0].mxu0 %v4530
      %v4856 = vpop.f32.mrb[0].mxu0
      %v4857 = vadd.f32 0.0, %v4856
      %v4858 = vpop.f32.mrb[0].mxu0
      %v4859 = vadd.f32 0.0, %v4858
      %4860 = vmatprep.mubr.f32.mxu0 0.0
      %4861 = vmatmul.mubr.f32.gmra.mrb[0].mxu0 %v4533
      %v4862 = vpop.f32.mrb[0].mxu0
      %v4863 = vadd.f32 0.0, %v4862
      %v4864 = vpop.f32.mrb[0].mxu0
      %v4865 = vadd.f32 0.0, %v4864
      %4866 = vmatprep.mubr.f32.mxu0 0.0
      %4867 = vmatmul.mubr.f32.gmra.mrb[0].mxu0 %v4536
      %v4868 = vpop.f32.mrb[0].mxu0
      %v4869 = vadd.f32 0.0, %v4868
      %v4870 = vpop.f32.mrb[0].mxu0
      %v4871 = vadd.f32 0.0, %v4870
      %4872 = vmatprep.mubr.f32.mxu0 0.0
      %4873 = vmatmul.mubr.f32.gmra.mrb[0].mxu0 %v4539
      %v4874 = vpop.f32.mrb[0].mxu0
      %v4875 = vadd.f32 0.0, %v4874
      %v4876 = vpop.f32.mrb[0].mxu0
      %v4877 = vadd.f32 0.0, %v4876
      %4878 = vmatprep.mubr.f32.mxu0 0.0
      %4879 = vmatmul.mubr.f32.gmra.mrb[0].mxu0 %v4542
      %v4880 = vpop.f32.mrb[0].mxu0
      %v4881 = vadd.f32 0.0, %v4880
      %v4882 = vpop.f32.mrb[0].mxu0
      %v4883 = vadd.f32 0.0, %v4882
      %4884 = vmatprep.mubr.f32.mxu0 0.0
      %4885 = vmatmul.mubr.f32.gmra.mrb[0].mxu0 %v4545
      %v4886 = vpop.f32.mrb[0].mxu0
      %v4887 = vadd.f32 0.0, %v4886
      %v4888 = vpop.f32.mrb[0].mxu0
      %v4889 = vadd.f32 0.0, %v4888
      %4890 = vmatprep.mubr.f32.mxu0 0.0
      %4891 = vmatmul.mubr.f32.gmra.mrb[0].mxu0 %v4548
      %v4892 = vpop.f32.mrb[0].mxu0
      %v4893 = vadd.f32 0.0, %v4892
      %v4894 = vpop.f32.mrb[0].mxu0
      %v4895 = vadd.f32 0.0, %v4894
      %4896 = vmatprep.mubr.f32.mxu0 0.0
      %4897 = vmatmul.mubr.f32.gmra.mrb[0].mxu0 %v4551
      %v4898 = vpop.f32.mrb[0].mxu0
      %v4899 = vadd.f32 0.0, %v4898
      %v4900 = vpop.f32.mrb[0].mxu0
      %v4901 = vadd.f32 0.0, %v4900
      %4902 = vmatprep.mubr.f32.mxu0 0.0
      %4903 = vmatmul.mubr.f32.gmra.mrb[0].mxu0 %v4554
      %v4904 = vpop.f32.mrb[0].mxu0
      %v4905 = vadd.f32 0.0, %v4904
      %v4906 = vpop.f32.mrb[0].mxu0
      %v4907 = vadd.f32 0.0, %v4906
      %4908 = vmatprep.mubr.f32.mxu0 0.0
      %4909 = vmatmul.mubr.f32.gmra.mrb[0].mxu0 %v4557
      %v4910 = vpop.f32.mrb[0].mxu0
      %v4911 = vadd.f32 0.0, %v4910
      %v4912 = vpop.f32.mrb[0].mxu0
      %v4913 = vadd.f32 0.0, %v4912
      %4914 = vmatprep.mubr.f32.mxu0 0.0
      %4915 = vmatmul.mubr.f32.gmra.mrb[0].mxu0 %v4560
      %v4916 = vpop.f32.mrb[0].mxu0
      %v4917 = vadd.f32 0.0, %v4916
      %v4918 = vpop.f32.mrb[0].mxu0
      %v4919 = vadd.f32 0.0, %v4918
      %4920 = vmatprep.mubr.f32.mxu0 0.0
      %4921 = vmatmul.mubr.f32.gmra.mrb[0].mxu0 %v4563
      %v4922 = vpop.f32.mrb[0].mxu0
      %v4923 = vadd.f32 0.0, %v4922
      %v4924 = vpop.f32.mrb[0].mxu0
      %v4925 = vadd.f32 0.0, %v4924
      %4926 = vmatprep.mubr.f32.mxu0 0.0
      %4927 = vmatmul.mubr.f32.gmra.mrb[0].mxu0 %v4566
      %v4928 = vpop.f32.mrb[0].mxu0
      %v4929 = vadd.f32 0.0, %v4928
      %v4930 = vpop.f32.mrb[0].mxu0
      %v4931 = vadd.f32 0.0, %v4930
      %4932 = vmatprep.mubr.f32.mxu0 0.0
      %4933 = vmatmul.mubr.f32.gmra.mrb[0].mxu0 %v4569
      %v4934 = vpop.f32.mrb[0].mxu0
      %v4935 = vadd.f32 0.0, %v4934
      %v4936 = vpop.f32.mrb[0].mxu0
      %v4937 = vadd.f32 0.0, %v4936
      %4938 = vmatprep.mubr.f32.mxu0 0.0
      %4939 = vmatmul.mubr.f32.gmra.mrb[0].mxu0 %v4572
      %v4940 = vpop.f32.mrb[0].mxu0
      %v4941 = vadd.f32 0.0, %v4940
      %v4942 = vpop.f32.mrb[0].mxu0
      %v4943 = vadd.f32 0.0, %v4942
      %4944 = vmatprep.mubr.f32.mxu0 0.0
      %4945 = vmatmul.mubr.f32.gmra.mrb[0].mxu0 %v4575
      %v4946 = vpop.f32.mrb[0].mxu0
      %v4947 = vadd.f32 0.0, %v4946
      %v4948 = vpop.f32.mrb[0].mxu0
      %v4949 = vadd.f32 0.0, %v4948
      %4950 = vmatprep.mubr.f32.mxu0 0.0
      %4951 = vmatmul.mubr.f32.gmra.mrb[0].mxu0 %v4578
      %v4952 = vpop.f32.mrb[0].mxu0
      %v4953 = vadd.f32 0.0, %v4952
      %v4954 = vpop.f32.mrb[0].mxu0
      %v4955 = vadd.f32 0.0, %v4954
      %4956 = vmatprep.mubr.f32.mxu0 0.0
      %4957 = vmatmul.mubr.f32.gmra.mrb[0].mxu0 %v4581
      %v4958 = vpop.f32.mrb[0].mxu0
      %v4959 = vadd.f32 0.0, %v4958
      %v4960 = vpop.f32.mrb[0].mxu0
      %v4961 = vadd.f32 0.0, %v4960
      %4962 = vmatprep.mubr.f32.mxu0 0.0
      %4963 = vmatmul.mubr.f32.gmra.mrb[0].mxu0 %v4584
      %v4964 = vpop.f32.mrb[0].mxu0
      %v4965 = vadd.f32 0.0, %v4964
      %v4966 = vpop.f32.mrb[0].mxu0
      %v4967 = vadd.f32 0.0, %v4966
      %4968 = vmatprep.mubr.f32.mxu0 0.0
      %4969 = vmatmul.mubr.f32.gmra.mrb[0].mxu0 %v4587
      %v4970 = vpop.f32.mrb[0].mxu0
      %v4971 = vadd.f32 0.0, %v4970
      %v4972 = vpop.f32.mrb[0].mxu0
      %v4973 = vadd.f32 0.0, %v4972
      %4974 = vmatprep.mubr.f32.mxu0 0.0
      %4975 = vmatmul.mubr.f32.gmra.mrb[0].mxu0 %v4590
      %v4976 = vpop.f32.mrb[0].mxu0
      %v4977 = vadd.f32 0.0, %v4976
      %v4978 = vpop.f32.mrb[0].mxu0
      %v4979 = vadd.f32 0.0, %v4978
      %4980 = vmatprep.mubr.f32.mxu0 0.0
      %4981 = vmatmul.mubr.f32.gmra.mrb[0].mxu0 %v4593
      %v4982 = vpop.f32.mrb[0].mxu0
      %v4983 = vadd.f32 0.0, %v4982
      %v4984 = vpop.f32.mrb[0].mxu0
      %v4985 = vadd.f32 0.0, %v4984
      %4986 = vmatprep.mubr.f32.mxu0 0.0
      %4987 = vmatmul.mubr.f32.gmra.mrb[0].mxu0 %v4596
      %v4988 = vpop.f32.mrb[0].mxu0
      %v4989 = vadd.f32 0.0, %v4988
      %v4990 = vpop.f32.mrb[0].mxu0
      %v4991 = vadd.f32 0.0, %v4990
      %4992 = vmatprep.mubr.f32.mxu0 0.0
      %4993 = vmatmul.mubr.f32.gmra.mrb[0].mxu0 %v4599
      %v4994 = vpop.f32.mrb[0].mxu0
      %v4995 = vadd.f32 0.0, %v4994
      %v4996 = vpop.f32.mrb[0].mxu0
      %v4997 = vadd.f32 0.0, %v4996
      %4998 = vmatprep.mubr.f32.mxu0 0.0
      %4999 = vmatmul.mubr.f32.gmra.mrb[0].mxu0 %v4602
      %v5000 = vpop.f32.mrb[0].mxu0
      %v5001 = vadd.f32 0.0, %v5000
      %v5002 = vpop.f32.mrb[0].mxu0
      %v5003 = vadd.f32 0.0, %v5002
      %5004 = vmatprep.mubr.f32.mxu0 0.0
      %5005 = vmatmul.mubr.f32.gmra.mrb[0].mxu0 %v4605
      %v5006 = vpop.f32.mrb[0].mxu0
      %v5007 = vadd.f32 0.0, %v5006
      %v5008 = vpop.f32.mrb[0].mxu0
      %v5009 = vadd.f32 0.0, %v5008
      %5010 = vmatprep.mubr.f32.mxu0 0.0
      %5011 = vmatmul.mubr.f32.gmra.mrb[0].mxu0 %v4608
      %v5012 = vpop.f32.mrb[0].mxu0
      %v5013 = vadd.f32 0.0, %v5012
      %v5014 = vpop.f32.mrb[0].mxu0
      %v5015 = vadd.f32 0.0, %v5014
      %5016 = vmatprep.mubr.f32.mxu0 0.0
      %5017 = vmatmul.mubr.f32.gmra.mrb[0].mxu0 %v4611
      %v5018 = vpop.f32.mrb[0].mxu0
      %v5019 = vadd.f32 0.0, %v5018
      %v5020 = vpop.f32.mrb[0].mxu0
      %v5021 = vadd.f32 0.0, %v5020
      %5022 = vmatprep.mubr.f32.mxu0 0.0
      %5023 = vmatmul.mubr.f32.gmra.mrb[0].mxu0 %v4614
      %v5024 = vpop.f32.mrb[0].mxu0
      %v5025 = vadd.f32 0.0, %v5024
      %v5026 = vpop.f32.mrb[0].mxu0
      %v5027 = vadd.f32 0.0, %v5026
      %5028 = vmatprep.mubr.f32.mxu0 0.0
      %5029 = vmatmul.mubr.f32.gmra.mrb[0].mxu0 %v4617
      %v5030 = vpop.f32.mrb[0].mxu0
      %v5031 = vadd.f32 0.0, %v5030
      %v5032 = vpop.f32.mrb[0].mxu0
      %v5033 = vadd.f32 0.0, %v5032
      %5034 = vmatprep.mubr.f32.mxu0 0.0
      %5035 = vmatmul.mubr.f32.gmra.mrb[0].mxu0 %v4620
      %v5036 = vpop.f32.mrb[0].mxu0
      %v5037 = vadd.f32 0.0, %v5036
      %v5038 = vpop.f32.mrb[0].mxu0
      %v5039 = vadd.f32 0.0, %v5038
      %5040 = vmatprep.mubr.f32.mxu0 0.0
      %5041 = vmatmul.mubr.f32.gmra.mrb[0].mxu0 %v4623
      %v5042 = vpop.f32.mrb[0].mxu0
      %v5043 = vadd.f32 0.0, %v5042
      %v5044 = vpop.f32.mrb[0].mxu0
      %v5045 = vadd.f32 0.0, %v5044
      %5046 = vmatprep.mubr.f32.mxu0 0.0
      %5047 = vmatmul.mubr.f32.gmra.mrb[0].mxu0 %v4626
      %v5048 = vpop.f32.mrb[0].mxu0
      %v5049 = vadd.f32 0.0, %v5048
      %v5050 = vpop.f32.mrb[0].mxu0
      %v5051 = vadd.f32 0.0, %v5050
      %5052 = vmatprep.mubr.f32.mxu0 0.0
      %5053 = vmatmul.mubr.f32.gmra.mrb[0].mxu0 %v4629
      %v5054 = vpop.f32.mrb[0].mxu0
      %v5055 = vadd.f32 0.0, %v5054
      %v5056 = vpop.f32.mrb[0].mxu0
      %v5057 = vadd.f32 0.0, %v5056
      %5058 = vmatprep.mubr.f32.mxu0 0.0
      %5059 = vmatmul.mubr.f32.gmra.mrb[0].mxu0 %v4632
      %v5060 = vpop.f32.mrb[0].mxu0
      %v5061 = vadd.f32 0.0, %v5060
      %v5062 = vpop.f32.mrb[0].mxu0
      %v5063 = vadd.f32 0.0, %v5062
      %5064 = vmatprep.mubr.f32.mxu0 0.0
      %5065 = vmatmul.mubr.f32.gmra.mrb[0].mxu0 %v4635
      %v5066 = vpop.f32.mrb[0].mxu0
      %v5067 = vadd.f32 0.0, %v5066
      %v5068 = vpop.f32.mrb[0].mxu0
      %v5069 = vadd.f32 0.0, %v5068
      %5070 = vmatprep.mubr.f32.mxu0 0.0
      %5071 = vmatmul.mubr.f32.gmra.mrb[0].mxu0 %v4638
      %v5072 = vpop.f32.mrb[0].mxu0
      %v5073 = vadd.f32 0.0, %v5072
      %v5074 = vpop.f32.mrb[0].mxu0
      %v5075 = vadd.f32 0.0, %v5074
      %5076 = vmatprep.mubr.f32.mxu0 0.0
      %5077 = vmatmul.mubr.f32.gmra.mrb[0].mxu0 %v4641
      %v5078 = vpop.f32.mrb[0].mxu0
      %v5079 = vadd.f32 0.0, %v5078
      %v5080 = vpop.f32.mrb[0].mxu0
      %v5081 = vadd.f32 0.0, %v5080
      %5082 = vmatprep.mubr.f32.mxu0 0.0
      %5083 = vmatmul.mubr.f32.gmra.mrb[0].mxu0 %v4644
      %v5084 = vpop.f32.mrb[0].mxu0
      %v5085 = vadd.f32 0.0, %v5084
      %v5086 = vpop.f32.mrb[0].mxu0
      %v5087 = vadd.f32 0.0, %v5086
      %5088 = vmatprep.mubr.f32.mxu0 0.0
      %5089 = vmatmul.mubr.f32.gmra.mrb[0].mxu0 %v4647
      %v5090 = vpop.f32.mrb[0].mxu0
      %v5091 = vadd.f32 0.0, %v5090
      %v5092 = vpop.f32.mrb[0].mxu0
      %v5093 = vadd.f32 0.0, %v5092
      %5094 = vmatprep.mubr.f32.mxu0 0.0
      %5095 = vmatmul.mubr.f32.gmra.mrb[0].mxu0 %v4650
      %v5096 = vpop.f32.mrb[0].mxu0
      %v5097 = vadd.f32 0.0, %v5096
      %v5098 = vpop.f32.mrb[0].mxu0
      %v5099 = vadd.f32 0.0, %v5098
      %5100 = vmatprep.mubr.f32.mxu0 0.0
      %5101 = vmatmul.mubr.f32.gmra.mrb[0].mxu0 %v4653
      %v5102 = vpop.f32.mrb[0].mxu0
      %v5103 = vadd.f32 0.0, %v5102
      %v5104 = vpop.f32.mrb[0].mxu0
      %v5105 = vadd.f32 0.0, %v5104
      %5106 = vmatprep.mubr.f32.mxu0 0.0
      %5107 = vmatmul.mubr.f32.gmra.mrb[0].mxu0 %v4656
      %v5108 = vpop.f32.mrb[0].mxu0
      %v5109 = vadd.f32 0.0, %v5108
      %v5110 = vpop.f32.mrb[0].mxu0
      %v5111 = vadd.f32 0.0, %v5110
      %5112 = vdwg.mxu0
      %5113 = vmatprep.subr.mxu0 0.0
      %5114 = vmatpush1.msra.mxu0 %v4662
      %5115 = vmatprep.subr.mxu0 0.0
      %5116 = vmatpush1.msra.mxu0 0.0
      %5117 = vmatprep.subr.mxu0 0.0
      %5118 = vmatpush1.msra.mxu0 0.0
      %5119 = vmatprep.subr.mxu0 0.0
      %5120 = vmatpush1.msra.mxu0 0.0
      %5121 = vmatprep.subr.mxu0 0.0
      %5122 = vmatpush1.msra.mxu0 0.0
      %5123 = vmatprep.subr.mxu0 0.0
      %5124 = vmatpush1.msra.mxu0 0.0
      %5125 = vmatprep.subr.mxu0 0.0
      %5126 = vmatpush1.msra.mxu0 0.0
      %5127 = vmatprep.subr.mxu0 0.0
      %5128 = vmatpush1.msra.mxu0 0.0
      %5129 = vmatprep.subr.mxu0 0.0
      %5130 = vmatpush1.msra.mxu0 0.0
      %5131 = vmatprep.subr.mxu0 0.0
      %5132 = vmatpush1.msra.mxu0 0.0
      %5133 = vmatprep.subr.mxu0 0.0
      %5134 = vmatpush1.msra.mxu0 0.0
      %5135 = vmatprep.subr.mxu0 0.0
      %5136 = vmatpush1.msra.mxu0 0.0
      %5137 = vmatprep.subr.mxu0 0.0
      %5138 = vmatpush1.msra.mxu0 0.0
      %5139 = vmatprep.subr.mxu0 0.0
      %5140 = vmatpush1.msra.mxu0 0.0
      %5141 = vmatprep.subr.mxu0 0.0
      %5142 = vmatpush1.msra.mxu0 0.0
      %5143 = vmatprep.subr.mxu0 0.0
      %5144 = vmatpush1.msra.mxu0 0.0
      %5145 = vmatprep.subr.mxu0 0.0
      %5146 = vmatpush1.msra.mxu0 0.0
      %5147 = vmatprep.subr.mxu0 0.0
      %5148 = vmatpush1.msra.mxu0 0.0
      %5149 = vmatprep.subr.mxu0 0.0
      %5150 = vmatpush1.msra.mxu0 0.0
      %5151 = vmatprep.subr.mxu0 0.0
      %5152 = vmatpush1.msra.mxu0 0.0
      %5153 = vmatprep.subr.mxu0 0.0
      %5154 = vmatpush1.msra.mxu0 0.0
      %5155 = vmatprep.subr.mxu0 0.0
      %5156 = vmatpush1.msra.mxu0 0.0
      %5157 = vmatprep.subr.mxu0 0.0
      %5158 = vmatpush1.msra.mxu0 0.0
      %5159 = vmatprep.subr.mxu0 0.0
      %5160 = vmatpush1.msra.mxu0 0.0
      %5161 = vmatprep.subr.mxu0 0.0
      %5162 = vmatpush1.msra.mxu0 0.0
      %5163 = vmatprep.subr.mxu0 0.0
      %5164 = vmatpush1.msra.mxu0 0.0
      %5165 = vmatprep.subr.mxu0 0.0
      %5166 = vmatpush1.msra.mxu0 0.0
      %5167 = vmatprep.subr.mxu0 0.0
      %5168 = vmatpush1.msra.mxu0 0.0
      %5169 = vmatprep.subr.mxu0 0.0
      %5170 = vmatpush1.msra.mxu0 0.0
      %5171 = vmatprep.subr.mxu0 0.0
      %5172 = vmatpush1.msra.mxu0 0.0
      %5173 = vmatprep.subr.mxu0 0.0
      %5174 = vmatpush1.msra.mxu0 0.0
      %5175 = vmatprep.subr.mxu0 0.0
      %5176 = vmatpush1.msra.mxu0 0.0
      %5177 = vmatprep.mubr.f32.mxu0 0.0
      %5178 = vmatmul.mubr.f32.gmra.mrb[0].mxu0 %v4467
      %v5179 = vpop.f32.mrb[0].mxu0
      %v5180 = vadd.f32 0.0, %v5179
      %v5181 = vpop.f32.mrb[0].mxu0
      %5182 = vmatprep.mubr.f32.mxu0 0.0
      %5183 = vmatmul.mubr.f32.gmra.mrb[0].mxu0 %v4470
      %v5184 = vpop.f32.mrb[0].mxu0
      %v5185 = vadd.f32 0.0, %v5184
      %v5186 = vpop.f32.mrb[0].mxu0
      %5187 = vmatprep.mubr.f32.mxu0 0.0
      %5188 = vmatmul.mubr.f32.gmra.mrb[0].mxu0 %v4473
      %v5189 = vpop.f32.mrb[0].mxu0
      %v5190 = vadd.f32 0.0, %v5189
      %v5191 = vpop.f32.mrb[0].mxu0
      %5192 = vmatprep.mubr.f32.mxu0 0.0
      %5193 = vmatmul.mubr.f32.gmra.mrb[0].mxu0 %v4476
      %v5194 = vpop.f32.mrb[0].mxu0
      %v5195 = vadd.f32 0.0, %v5194
      %v5196 = vpop.f32.mrb[0].mxu0
      %5197 = vmatprep.mubr.f32.mxu0 0.0
      %5198 = vmatmul.mubr.f32.gmra.mrb[0].mxu0 %v4479
      %v5199 = vpop.f32.mrb[0].mxu0
      %v5200 = vadd.f32 0.0, %v5199
      %v5201 = vpop.f32.mrb[0].mxu0
      %5202 = vmatprep.mubr.f32.mxu0 0.0
      %5203 = vmatmul.mubr.f32.gmra.mrb[0].mxu0 %v4482
      %v5204 = vpop.f32.mrb[0].mxu0
      %v5205 = vadd.f32 0.0, %v5204
      %v5206 = vpop.f32.mrb[0].mxu0
      %5207 = vmatprep.mubr.f32.mxu0 0.0
      %5208 = vmatmul.mubr.f32.gmra.mrb[0].mxu0 %v4485
      %v5209 = vpop.f32.mrb[0].mxu0
      %v5210 = vadd.f32 0.0, %v5209
      %v5211 = vpop.f32.mrb[0].mxu0
      %5212 = vmatprep.mubr.f32.mxu0 0.0
      %5213 = vmatmul.mubr.f32.gmra.mrb[0].mxu0 %v4488
      %v5214 = vpop.f32.mrb[0].mxu0
      %v5215 = vadd.f32 0.0, %v5214
      %v5216 = vpop.f32.mrb[0].mxu0
      %5217 = vmatprep.mubr.f32.mxu0 0.0
      %5218 = vmatmul.mubr.f32.gmra.mrb[0].mxu0 %v4491
      %v5219 = vpop.f32.mrb[0].mxu0
      %v5220 = vadd.f32 0.0, %v5219
      %v5221 = vpop.f32.mrb[0].mxu0
      %5222 = vmatprep.mubr.f32.mxu0 0.0
      %5223 = vmatmul.mubr.f32.gmra.mrb[0].mxu0 %v4494
      %v5224 = vpop.f32.mrb[0].mxu0
      %v5225 = vadd.f32 0.0, %v5224
      %v5226 = vpop.f32.mrb[0].mxu0
      %5227 = vmatprep.mubr.f32.mxu0 0.0
      %5228 = vmatmul.mubr.f32.gmra.mrb[0].mxu0 %v4497
      %v5229 = vpop.f32.mrb[0].mxu0
      %v5230 = vadd.f32 0.0, %v5229
      %v5231 = vpop.f32.mrb[0].mxu0
      %5232 = vmatprep.mubr.f32.mxu0 0.0
      %5233 = vmatmul.mubr.f32.gmra.mrb[0].mxu0 %v4500
      %v5234 = vpop.f32.mrb[0].mxu0
      %v5235 = vadd.f32 0.0, %v5234
      %v5236 = vpop.f32.mrb[0].mxu0
      %5237 = vmatprep.mubr.f32.mxu0 0.0
      %5238 = vmatmul.mubr.f32.gmra.mrb[0].mxu0 %v4503
      %v5239 = vpop.f32.mrb[0].mxu0
      %v5240 = vadd.f32 0.0, %v5239
      %v5241 = vpop.f32.mrb[0].mxu0
      %5242 = vmatprep.mubr.f32.mxu0 0.0
      %5243 = vmatmul.mubr.f32.gmra.mrb[0].mxu0 %v4506
      %v5244 = vpop.f32.mrb[0].mxu0
      %v5245 = vadd.f32 0.0, %v5244
      %v5246 = vpop.f32.mrb[0].mxu0
      %5247 = vmatprep.mubr.f32.mxu0 0.0
      %5248 = vmatmul.mubr.f32.gmra.mrb[0].mxu0 %v4509
      %v5249 = vpop.f32.mrb[0].mxu0
      %v5250 = vadd.f32 0.0, %v5249
      %v5251 = vpop.f32.mrb[0].mxu0
      %5252 = vmatprep.mubr.f32.mxu0 0.0
      %5253 = vmatmul.mubr.f32.gmra.mrb[0].mxu0 %v4512
      %v5254 = vpop.f32.mrb[0].mxu0
      %v5255 = vadd.f32 0.0, %v5254
      %v5256 = vpop.f32.mrb[0].mxu0
      %5257 = vmatprep.mubr.f32.mxu0 0.0
      %5258 = vmatmul.mubr.f32.gmra.mrb[0].mxu0 %v4515
      %v5259 = vpop.f32.mrb[0].mxu0
      %v5260 = vadd.f32 0.0, %v5259
      %v5261 = vpop.f32.mrb[0].mxu0
      %5262 = vmatprep.mubr.f32.mxu0 0.0
      %5263 = vmatmul.mubr.f32.gmra.mrb[0].mxu0 %v4518
      %v5264 = vpop.f32.mrb[0].mxu0
      %v5265 = vadd.f32 0.0, %v5264
      %v5266 = vpop.f32.mrb[0].mxu0
      %5267 = vmatprep.mubr.f32.mxu0 0.0
      %5268 = vmatmul.mubr.f32.gmra.mrb[0].mxu0 %v4521
      %v5269 = vpop.f32.mrb[0].mxu0
      %v5270 = vadd.f32 0.0, %v5269
      %v5271 = vpop.f32.mrb[0].mxu0
      %5272 = vmatprep.mubr.f32.mxu0 0.0
      %5273 = vmatmul.mubr.f32.gmra.mrb[0].mxu0 %v4524
      %v5274 = vpop.f32.mrb[0].mxu0
      %v5275 = vadd.f32 0.0, %v5274
      %v5276 = vpop.f32.mrb[0].mxu0
      %5277 = vmatprep.mubr.f32.mxu0 0.0
      %5278 = vmatmul.mubr.f32.gmra.mrb[0].mxu0 %v4527
      %v5279 = vpop.f32.mrb[0].mxu0
      %v5280 = vadd.f32 0.0, %v5279
      %v5281 = vpop.f32.mrb[0].mxu0
      %5282 = vmatprep.mubr.f32.mxu0 0.0
      %5283 = vmatmul.mubr.f32.gmra.mrb[0].mxu0 %v4530
      %v5284 = vpop.f32.mrb[0].mxu0
      %v5285 = vadd.f32 0.0, %v5284
      %v5286 = vpop.f32.mrb[0].mxu0
      %5287 = vmatprep.mubr.f32.mxu0 0.0
      %5288 = vmatmul.mubr.f32.gmra.mrb[0].mxu0 %v4533
      %v5289 = vpop.f32.mrb[0].mxu0
      %v5290 = vadd.f32 0.0, %v5289
      %v5291 = vpop.f32.mrb[0].mxu0
      %5292 = vmatprep.mubr.f32.mxu0 0.0
      %5293 = vmatmul.mubr.f32.gmra.mrb[0].mxu0 %v4536
      %v5294 = vpop.f32.mrb[0].mxu0
      %v5295 = vadd.f32 0.0, %v5294
      %v5296 = vpop.f32.mrb[0].mxu0
      %5297 = vmatprep.mubr.f32.mxu0 0.0
      %5298 = vmatmul.mubr.f32.gmra.mrb[0].mxu0 %v4539
      %v5299 = vpop.f32.mrb[0].mxu0
      %v5300 = vadd.f32 0.0, %v5299
      %v5301 = vpop.f32.mrb[0].mxu0
      %5302 = vmatprep.mubr.f32.mxu0 0.0
      %5303 = vmatmul.mubr.f32.gmra.mrb[0].mxu0 %v4542
      %v5304 = vpop.f32.mrb[0].mxu0
      %v5305 = vadd.f32 0.0, %v5304
      %v5306 = vpop.f32.mrb[0].mxu0
      %5307 = vmatprep.mubr.f32.mxu0 0.0
      %5308 = vmatmul.mubr.f32.gmra.mrb[0].mxu0 %v4545
      %v5309 = vpop.f32.mrb[0].mxu0
      %v5310 = vadd.f32 0.0, %v5309
      %v5311 = vpop.f32.mrb[0].mxu0
      %5312 = vmatprep.mubr.f32.mxu0 0.0
      %5313 = vmatmul.mubr.f32.gmra.mrb[0].mxu0 %v4548
      %v5314 = vpop.f32.mrb[0].mxu0
      %v5315 = vadd.f32 0.0, %v5314
      %v5316 = vpop.f32.mrb[0].mxu0
      %5317 = vmatprep.mubr.f32.mxu0 0.0
      %5318 = vmatmul.mubr.f32.gmra.mrb[0].mxu0 %v4551
      %v5319 = vpop.f32.mrb[0].mxu0
      %v5320 = vadd.f32 0.0, %v5319
      %v5321 = vpop.f32.mrb[0].mxu0
      %5322 = vmatprep.mubr.f32.mxu0 0.0
      %5323 = vmatmul.mubr.f32.gmra.mrb[0].mxu0 %v4554
      %v5324 = vpop.f32.mrb[0].mxu0
      %v5325 = vadd.f32 0.0, %v5324
      %v5326 = vpop.f32.mrb[0].mxu0
      %5327 = vmatprep.mubr.f32.mxu0 0.0
      %5328 = vmatmul.mubr.f32.gmra.mrb[0].mxu0 %v4557
      %v5329 = vpop.f32.mrb[0].mxu0
      %v5330 = vadd.f32 0.0, %v5329
      %v5331 = vpop.f32.mrb[0].mxu0
      %5332 = vmatprep.mubr.f32.mxu0 0.0
      %5333 = vmatmul.mubr.f32.gmra.mrb[0].mxu0 %v4560
      %v5334 = vpop.f32.mrb[0].mxu0
      %v5335 = vadd.f32 0.0, %v5334
      %v5336 = vpop.f32.mrb[0].mxu0
      %5337 = vmatprep.mubr.f32.mxu0 0.0
      %5338 = vmatmul.mubr.f32.gmra.mrb[0].mxu0 %v4563
      %v5339 = vpop.f32.mrb[0].mxu0
      %v5340 = vadd.f32 0.0, %v5339
      %v5341 = vpop.f32.mrb[0].mxu0
      %5342 = vmatprep.mubr.f32.mxu0 0.0
      %5343 = vmatmul.mubr.f32.gmra.mrb[0].mxu0 %v4566
      %v5344 = vpop.f32.mrb[0].mxu0
      %v5345 = vadd.f32 0.0, %v5344
      %v5346 = vpop.f32.mrb[0].mxu0
      %5347 = vmatprep.mubr.f32.mxu0 0.0
      %5348 = vmatmul.mubr.f32.gmra.mrb[0].mxu0 %v4569
      %v5349 = vpop.f32.mrb[0].mxu0
      %v5350 = vadd.f32 0.0, %v5349
      %v5351 = vpop.f32.mrb[0].mxu0
      %5352 = vmatprep.mubr.f32.mxu0 0.0
      %5353 = vmatmul.mubr.f32.gmra.mrb[0].mxu0 %v4572
      %v5354 = vpop.f32.mrb[0].mxu0
      %v5355 = vadd.f32 0.0, %v5354
      %v5356 = vpop.f32.mrb[0].mxu0
      %5357 = vmatprep.mubr.f32.mxu0 0.0
      %5358 = vmatmul.mubr.f32.gmra.mrb[0].mxu0 %v4575
      %v5359 = vpop.f32.mrb[0].mxu0
      %v5360 = vadd.f32 0.0, %v5359
      %v5361 = vpop.f32.mrb[0].mxu0
      %5362 = vmatprep.mubr.f32.mxu0 0.0
      %5363 = vmatmul.mubr.f32.gmra.mrb[0].mxu0 %v4578
      %v5364 = vpop.f32.mrb[0].mxu0
      %v5365 = vadd.f32 0.0, %v5364
      %v5366 = vpop.f32.mrb[0].mxu0
      %5367 = vmatprep.mubr.f32.mxu0 0.0
      %5368 = vmatmul.mubr.f32.gmra.mrb[0].mxu0 %v4581
      %v5369 = vpop.f32.mrb[0].mxu0
      %v5370 = vadd.f32 0.0, %v5369
      %v5371 = vpop.f32.mrb[0].mxu0
      %5372 = vmatprep.mubr.f32.mxu0 0.0
      %5373 = vmatmul.mubr.f32.gmra.mrb[0].mxu0 %v4584
      %v5374 = vpop.f32.mrb[0].mxu0
      %v5375 = vadd.f32 0.0, %v5374
      %v5376 = vpop.f32.mrb[0].mxu0
      %5377 = vmatprep.mubr.f32.mxu0 0.0
      %5378 = vmatmul.mubr.f32.gmra.mrb[0].mxu0 %v4587
      %v5379 = vpop.f32.mrb[0].mxu0
      %v5380 = vadd.f32 0.0, %v5379
      %v5381 = vpop.f32.mrb[0].mxu0
      %5382 = vmatprep.mubr.f32.mxu0 0.0
      %5383 = vmatmul.mubr.f32.gmra.mrb[0].mxu0 %v4590
      %v5384 = vpop.f32.mrb[0].mxu0
      %v5385 = vadd.f32 0.0, %v5384
      %v5386 = vpop.f32.mrb[0].mxu0
      %5387 = vmatprep.mubr.f32.mxu0 0.0
      %5388 = vmatmul.mubr.f32.gmra.mrb[0].mxu0 %v4593
      %v5389 = vpop.f32.mrb[0].mxu0
      %v5390 = vadd.f32 0.0, %v5389
      %v5391 = vpop.f32.mrb[0].mxu0
      %5392 = vmatprep.mubr.f32.mxu0 0.0
      %5393 = vmatmul.mubr.f32.gmra.mrb[0].mxu0 %v4596
      %v5394 = vpop.f32.mrb[0].mxu0
      %v5395 = vadd.f32 0.0, %v5394
      %v5396 = vpop.f32.mrb[0].mxu0
      %5397 = vmatprep.mubr.f32.mxu0 0.0
      %5398 = vmatmul.mubr.f32.gmra.mrb[0].mxu0 %v4599
      %v5399 = vpop.f32.mrb[0].mxu0
      %v5400 = vadd.f32 0.0, %v5399
      %v5401 = vpop.f32.mrb[0].mxu0
      %5402 = vmatprep.mubr.f32.mxu0 0.0
      %5403 = vmatmul.mubr.f32.gmra.mrb[0].mxu0 %v4602
      %v5404 = vpop.f32.mrb[0].mxu0
      %v5405 = vadd.f32 0.0, %v5404
      %v5406 = vpop.f32.mrb[0].mxu0
      %5407 = vmatprep.mubr.f32.mxu0 0.0
      %5408 = vmatmul.mubr.f32.gmra.mrb[0].mxu0 %v4605
      %v5409 = vpop.f32.mrb[0].mxu0
      %v5410 = vadd.f32 0.0, %v5409
      %v5411 = vpop.f32.mrb[0].mxu0
      %5412 = vmatprep.mubr.f32.mxu0 0.0
      %5413 = vmatmul.mubr.f32.gmra.mrb[0].mxu0 %v4608
      %v5414 = vpop.f32.mrb[0].mxu0
      %v5415 = vadd.f32 0.0, %v5414
      %v5416 = vpop.f32.mrb[0].mxu0
      %5417 = vmatprep.mubr.f32.mxu0 0.0
      %5418 = vmatmul.mubr.f32.gmra.mrb[0].mxu0 %v4611
      %v5419 = vpop.f32.mrb[0].mxu0
      %v5420 = vadd.f32 0.0, %v5419
      %v5421 = vpop.f32.mrb[0].mxu0
      %5422 = vmatprep.mubr.f32.mxu0 0.0
      %5423 = vmatmul.mubr.f32.gmra.mrb[0].mxu0 %v4614
      %v5424 = vpop.f32.mrb[0].mxu0
      %v5425 = vadd.f32 0.0, %v5424
      %v5426 = vpop.f32.mrb[0].mxu0
      %5427 = vmatprep.mubr.f32.mxu0 0.0
      %5428 = vmatmul.mubr.f32.gmra.mrb[0].mxu0 %v4617
      %v5429 = vpop.f32.mrb[0].mxu0
      %v5430 = vadd.f32 0.0, %v5429
      %v5431 = vpop.f32.mrb[0].mxu0
      %5432 = vmatprep.mubr.f32.mxu0 0.0
      %5433 = vmatmul.mubr.f32.gmra.mrb[0].mxu0 %v4620
      %v5434 = vpop.f32.mrb[0].mxu0
      %v5435 = vadd.f32 0.0, %v5434
      %v5436 = vpop.f32.mrb[0].mxu0
      %5437 = vmatprep.mubr.f32.mxu0 0.0
      %5438 = vmatmul.mubr.f32.gmra.mrb[0].mxu0 %v4623
      %v5439 = vpop.f32.mrb[0].mxu0
      %v5440 = vadd.f32 0.0, %v5439
      %v5441 = vpop.f32.mrb[0].mxu0
      %5442 = vmatprep.mubr.f32.mxu0 0.0
      %5443 = vmatmul.mubr.f32.gmra.mrb[0].mxu0 %v4626
      %v5444 = vpop.f32.mrb[0].mxu0
      %v5445 = vadd.f32 0.0, %v5444
      %v5446 = vpop.f32.mrb[0].mxu0
      %5447 = vmatprep.mubr.f32.mxu0 0.0
      %5448 = vmatmul.mubr.f32.gmra.mrb[0].mxu0 %v4629
      %v5449 = vpop.f32.mrb[0].mxu0
      %v5450 = vadd.f32 0.0, %v5449
      %v5451 = vpop.f32.mrb[0].mxu0
      %5452 = vmatprep.mubr.f32.mxu0 0.0
      %5453 = vmatmul.mubr.f32.gmra.mrb[0].mxu0 %v4632
      %v5454 = vpop.f32.mrb[0].mxu0
      %v5455 = vadd.f32 0.0, %v5454
      %v5456 = vpop.f32.mrb[0].mxu0
      %5457 = vmatprep.mubr.f32.mxu0 0.0
      %5458 = vmatmul.mubr.f32.gmra.mrb[0].mxu0 %v4635
      %v5459 = vpop.f32.mrb[0].mxu0
      %v5460 = vadd.f32 0.0, %v5459
      %v5461 = vpop.f32.mrb[0].mxu0
      %5462 = vmatprep.mubr.f32.mxu0 0.0
      %5463 = vmatmul.mubr.f32.gmra.mrb[0].mxu0 %v4638
      %v5464 = vpop.f32.mrb[0].mxu0
      %v5465 = vadd.f32 0.0, %v5464
      %v5466 = vpop.f32.mrb[0].mxu0
      %5467 = vmatprep.mubr.f32.mxu0 0.0
      %5468 = vmatmul.mubr.f32.gmra.mrb[0].mxu0 %v4641
      %v5469 = vpop.f32.mrb[0].mxu0
      %v5470 = vadd.f32 0.0, %v5469
      %v5471 = vpop.f32.mrb[0].mxu0
      %5472 = vmatprep.mubr.f32.mxu0 0.0
      %5473 = vmatmul.mubr.f32.gmra.mrb[0].mxu0 %v4644
      %v5474 = vpop.f32.mrb[0].mxu0
      %v5475 = vadd.f32 0.0, %v5474
      %v5476 = vpop.f32.mrb[0].mxu0
      %5477 = vmatprep.mubr.f32.mxu0 0.0
      %5478 = vmatmul.mubr.f32.gmra.mrb[0].mxu0 %v4647
      %v5479 = vpop.f32.mrb[0].mxu0
      %v5480 = vadd.f32 0.0, %v5479
      %v5481 = vpop.f32.mrb[0].mxu0
      %5482 = vmatprep.mubr.f32.mxu0 0.0
      %5483 = vmatmul.mubr.f32.gmra.mrb[0].mxu0 %v4650
      %v5484 = vpop.f32.mrb[0].mxu0
      %v5485 = vadd.f32 0.0, %v5484
      %v5486 = vpop.f32.mrb[0].mxu0
      %5487 = vmatprep.mubr.f32.mxu0 0.0
      %5488 = vmatmul.mubr.f32.gmra.mrb[0].mxu0 %v4653
      %v5489 = vpop.f32.mrb[0].mxu0
      %v5490 = vadd.f32 0.0, %v5489
      %v5491 = vpop.f32.mrb[0].mxu0
      %5492 = vmatprep.mubr.f32.mxu0 0.0
      %5493 = vmatmul.mubr.f32.gmra.mrb[0].mxu0 %v4656
      %v5494 = vpop.f32.mrb[0].mxu0
      %v5495 = vadd.f32 0.0, %v5494
      %v5496 = vpop.f32.mrb[0].mxu0
      %5497 = vdwg.mxu0
      %v5498 = vmul.f32 %v3629, %v4731
      %v5499 = vmul.f32 %v3631, %v4733
      %v5500 = vmul.f32 %v4078, %v5180
      %v5501 = vmul.f32 %v3635, %v4737
      %v5502 = vmul.f32 %v3637, %v4739
      %v5503 = vmul.f32 %v4083, %v5185
      %v5504 = vmul.f32 %v3641, %v4743
      %v5505 = vmul.f32 %v3643, %v4745
      %v5506 = vmul.f32 %v4088, %v5190
      %v5507 = vmul.f32 %v3647, %v4749
      %v5508 = vmul.f32 %v3649, %v4751
      %v5509 = vmul.f32 %v4093, %v5195
      %v5510 = vmul.f32 %v3653, %v4755
      %v5511 = vmul.f32 %v3655, %v4757
      %v5512 = vmul.f32 %v4098, %v5200
      %v5513 = vmul.f32 %v3659, %v4761
      %v5514 = vmul.f32 %v3661, %v4763
      %v5515 = vmul.f32 %v4103, %v5205
      %v5516 = vmul.f32 %v3665, %v4767
      %v5517 = vmul.f32 %v3667, %v4769
      %v5518 = vmul.f32 %v4108, %v5210
      %v5519 = vmul.f32 %v3671, %v4773
      %v5520 = vmul.f32 %v3673, %v4775
      %v5521 = vmul.f32 %v4113, %v5215
      %v5522 = vmul.f32 %v3677, %v4779
      %v5523 = vmul.f32 %v3679, %v4781
      %v5524 = vmul.f32 %v4118, %v5220
      %v5525 = vmul.f32 %v3683, %v4785
      %v5526 = vmul.f32 %v3685, %v4787
      %v5527 = vmul.f32 %v4123, %v5225
      %v5528 = vmul.f32 %v3689, %v4791
      %v5529 = vmul.f32 %v3691, %v4793
      %v5530 = vmul.f32 %v4128, %v5230
      %v5531 = vmul.f32 %v3695, %v4797
      %v5532 = vmul.f32 %v3697, %v4799
      %v5533 = vmul.f32 %v4133, %v5235
      %v5534 = vmul.f32 %v3701, %v4803
      %v5535 = vmul.f32 %v3703, %v4805
      %v5536 = vmul.f32 %v4138, %v5240
      %v5537 = vmul.f32 %v3707, %v4809
      %v5538 = vmul.f32 %v3709, %v4811
      %v5539 = vmul.f32 %v4143, %v5245
      %v5540 = vmul.f32 %v3713, %v4815
      %v5541 = vmul.f32 %v3715, %v4817
      %v5542 = vmul.f32 %v4148, %v5250
      %v5543 = vmul.f32 %v3719, %v4821
      %v5544 = vmul.f32 %v3721, %v4823
      %v5545 = vmul.f32 %v4153, %v5255
      %v5546 = vmul.f32 %v3725, %v4827
      %v5547 = vmul.f32 %v3727, %v4829
      %v5548 = vmul.f32 %v4158, %v5260
      %v5549 = vmul.f32 %v3731, %v4833
      %v5550 = vmul.f32 %v3733, %v4835
      %v5551 = vmul.f32 %v4163, %v5265
      %v5552 = vmul.f32 %v3737, %v4839
      %v5553 = vmul.f32 %v3739, %v4841
      %v5554 = vmul.f32 %v4168, %v5270
      %v5555 = vmul.f32 %v3743, %v4845
      %v5556 = vmul.f32 %v3745, %v4847
      %v5557 = vmul.f32 %v4173, %v5275
      %v5558 = vmul.f32 %v3749, %v4851
      %v5559 = vmul.f32 %v3751, %v4853
      %v5560 = vmul.f32 %v4178, %v5280
      %v5561 = vmul.f32 %v3755, %v4857
      %v5562 = vmul.f32 %v3757, %v4859
      %v5563 = vmul.f32 %v4183, %v5285
      %v5564 = vmul.f32 %v3761, %v4863
      %v5565 = vmul.f32 %v3763, %v4865
      %v5566 = vmul.f32 %v4188, %v5290
      %v5567 = vmul.f32 %v3767, %v4869
      %v5568 = vmul.f32 %v3769, %v4871
      %v5569 = vmul.f32 %v4193, %v5295
      %v5570 = vmul.f32 %v3773, %v4875
      %v5571 = vmul.f32 %v3775, %v4877
      %v5572 = vmul.f32 %v4198, %v5300
      %v5573 = vmul.f32 %v3779, %v4881
      %v5574 = vmul.f32 %v3781, %v4883
      %v5575 = vmul.f32 %v4203, %v5305
      %v5576 = vmul.f32 %v3785, %v4887
      %v5577 = vmul.f32 %v3787, %v4889
      %v5578 = vmul.f32 %v4208, %v5310
      %v5579 = vmul.f32 %v3791, %v4893
      %v5580 = vmul.f32 %v3793, %v4895
      %v5581 = vmul.f32 %v4213, %v5315
      %v5582 = vmul.f32 %v3797, %v4899
      %v5583 = vmul.f32 %v3799, %v4901
      %v5584 = vmul.f32 %v4218, %v5320
      %v5585 = vmul.f32 %v3803, %v4905
      %v5586 = vmul.f32 %v3805, %v4907
      %v5587 = vmul.f32 %v4223, %v5325
      %v5588 = vmul.f32 %v3809, %v4911
      %v5589 = vmul.f32 %v3811, %v4913
      %v5590 = vmul.f32 %v4228, %v5330
      %v5591 = vmul.f32 %v3815, %v4917
      %v5592 = vmul.f32 %v3817, %v4919
      %v5593 = vmul.f32 %v4233, %v5335
      %v5594 = vmul.f32 %v3821, %v4923
      %v5595 = vmul.f32 %v3823, %v4925
      %v5596 = vmul.f32 %v4238, %v5340
      %v5597 = vmul.f32 %v3827, %v4929
      %v5598 = vmul.f32 %v3829, %v4931
      %v5599 = vmul.f32 %v4243, %v5345
      %v5600 = vmul.f32 %v3833, %v4935
      %v5601 = vmul.f32 %v3835, %v4937
      %v5602 = vmul.f32 %v4248, %v5350
      %v5603 = vmul.f32 %v3839, %v4941
      %v5604 = vmul.f32 %v3841, %v4943
      %v5605 = vmul.f32 %v4253, %v5355
      %v5606 = vmul.f32 %v3845, %v4947
      %v5607 = vmul.f32 %v3847, %v4949
      %v5608 = vmul.f32 %v4258, %v5360
      %v5609 = vmul.f32 %v3851, %v4953
      %v5610 = vmul.f32 %v3853, %v4955
      %v5611 = vmul.f32 %v4263, %v5365
      %v5612 = vmul.f32 %v3857, %v4959
      %v5613 = vmul.f32 %v3859, %v4961
      %v5614 = vmul.f32 %v4268, %v5370
      %v5615 = vmul.f32 %v3863, %v4965
      %v5616 = vmul.f32 %v3865, %v4967
      %v5617 = vmul.f32 %v4273, %v5375
      %v5618 = vmul.f32 %v3869, %v4971
      %v5619 = vmul.f32 %v3871, %v4973
      %v5620 = vmul.f32 %v4278, %v5380
      %v5621 = vmul.f32 %v3875, %v4977
      %v5622 = vmul.f32 %v3877, %v4979
      %v5623 = vmul.f32 %v4283, %v5385
      %v5624 = vmul.f32 %v3881, %v4983
      %v5625 = vmul.f32 %v3883, %v4985
      %v5626 = vmul.f32 %v4288, %v5390
      %v5627 = vmul.f32 %v3887, %v4989
      %v5628 = vmul.f32 %v3889, %v4991
      %v5629 = vmul.f32 %v4293, %v5395
      %v5630 = vmul.f32 %v3893, %v4995
      %v5631 = vmul.f32 %v3895, %v4997
      %v5632 = vmul.f32 %v4298, %v5400
      %v5633 = vmul.f32 %v3899, %v5001
      %v5634 = vmul.f32 %v3901, %v5003
      %v5635 = vmul.f32 %v4303, %v5405
      %v5636 = vmul.f32 %v3905, %v5007
      %v5637 = vmul.f32 %v3907, %v5009
      %v5638 = vmul.f32 %v4308, %v5410
      %v5639 = vmul.f32 %v3911, %v5013
      %v5640 = vmul.f32 %v3913, %v5015
      %v5641 = vmul.f32 %v4313, %v5415
      %v5642 = vmul.f32 %v3917, %v5019
      %v5643 = vmul.f32 %v3919, %v5021
      %v5644 = vmul.f32 %v4318, %v5420
      %v5645 = vmul.f32 %v3923, %v5025
      %v5646 = vmul.f32 %v3925, %v5027
      %v5647 = vmul.f32 %v4323, %v5425
      %v5648 = vmul.f32 %v3929, %v5031
      %v5649 = vmul.f32 %v3931, %v5033
      %v5650 = vmul.f32 %v4328, %v5430
      %v5651 = vmul.f32 %v3935, %v5037
      %v5652 = vmul.f32 %v3937, %v5039
      %v5653 = vmul.f32 %v4333, %v5435
      %v5654 = vmul.f32 %v3941, %v5043
      %v5655 = vmul.f32 %v3943, %v5045
      %v5656 = vmul.f32 %v4338, %v5440
      %v5657 = vmul.f32 %v3947, %v5049
      %v5658 = vmul.f32 %v3949, %v5051
      %v5659 = vmul.f32 %v4343, %v5445
      %v5660 = vmul.f32 %v3953, %v5055
      %v5661 = vmul.f32 %v3955, %v5057
      %v5662 = vmul.f32 %v4348, %v5450
      %v5663 = vmul.f32 %v3959, %v5061
      %v5664 = vmul.f32 %v3961, %v5063
      %v5665 = vmul.f32 %v4353, %v5455
      %v5666 = vmul.f32 %v3965, %v5067
      %v5667 = vmul.f32 %v3967, %v5069
      %v5668 = vmul.f32 %v4358, %v5460
      %v5669 = vmul.f32 %v3971, %v5073
      %v5670 = vmul.f32 %v3973, %v5075
      %v5671 = vmul.f32 %v4363, %v5465
      %v5672 = vmul.f32 %v3977, %v5079
      %v5673 = vmul.f32 %v3979, %v5081
      %v5674 = vmul.f32 %v4368, %v5470
      %v5675 = vmul.f32 %v3983, %v5085
      %v5676 = vmul.f32 %v3985, %v5087
      %v5677 = vmul.f32 %v4373, %v5475
      %v5678 = vmul.f32 %v3989, %v5091
      %v5679 = vmul.f32 %v3991, %v5093
      %v5680 = vmul.f32 %v4378, %v5480
      %v5681 = vmul.f32 %v3995, %v5097
      %v5682 = vmul.f32 %v3997, %v5099
      %v5683 = vmul.f32 %v4383, %v5485
      %v5684 = vmul.f32 %v4001, %v5103
      %v5685 = vmul.f32 %v4003, %v5105
      %v5686 = vmul.f32 %v4388, %v5490
      %v5687 = vmul.f32 %v4007, %v5109
      %v5688 = vmul.f32 %v4009, %v5111
      %v5689 = vmul.f32 %v4393, %v5495
      %v5690 = vmul.f32 %v5498, %v2583
      %v5691 = vmul.f32 %v5499, %v2585
      %v5692 = vmul.f32 %v5500, %v3032
      %v5693 = vmul.f32 %v5501, %v2589
      %v5694 = vmul.f32 %v5502, %v2591
      %v5695 = vmul.f32 %v5503, %v3037
      %v5696 = vmul.f32 %v5504, %v2595
      %v5697 = vmul.f32 %v5505, %v2597
      %v5698 = vmul.f32 %v5506, %v3042
      %v5699 = vmul.f32 %v5507, %v2601
      %v5700 = vmul.f32 %v5508, %v2603
      %v5701 = vmul.f32 %v5509, %v3047
      %v5702 = vmul.f32 %v5510, %v2607
      %v5703 = vmul.f32 %v5511, %v2609
      %v5704 = vmul.f32 %v5512, %v3052
      %v5705 = vmul.f32 %v5513, %v2613
      %v5706 = vmul.f32 %v5514, %v2615
      %v5707 = vmul.f32 %v5515, %v3057
      %v5708 = vmul.f32 %v5516, %v2619
      %v5709 = vmul.f32 %v5517, %v2621
      %v5710 = vmul.f32 %v5518, %v3062
      %v5711 = vmul.f32 %v5519, %v2625
      %v5712 = vmul.f32 %v5520, %v2627
      %v5713 = vmul.f32 %v5521, %v3067
      %v5714 = vmul.f32 %v5522, %v2631
      %v5715 = vmul.f32 %v5523, %v2633
      %v5716 = vmul.f32 %v5524, %v3072
      %v5717 = vmul.f32 %v5525, %v2637
      %v5718 = vmul.f32 %v5526, %v2639
      %v5719 = vmul.f32 %v5527, %v3077
      %v5720 = vmul.f32 %v5528, %v2643
      %v5721 = vmul.f32 %v5529, %v2645
      %v5722 = vmul.f32 %v5530, %v3082
      %v5723 = vmul.f32 %v5531, %v2649
      %v5724 = vmul.f32 %v5532, %v2651
      %v5725 = vmul.f32 %v5533, %v3087
      %v5726 = vmul.f32 %v5534, %v2655
      %v5727 = vmul.f32 %v5535, %v2657
      %v5728 = vmul.f32 %v5536, %v3092
      %v5729 = vmul.f32 %v5537, %v2661
      %v5730 = vmul.f32 %v5538, %v2663
      %v5731 = vmul.f32 %v5539, %v3097
      %v5732 = vmul.f32 %v5540, %v2667
      %v5733 = vmul.f32 %v5541, %v2669
      %v5734 = vmul.f32 %v5542, %v3102
      %v5735 = vmul.f32 %v5543, %v2673
      %v5736 = vmul.f32 %v5544, %v2675
      %v5737 = vmul.f32 %v5545, %v3107
      %v5738 = vmul.f32 %v5546, %v2679
      %v5739 = vmul.f32 %v5547, %v2681
      %v5740 = vmul.f32 %v5548, %v3112
      %v5741 = vmul.f32 %v5549, %v2685
      %v5742 = vmul.f32 %v5550, %v2687
      %v5743 = vmul.f32 %v5551, %v3117
      %v5744 = vmul.f32 %v5552, %v2691
      %v5745 = vmul.f32 %v5553, %v2693
      %v5746 = vmul.f32 %v5554, %v3122
      %v5747 = vmul.f32 %v5555, %v2697
      %v5748 = vmul.f32 %v5556, %v2699
      %v5749 = vmul.f32 %v5557, %v3127
      %v5750 = vmul.f32 %v5558, %v2703
      %v5751 = vmul.f32 %v5559, %v2705
      %v5752 = vmul.f32 %v5560, %v3132
      %v5753 = vmul.f32 %v5561, %v2709
      %v5754 = vmul.f32 %v5562, %v2711
      %v5755 = vmul.f32 %v5563, %v3137
      %v5756 = vmul.f32 %v5564, %v2715
      %v5757 = vmul.f32 %v5565, %v2717
      %v5758 = vmul.f32 %v5566, %v3142
      %v5759 = vmul.f32 %v5567, %v2721
      %v5760 = vmul.f32 %v5568, %v2723
      %v5761 = vmul.f32 %v5569, %v3147
      %v5762 = vmul.f32 %v5570, %v2727
      %v5763 = vmul.f32 %v5571, %v2729
      %v5764 = vmul.f32 %v5572, %v3152
      %v5765 = vmul.f32 %v5573, %v2733
      %v5766 = vmul.f32 %v5574, %v2735
      %v5767 = vmul.f32 %v5575, %v3157
      %v5768 = vmul.f32 %v5576, %v2739
      %v5769 = vmul.f32 %v5577, %v2741
      %v5770 = vmul.f32 %v5578, %v3162
      %v5771 = vmul.f32 %v5579, %v2745
      %v5772 = vmul.f32 %v5580, %v2747
      %v5773 = vmul.f32 %v5581, %v3167
      %v5774 = vmul.f32 %v5582, %v2751
      %v5775 = vmul.f32 %v5583, %v2753
      %v5776 = vmul.f32 %v5584, %v3172
      %v5777 = vmul.f32 %v5585, %v2757
      %v5778 = vmul.f32 %v5586, %v2759
      %v5779 = vmul.f32 %v5587, %v3177
      %v5780 = vmul.f32 %v5588, %v2763
      %v5781 = vmul.f32 %v5589, %v2765
      %v5782 = vmul.f32 %v5590, %v3182
      %v5783 = vmul.f32 %v5591, %v2769
      %v5784 = vmul.f32 %v5592, %v2771
      %v5785 = vmul.f32 %v5593, %v3187
      %v5786 = vmul.f32 %v5594, %v2775
      %v5787 = vmul.f32 %v5595, %v2777
      %v5788 = vmul.f32 %v5596, %v3192
      %v5789 = vmul.f32 %v5597, %v2781
      %v5790 = vmul.f32 %v5598, %v2783
      %v5791 = vmul.f32 %v5599, %v3197
      %v5792 = vmul.f32 %v5600, %v2787
      %v5793 = vmul.f32 %v5601, %v2789
      %v5794 = vmul.f32 %v5602, %v3202
      %v5795 = vmul.f32 %v5603, %v2793
      %v5796 = vmul.f32 %v5604, %v2795
      %v5797 = vmul.f32 %v5605, %v3207
      %v5798 = vmul.f32 %v5606, %v2799
      %v5799 = vmul.f32 %v5607, %v2801
      %v5800 = vmul.f32 %v5608, %v3212
      %v5801 = vmul.f32 %v5609, %v2805
      %v5802 = vmul.f32 %v5610, %v2807
      %v5803 = vmul.f32 %v5611, %v3217
      %v5804 = vmul.f32 %v5612, %v2811
      %v5805 = vmul.f32 %v5613, %v2813
      %v5806 = vmul.f32 %v5614, %v3222
      %v5807 = vmul.f32 %v5615, %v2817
      %v5808 = vmul.f32 %v5616, %v2819
      %v5809 = vmul.f32 %v5617, %v3227
      %v5810 = vmul.f32 %v5618, %v2823
      %v5811 = vmul.f32 %v5619, %v2825
      %v5812 = vmul.f32 %v5620, %v3232
      %v5813 = vmul.f32 %v5621, %v2829
      %v5814 = vmul.f32 %v5622, %v2831
      %v5815 = vmul.f32 %v5623, %v3237
      %v5816 = vmul.f32 %v5624, %v2835
      %v5817 = vmul.f32 %v5625, %v2837
      %v5818 = vmul.f32 %v5626, %v3242
      %v5819 = vmul.f32 %v5627, %v2841
      %v5820 = vmul.f32 %v5628, %v2843
      %v5821 = vmul.f32 %v5629, %v3247
      %v5822 = vmul.f32 %v5630, %v2847
      %v5823 = vmul.f32 %v5631, %v2849
      %v5824 = vmul.f32 %v5632, %v3252
      %v5825 = vmul.f32 %v5633, %v2853
      %v5826 = vmul.f32 %v5634, %v2855
      %v5827 = vmul.f32 %v5635, %v3257
      %v5828 = vmul.f32 %v5636, %v2859
      %v5829 = vmul.f32 %v5637, %v2861
      %v5830 = vmul.f32 %v5638, %v3262
      %v5831 = vmul.f32 %v5639, %v2865
      %v5832 = vmul.f32 %v5640, %v2867
      %v5833 = vmul.f32 %v5641, %v3267
      %v5834 = vmul.f32 %v5642, %v2871
      %v5835 = vmul.f32 %v5643, %v2873
      %v5836 = vmul.f32 %v5644, %v3272
      %v5837 = vmul.f32 %v5645, %v2877
      %v5838 = vmul.f32 %v5646, %v2879
      %v5839 = vmul.f32 %v5647, %v3277
      %v5840 = vmul.f32 %v5648, %v2883
      %v5841 = vmul.f32 %v5649, %v2885
      %v5842 = vmul.f32 %v5650, %v3282
      %v5843 = vmul.f32 %v5651, %v2889
      %v5844 = vmul.f32 %v5652, %v2891
      %v5845 = vmul.f32 %v5653, %v3287
      %v5846 = vmul.f32 %v5654, %v2895
      %v5847 = vmul.f32 %v5655, %v2897
      %v5848 = vmul.f32 %v5656, %v3292
      %v5849 = vmul.f32 %v5657, %v2901
      %v5850 = vmul.f32 %v5658, %v2903
      %v5851 = vmul.f32 %v5659, %v3297
      %v5852 = vmul.f32 %v5660, %v2907
      %v5853 = vmul.f32 %v5661, %v2909
      %v5854 = vmul.f32 %v5662, %v3302
      %v5855 = vmul.f32 %v5663, %v2913
      %v5856 = vmul.f32 %v5664, %v2915
      %v5857 = vmul.f32 %v5665, %v3307
      %v5858 = vmul.f32 %v5666, %v2919
      %v5859 = vmul.f32 %v5667, %v2921
      %v5860 = vmul.f32 %v5668, %v3312
      %v5861 = vmul.f32 %v5669, %v2925
      %v5862 = vmul.f32 %v5670, %v2927
      %v5863 = vmul.f32 %v5671, %v3317
      %v5864 = vmul.f32 %v5672, %v2931
      %v5865 = vmul.f32 %v5673, %v2933
      %v5866 = vmul.f32 %v5674, %v3322
      %v5867 = vmul.f32 %v5675, %v2937
      %v5868 = vmul.f32 %v5676, %v2939
      %v5869 = vmul.f32 %v5677, %v3327
      %v5870 = vmul.f32 %v5678, %v2943
      %v5871 = vmul.f32 %v5679, %v2945
      %v5872 = vmul.f32 %v5680, %v3332
      %v5873 = vmul.f32 %v5681, %v2949
      %v5874 = vmul.f32 %v5682, %v2951
      %v5875 = vmul.f32 %v5683, %v3337
      %v5876 = vmul.f32 %v5684, %v2955
      %v5877 = vmul.f32 %v5685, %v2957
      %v5878 = vmul.f32 %v5686, %v3342
      %v5879 = vmul.f32 %v5687, %v2961
      %v5880 = vmul.f32 %v5688, %v2963
      %v5881 = vmul.f32 %v5689, %v3347
      %v5882 = vld [vmem:[%s11] sm:$0xff]
      %v5883 = vld [vmem:[%s11 + $0x8] sm:$0xff]
      %v5884 = vld [vmem:[%s11 + $0x10] sm:$0xff]
      %v5885 = vld [vmem:[%s11 + $0x18] sm:$0xff]
      %v5886 = vld [vmem:[%s11 + $0x20] sm:$0xff]
      %v5887 = vld [vmem:[%s11 + $0x28] sm:$0xff]
      %v5888 = vld [vmem:[%s11 + $0x30] sm:$0xff]
      %v5889 = vld [vmem:[%s11 + $0x38] sm:$0xff]
      %v5890 = vld [vmem:[%s11 + $0x40] sm:$0xff]
      %v5891 = vld [vmem:[%s11 + $0x48] sm:$0xff]
      %v5892 = vld [vmem:[%s11 + $0x50] sm:$0xff]
      %v5893 = vld [vmem:[%s11 + $0x58] sm:$0xff]
      %v5894 = vld [vmem:[%s11 + $0x60] sm:$0xff]
      %v5895 = vld [vmem:[%s11 + $0x68] sm:$0xff]
      %v5896 = vld [vmem:[%s11 + $0x70] sm:$0xff]
      %v5897 = vld [vmem:[%s11 + $0x78] sm:$0xff]
      %v5898 = vld [vmem:[%s11 + $0x80] sm:$0xff]
      %v5899 = vld [vmem:[%s11 + $0x88] sm:$0xff]
      %v5900 = vld [vmem:[%s11 + $0x90] sm:$0xff]
      %v5901 = vld [vmem:[%s11 + $0x98] sm:$0xff]
      %v5902 = vld [vmem:[%s11 + $0xa0] sm:$0xff]
      %v5903 = vld [vmem:[%s11 + $0xa8] sm:$0xff]
      %v5904 = vld [vmem:[%s11 + $0xb0] sm:$0xff]
      %v5905 = vld [vmem:[%s11 + $0xb8] sm:$0xff]
      %v5906 = vld [vmem:[%s11 + $0xc0] sm:$0xff]
      %v5907 = vld [vmem:[%s11 + $0xc8] sm:$0xff]
      %v5908 = vld [vmem:[%s11 + $0xd0] sm:$0xff]
      %v5909 = vld [vmem:[%s11 + $0xd8] sm:$0xff]
      %v5910 = vld [vmem:[%s11 + $0xe0] sm:$0xff]
      %v5911 = vld [vmem:[%s11 + $0xe8] sm:$0xff]
      %v5912 = vld [vmem:[%s11 + $0xf0] sm:$0xff]
      %v5913 = vld [vmem:[%s11 + $0xf8] sm:$0xff]
      %v5914 = vld [vmem:[%s11 + $0x100] sm:$0xff]
      %v5915 = vld [vmem:[%s11 + $0x108] sm:$0xff]
      %v5916 = vld [vmem:[%s11 + $0x110] sm:$0xff]
      %v5917 = vld [vmem:[%s11 + $0x118] sm:$0xff]
      %v5918 = vld [vmem:[%s11 + $0x120] sm:$0xff]
      %v5919 = vld [vmem:[%s11 + $0x128] sm:$0xff]
      %v5920 = vld [vmem:[%s11 + $0x130] sm:$0xff]
      %v5921 = vld [vmem:[%s11 + $0x138] sm:$0xff]
      %v5922 = vld [vmem:[%s11 + $0x140] sm:$0xff]
      %v5923 = vld [vmem:[%s11 + $0x148] sm:$0xff]
      %v5924 = vld [vmem:[%s11 + $0x150] sm:$0xff]
      %v5925 = vld [vmem:[%s11 + $0x158] sm:$0xff]
      %v5926 = vld [vmem:[%s11 + $0x160] sm:$0xff]
      %v5927 = vld [vmem:[%s11 + $0x168] sm:$0xff]
      %v5928 = vld [vmem:[%s11 + $0x170] sm:$0xff]
      %v5929 = vld [vmem:[%s11 + $0x178] sm:$0xff]
      %5930 = vmatprep.subr.mxu0 0.0
      %5931 = vmatpush1.msra.mxu0 %v5882
      %5932 = vmatprep.subr.mxu0 0.0
      %5933 = vmatpush1.msra.mxu0 %v5883
      %5934 = vmatprep.subr.mxu0 0.0
      %5935 = vmatpush1.msra.mxu0 %v5884
      %5936 = vmatprep.subr.mxu0 0.0
      %5937 = vmatpush1.msra.mxu0 %v5885
      %5938 = vmatprep.subr.mxu0 0.0
      %5939 = vmatpush1.msra.mxu0 %v5886
      %5940 = vmatprep.subr.mxu0 0.0
      %5941 = vmatpush1.msra.mxu0 %v5887
      %5942 = vmatprep.subr.mxu0 0.0
      %5943 = vmatpush1.msra.mxu0 %v5888
      %5944 = vmatprep.subr.mxu0 0.0
      %5945 = vmatpush1.msra.mxu0 %v5889
      %5946 = vmatprep.subr.mxu0 0.0
      %5947 = vmatpush1.msra.mxu0 %v5890
      %5948 = vmatprep.subr.mxu0 0.0
      %5949 = vmatpush1.msra.mxu0 %v5891
      %5950 = vmatprep.subr.mxu0 0.0
      %5951 = vmatpush1.msra.mxu0 %v5892
      %5952 = vmatprep.subr.mxu0 0.0
      %5953 = vmatpush1.msra.mxu0 %v5893
      %5954 = vmatprep.subr.mxu0 0.0
      %5955 = vmatpush1.msra.mxu0 %v5894
      %5956 = vmatprep.subr.mxu0 0.0
      %5957 = vmatpush1.msra.mxu0 %v5895
      %5958 = vmatprep.subr.mxu0 0.0
      %5959 = vmatpush1.msra.mxu0 %v5896
      %5960 = vmatprep.subr.mxu0 0.0
      %5961 = vmatpush1.msra.mxu0 %v5897
      %5962 = vmatprep.subr.mxu0 0.0
      %5963 = vmatpush1.msra.mxu0 %v5898
      %5964 = vmatprep.subr.mxu0 0.0
      %5965 = vmatpush1.msra.mxu0 %v5899
      %5966 = vmatprep.subr.mxu0 0.0
      %5967 = vmatpush1.msra.mxu0 %v5900
      %5968 = vmatprep.subr.mxu0 0.0
      %5969 = vmatpush1.msra.mxu0 %v5901
      %5970 = vmatprep.subr.mxu0 0.0
      %5971 = vmatpush1.msra.mxu0 %v5902
      %5972 = vmatprep.subr.mxu0 0.0
      %5973 = vmatpush1.msra.mxu0 %v5903
      %5974 = vmatprep.subr.mxu0 0.0
      %5975 = vmatpush1.msra.mxu0 %v5904
      %5976 = vmatprep.subr.mxu0 0.0
      %5977 = vmatpush1.msra.mxu0 %v5905
      %5978 = vmatprep.subr.mxu0 0.0
      %5979 = vmatpush1.msra.mxu0 %v5906
      %5980 = vmatprep.subr.mxu0 0.0
      %5981 = vmatpush1.msra.mxu0 %v5907
      %5982 = vmatprep.subr.mxu0 0.0
      %5983 = vmatpush1.msra.mxu0 %v5908
      %5984 = vmatprep.subr.mxu0 0.0
      %5985 = vmatpush1.msra.mxu0 %v5909
      %5986 = vmatprep.subr.mxu0 0.0
      %5987 = vmatpush1.msra.mxu0 %v5910
      %5988 = vmatprep.subr.mxu0 0.0
      %5989 = vmatpush1.msra.mxu0 %v5911
      %5990 = vmatprep.subr.mxu0 0.0
      %5991 = vmatpush1.msra.mxu0 %v5912
      %5992 = vmatprep.subr.mxu0 0.0
      %5993 = vmatpush1.msra.mxu0 %v5913
      %5994 = vmatprep.mubr.f32.mxu0 %v5691
      %5995 = vmatmul.mubr.f32.gmra.mrb[0].mxu0 %v5690
      %v5996 = vpop.f32.mrb[0].mxu0
      %v5997 = vadd.f32 0.0, %v5996
      %v5998 = vpop.f32.mrb[0].mxu0
      %5999 = vmatprep.mubr.f32.mxu0 %v5694
      %6000 = vmatmul.mubr.f32.gmra.mrb[0].mxu0 %v5693
      %v6001 = vpop.f32.mrb[0].mxu0
      %v6002 = vadd.f32 0.0, %v6001
      %v6003 = vpop.f32.mrb[0].mxu0
      %6004 = vmatprep.mubr.f32.mxu0 %v5697
      %6005 = vmatmul.mubr.f32.gmra.mrb[0].mxu0 %v5696
      %v6006 = vpop.f32.mrb[0].mxu0
      %v6007 = vadd.f32 0.0, %v6006
      %v6008 = vpop.f32.mrb[0].mxu0
      %6009 = vmatprep.mubr.f32.mxu0 %v5700
      %6010 = vmatmul.mubr.f32.gmra.mrb[0].mxu0 %v5699
      %v6011 = vpop.f32.mrb[0].mxu0
      %v6012 = vadd.f32 0.0, %v6011
      %v6013 = vpop.f32.mrb[0].mxu0
      %6014 = vmatprep.mubr.f32.mxu0 %v5703
      %6015 = vmatmul.mubr.f32.gmra.mrb[0].mxu0 %v5702
      %v6016 = vpop.f32.mrb[0].mxu0
      %v6017 = vadd.f32 0.0, %v6016
      %v6018 = vpop.f32.mrb[0].mxu0
      %6019 = vmatprep.mubr.f32.mxu0 %v5706
      %6020 = vmatmul.mubr.f32.gmra.mrb[0].mxu0 %v5705
      %v6021 = vpop.f32.mrb[0].mxu0
      %v6022 = vadd.f32 0.0, %v6021
      %v6023 = vpop.f32.mrb[0].mxu0
      %6024 = vmatprep.mubr.f32.mxu0 %v5709
      %6025 = vmatmul.mubr.f32.gmra.mrb[0].mxu0 %v5708
      %v6026 = vpop.f32.mrb[0].mxu0
      %v6027 = vadd.f32 0.0, %v6026
      %v6028 = vpop.f32.mrb[0].mxu0
      %6029 = vmatprep.mubr.f32.mxu0 %v5712
      %6030 = vmatmul.mubr.f32.gmra.mrb[0].mxu0 %v5711
      %v6031 = vpop.f32.mrb[0].mxu0
      %v6032 = vadd.f32 0.0, %v6031
      %v6033 = vpop.f32.mrb[0].mxu0
      %6034 = vmatprep.mubr.f32.mxu0 %v5715
      %6035 = vmatmul.mubr.f32.gmra.mrb[0].mxu0 %v5714
      %v6036 = vpop.f32.mrb[0].mxu0
      %v6037 = vadd.f32 0.0, %v6036
      %v6038 = vpop.f32.mrb[0].mxu0
      %6039 = vmatprep.mubr.f32.mxu0 %v5718
      %6040 = vmatmul.mubr.f32.gmra.mrb[0].mxu0 %v5717
      %v6041 = vpop.f32.mrb[0].mxu0
      %v6042 = vadd.f32 0.0, %v6041
      %v6043 = vpop.f32.mrb[0].mxu0
      %6044 = vmatprep.mubr.f32.mxu0 %v5721
      %6045 = vmatmul.mubr.f32.gmra.mrb[0].mxu0 %v5720
      %v6046 = vpop.f32.mrb[0].mxu0
      %v6047 = vadd.f32 0.0, %v6046
      %v6048 = vpop.f32.mrb[0].mxu0
      %6049 = vmatprep.mubr.f32.mxu0 %v5724
      %6050 = vmatmul.mubr.f32.gmra.mrb[0].mxu0 %v5723
      %v6051 = vpop.f32.mrb[0].mxu0
      %v6052 = vadd.f32 0.0, %v6051
      %v6053 = vpop.f32.mrb[0].mxu0
      %6054 = vmatprep.mubr.f32.mxu0 %v5727
      %6055 = vmatmul.mubr.f32.gmra.mrb[0].mxu0 %v5726
      %v6056 = vpop.f32.mrb[0].mxu0
      %v6057 = vadd.f32 0.0, %v6056
      %v6058 = vpop.f32.mrb[0].mxu0
      %6059 = vmatprep.mubr.f32.mxu0 %v5730
      %6060 = vmatmul.mubr.f32.gmra.mrb[0].mxu0 %v5729
      %v6061 = vpop.f32.mrb[0].mxu0
      %v6062 = vadd.f32 0.0, %v6061
      %v6063 = vpop.f32.mrb[0].mxu0
      %6064 = vmatprep.mubr.f32.mxu0 %v5733
      %6065 = vmatmul.mubr.f32.gmra.mrb[0].mxu0 %v5732
      %v6066 = vpop.f32.mrb[0].mxu0
      %v6067 = vadd.f32 0.0, %v6066
      %v6068 = vpop.f32.mrb[0].mxu0
      %6069 = vmatprep.mubr.f32.mxu0 %v5736
      %6070 = vmatmul.mubr.f32.gmra.mrb[0].mxu0 %v5735
      %v6071 = vpop.f32.mrb[0].mxu0
      %v6072 = vadd.f32 0.0, %v6071
      %v6073 = vpop.f32.mrb[0].mxu0
      %6074 = vmatprep.mubr.f32.mxu0 %v5739
      %6075 = vmatmul.mubr.f32.gmra.mrb[0].mxu0 %v5738
      %v6076 = vpop.f32.mrb[0].mxu0
      %v6077 = vadd.f32 0.0, %v6076
      %v6078 = vpop.f32.mrb[0].mxu0
      %6079 = vmatprep.mubr.f32.mxu0 %v5742
      %6080 = vmatmul.mubr.f32.gmra.mrb[0].mxu0 %v5741
      %v6081 = vpop.f32.mrb[0].mxu0
      %v6082 = vadd.f32 0.0, %v6081
      %v6083 = vpop.f32.mrb[0].mxu0
      %6084 = vmatprep.mubr.f32.mxu0 %v5745
      %6085 = vmatmul.mubr.f32.gmra.mrb[0].mxu0 %v5744
      %v6086 = vpop.f32.mrb[0].mxu0
      %v6087 = vadd.f32 0.0, %v6086
      %v6088 = vpop.f32.mrb[0].mxu0
      %6089 = vmatprep.mubr.f32.mxu0 %v5748
      %6090 = vmatmul.mubr.f32.gmra.mrb[0].mxu0 %v5747
      %v6091 = vpop.f32.mrb[0].mxu0
      %v6092 = vadd.f32 0.0, %v6091
      %v6093 = vpop.f32.mrb[0].mxu0
      %6094 = vmatprep.mubr.f32.mxu0 %v5751
      %6095 = vmatmul.mubr.f32.gmra.mrb[0].mxu0 %v5750
      %v6096 = vpop.f32.mrb[0].mxu0
      %v6097 = vadd.f32 0.0, %v6096
      %v6098 = vpop.f32.mrb[0].mxu0
      %6099 = vmatprep.mubr.f32.mxu0 %v5754
      %6100 = vmatmul.mubr.f32.gmra.mrb[0].mxu0 %v5753
      %v6101 = vpop.f32.mrb[0].mxu0
      %v6102 = vadd.f32 0.0, %v6101
      %v6103 = vpop.f32.mrb[0].mxu0
      %6104 = vmatprep.mubr.f32.mxu0 %v5757
      %6105 = vmatmul.mubr.f32.gmra.mrb[0].mxu0 %v5756
      %v6106 = vpop.f32.mrb[0].mxu0
      %v6107 = vadd.f32 0.0, %v6106
      %v6108 = vpop.f32.mrb[0].mxu0
      %6109 = vmatprep.mubr.f32.mxu0 %v5760
      %6110 = vmatmul.mubr.f32.gmra.mrb[0].mxu0 %v5759
      %v6111 = vpop.f32.mrb[0].mxu0
      %v6112 = vadd.f32 0.0, %v6111
      %v6113 = vpop.f32.mrb[0].mxu0
      %6114 = vmatprep.mubr.f32.mxu0 %v5763
      %6115 = vmatmul.mubr.f32.gmra.mrb[0].mxu0 %v5762
      %v6116 = vpop.f32.mrb[0].mxu0
      %v6117 = vadd.f32 0.0, %v6116
      %v6118 = vpop.f32.mrb[0].mxu0
      %6119 = vmatprep.mubr.f32.mxu0 %v5766
      %6120 = vmatmul.mubr.f32.gmra.mrb[0].mxu0 %v5765
      %v6121 = vpop.f32.mrb[0].mxu0
      %v6122 = vadd.f32 0.0, %v6121
      %v6123 = vpop.f32.mrb[0].mxu0
      %6124 = vmatprep.mubr.f32.mxu0 %v5769
      %6125 = vmatmul.mubr.f32.gmra.mrb[0].mxu0 %v5768
      %v6126 = vpop.f32.mrb[0].mxu0
      %v6127 = vadd.f32 0.0, %v6126
      %v6128 = vpop.f32.mrb[0].mxu0
      %6129 = vmatprep.mubr.f32.mxu0 %v5772
      %6130 = vmatmul.mubr.f32.gmra.mrb[0].mxu0 %v5771
      %v6131 = vpop.f32.mrb[0].mxu0
      %v6132 = vadd.f32 0.0, %v6131
      %v6133 = vpop.f32.mrb[0].mxu0
      %6134 = vmatprep.mubr.f32.mxu0 %v5775
      %6135 = vmatmul.mubr.f32.gmra.mrb[0].mxu0 %v5774
      %v6136 = vpop.f32.mrb[0].mxu0
      %v6137 = vadd.f32 0.0, %v6136
      %v6138 = vpop.f32.mrb[0].mxu0
      %6139 = vmatprep.mubr.f32.mxu0 %v5778
      %6140 = vmatmul.mubr.f32.gmra.mrb[0].mxu0 %v5777
      %v6141 = vpop.f32.mrb[0].mxu0
      %v6142 = vadd.f32 0.0, %v6141
      %v6143 = vpop.f32.mrb[0].mxu0
      %6144 = vmatprep.mubr.f32.mxu0 %v5781
      %6145 = vmatmul.mubr.f32.gmra.mrb[0].mxu0 %v5780
      %v6146 = vpop.f32.mrb[0].mxu0
      %v6147 = vadd.f32 0.0, %v6146
      %v6148 = vpop.f32.mrb[0].mxu0
      %6149 = vmatprep.mubr.f32.mxu0 %v5784
      %6150 = vmatmul.mubr.f32.gmra.mrb[0].mxu0 %v5783
      %v6151 = vpop.f32.mrb[0].mxu0
      %v6152 = vadd.f32 0.0, %v6151
      %v6153 = vpop.f32.mrb[0].mxu0
      %6154 = vmatprep.mubr.f32.mxu0 %v5787
      %6155 = vmatmul.mubr.f32.gmra.mrb[0].mxu0 %v5786
      %v6156 = vpop.f32.mrb[0].mxu0
      %v6157 = vadd.f32 0.0, %v6156
      %v6158 = vpop.f32.mrb[0].mxu0
      %6159 = vmatprep.mubr.f32.mxu0 %v5790
      %6160 = vmatmul.mubr.f32.gmra.mrb[0].mxu0 %v5789
      %v6161 = vpop.f32.mrb[0].mxu0
      %v6162 = vadd.f32 0.0, %v6161
      %v6163 = vpop.f32.mrb[0].mxu0
      %6164 = vmatprep.mubr.f32.mxu0 %v5793
      %6165 = vmatmul.mubr.f32.gmra.mrb[0].mxu0 %v5792
      %v6166 = vpop.f32.mrb[0].mxu0
      %v6167 = vadd.f32 0.0, %v6166
      %v6168 = vpop.f32.mrb[0].mxu0
      %6169 = vmatprep.mubr.f32.mxu0 %v5796
      %6170 = vmatmul.mubr.f32.gmra.mrb[0].mxu0 %v5795
      %v6171 = vpop.f32.mrb[0].mxu0
      %v6172 = vadd.f32 0.0, %v6171
      %v6173 = vpop.f32.mrb[0].mxu0
      %6174 = vmatprep.mubr.f32.mxu0 %v5799
      %6175 = vmatmul.mubr.f32.gmra.mrb[0].mxu0 %v5798
      %v6176 = vpop.f32.mrb[0].mxu0
      %v6177 = vadd.f32 0.0, %v6176
      %v6178 = vpop.f32.mrb[0].mxu0
      %6179 = vmatprep.mubr.f32.mxu0 %v5802
      %6180 = vmatmul.mubr.f32.gmra.mrb[0].mxu0 %v5801
      %v6181 = vpop.f32.mrb[0].mxu0
      %v6182 = vadd.f32 0.0, %v6181
      %v6183 = vpop.f32.mrb[0].mxu0
      %6184 = vmatprep.mubr.f32.mxu0 %v5805
      %6185 = vmatmul.mubr.f32.gmra.mrb[0].mxu0 %v5804
      %v6186 = vpop.f32.mrb[0].mxu0
      %v6187 = vadd.f32 0.0, %v6186
      %v6188 = vpop.f32.mrb[0].mxu0
      %6189 = vmatprep.mubr.f32.mxu0 %v5808
      %6190 = vmatmul.mubr.f32.gmra.mrb[0].mxu0 %v5807
      %v6191 = vpop.f32.mrb[0].mxu0
      %v6192 = vadd.f32 0.0, %v6191
      %v6193 = vpop.f32.mrb[0].mxu0
      %6194 = vmatprep.mubr.f32.mxu0 %v5811
      %6195 = vmatmul.mubr.f32.gmra.mrb[0].mxu0 %v5810
      %v6196 = vpop.f32.mrb[0].mxu0
      %v6197 = vadd.f32 0.0, %v6196
      %v6198 = vpop.f32.mrb[0].mxu0
      %6199 = vmatprep.mubr.f32.mxu0 %v5814
      %6200 = vmatmul.mubr.f32.gmra.mrb[0].mxu0 %v5813
      %v6201 = vpop.f32.mrb[0].mxu0
      %v6202 = vadd.f32 0.0, %v6201
      %v6203 = vpop.f32.mrb[0].mxu0
      %6204 = vmatprep.mubr.f32.mxu0 %v5817
      %6205 = vmatmul.mubr.f32.gmra.mrb[0].mxu0 %v5816
      %v6206 = vpop.f32.mrb[0].mxu0
      %v6207 = vadd.f32 0.0, %v6206
      %v6208 = vpop.f32.mrb[0].mxu0
      %6209 = vmatprep.mubr.f32.mxu0 %v5820
      %6210 = vmatmul.mubr.f32.gmra.mrb[0].mxu0 %v5819
      %v6211 = vpop.f32.mrb[0].mxu0
      %v6212 = vadd.f32 0.0, %v6211
      %v6213 = vpop.f32.mrb[0].mxu0
      %6214 = vmatprep.mubr.f32.mxu0 %v5823
      %6215 = vmatmul.mubr.f32.gmra.mrb[0].mxu0 %v5822
      %v6216 = vpop.f32.mrb[0].mxu0
      %v6217 = vadd.f32 0.0, %v6216
      %v6218 = vpop.f32.mrb[0].mxu0
      %6219 = vmatprep.mubr.f32.mxu0 %v5826
      %6220 = vmatmul.mubr.f32.gmra.mrb[0].mxu0 %v5825
      %v6221 = vpop.f32.mrb[0].mxu0
      %v6222 = vadd.f32 0.0, %v6221
      %v6223 = vpop.f32.mrb[0].mxu0
      %6224 = vmatprep.mubr.f32.mxu0 %v5829
      %6225 = vmatmul.mubr.f32.gmra.mrb[0].mxu0 %v5828
      %v6226 = vpop.f32.mrb[0].mxu0
      %v6227 = vadd.f32 0.0, %v6226
      %v6228 = vpop.f32.mrb[0].mxu0
      %6229 = vmatprep.mubr.f32.mxu0 %v5832
      %6230 = vmatmul.mubr.f32.gmra.mrb[0].mxu0 %v5831
      %v6231 = vpop.f32.mrb[0].mxu0
      %v6232 = vadd.f32 0.0, %v6231
      %v6233 = vpop.f32.mrb[0].mxu0
      %6234 = vmatprep.mubr.f32.mxu0 %v5835
      %6235 = vmatmul.mubr.f32.gmra.mrb[0].mxu0 %v5834
      %v6236 = vpop.f32.mrb[0].mxu0
      %v6237 = vadd.f32 0.0, %v6236
      %v6238 = vpop.f32.mrb[0].mxu0
      %6239 = vmatprep.mubr.f32.mxu0 %v5838
      %6240 = vmatmul.mubr.f32.gmra.mrb[0].mxu0 %v5837
      %v6241 = vpop.f32.mrb[0].mxu0
      %v6242 = vadd.f32 0.0, %v6241
      %v6243 = vpop.f32.mrb[0].mxu0
      %6244 = vmatprep.mubr.f32.mxu0 %v5841
      %6245 = vmatmul.mubr.f32.gmra.mrb[0].mxu0 %v5840
      %v6246 = vpop.f32.mrb[0].mxu0
      %v6247 = vadd.f32 0.0, %v6246
      %v6248 = vpop.f32.mrb[0].mxu0
      %6249 = vmatprep.mubr.f32.mxu0 %v5844
      %6250 = vmatmul.mubr.f32.gmra.mrb[0].mxu0 %v5843
      %v6251 = vpop.f32.mrb[0].mxu0
      %v6252 = vadd.f32 0.0, %v6251
      %v6253 = vpop.f32.mrb[0].mxu0
      %6254 = vmatprep.mubr.f32.mxu0 %v5847
      %6255 = vmatmul.mubr.f32.gmra.mrb[0].mxu0 %v5846
      %v6256 = vpop.f32.mrb[0].mxu0
      %v6257 = vadd.f32 0.0, %v6256
      %v6258 = vpop.f32.mrb[0].mxu0
      %6259 = vmatprep.mubr.f32.mxu0 %v5850
      %6260 = vmatmul.mubr.f32.gmra.mrb[0].mxu0 %v5849
      %v6261 = vpop.f32.mrb[0].mxu0
      %v6262 = vadd.f32 0.0, %v6261
      %v6263 = vpop.f32.mrb[0].mxu0
      %6264 = vmatprep.mubr.f32.mxu0 %v5853
      %6265 = vmatmul.mubr.f32.gmra.mrb[0].mxu0 %v5852
      %v6266 = vpop.f32.mrb[0].mxu0
      %v6267 = vadd.f32 0.0, %v6266
      %v6268 = vpop.f32.mrb[0].mxu0
      %6269 = vmatprep.mubr.f32.mxu0 %v5856
      %6270 = vmatmul.mubr.f32.gmra.mrb[0].mxu0 %v5855
      %v6271 = vpop.f32.mrb[0].mxu0
      %v6272 = vadd.f32 0.0, %v6271
      %v6273 = vpop.f32.mrb[0].mxu0
      %6274 = vmatprep.mubr.f32.mxu0 %v5859
      %6275 = vmatmul.mubr.f32.gmra.mrb[0].mxu0 %v5858
      %v6276 = vpop.f32.mrb[0].mxu0
      %v6277 = vadd.f32 0.0, %v6276
      %v6278 = vpop.f32.mrb[0].mxu0
      %6279 = vmatprep.mubr.f32.mxu0 %v5862
      %6280 = vmatmul.mubr.f32.gmra.mrb[0].mxu0 %v5861
      %v6281 = vpop.f32.mrb[0].mxu0
      %v6282 = vadd.f32 0.0, %v6281
      %v6283 = vpop.f32.mrb[0].mxu0
      %6284 = vmatprep.mubr.f32.mxu0 %v5865
      %6285 = vmatmul.mubr.f32.gmra.mrb[0].mxu0 %v5864
      %v6286 = vpop.f32.mrb[0].mxu0
      %v6287 = vadd.f32 0.0, %v6286
      %v6288 = vpop.f32.mrb[0].mxu0
      %6289 = vmatprep.mubr.f32.mxu0 %v5868
      %6290 = vmatmul.mubr.f32.gmra.mrb[0].mxu0 %v5867
      %v6291 = vpop.f32.mrb[0].mxu0
      %v6292 = vadd.f32 0.0, %v6291
      %v6293 = vpop.f32.mrb[0].mxu0
      %6294 = vmatprep.mubr.f32.mxu0 %v5871
      %6295 = vmatmul.mubr.f32.gmra.mrb[0].mxu0 %v5870
      %v6296 = vpop.f32.mrb[0].mxu0
      %v6297 = vadd.f32 0.0, %v6296
      %v6298 = vpop.f32.mrb[0].mxu0
      %6299 = vmatprep.mubr.f32.mxu0 %v5874
      %6300 = vmatmul.mubr.f32.gmra.mrb[0].mxu0 %v5873
      %v6301 = vpop.f32.mrb[0].mxu0
      %v6302 = vadd.f32 0.0, %v6301
      %v6303 = vpop.f32.mrb[0].mxu0
      %6304 = vmatprep.mubr.f32.mxu0 %v5877
      %6305 = vmatmul.mubr.f32.gmra.mrb[0].mxu0 %v5876
      %v6306 = vpop.f32.mrb[0].mxu0
      %v6307 = vadd.f32 0.0, %v6306
      %v6308 = vpop.f32.mrb[0].mxu0
      %6309 = vmatprep.mubr.f32.mxu0 %v5880
      %6310 = vmatmul.mubr.f32.gmra.mrb[0].mxu0 %v5879
      %v6311 = vpop.f32.mrb[0].mxu0
      %v6312 = vadd.f32 0.0, %v6311
      %v6313 = vpop.f32.mrb[0].mxu0
      %6314 = vdwg.mxu0
      %6315 = vmatprep.subr.mxu0 0.0
      %6316 = vmatpush1.msra.mxu0 %v5914
      %6317 = vmatprep.subr.mxu0 0.0
      %6318 = vmatpush1.msra.mxu0 %v5915
      %6319 = vmatprep.subr.mxu0 0.0
      %6320 = vmatpush1.msra.mxu0 %v5916
      %6321 = vmatprep.subr.mxu0 0.0
      %6322 = vmatpush1.msra.mxu0 %v5917
      %6323 = vmatprep.subr.mxu0 0.0
      %6324 = vmatpush1.msra.mxu0 %v5918
      %6325 = vmatprep.subr.mxu0 0.0
      %6326 = vmatpush1.msra.mxu0 %v5919
      %6327 = vmatprep.subr.mxu0 0.0
      %6328 = vmatpush1.msra.mxu0 %v5920
      %6329 = vmatprep.subr.mxu0 0.0
      %6330 = vmatpush1.msra.mxu0 %v5921
      %6331 = vmatprep.subr.mxu0 0.0
      %6332 = vmatpush1.msra.mxu0 %v5922
      %6333 = vmatprep.subr.mxu0 0.0
      %6334 = vmatpush1.msra.mxu0 %v5923
      %6335 = vmatprep.subr.mxu0 0.0
      %6336 = vmatpush1.msra.mxu0 %v5924
      %6337 = vmatprep.subr.mxu0 0.0
      %6338 = vmatpush1.msra.mxu0 %v5925
      %6339 = vmatprep.subr.mxu0 0.0
      %6340 = vmatpush1.msra.mxu0 %v5926
      %6341 = vmatprep.subr.mxu0 0.0
      %6342 = vmatpush1.msra.mxu0 %v5927
      %6343 = vmatprep.subr.mxu0 0.0
      %6344 = vmatpush1.msra.mxu0 %v5928
      %6345 = vmatprep.subr.mxu0 0.0
      %6346 = vmatpush1.msra.mxu0 %v5929
      %6347 = vmatprep.subr.mxu0 0.0
      %6348 = vmatpush1.msra.mxu0 0.0
      %6349 = vmatprep.subr.mxu0 0.0
      %6350 = vmatpush1.msra.mxu0 0.0
      %6351 = vmatprep.subr.mxu0 0.0
      %6352 = vmatpush1.msra.mxu0 0.0
      %6353 = vmatprep.subr.mxu0 0.0
      %6354 = vmatpush1.msra.mxu0 0.0
      %6355 = vmatprep.subr.mxu0 0.0
      %6356 = vmatpush1.msra.mxu0 0.0
      %6357 = vmatprep.subr.mxu0 0.0
      %6358 = vmatpush1.msra.mxu0 0.0
      %6359 = vmatprep.subr.mxu0 0.0
      %6360 = vmatpush1.msra.mxu0 0.0
      %6361 = vmatprep.subr.mxu0 0.0
      %6362 = vmatpush1.msra.mxu0 0.0
      %6363 = vmatprep.subr.mxu0 0.0
      %6364 = vmatpush1.msra.mxu0 0.0
      %6365 = vmatprep.subr.mxu0 0.0
      %6366 = vmatpush1.msra.mxu0 0.0
      %6367 = vmatprep.subr.mxu0 0.0
      %6368 = vmatpush1.msra.mxu0 0.0
      %6369 = vmatprep.subr.mxu0 0.0
      %6370 = vmatpush1.msra.mxu0 0.0
      %6371 = vmatprep.subr.mxu0 0.0
      %6372 = vmatpush1.msra.mxu0 0.0
      %6373 = vmatprep.subr.mxu0 0.0
      %6374 = vmatpush1.msra.mxu0 0.0
      %6375 = vmatprep.subr.mxu0 0.0
      %6376 = vmatpush1.msra.mxu0 0.0
      %6377 = vmatprep.subr.mxu0 0.0
      %6378 = vmatpush1.msra.mxu0 0.0
      %6379 = vmatprep.mubr.f32.mxu0 0.0
      %6380 = vmatmul.mubr.f32.gmra.mrb[0].mxu0 %v5692
      %v6381 = vpop.f32.mrb[0].mxu0
      %v6382 = vadd.f32 %v5997, %v6381
      %v6383 = vpop.f32.mrb[0].mxu0
      %6384 = vmatprep.mubr.f32.mxu0 0.0
      %6385 = vmatmul.mubr.f32.gmra.mrb[0].mxu0 %v5695
      %v6386 = vpop.f32.mrb[0].mxu0
      %v6387 = vadd.f32 %v6002, %v6386
      %v6388 = vpop.f32.mrb[0].mxu0
      %6389 = vmatprep.mubr.f32.mxu0 0.0
      %6390 = vmatmul.mubr.f32.gmra.mrb[0].mxu0 %v5698
      %v6391 = vpop.f32.mrb[0].mxu0
      %v6392 = vadd.f32 %v6007, %v6391
      %v6393 = vpop.f32.mrb[0].mxu0
      %6394 = vmatprep.mubr.f32.mxu0 0.0
      %6395 = vmatmul.mubr.f32.gmra.mrb[0].mxu0 %v5701
      %v6396 = vpop.f32.mrb[0].mxu0
      %v6397 = vadd.f32 %v6012, %v6396
      %v6398 = vpop.f32.mrb[0].mxu0
      %6399 = vmatprep.mubr.f32.mxu0 0.0
      %6400 = vmatmul.mubr.f32.gmra.mrb[0].mxu0 %v5704
      %v6401 = vpop.f32.mrb[0].mxu0
      %v6402 = vadd.f32 %v6017, %v6401
      %v6403 = vpop.f32.mrb[0].mxu0
      %6404 = vmatprep.mubr.f32.mxu0 0.0
      %6405 = vmatmul.mubr.f32.gmra.mrb[0].mxu0 %v5707
      %v6406 = vpop.f32.mrb[0].mxu0
      %v6407 = vadd.f32 %v6022, %v6406
      %v6408 = vpop.f32.mrb[0].mxu0
      %6409 = vmatprep.mubr.f32.mxu0 0.0
      %6410 = vmatmul.mubr.f32.gmra.mrb[0].mxu0 %v5710
      %v6411 = vpop.f32.mrb[0].mxu0
      %v6412 = vadd.f32 %v6027, %v6411
      %v6413 = vpop.f32.mrb[0].mxu0
      %6414 = vmatprep.mubr.f32.mxu0 0.0
      %6415 = vmatmul.mubr.f32.gmra.mrb[0].mxu0 %v5713
      %v6416 = vpop.f32.mrb[0].mxu0
      %v6417 = vadd.f32 %v6032, %v6416
      %v6418 = vpop.f32.mrb[0].mxu0
      %6419 = vmatprep.mubr.f32.mxu0 0.0
      %6420 = vmatmul.mubr.f32.gmra.mrb[0].mxu0 %v5716
      %v6421 = vpop.f32.mrb[0].mxu0
      %v6422 = vadd.f32 %v6037, %v6421
      %v6423 = vpop.f32.mrb[0].mxu0
      %6424 = vmatprep.mubr.f32.mxu0 0.0
      %6425 = vmatmul.mubr.f32.gmra.mrb[0].mxu0 %v5719
      %v6426 = vpop.f32.mrb[0].mxu0
      %v6427 = vadd.f32 %v6042, %v6426
      %v6428 = vpop.f32.mrb[0].mxu0
      %6429 = vmatprep.mubr.f32.mxu0 0.0
      %6430 = vmatmul.mubr.f32.gmra.mrb[0].mxu0 %v5722
      %v6431 = vpop.f32.mrb[0].mxu0
      %v6432 = vadd.f32 %v6047, %v6431
      %v6433 = vpop.f32.mrb[0].mxu0
      %6434 = vmatprep.mubr.f32.mxu0 0.0
      %6435 = vmatmul.mubr.f32.gmra.mrb[0].mxu0 %v5725
      %v6436 = vpop.f32.mrb[0].mxu0
      %v6437 = vadd.f32 %v6052, %v6436
      %v6438 = vpop.f32.mrb[0].mxu0
      %6439 = vmatprep.mubr.f32.mxu0 0.0
      %6440 = vmatmul.mubr.f32.gmra.mrb[0].mxu0 %v5728
      %v6441 = vpop.f32.mrb[0].mxu0
      %v6442 = vadd.f32 %v6057, %v6441
      %v6443 = vpop.f32.mrb[0].mxu0
      %6444 = vmatprep.mubr.f32.mxu0 0.0
      %6445 = vmatmul.mubr.f32.gmra.mrb[0].mxu0 %v5731
      %v6446 = vpop.f32.mrb[0].mxu0
      %v6447 = vadd.f32 %v6062, %v6446
      %v6448 = vpop.f32.mrb[0].mxu0
      %6449 = vmatprep.mubr.f32.mxu0 0.0
      %6450 = vmatmul.mubr.f32.gmra.mrb[0].mxu0 %v5734
      %v6451 = vpop.f32.mrb[0].mxu0
      %v6452 = vadd.f32 %v6067, %v6451
      %v6453 = vpop.f32.mrb[0].mxu0
      %6454 = vmatprep.mubr.f32.mxu0 0.0
      %6455 = vmatmul.mubr.f32.gmra.mrb[0].mxu0 %v5737
      %v6456 = vpop.f32.mrb[0].mxu0
      %v6457 = vadd.f32 %v6072, %v6456
      %v6458 = vpop.f32.mrb[0].mxu0
      %6459 = vmatprep.mubr.f32.mxu0 0.0
      %6460 = vmatmul.mubr.f32.gmra.mrb[0].mxu0 %v5740
      %v6461 = vpop.f32.mrb[0].mxu0
      %v6462 = vadd.f32 %v6077, %v6461
      %v6463 = vpop.f32.mrb[0].mxu0
      %6464 = vmatprep.mubr.f32.mxu0 0.0
      %6465 = vmatmul.mubr.f32.gmra.mrb[0].mxu0 %v5743
      %v6466 = vpop.f32.mrb[0].mxu0
      %v6467 = vadd.f32 %v6082, %v6466
      %v6468 = vpop.f32.mrb[0].mxu0
      %6469 = vmatprep.mubr.f32.mxu0 0.0
      %6470 = vmatmul.mubr.f32.gmra.mrb[0].mxu0 %v5746
      %v6471 = vpop.f32.mrb[0].mxu0
      %v6472 = vadd.f32 %v6087, %v6471
      %v6473 = vpop.f32.mrb[0].mxu0
      %6474 = vmatprep.mubr.f32.mxu0 0.0
      %6475 = vmatmul.mubr.f32.gmra.mrb[0].mxu0 %v5749
      %v6476 = vpop.f32.mrb[0].mxu0
      %v6477 = vadd.f32 %v6092, %v6476
      %v6478 = vpop.f32.mrb[0].mxu0
      %6479 = vmatprep.mubr.f32.mxu0 0.0
      %6480 = vmatmul.mubr.f32.gmra.mrb[0].mxu0 %v5752
      %v6481 = vpop.f32.mrb[0].mxu0
      %v6482 = vadd.f32 %v6097, %v6481
      %v6483 = vpop.f32.mrb[0].mxu0
      %6484 = vmatprep.mubr.f32.mxu0 0.0
      %6485 = vmatmul.mubr.f32.gmra.mrb[0].mxu0 %v5755
      %v6486 = vpop.f32.mrb[0].mxu0
      %v6487 = vadd.f32 %v6102, %v6486
      %v6488 = vpop.f32.mrb[0].mxu0
      %6489 = vmatprep.mubr.f32.mxu0 0.0
      %6490 = vmatmul.mubr.f32.gmra.mrb[0].mxu0 %v5758
      %v6491 = vpop.f32.mrb[0].mxu0
      %v6492 = vadd.f32 %v6107, %v6491
      %v6493 = vpop.f32.mrb[0].mxu0
      %6494 = vmatprep.mubr.f32.mxu0 0.0
      %6495 = vmatmul.mubr.f32.gmra.mrb[0].mxu0 %v5761
      %v6496 = vpop.f32.mrb[0].mxu0
      %v6497 = vadd.f32 %v6112, %v6496
      %v6498 = vpop.f32.mrb[0].mxu0
      %6499 = vmatprep.mubr.f32.mxu0 0.0
      %6500 = vmatmul.mubr.f32.gmra.mrb[0].mxu0 %v5764
      %v6501 = vpop.f32.mrb[0].mxu0
      %v6502 = vadd.f32 %v6117, %v6501
      %v6503 = vpop.f32.mrb[0].mxu0
      %6504 = vmatprep.mubr.f32.mxu0 0.0
      %6505 = vmatmul.mubr.f32.gmra.mrb[0].mxu0 %v5767
      %v6506 = vpop.f32.mrb[0].mxu0
      %v6507 = vadd.f32 %v6122, %v6506
      %v6508 = vpop.f32.mrb[0].mxu0
      %6509 = vmatprep.mubr.f32.mxu0 0.0
      %6510 = vmatmul.mubr.f32.gmra.mrb[0].mxu0 %v5770
      %v6511 = vpop.f32.mrb[0].mxu0
      %v6512 = vadd.f32 %v6127, %v6511
      %v6513 = vpop.f32.mrb[0].mxu0
      %6514 = vmatprep.mubr.f32.mxu0 0.0
      %6515 = vmatmul.mubr.f32.gmra.mrb[0].mxu0 %v5773
      %v6516 = vpop.f32.mrb[0].mxu0
      %v6517 = vadd.f32 %v6132, %v6516
      %v6518 = vpop.f32.mrb[0].mxu0
      %6519 = vmatprep.mubr.f32.mxu0 0.0
      %6520 = vmatmul.mubr.f32.gmra.mrb[0].mxu0 %v5776
      %v6521 = vpop.f32.mrb[0].mxu0
      %v6522 = vadd.f32 %v6137, %v6521
      %v6523 = vpop.f32.mrb[0].mxu0
      %6524 = vmatprep.mubr.f32.mxu0 0.0
      %6525 = vmatmul.mubr.f32.gmra.mrb[0].mxu0 %v5779
      %v6526 = vpop.f32.mrb[0].mxu0
      %v6527 = vadd.f32 %v6142, %v6526
      %v6528 = vpop.f32.mrb[0].mxu0
      %6529 = vmatprep.mubr.f32.mxu0 0.0
      %6530 = vmatmul.mubr.f32.gmra.mrb[0].mxu0 %v5782
      %v6531 = vpop.f32.mrb[0].mxu0
      %v6532 = vadd.f32 %v6147, %v6531
      %v6533 = vpop.f32.mrb[0].mxu0
      %6534 = vmatprep.mubr.f32.mxu0 0.0
      %6535 = vmatmul.mubr.f32.gmra.mrb[0].mxu0 %v5785
      %v6536 = vpop.f32.mrb[0].mxu0
      %v6537 = vadd.f32 %v6152, %v6536
      %v6538 = vpop.f32.mrb[0].mxu0
      %6539 = vmatprep.mubr.f32.mxu0 0.0
      %6540 = vmatmul.mubr.f32.gmra.mrb[0].mxu0 %v5788
      %v6541 = vpop.f32.mrb[0].mxu0
      %v6542 = vadd.f32 %v6157, %v6541
      %v6543 = vpop.f32.mrb[0].mxu0
      %6544 = vmatprep.mubr.f32.mxu0 0.0
      %6545 = vmatmul.mubr.f32.gmra.mrb[0].mxu0 %v5791
      %v6546 = vpop.f32.mrb[0].mxu0
      %v6547 = vadd.f32 %v6162, %v6546
      %v6548 = vpop.f32.mrb[0].mxu0
      %6549 = vmatprep.mubr.f32.mxu0 0.0
      %6550 = vmatmul.mubr.f32.gmra.mrb[0].mxu0 %v5794
      %v6551 = vpop.f32.mrb[0].mxu0
      %v6552 = vadd.f32 %v6167, %v6551
      %v6553 = vpop.f32.mrb[0].mxu0
      %6554 = vmatprep.mubr.f32.mxu0 0.0
      %6555 = vmatmul.mubr.f32.gmra.mrb[0].mxu0 %v5797
      %v6556 = vpop.f32.mrb[0].mxu0
      %v6557 = vadd.f32 %v6172, %v6556
      %v6558 = vpop.f32.mrb[0].mxu0
      %6559 = vmatprep.mubr.f32.mxu0 0.0
      %6560 = vmatmul.mubr.f32.gmra.mrb[0].mxu0 %v5800
      %v6561 = vpop.f32.mrb[0].mxu0
      %v6562 = vadd.f32 %v6177, %v6561
      %v6563 = vpop.f32.mrb[0].mxu0
      %6564 = vmatprep.mubr.f32.mxu0 0.0
      %6565 = vmatmul.mubr.f32.gmra.mrb[0].mxu0 %v5803
      %v6566 = vpop.f32.mrb[0].mxu0
      %v6567 = vadd.f32 %v6182, %v6566
      %v6568 = vpop.f32.mrb[0].mxu0
      %6569 = vmatprep.mubr.f32.mxu0 0.0
      %6570 = vmatmul.mubr.f32.gmra.mrb[0].mxu0 %v5806
      %v6571 = vpop.f32.mrb[0].mxu0
      %v6572 = vadd.f32 %v6187, %v6571
      %v6573 = vpop.f32.mrb[0].mxu0
      %6574 = vmatprep.mubr.f32.mxu0 0.0
      %6575 = vmatmul.mubr.f32.gmra.mrb[0].mxu0 %v5809
      %v6576 = vpop.f32.mrb[0].mxu0
      %v6577 = vadd.f32 %v6192, %v6576
      %v6578 = vpop.f32.mrb[0].mxu0
      %6579 = vmatprep.mubr.f32.mxu0 0.0
      %6580 = vmatmul.mubr.f32.gmra.mrb[0].mxu0 %v5812
      %v6581 = vpop.f32.mrb[0].mxu0
      %v6582 = vadd.f32 %v6197, %v6581
      %v6583 = vpop.f32.mrb[0].mxu0
      %6584 = vmatprep.mubr.f32.mxu0 0.0
      %6585 = vmatmul.mubr.f32.gmra.mrb[0].mxu0 %v5815
      %v6586 = vpop.f32.mrb[0].mxu0
      %v6587 = vadd.f32 %v6202, %v6586
      %v6588 = vpop.f32.mrb[0].mxu0
      %6589 = vmatprep.mubr.f32.mxu0 0.0
      %6590 = vmatmul.mubr.f32.gmra.mrb[0].mxu0 %v5818
      %v6591 = vpop.f32.mrb[0].mxu0
      %v6592 = vadd.f32 %v6207, %v6591
      %v6593 = vpop.f32.mrb[0].mxu0
      %6594 = vmatprep.mubr.f32.mxu0 0.0
      %6595 = vmatmul.mubr.f32.gmra.mrb[0].mxu0 %v5821
      %v6596 = vpop.f32.mrb[0].mxu0
      %v6597 = vadd.f32 %v6212, %v6596
      %v6598 = vpop.f32.mrb[0].mxu0
      %6599 = vmatprep.mubr.f32.mxu0 0.0
      %6600 = vmatmul.mubr.f32.gmra.mrb[0].mxu0 %v5824
      %v6601 = vpop.f32.mrb[0].mxu0
      %v6602 = vadd.f32 %v6217, %v6601
      %v6603 = vpop.f32.mrb[0].mxu0
      %6604 = vmatprep.mubr.f32.mxu0 0.0
      %6605 = vmatmul.mubr.f32.gmra.mrb[0].mxu0 %v5827
      %v6606 = vpop.f32.mrb[0].mxu0
      %v6607 = vadd.f32 %v6222, %v6606
      %v6608 = vpop.f32.mrb[0].mxu0
      %6609 = vmatprep.mubr.f32.mxu0 0.0
      %6610 = vmatmul.mubr.f32.gmra.mrb[0].mxu0 %v5830
      %v6611 = vpop.f32.mrb[0].mxu0
      %v6612 = vadd.f32 %v6227, %v6611
      %v6613 = vpop.f32.mrb[0].mxu0
      %6614 = vmatprep.mubr.f32.mxu0 0.0
      %6615 = vmatmul.mubr.f32.gmra.mrb[0].mxu0 %v5833
      %v6616 = vpop.f32.mrb[0].mxu0
      %v6617 = vadd.f32 %v6232, %v6616
      %v6618 = vpop.f32.mrb[0].mxu0
      %6619 = vmatprep.mubr.f32.mxu0 0.0
      %6620 = vmatmul.mubr.f32.gmra.mrb[0].mxu0 %v5836
      %v6621 = vpop.f32.mrb[0].mxu0
      %v6622 = vadd.f32 %v6237, %v6621
      %v6623 = vpop.f32.mrb[0].mxu0
      %6624 = vmatprep.mubr.f32.mxu0 0.0
      %6625 = vmatmul.mubr.f32.gmra.mrb[0].mxu0 %v5839
      %v6626 = vpop.f32.mrb[0].mxu0
      %v6627 = vadd.f32 %v6242, %v6626
      %v6628 = vpop.f32.mrb[0].mxu0
      %6629 = vmatprep.mubr.f32.mxu0 0.0
      %6630 = vmatmul.mubr.f32.gmra.mrb[0].mxu0 %v5842
      %v6631 = vpop.f32.mrb[0].mxu0
      %v6632 = vadd.f32 %v6247, %v6631
      %v6633 = vpop.f32.mrb[0].mxu0
      %6634 = vmatprep.mubr.f32.mxu0 0.0
      %6635 = vmatmul.mubr.f32.gmra.mrb[0].mxu0 %v5845
      %v6636 = vpop.f32.mrb[0].mxu0
      %v6637 = vadd.f32 %v6252, %v6636
      %v6638 = vpop.f32.mrb[0].mxu0
      %6639 = vmatprep.mubr.f32.mxu0 0.0
      %6640 = vmatmul.mubr.f32.gmra.mrb[0].mxu0 %v5848
      %v6641 = vpop.f32.mrb[0].mxu0
      %v6642 = vadd.f32 %v6257, %v6641
      %v6643 = vpop.f32.mrb[0].mxu0
      %6644 = vmatprep.mubr.f32.mxu0 0.0
      %6645 = vmatmul.mubr.f32.gmra.mrb[0].mxu0 %v5851
      %v6646 = vpop.f32.mrb[0].mxu0
      %v6647 = vadd.f32 %v6262, %v6646
      %v6648 = vpop.f32.mrb[0].mxu0
      %6649 = vmatprep.mubr.f32.mxu0 0.0
      %6650 = vmatmul.mubr.f32.gmra.mrb[0].mxu0 %v5854
      %v6651 = vpop.f32.mrb[0].mxu0
      %v6652 = vadd.f32 %v6267, %v6651
      %v6653 = vpop.f32.mrb[0].mxu0
      %6654 = vmatprep.mubr.f32.mxu0 0.0
      %6655 = vmatmul.mubr.f32.gmra.mrb[0].mxu0 %v5857
      %v6656 = vpop.f32.mrb[0].mxu0
      %v6657 = vadd.f32 %v6272, %v6656
      %v6658 = vpop.f32.mrb[0].mxu0
      %6659 = vmatprep.mubr.f32.mxu0 0.0
      %6660 = vmatmul.mubr.f32.gmra.mrb[0].mxu0 %v5860
      %v6661 = vpop.f32.mrb[0].mxu0
      %v6662 = vadd.f32 %v6277, %v6661
      %v6663 = vpop.f32.mrb[0].mxu0
      %6664 = vmatprep.mubr.f32.mxu0 0.0
      %6665 = vmatmul.mubr.f32.gmra.mrb[0].mxu0 %v5863
      %v6666 = vpop.f32.mrb[0].mxu0
      %v6667 = vadd.f32 %v6282, %v6666
      %v6668 = vpop.f32.mrb[0].mxu0
      %6669 = vmatprep.mubr.f32.mxu0 0.0
      %6670 = vmatmul.mubr.f32.gmra.mrb[0].mxu0 %v5866
      %v6671 = vpop.f32.mrb[0].mxu0
      %v6672 = vadd.f32 %v6287, %v6671
      %v6673 = vpop.f32.mrb[0].mxu0
      %6674 = vmatprep.mubr.f32.mxu0 0.0
      %6675 = vmatmul.mubr.f32.gmra.mrb[0].mxu0 %v5869
      %v6676 = vpop.f32.mrb[0].mxu0
      %v6677 = vadd.f32 %v6292, %v6676
      %v6678 = vpop.f32.mrb[0].mxu0
      %6679 = vmatprep.mubr.f32.mxu0 0.0
      %6680 = vmatmul.mubr.f32.gmra.mrb[0].mxu0 %v5872
      %v6681 = vpop.f32.mrb[0].mxu0
      %v6682 = vadd.f32 %v6297, %v6681
      %v6683 = vpop.f32.mrb[0].mxu0
      %6684 = vmatprep.mubr.f32.mxu0 0.0
      %6685 = vmatmul.mubr.f32.gmra.mrb[0].mxu0 %v5875
      %v6686 = vpop.f32.mrb[0].mxu0
      %v6687 = vadd.f32 %v6302, %v6686
      %v6688 = vpop.f32.mrb[0].mxu0
      %6689 = vmatprep.mubr.f32.mxu0 0.0
      %6690 = vmatmul.mubr.f32.gmra.mrb[0].mxu0 %v5878
      %v6691 = vpop.f32.mrb[0].mxu0
      %v6692 = vadd.f32 %v6307, %v6691
      %v6693 = vpop.f32.mrb[0].mxu0
      %6694 = vmatprep.mubr.f32.mxu0 0.0
      %6695 = vmatmul.mubr.f32.gmra.mrb[0].mxu0 %v5881
      %v6696 = vpop.f32.mrb[0].mxu0
      %v6697 = vadd.f32 %v6312, %v6696
      %v6698 = vpop.f32.mrb[0].mxu0
      %6699 = vdwg.mxu0
      %v6700 = vsel %vm3359, %v6382, 1.0
      %v6701 = vsel %vm3359, %v6387, 1.0
      %v6702 = vsel %vm3359, %v6392, 1.0
      %v6703 = vsel %vm3359, %v6397, 1.0
      %v6704 = vsel %vm3359, %v6402, 1.0
      %v6705 = vsel %vm3359, %v6407, 1.0
      %v6706 = vsel %vm3359, %v6412, 1.0
      %v6707 = vsel %vm3359, %v6417, 1.0
      %v6708 = vsel %vm3359, %v6422, 1.0
      %v6709 = vsel %vm3359, %v6427, 1.0
      %v6710 = vsel %vm3359, %v6432, 1.0
      %v6711 = vsel %vm3359, %v6437, 1.0
      %v6712 = vsel %vm3359, %v6442, 1.0
      %v6713 = vsel %vm3359, %v6447, 1.0
      %v6714 = vsel %vm3359, %v6452, 1.0
      %v6715 = vsel %vm3359, %v6457, 1.0
      %v6716 = vsel %vm3359, %v6462, 1.0
      %v6717 = vsel %vm3359, %v6467, 1.0
      %v6718 = vsel %vm3359, %v6472, 1.0
      %v6719 = vsel %vm3359, %v6477, 1.0
      %v6720 = vsel %vm3359, %v6482, 1.0
      %v6721 = vsel %vm3359, %v6487, 1.0
      %v6722 = vsel %vm3359, %v6492, 1.0
      %v6723 = vsel %vm3359, %v6497, 1.0
      %v6724 = vsel %vm3359, %v6502, 1.0
      %v6725 = vsel %vm3359, %v6507, 1.0
      %v6726 = vsel %vm3359, %v6512, 1.0
      %v6727 = vsel %vm3359, %v6517, 1.0
      %v6728 = vsel %vm3359, %v6522, 1.0
      %v6729 = vsel %vm3359, %v6527, 1.0
      %v6730 = vsel %vm3359, %v6532, 1.0
      %v6731 = vsel %vm3359, %v6537, 1.0
      %v6732 = vsel %vm3359, %v6542, 1.0
      %v6733 = vsel %vm3359, %v6547, 1.0
      %v6734 = vsel %vm3359, %v6552, 1.0
      %v6735 = vsel %vm3359, %v6557, 1.0
      %v6736 = vsel %vm3359, %v6562, 1.0
      %v6737 = vsel %vm3359, %v6567, 1.0
      %v6738 = vsel %vm3359, %v6572, 1.0
      %v6739 = vsel %vm3359, %v6577, 1.0
      %v6740 = vsel %vm3359, %v6582, 1.0
      %v6741 = vsel %vm3359, %v6587, 1.0
      %v6742 = vsel %vm3359, %v6592, 1.0
      %v6743 = vsel %vm3359, %v6597, 1.0
      %v6744 = vsel %vm3359, %v6602, 1.0
      %v6745 = vsel %vm3359, %v6607, 1.0
      %v6746 = vsel %vm3359, %v6612, 1.0
      %v6747 = vsel %vm3359, %v6617, 1.0
      %v6748 = vsel %vm3359, %v6622, 1.0
      %v6749 = vsel %vm3359, %v6627, 1.0
      %v6750 = vsel %vm3359, %v6632, 1.0
      %v6751 = vsel %vm3359, %v6637, 1.0
      %v6752 = vsel %vm3359, %v6642, 1.0
      %v6753 = vsel %vm3359, %v6647, 1.0
      %v6754 = vsel %vm3359, %v6652, 1.0
      %v6755 = vsel %vm3359, %v6657, 1.0
      %v6756 = vsel %vm3359, %v6662, 1.0
      %v6757 = vsel %vm3359, %v6667, 1.0
      %v6758 = vsel %vm3359, %v6672, 1.0
      %v6759 = vsel %vm3359, %v6677, 1.0
      %v6760 = vsel %vm3359, %v6682, 1.0
      %v6761 = vsel %vm3359, %v6687, 1.0
      %v6762 = vsel %vm3359, %v6692, 1.0
      %v6763 = vsel %vm3359, %v6697, 1.0
      %v6764 = vld [vmem:[%s508] sm:$0xf]
      %v6765 = vlaneseq
      %v6766 = vshrl.u32 %v6765, 7
      %v6767 = vadd.s32 %v6766, 8
      %v6768 = vadd.s32 %v6766, 16
      %v6769 = vlaneseq
      %v6770 = vshrl.u32 %v6769, 7
      %v6771 = vsub.s32 0, %v6770
      %v6772 = vrot.slane %v6764, %v6771
      %v6773 = vlaneseq
      %v6774 = vshrl.u32 %v6773, 7
      %v6775 = vsub.s32 1, %v6774
      %v6776 = vrot.slane %v6764, %v6775
      %v6777 = vlaneseq
      %v6778 = vshrl.u32 %v6777, 7
      %v6779 = vsub.s32 2, %v6778
      %v6780 = vrot.slane %v6764, %v6779
      %v6781 = vlaneseq
      %v6782 = vshrl.u32 %v6781, 7
      %v6783 = vsub.s32 3, %v6782
      %v6784 = vrot.slane %v6764, %v6783
      %vm6785 = vcmp.eq.s32.totalorder %v6766, %v6772
      %vm6786 = vcmp.eq.s32.totalorder %v6766, %v6776
      %vm6787 = vcmp.eq.s32.totalorder %v6766, %v6780
      %vm6788 = vcmp.eq.s32.totalorder %v6766, %v6784
      %vm6789 = vcmp.eq.s32.totalorder %v6767, %v6772
      %vm6790 = vcmp.eq.s32.totalorder %v6767, %v6776
      %vm6791 = vcmp.eq.s32.totalorder %v6767, %v6780
      %vm6792 = vcmp.eq.s32.totalorder %v6767, %v6784
      %vm6793 = vcmp.eq.s32.totalorder %v6768, %v6772
      %vm6794 = vcmp.eq.s32.totalorder %v6768, %v6776
      %vm6795 = vcmp.eq.s32.totalorder %v6768, %v6780
      %vm6796 = vcmp.eq.s32.totalorder %v6768, %v6784
      %v6797 = vsel %vm6785, 1, 0
      %v6798 = vsel %vm6786, 1, 0
      %v6799 = vsel %vm6787, 1, 0
      %v6800 = vsel %vm6788, 1, 0
      %v6801 = vsel %vm6789, 1, 0
      %v6802 = vsel %vm6790, 1, 0
      %v6803 = vsel %vm6791, 1, 0
      %v6804 = vsel %vm6792, 1, 0
      %v6805 = vsel %vm6793, 1, 0
      %v6806 = vsel %vm6794, 1, 0
      %v6807 = vsel %vm6795, 1, 0
      %v6808 = vsel %vm6796, 1, 0
      %v6809 = vcvt.s32.f32 %v6797
      %v6810 = vcvt.s32.f32 %v6798
      %v6811 = vcvt.s32.f32 %v6799
      %v6812 = vcvt.s32.f32 %v6800
      %v6813 = vcvt.s32.f32 %v6801
      %v6814 = vcvt.s32.f32 %v6802
      %v6815 = vcvt.s32.f32 %v6803
      %v6816 = vcvt.s32.f32 %v6804
      %v6817 = vcvt.s32.f32 %v6805
      %v6818 = vcvt.s32.f32 %v6806
      %v6819 = vcvt.s32.f32 %v6807
      %v6820 = vcvt.s32.f32 %v6808
      %v6821 = vld [vmem:[%s546] sm:$0xff]
      %v6822 = vld [vmem:[%s546 + $0x8] sm:$0xff]
      %v6823 = vld [vmem:[%s546 + $0x10] sm:$0xff]
      %6824 = vmatprep.subr.mxu0 0.0
      %6825 = vmatpush1.msra.mxu0 %v6700
      %6826 = vmatprep.subr.mxu0 0.0
      %6827 = vmatpush1.msra.mxu0 %v6701
      %6828 = vmatprep.subr.mxu0 0.0
      %6829 = vmatpush1.msra.mxu0 %v6702
      %6830 = vmatprep.subr.mxu0 0.0
      %6831 = vmatpush1.msra.mxu0 %v6703
      %6832 = vmatprep.subr.mxu0 0.0
      %6833 = vmatpush1.msra.mxu0 %v6704
      %6834 = vmatprep.subr.mxu0 0.0
      %6835 = vmatpush1.msra.mxu0 %v6705
      %6836 = vmatprep.subr.mxu0 0.0
      %6837 = vmatpush1.msra.mxu0 %v6706
      %6838 = vmatprep.subr.mxu0 0.0
      %6839 = vmatpush1.msra.mxu0 %v6707
      %6840 = vmatprep.subr.mxu0 0.0
      %6841 = vmatpush1.msra.mxu0 %v6708
      %6842 = vmatprep.subr.mxu0 0.0
      %6843 = vmatpush1.msra.mxu0 %v6709
      %6844 = vmatprep.subr.mxu0 0.0
      %6845 = vmatpush1.msra.mxu0 %v6710
      %6846 = vmatprep.subr.mxu0 0.0
      %6847 = vmatpush1.msra.mxu0 %v6711
      %6848 = vmatprep.subr.mxu0 0.0
      %6849 = vmatpush1.msra.mxu0 %v6712
      %6850 = vmatprep.subr.mxu0 0.0
      %6851 = vmatpush1.msra.mxu0 %v6713
      %6852 = vmatprep.subr.mxu0 0.0
      %6853 = vmatpush1.msra.mxu0 %v6714
      %6854 = vmatprep.subr.mxu0 0.0
      %6855 = vmatpush1.msra.mxu0 %v6715
      %6856 = vmatprep.subr.mxu0 0.0
      %6857 = vmatpush1.msra.mxu0 %v6716
      %6858 = vmatprep.subr.mxu0 0.0
      %6859 = vmatpush1.msra.mxu0 %v6717
      %6860 = vmatprep.subr.mxu0 0.0
      %6861 = vmatpush1.msra.mxu0 %v6718
      %6862 = vmatprep.subr.mxu0 0.0
      %6863 = vmatpush1.msra.mxu0 %v6719
      %6864 = vmatprep.subr.mxu0 0.0
      %6865 = vmatpush1.msra.mxu0 %v6720
      %6866 = vmatprep.subr.mxu0 0.0
      %6867 = vmatpush1.msra.mxu0 %v6721
      %6868 = vmatprep.subr.mxu0 0.0
      %6869 = vmatpush1.msra.mxu0 %v6722
      %6870 = vmatprep.subr.mxu0 0.0
      %6871 = vmatpush1.msra.mxu0 %v6723
      %6872 = vmatprep.subr.mxu0 0.0
      %6873 = vmatpush1.msra.mxu0 %v6724
      %6874 = vmatprep.subr.mxu0 0.0
      %6875 = vmatpush1.msra.mxu0 %v6725
      %6876 = vmatprep.subr.mxu0 0.0
      %6877 = vmatpush1.msra.mxu0 %v6726
      %6878 = vmatprep.subr.mxu0 0.0
      %6879 = vmatpush1.msra.mxu0 %v6727
      %6880 = vmatprep.subr.mxu0 0.0
      %6881 = vmatpush1.msra.mxu0 %v6728
      %6882 = vmatprep.subr.mxu0 0.0
      %6883 = vmatpush1.msra.mxu0 %v6729
      %6884 = vmatprep.subr.mxu0 0.0
      %6885 = vmatpush1.msra.mxu0 %v6730
      %6886 = vmatprep.subr.mxu0 0.0
      %6887 = vmatpush1.msra.mxu0 %v6731
      %6888 = vmatprep.mubr.f32.mxu0 %v6810
      %6889 = vmatmul.mubr.f32.gmra.mrb[0].mxu0 %v6809
      %v6890 = vpop.f32.mrb[0].mxu0
      %v6891 = vadd.f32 0.0, %v6890
      %v6892 = vpop.f32.mrb[0].mxu0
      %6893 = vmatprep.mubr.f32.mxu0 %v6814
      %6894 = vmatmul.mubr.f32.gmra.mrb[0].mxu0 %v6813
      %v6895 = vpop.f32.mrb[0].mxu0
      %v6896 = vadd.f32 0.0, %v6895
      %v6897 = vpop.f32.mrb[0].mxu0
      %6898 = vmatprep.mubr.f32.mxu0 %v6818
      %6899 = vmatmul.mubr.f32.gmra.mrb[0].mxu0 %v6817
      %v6900 = vpop.f32.mrb[0].mxu0
      %v6901 = vadd.f32 0.0, %v6900
      %v6902 = vpop.f32.mrb[0].mxu0
      %6903 = vdwg.mxu0
      %6904 = vmatprep.subr.mxu0 0.0
      %6905 = vmatpush1.msra.mxu0 %v6732
      %6906 = vmatprep.subr.mxu0 0.0
      %6907 = vmatpush1.msra.mxu0 %v6733
      %6908 = vmatprep.subr.mxu0 0.0
      %6909 = vmatpush1.msra.mxu0 %v6734
      %6910 = vmatprep.subr.mxu0 0.0
      %6911 = vmatpush1.msra.mxu0 %v6735
      %6912 = vmatprep.subr.mxu0 0.0
      %6913 = vmatpush1.msra.mxu0 %v6736
      %6914 = vmatprep.subr.mxu0 0.0
      %6915 = vmatpush1.msra.mxu0 %v6737
      %6916 = vmatprep.subr.mxu0 0.0
      %6917 = vmatpush1.msra.mxu0 %v6738
      %6918 = vmatprep.subr.mxu0 0.0
      %6919 = vmatpush1.msra.mxu0 %v6739
      %6920 = vmatprep.subr.mxu0 0.0
      %6921 = vmatpush1.msra.mxu0 %v6740
      %6922 = vmatprep.subr.mxu0 0.0
      %6923 = vmatpush1.msra.mxu0 %v6741
      %6924 = vmatprep.subr.mxu0 0.0
      %6925 = vmatpush1.msra.mxu0 %v6742
      %6926 = vmatprep.subr.mxu0 0.0
      %6927 = vmatpush1.msra.mxu0 %v6743
      %6928 = vmatprep.subr.mxu0 0.0
      %6929 = vmatpush1.msra.mxu0 %v6744
      %6930 = vmatprep.subr.mxu0 0.0
      %6931 = vmatpush1.msra.mxu0 %v6745
      %6932 = vmatprep.subr.mxu0 0.0
      %6933 = vmatpush1.msra.mxu0 %v6746
      %6934 = vmatprep.subr.mxu0 0.0
      %6935 = vmatpush1.msra.mxu0 %v6747
      %6936 = vmatprep.subr.mxu0 0.0
      %6937 = vmatpush1.msra.mxu0 %v6748
      %6938 = vmatprep.subr.mxu0 0.0
      %6939 = vmatpush1.msra.mxu0 %v6749
      %6940 = vmatprep.subr.mxu0 0.0
      %6941 = vmatpush1.msra.mxu0 %v6750
      %6942 = vmatprep.subr.mxu0 0.0
      %6943 = vmatpush1.msra.mxu0 %v6751
      %6944 = vmatprep.subr.mxu0 0.0
      %6945 = vmatpush1.msra.mxu0 %v6752
      %6946 = vmatprep.subr.mxu0 0.0
      %6947 = vmatpush1.msra.mxu0 %v6753
      %6948 = vmatprep.subr.mxu0 0.0
      %6949 = vmatpush1.msra.mxu0 %v6754
      %6950 = vmatprep.subr.mxu0 0.0
      %6951 = vmatpush1.msra.mxu0 %v6755
      %6952 = vmatprep.subr.mxu0 0.0
      %6953 = vmatpush1.msra.mxu0 %v6756
      %6954 = vmatprep.subr.mxu0 0.0
      %6955 = vmatpush1.msra.mxu0 %v6757
      %6956 = vmatprep.subr.mxu0 0.0
      %6957 = vmatpush1.msra.mxu0 %v6758
      %6958 = vmatprep.subr.mxu0 0.0
      %6959 = vmatpush1.msra.mxu0 %v6759
      %6960 = vmatprep.subr.mxu0 0.0
      %6961 = vmatpush1.msra.mxu0 %v6760
      %6962 = vmatprep.subr.mxu0 0.0
      %6963 = vmatpush1.msra.mxu0 %v6761
      %6964 = vmatprep.subr.mxu0 0.0
      %6965 = vmatpush1.msra.mxu0 %v6762
      %6966 = vmatprep.subr.mxu0 0.0
      %6967 = vmatpush1.msra.mxu0 %v6763
      %6968 = vmatprep.mubr.f32.mxu0 %v6812
      %6969 = vmatmul.mubr.f32.gmra.mrb[0].mxu0 %v6811
      %v6970 = vpop.f32.mrb[0].mxu0
      %v6971 = vadd.f32 %v6891, %v6970
      %v6972 = vpop.f32.mrb[0].mxu0
      %6973 = vmatprep.mubr.f32.mxu0 %v6816
      %6974 = vmatmul.mubr.f32.gmra.mrb[0].mxu0 %v6815
      %v6975 = vpop.f32.mrb[0].mxu0
      %v6976 = vadd.f32 %v6896, %v6975
      %v6977 = vpop.f32.mrb[0].mxu0
      %6978 = vmatprep.mubr.f32.mxu0 %v6820
      %6979 = vmatmul.mubr.f32.gmra.mrb[0].mxu0 %v6819
      %v6980 = vpop.f32.mrb[0].mxu0
      %v6981 = vadd.f32 %v6901, %v6980
      %v6982 = vpop.f32.mrb[0].mxu0
      %6983 = vdwg.mxu0
      %v6984 = vadd.f32 %v6821, %v6971
      %v6985 = vadd.f32 %v6822, %v6976
      %v6986 = vadd.f32 %v6823, %v6981
      %vm6987 = vcmask 171008
      %6988 = vst.msk [vmem:[%s546] sm:$0xff] %vm6987, %v6984
      %6989 = vst.msk [vmem:[%s546 + $0x8] sm:$0xff] %vm6987, %v6985
      %6990 = vst.msk [vmem:[%s546 + $0x10] sm:$0xff] %vm6987, %v6986
      %p6991 = scmp.lt.s32.totalorder %s27, 1
      %s6992 = scalar_select %p6991, %s27, 1
      %s6993 = smul.addr %s6992, 3
      %s6994 = smul.addr %s6993, 8
      %s6995 = scalar_lea.vmem %s12, %s6994
      // Predicated region
      $region73: #{tpu_custom_call.1} parent=67 // pred_check
        %p6996 = pneg %p341
      $region74: #{tpu_custom_call.1} parent=67 // pred_check_branch
        %6998 = sbr.rel (%p6996) target = $region76
      $region75: #{tpu_custom_call.1} parent=67 // pred_region
        _
      $region76: #{tpu_custom_call.1} parent=67 // pred_fallthru
        _
    $region68: #{tpu_custom_call.1} parent=5 // pred_fallthru
      _
    %p6999 = scmp.le.s32.totalorder 2, %s18
    // Predicated region
    $region77: #{tpu_custom_call.1} parent=5 // pred_check
      %p7000 = pneg %p6999
    $region78: #{tpu_custom_call.1} parent=5 // pred_check_branch
      %7002 = sbr.rel (%p7000) target = $region80
    $region79: #{tpu_custom_call.1} parent=5 // pred_region
      %s7003 = ssub.s32 %s18, 2
      // Predicated region
      $region81: #{tpu_custom_call.1} parent=79 // pred_check
        %p7004 = pneg %p347
      $region82: #{tpu_custom_call.1} parent=79 // pred_check_branch
        %7006 = sbr.rel (%p7004) target = $region84
      $region83: #{tpu_custom_call.1} parent=79 // pred_region
        %p7007 = scmp.lt.s32.totalorder %s29, 1
        %s7008 = scalar_select %p7007, %s29, 1
        %s7009 = smul.addr %s7008, 3
        %s7010 = smul.addr %s7009, 8
        %s7011 = scalar_lea.vmem %s12, %s7010
      $region84: #{tpu_custom_call.1} parent=79 // pred_fallthru
        _
    $region80: #{tpu_custom_call.1} parent=5 // pred_fallthru
      _
  $region6: #{tpu_custom_call.1} parent=0 // loop_footer
    %s22 = sadd.s32 1, %s18
  $region7: #{tpu_custom_call.1} parent=0 // loop_footer_branch
    %17 = sbr.rel target = $region3
  $region8: #{tpu_custom_call.1} parent=0 // loop_exit
    _

</llo_original>
